<compile_context>
chip_gen: v6e
topology: v6e:2x2x1
jax: 0.10.0
libtpu: 0.0.40
codegen_flags: <defaults>
</compile_context>

<pallas_src>
import functools

import jax
import jax.numpy as jnp
import numpy as np
from jax.experimental import pallas as pl
from jax.experimental.pallas import tpu as pltpu


def _attention_kernel(
    feats_ref,     # (nT*nB, nC)   flattened feats, resident for the whole call
    w_i2h_ref,     # (nC, H)       i2h weight (transposed)
    w_hid_ref,     # (H, 4H)       [h2h | GRU weight_hh] fused (transposed)
    b_hid_ref,     # (1, 4H)       [b_h2h | b_hh] fused
    w_score_ref,   # (H, 1)        score weight (transposed)
    w_ih_ref,      # (nC, 3H)      GRU input weights (transposed)
    b_ih_ref,      # (1, 3H)
    w_gen_ref,     # (H, nclass)   generator weight (transposed)
    b_gen_ref,     # (1, nclass)
    sel_ref,       # (nB, nT*nB)   sel[b, t*nB + b] = 1 (per-batch row select)
    probs_ref,     # out block: (max_length*nB, nclass)
    hseq_ref,      # scratch VMEM: (max_length*nB, H) decoded hidden states
    *, nT, nB, H, max_length,
):
    f32 = jnp.float32

    # ---- loop-invariant work, done once ----
    feats = feats_ref[...]                                        # (nT*nB, nC)
    feats_proj = jnp.dot(feats, w_i2h_ref[...],
                         preferred_element_type=f32)              # (nT*nB, H)
    w_hid, b_hid = w_hid_ref[...], b_hid_ref[...]
    w_score = w_score_ref[...]
    w_ih, b_ih = w_ih_ref[...], b_ih_ref[...]
    sel = sel_ref[...]                                            # (nB, nT*nB)

    # hidden = zeros at the first decode step (torch: Variable(torch.zeros()))
    hidden = jnp.zeros((nB, H), f32)

    # ---- fully-unrolled sequential decode loop (GRU recurrence is serial) ----
    for t in range(max_length):
        # Fused hidden matmul: [h2h(hidden) | weight_hh @ hidden] in one push.
        # NOTE: gate slices below are mid-vreg lane slices (H=32); keep an eye
        # on the bundle dump for lane-shift relayouts before re-fusing further.
        hg = jnp.dot(hidden, w_hid, preferred_element_type=f32) + b_hid  # (nB,4H)
        hp = hg[:, :H]                                            # h2h(prev)  (nB, H)
        gh = hg[:, H:]                                            # GRU h gates (nB, 3H)

        # ---- AttentionCell ----
        th = jnp.tanh(feats_proj + jnp.tile(hp, (nT, 1)))         # (nT*nB, H)
        e = jnp.dot(th, w_score, preferred_element_type=f32)      # (nT*nB, 1)
        # Softmax over t per batch: a global max is constant within each group,
        # so it is a valid stabiliser (same function as per-column max).
        p = jnp.exp(e - jnp.max(e, keepdims=True))                # (nT*nB, 1)
        pw = feats * p                                            # (nT*nB, nC)
        ctx_un = jnp.dot(sel, pw, preferred_element_type=f32)     # (nB, nC) unnormalised
        denom = jnp.dot(sel, p, preferred_element_type=f32)       # (nB, 1)

        # GRUCell(context, hidden); PyTorch gate order (r, z, n).
        # Normalisation by 1/denom folded after the w_ih matmul (row scaling
        # commutes with right-matmul), so the EUP reciprocal overlaps the push.
        gi = (jnp.dot(ctx_un, w_ih, preferred_element_type=f32)
              * pl.reciprocal(denom, approx=True) + b_ih)         # (nB, 3H)
        r = jax.nn.sigmoid(gi[:, 0 * H:1 * H] + gh[:, 0 * H:1 * H])
        z = jax.nn.sigmoid(gi[:, 1 * H:2 * H] + gh[:, 1 * H:2 * H])
        n = jnp.tanh(gi[:, 2 * H:3 * H] + r * gh[:, 2 * H:3 * H])
        hidden = (1.0 - z) * n + z * hidden                       # (nB, H)

        # Static-offset store; generator deferred out of the loop.
        hseq_ref[pl.ds(t * nB, nB), :] = hidden

    # ---- Attention.generator: one big matmul over all decoded hiddens ----
    probs_ref[...] = jnp.dot(hseq_ref[...], w_gen_ref[...],
                             preferred_element_type=f32) + b_gen_ref[...]

    # TODO(synk): the PyTorch early break `if key_value.item() == 112` is a
    # data-dependent host-side break; with num_classes <= 112 the argmax can
    # never equal 112, so running all max_length steps is semantically equal.


def attention_forward(feats, params, max_length):
    """feats: (nT, nB, nC) float32. Returns probs (nB, max_length, nclass)."""
    nT, nB, nC = feats.shape
    H = params["w_h2h"].shape[0]
    nclass = params["w_gen"].shape[0]

    # Flatten (nT, nB) -> row index t*nB + b (row-major), keep everything 2-D.
    feats_flat = feats.reshape(nT * nB, nC)
    # Fuse the two hidden-state matmuls: hidden @ [w_h2h.T | w_hh.T].
    w_hid = jnp.concatenate([params["w_h2h"].T, params["w_hh"].T], axis=1)  # (H, 4H)
    b_hid = jnp.concatenate([params["b_h2h"], params["b_hh"]])[None, :]     # (1, 4H)
    # Per-batch select matrix for the strided (over t) reductions.
    sel = (jnp.arange(nT * nB)[None, :] % nB ==
           jnp.arange(nB)[:, None]).astype(jnp.float32)                     # (nB, nT*nB)

    args = (
        feats_flat,                 # (nT*nB, nC)
        params["w_i2h"].T,          # (nC, H)
        w_hid,                      # (H, 4H)
        b_hid,                      # (1, 4H)
        params["w_score"].T,        # (H, 1)
        params["w_ih"].T,           # (nC, 3H)
        params["b_ih"][None, :],    # (1, 3H)
        params["w_gen"].T,          # (H, nclass)
        params["b_gen"][None, :],   # (1, nclass)
        sel,                        # (nB, nT*nB)
    )

    kernel = functools.partial(_attention_kernel, nT=nT, nB=nB, H=H,
                               max_length=max_length)

    in_specs = [pl.BlockSpec(a.shape, lambda i: (0, 0)) for a in args]

    # TODO(synk): for production sizes, single-buffer feats (grid=(1,) gains
    # nothing from double buffering), set vmem_limit_bytes so resident feats +
    # feats_proj fit v7x's 64 MiB VMEM, and feed bf16 operands to the dots on
    # v6e/v7x (f32 accumulation via preferred_element_type).
    out = pl.pallas_call(
        kernel,
        out_shape=jax.ShapeDtypeStruct((max_length * nB, nclass), jnp.float32),
        grid_spec=pltpu.PrefetchScalarGridSpec(
            num_scalar_prefetch=0,
            grid=(1,),                                  # single invocation; the
            in_specs=in_specs,                          # decode loop lives inside
            out_specs=pl.BlockSpec((max_length * nB, nclass), lambda i: (0, 0)),
            scratch_shapes=[pltpu.VMEM((max_length * nB, H), jnp.float32)],
        ),
        compiler_params=pltpu.CompilerParams(
            dimension_semantics=("arbitrary",)),
    )(*args)
    return jnp.transpose(out.reshape(max_length, nB, nclass), (1, 0, 2))


def reference_forward(feats, params, max_length):
    """Pure-JAX reference mirroring the PyTorch forward (lengths=None path)."""
    nT, nB, nC = feats.shape
    H = params["w_h2h"].shape[0]
    hidden = jnp.zeros((nB, H), jnp.float32)
    probs = []
    for _ in range(max_length):
        fp = jnp.einsum("tbc,hc->tbh", feats, params["w_i2h"])
        hp = hidden @ params["w_h2h"].T + params["b_h2h"]
        th = jnp.tanh(fp + hp[None])
        emition = jnp.einsum("tbh,h->tb", th, params["w_score"][0]).T
        alpha = jax.nn.softmax(emition, axis=1)
        context = jnp.einsum("tbc,bt->bc", feats, alpha)
        gi = context @ params["w_ih"].T + params["b_ih"]
        gh = hidden @ params["w_hh"].T + params["b_hh"]
        r = jax.nn.sigmoid(gi[:, :H] + gh[:, :H])
        z = jax.nn.sigmoid(gi[:, H:2 * H] + gh[:, H:2 * H])
        n = jnp.tanh(gi[:, 2 * H:] + r * gh[:, 2 * H:])
        hidden = (1.0 - z) * n + z * hidden
        probs.append(hidden @ params["w_gen"].T + params["b_gen"])
    return jnp.stack(probs, axis=1)


if __name__ == "__main__":
    # Small shapes consistent with the module's forward:
    # feats: (nT, nB, nC) with nC == input_size, hidden_size=32, nclass=32.
    nT, nB, nC = 8, 2, 32
    H, nclass = 32, 32
    max_length = 20   # Attention.max_length default

    key = jax.random.PRNGKey(0)
    ks = jax.random.split(key, 12)
    f32 = jnp.float32
    params = {
        # AttentionCell
        "w_i2h":   0.1 * jax.random.normal(ks[0], (H, nC), f32),       # Linear(nC->H, no bias)
        "w_h2h":   0.1 * jax.random.normal(ks[1], (H, H), f32),        # Linear(H->H)
        "b_h2h":   0.1 * jax.random.normal(ks[2], (H,), f32),
        "w_score": 0.1 * jax.random.normal(ks[3], (1, H), f32),        # Linear(H->1, no bias)
        "w_ih":    0.1 * jax.random.normal(ks[4], (3 * H, nC), f32),   # GRUCell weight_ih
        "b_ih":    0.1 * jax.random.normal(ks[5], (3 * H,), f32),
        "w_hh":    0.1 * jax.random.normal(ks[6], (3 * H, H), f32),    # GRUCell weight_hh
        "b_hh":    0.1 * jax.random.normal(ks[7], (3 * H,), f32),
        # Attention.generator
        "w_gen":   0.1 * jax.random.normal(ks[8], (nclass, H), f32),
        "b_gen":   0.1 * jax.random.normal(ks[9], (nclass,), f32),
    }
    feats = jax.random.normal(ks[10], (nT, nB, nC), f32)

    probs = jax.block_until_ready(attention_forward(feats, params, max_length))
    assert probs.shape == (nB, max_length, nclass)

    ref = jax.block_until_ready(reference_forward(feats, params, max_length))
    # Tolerance re-baselined for DEFAULT matmul precision + approx reciprocal
    # (was 1e-4 under jax_default_matmul_precision='highest').
    np.testing.assert_allclose(np.asarray(probs), np.asarray(ref),
                               rtol=2e-2, atol=2e-2)
    print("KERNEL_OK")
</pallas_src>

<mosaic_0001>
module attributes {stable_mosaic.version = 11 : i64} {
  func.func @_attention_kernel(%arg0: i32, %arg1: memref<16x32xf32, #tpu.memory_space<vmem>>, %arg2: memref<32x32xf32, #tpu.memory_space<vmem>>, %arg3: memref<32x128xf32, #tpu.memory_space<vmem>>, %arg4: memref<1x128xf32, #tpu.memory_space<vmem>>, %arg5: memref<32x1xf32, #tpu.memory_space<vmem>>, %arg6: memref<32x96xf32, #tpu.memory_space<vmem>>, %arg7: memref<1x96xf32, #tpu.memory_space<vmem>>, %arg8: memref<32x32xf32, #tpu.memory_space<vmem>>, %arg9: memref<1x32xf32, #tpu.memory_space<vmem>>, %arg10: memref<2x16xf32, #tpu.memory_space<vmem>>, %arg11: memref<40x32xf32, #tpu.memory_space<vmem>>, %arg12: memref<40x32xf32, #tpu.memory_space<vmem>>) attributes {dimension_semantics = [#tpu.dimension_semantics<arbitrary>], iteration_bounds = array<i64: 1>, scalar_prefetch = 0 : i64, scratch_operands = 1 : i64, tpu.core_type = #tpu.core_type<tc>, window_params = [{pipeline_mode = #tpu.pipeline_mode<synchronous>, transform_indices = @transform_0, window_bounds = array<i64: 16, 32>}, {pipeline_mode = #tpu.pipeline_mode<synchronous>, transform_indices = @transform_1, window_bounds = array<i64: 32, 32>}, {pipeline_mode = #tpu.pipeline_mode<synchronous>, transform_indices = @transform_2, window_bounds = array<i64: 32, 128>}, {pipeline_mode = #tpu.pipeline_mode<synchronous>, transform_indices = @transform_3, window_bounds = array<i64: 1, 128>}, {pipeline_mode = #tpu.pipeline_mode<synchronous>, transform_indices = @transform_4, window_bounds = array<i64: 32, 1>}, {pipeline_mode = #tpu.pipeline_mode<synchronous>, transform_indices = @transform_5, window_bounds = array<i64: 32, 96>}, {pipeline_mode = #tpu.pipeline_mode<synchronous>, transform_indices = @transform_6, window_bounds = array<i64: 1, 96>}, {pipeline_mode = #tpu.pipeline_mode<synchronous>, transform_indices = @transform_7, window_bounds = array<i64: 32, 32>}, {pipeline_mode = #tpu.pipeline_mode<synchronous>, transform_indices = @transform_8, window_bounds = array<i64: 1, 32>}, {pipeline_mode = #tpu.pipeline_mode<synchronous>, transform_indices = @transform_9, window_bounds = array<i64: 2, 16>}, {pipeline_mode = #tpu.pipeline_mode<synchronous>, transform_indices = @transform_10, window_bounds = array<i64: 40, 32>}]} {
    %c0 = arith.constant 0 : index
    %c0_0 = arith.constant 0 : index
    %0 = vector.load %arg1[%c0, %c0_0] : memref<16x32xf32, #tpu.memory_space<vmem>>, vector<16x32xf32>
    %c0_1 = arith.constant 0 : index
    %c0_2 = arith.constant 0 : index
    %1 = vector.load %arg2[%c0_1, %c0_2] : memref<32x32xf32, #tpu.memory_space<vmem>>, vector<32x32xf32>
    %cst = arith.constant dense<0.000000e+00> : vector<16x32xf32>
    %2 = tpu.matmul %0, %1, %cst {dimension_numbers = #tpu.dot_dimension_numbers<[1], [0], [0], [1], [0, 0, 1, 1], [], []>} : vector<16x32xf32>, vector<32x32xf32>, vector<16x32xf32> -> vector<16x32xf32>
    %c0_3 = arith.constant 0 : index
    %c0_4 = arith.constant 0 : index
    %3 = vector.load %arg3[%c0_3, %c0_4] : memref<32x128xf32, #tpu.memory_space<vmem>>, vector<32x128xf32>
    %c0_5 = arith.constant 0 : index
    %c0_6 = arith.constant 0 : index
    %4 = vector.load %arg4[%c0_5, %c0_6] : memref<1x128xf32, #tpu.memory_space<vmem>>, vector<1x128xf32>
    %c0_7 = arith.constant 0 : index
    %c0_8 = arith.constant 0 : index
    %5 = vector.load %arg5[%c0_7, %c0_8] : memref<32x1xf32, #tpu.memory_space<vmem>>, vector<32x1xf32>
    %c0_9 = arith.constant 0 : index
    %c0_10 = arith.constant 0 : index
    %6 = vector.load %arg6[%c0_9, %c0_10] : memref<32x96xf32, #tpu.memory_space<vmem>>, vector<32x96xf32>
    %c0_11 = arith.constant 0 : index
    %c0_12 = arith.constant 0 : index
    %7 = vector.load %arg7[%c0_11, %c0_12] : memref<1x96xf32, #tpu.memory_space<vmem>>, vector<1x96xf32>
    %c0_13 = arith.constant 0 : index
    %c0_14 = arith.constant 0 : index
    %8 = vector.load %arg10[%c0_13, %c0_14] : memref<2x16xf32, #tpu.memory_space<vmem>>, vector<2x16xf32>
    %cst_15 = arith.constant 0.000000e+00 : f32
    %9 = vector.broadcast %cst_15 : f32 to vector<2x32xf32>
    %cst_16 = arith.constant dense<0.000000e+00> : vector<2x128xf32>
    %10 = tpu.matmul %9, %3, %cst_16 {dimension_numbers = #tpu.dot_dimension_numbers<[1], [0], [0], [1], [0, 0, 1, 1], [], []>} : vector<2x32xf32>, vector<32x128xf32>, vector<2x128xf32> -> vector<2x128xf32>
    %11 = vector.broadcast %4 : vector<1x128xf32> to vector<2x128xf32>
    %12 = arith.addf %10, %11 : vector<2x128xf32>
    %13 = vector.extract_strided_slice %12 {offsets = [0, 0], sizes = [2, 32], strides = [1, 1]} : vector<2x128xf32> to vector<2x32xf32>
    %14 = vector.extract_strided_slice %12 {offsets = [0, 32], sizes = [2, 96], strides = [1, 1]} : vector<2x128xf32> to vector<2x96xf32>
    %15 = tpu.concatenate %13, %13, %13, %13, %13, %13, %13, %13 in 0 : vector<2x32xf32>, vector<2x32xf32>, vector<2x32xf32>, vector<2x32xf32>, vector<2x32xf32>, vector<2x32xf32>, vector<2x32xf32>, vector<2x32xf32> -> vector<16x32xf32>
    %16 = arith.addf %2, %15 : vector<16x32xf32>
    %17 = math.tanh %16 : vector<16x32xf32>
    %cst_17 = arith.constant dense<0.000000e+00> : vector<16x1xf32>
    %18 = tpu.matmul %17, %5, %cst_17 {dimension_numbers = #tpu.dot_dimension_numbers<[1], [0], [0], [1], [0, 0, 1, 1], [], []>} : vector<16x32xf32>, vector<32x1xf32>, vector<16x1xf32> -> vector<16x1xf32>
    %19 = vector.shape_cast %18 : vector<16x1xf32> to vector<1x16x1xf32>
    %cst_18 = arith.constant dense<0xFF800000> : vector<1xf32>
    %20 = vector.multi_reduction <maximumf>, %19, %cst_18 [1, 2] : vector<1x16x1xf32> to vector<1xf32>
    %21 = vector.shape_cast %20 : vector<1xf32> to vector<1x1x1xf32>
    %22 = vector.extract %21[0, 0, 0] : f32 from vector<1x1x1xf32>
    %23 = vector.broadcast %22 : f32 to vector<1x1xf32>
    %24 = vector.broadcast %23 : vector<1x1xf32> to vector<16x1xf32>
    %25 = arith.subf %18, %24 : vector<16x1xf32>
    %26 = math.exp %25 : vector<16x1xf32>
    %27 = vector.broadcast %26 : vector<16x1xf32> to vector<16x32xf32>
    %28 = arith.mulf %0, %27 : vector<16x32xf32>
    %cst_19 = arith.constant dense<0.000000e+00> : vector<2x32xf32>
    %29 = tpu.matmul %8, %28, %cst_19 {dimension_numbers = #tpu.dot_dimension_numbers<[1], [0], [0], [1], [0, 0, 1, 1], [], []>} : vector<2x16xf32>, vector<16x32xf32>, vector<2x32xf32> -> vector<2x32xf32>
    %cst_20 = arith.constant dense<0.000000e+00> : vector<2x1xf32>
    %30 = tpu.matmul %8, %26, %cst_20 {dimension_numbers = #tpu.dot_dimension_numbers<[1], [0], [0], [1], [0, 0, 1, 1], [], []>} : vector<2x16xf32>, vector<16x1xf32>, vector<2x1xf32> -> vector<2x1xf32>
    %cst_21 = arith.constant dense<0.000000e+00> : vector<2x96xf32>
    %31 = tpu.matmul %29, %6, %cst_21 {dimension_numbers = #tpu.dot_dimension_numbers<[1], [0], [0], [1], [0, 0, 1, 1], [], []>} : vector<2x32xf32>, vector<32x96xf32>, vector<2x96xf32> -> vector<2x96xf32>
    %32 = tpu.reciprocal %30 {approx = true} : vector<2x1xf32> -> vector<2x1xf32>
    %33 = vector.broadcast %32 : vector<2x1xf32> to vector<2x96xf32>
    %34 = arith.mulf %31, %33 : vector<2x96xf32>
    %35 = vector.broadcast %7 : vector<1x96xf32> to vector<2x96xf32>
    %36 = arith.addf %34, %35 : vector<2x96xf32>
    %37 = vector.extract_strided_slice %36 {offsets = [0, 0], sizes = [2, 32], strides = [1, 1]} : vector<2x96xf32> to vector<2x32xf32>
    %38 = vector.extract_strided_slice %14 {offsets = [0, 0], sizes = [2, 32], strides = [1, 1]} : vector<2x96xf32> to vector<2x32xf32>
    %39 = arith.addf %37, %38 : vector<2x32xf32>
    %40 = arith.negf %39 : vector<2x32xf32>
    %41 = math.exp %40 : vector<2x32xf32>
    %cst_22 = arith.constant 1.000000e+00 : f32
    %42 = vector.broadcast %cst_22 : f32 to vector<2x32xf32>
    %43 = arith.addf %42, %41 : vector<2x32xf32>
    %44 = arith.divf %42, %43 : vector<2x32xf32>
    %45 = vector.extract_strided_slice %36 {offsets = [0, 32], sizes = [2, 32], strides = [1, 1]} : vector<2x96xf32> to vector<2x32xf32>
    %46 = vector.extract_strided_slice %14 {offsets = [0, 32], sizes = [2, 32], strides = [1, 1]} : vector<2x96xf32> to vector<2x32xf32>
    %47 = arith.addf %45, %46 : vector<2x32xf32>
    %48 = arith.negf %47 : vector<2x32xf32>
    %49 = math.exp %48 : vector<2x32xf32>
    %cst_23 = arith.constant 1.000000e+00 : f32
    %50 = vector.broadcast %cst_23 : f32 to vector<2x32xf32>
    %51 = arith.addf %50, %49 : vector<2x32xf32>
    %52 = arith.divf %50, %51 : vector<2x32xf32>
    %53 = vector.extract_strided_slice %36 {offsets = [0, 64], sizes = [2, 32], strides = [1, 1]} : vector<2x96xf32> to vector<2x32xf32>
    %54 = vector.extract_strided_slice %14 {offsets = [0, 64], sizes = [2, 32], strides = [1, 1]} : vector<2x96xf32> to vector<2x32xf32>
    %55 = arith.mulf %44, %54 : vector<2x32xf32>
    %56 = arith.addf %53, %55 : vector<2x32xf32>
    %57 = math.tanh %56 : vector<2x32xf32>
    %cst_24 = arith.constant 1.000000e+00 : f32
    %58 = vector.broadcast %cst_24 : f32 to vector<2x32xf32>
    %59 = arith.subf %58, %52 : vector<2x32xf32>
    %60 = arith.mulf %59, %57 : vector<2x32xf32>
    %61 = arith.mulf %52, %9 : vector<2x32xf32>
    %62 = arith.addf %60, %61 : vector<2x32xf32>
    %c0_25 = arith.constant 0 : index
    %c0_26 = arith.constant 0 : index
    %63 = vector.load %arg12[%c0_25, %c0_26] : memref<40x32xf32, #tpu.memory_space<vmem>>, vector<2x32xf32>
    tpu.vector_store %arg12[%c0_25, %c0_26], %62 {strides = array<i32>} : memref<40x32xf32, #tpu.memory_space<vmem>>, vector<2x32xf32>,
    %cst_27 = arith.constant dense<0.000000e+00> : vector<2x128xf32>
    %64 = tpu.matmul %62, %3, %cst_27 {dimension_numbers = #tpu.dot_dimension_numbers<[1], [0], [0], [1], [0, 0, 1, 1], [], []>} : vector<2x32xf32>, vector<32x128xf32>, vector<2x128xf32> -> vector<2x128xf32>
    %65 = vector.broadcast %4 : vector<1x128xf32> to vector<2x128xf32>
    %66 = arith.addf %64, %65 : vector<2x128xf32>
    %67 = vector.extract_strided_slice %66 {offsets = [0, 0], sizes = [2, 32], strides = [1, 1]} : vector<2x128xf32> to vector<2x32xf32>
    %68 = vector.extract_strided_slice %66 {offsets = [0, 32], sizes = [2, 96], strides = [1, 1]} : vector<2x128xf32> to vector<2x96xf32>
    %69 = tpu.concatenate %67, %67, %67, %67, %67, %67, %67, %67 in 0 : vector<2x32xf32>, vector<2x32xf32>, vector<2x32xf32>, vector<2x32xf32>, vector<2x32xf32>, vector<2x32xf32>, vector<2x32xf32>, vector<2x32xf32> -> vector<16x32xf32>
    %70 = arith.addf %2, %69 : vector<16x32xf32>
    %71 = math.tanh %70 : vector<16x32xf32>
    %cst_28 = arith.constant dense<0.000000e+00> : vector<16x1xf32>
    %72 = tpu.matmul %71, %5, %cst_28 {dimension_numbers = #tpu.dot_dimension_numbers<[1], [0], [0], [1], [0, 0, 1, 1], [], []>} : vector<16x32xf32>, vector<32x1xf32>, vector<16x1xf32> -> vector<16x1xf32>
    %73 = vector.shape_cast %72 : vector<16x1xf32> to vector<1x16x1xf32>
    %cst_29 = arith.constant dense<0xFF800000> : vector<1xf32>
    %74 = vector.multi_reduction <maximumf>, %73, %cst_29 [1, 2] : vector<1x16x1xf32> to vector<1xf32>
    %75 = vector.shape_cast %74 : vector<1xf32> to vector<1x1x1xf32>
    %76 = vector.extract %75[0, 0, 0] : f32 from vector<1x1x1xf32>
    %77 = vector.broadcast %76 : f32 to vector<1x1xf32>
    %78 = vector.broadcast %77 : vector<1x1xf32> to vector<16x1xf32>
    %79 = arith.subf %72, %78 : vector<16x1xf32>
    %80 = math.exp %79 : vector<16x1xf32>
    %81 = vector.broadcast %80 : vector<16x1xf32> to vector<16x32xf32>
    %82 = arith.mulf %0, %81 : vector<16x32xf32>
    %cst_30 = arith.constant dense<0.000000e+00> : vector<2x32xf32>
    %83 = tpu.matmul %8, %82, %cst_30 {dimension_numbers = #tpu.dot_dimension_numbers<[1], [0], [0], [1], [0, 0, 1, 1], [], []>} : vector<2x16xf32>, vector<16x32xf32>, vector<2x32xf32> -> vector<2x32xf32>
    %cst_31 = arith.constant dense<0.000000e+00> : vector<2x1xf32>
    %84 = tpu.matmul %8, %80, %cst_31 {dimension_numbers = #tpu.dot_dimension_numbers<[1], [0], [0], [1], [0, 0, 1, 1], [], []>} : vector<2x16xf32>, vector<16x1xf32>, vector<2x1xf32> -> vector<2x1xf32>
    %cst_32 = arith.constant dense<0.000000e+00> : vector<2x96xf32>
    %85 = tpu.matmul %83, %6, %cst_32 {dimension_numbers = #tpu.dot_dimension_numbers<[1], [0], [0], [1], [0, 0, 1, 1], [], []>} : vector<2x32xf32>, vector<32x96xf32>, vector<2x96xf32> -> vector<2x96xf32>
    %86 = tpu.reciprocal %84 {approx = true} : vector<2x1xf32> -> vector<2x1xf32>
    %87 = vector.broadcast %86 : vector<2x1xf32> to vector<2x96xf32>
    %88 = arith.mulf %85, %87 : vector<2x96xf32>
    %89 = vector.broadcast %7 : vector<1x96xf32> to vector<2x96xf32>
    %90 = arith.addf %88, %89 : vector<2x96xf32>
    %91 = vector.extract_strided_slice %90 {offsets = [0, 0], sizes = [2, 32], strides = [1, 1]} : vector<2x96xf32> to vector<2x32xf32>
    %92 = vector.extract_strided_slice %68 {offsets = [0, 0], sizes = [2, 32], strides = [1, 1]} : vector<2x96xf32> to vector<2x32xf32>
    %93 = arith.addf %91, %92 : vector<2x32xf32>
    %94 = arith.negf %93 : vector<2x32xf32>
    %95 = math.exp %94 : vector<2x32xf32>
    %cst_33 = arith.constant 1.000000e+00 : f32
    %96 = vector.broadcast %cst_33 : f32 to vector<2x32xf32>
    %97 = arith.addf %96, %95 : vector<2x32xf32>
    %98 = arith.divf %96, %97 : vector<2x32xf32>
    %99 = vector.extract_strided_slice %90 {offsets = [0, 32], sizes = [2, 32], strides = [1, 1]} : vector<2x96xf32> to vector<2x32xf32>
    %100 = vector.extract_strided_slice %68 {offsets = [0, 32], sizes = [2, 32], strides = [1, 1]} : vector<2x96xf32> to vector<2x32xf32>
    %101 = arith.addf %99, %100 : vector<2x32xf32>
    %102 = arith.negf %101 : vector<2x32xf32>
    %103 = math.exp %102 : vector<2x32xf32>
    %cst_34 = arith.constant 1.000000e+00 : f32
    %104 = vector.broadcast %cst_34 : f32 to vector<2x32xf32>
    %105 = arith.addf %104, %103 : vector<2x32xf32>
    %106 = arith.divf %104, %105 : vector<2x32xf32>
    %107 = vector.extract_strided_slice %90 {offsets = [0, 64], sizes = [2, 32], strides = [1, 1]} : vector<2x96xf32> to vector<2x32xf32>
    %108 = vector.extract_strided_slice %68 {offsets = [0, 64], sizes = [2, 32], strides = [1, 1]} : vector<2x96xf32> to vector<2x32xf32>
    %109 = arith.mulf %98, %108 : vector<2x32xf32>
    %110 = arith.addf %107, %109 : vector<2x32xf32>
    %111 = math.tanh %110 : vector<2x32xf32>
    %cst_35 = arith.constant 1.000000e+00 : f32
    %112 = vector.broadcast %cst_35 : f32 to vector<2x32xf32>
    %113 = arith.subf %112, %106 : vector<2x32xf32>
    %114 = arith.mulf %113, %111 : vector<2x32xf32>
    %115 = arith.mulf %106, %62 : vector<2x32xf32>
    %116 = arith.addf %114, %115 : vector<2x32xf32>
    %c2 = arith.constant 2 : index
    %c0_36 = arith.constant 0 : index
    %117 = vector.load %arg12[%c2, %c0_36] : memref<40x32xf32, #tpu.memory_space<vmem>>, vector<2x32xf32>
    tpu.vector_store %arg12[%c2, %c0_36], %116 {strides = array<i32>} : memref<40x32xf32, #tpu.memory_space<vmem>>, vector<2x32xf32>,
    %cst_37 = arith.constant dense<0.000000e+00> : vector<2x128xf32>
    %118 = tpu.matmul %116, %3, %cst_37 {dimension_numbers = #tpu.dot_dimension_numbers<[1], [0], [0], [1], [0, 0, 1, 1], [], []>} : vector<2x32xf32>, vector<32x128xf32>, vector<2x128xf32> -> vector<2x128xf32>
    %119 = vector.broadcast %4 : vector<1x128xf32> to vector<2x128xf32>
    %120 = arith.addf %118, %119 : vector<2x128xf32>
    %121 = vector.extract_strided_slice %120 {offsets = [0, 0], sizes = [2, 32], strides = [1, 1]} : vector<2x128xf32> to vector<2x32xf32>
    %122 = vector.extract_strided_slice %120 {offsets = [0, 32], sizes = [2, 96], strides = [1, 1]} : vector<2x128xf32> to vector<2x96xf32>
    %123 = tpu.concatenate %121, %121, %121, %121, %121, %121, %121, %121 in 0 : vector<2x32xf32>, vector<2x32xf32>, vector<2x32xf32>, vector<2x32xf32>, vector<2x32xf32>, vector<2x32xf32>, vector<2x32xf32>, vector<2x32xf32> -> vector<16x32xf32>
    %124 = arith.addf %2, %123 : vector<16x32xf32>
    %125 = math.tanh %124 : vector<16x32xf32>
    %cst_38 = arith.constant dense<0.000000e+00> : vector<16x1xf32>
    %126 = tpu.matmul %125, %5, %cst_38 {dimension_numbers = #tpu.dot_dimension_numbers<[1], [0], [0], [1], [0, 0, 1, 1], [], []>} : vector<16x32xf32>, vector<32x1xf32>, vector<16x1xf32> -> vector<16x1xf32>
    %127 = vector.shape_cast %126 : vector<16x1xf32> to vector<1x16x1xf32>
    %cst_39 = arith.constant dense<0xFF800000> : vector<1xf32>
    %128 = vector.multi_reduction <maximumf>, %127, %cst_39 [1, 2] : vector<1x16x1xf32> to vector<1xf32>
    %129 = vector.shape_cast %128 : vector<1xf32> to vector<1x1x1xf32>
    %130 = vector.extract %129[0, 0, 0] : f32 from vector<1x1x1xf32>
    %131 = vector.broadcast %130 : f32 to vector<1x1xf32>
    %132 = vector.broadcast %131 : vector<1x1xf32> to vector<16x1xf32>
    %133 = arith.subf %126, %132 : vector<16x1xf32>
    %134 = math.exp %133 : vector<16x1xf32>
    %135 = vector.broadcast %134 : vector<16x1xf32> to vector<16x32xf32>
    %136 = arith.mulf %0, %135 : vector<16x32xf32>
    %cst_40 = arith.constant dense<0.000000e+00> : vector<2x32xf32>
    %137 = tpu.matmul %8, %136, %cst_40 {dimension_numbers = #tpu.dot_dimension_numbers<[1], [0], [0], [1], [0, 0, 1, 1], [], []>} : vector<2x16xf32>, vector<16x32xf32>, vector<2x32xf32> -> vector<2x32xf32>
    %cst_41 = arith.constant dense<0.000000e+00> : vector<2x1xf32>
    %138 = tpu.matmul %8, %134, %cst_41 {dimension_numbers = #tpu.dot_dimension_numbers<[1], [0], [0], [1], [0, 0, 1, 1], [], []>} : vector<2x16xf32>, vector<16x1xf32>, vector<2x1xf32> -> vector<2x1xf32>
    %cst_42 = arith.constant dense<0.000000e+00> : vector<2x96xf32>
    %139 = tpu.matmul %137, %6, %cst_42 {dimension_numbers = #tpu.dot_dimension_numbers<[1], [0], [0], [1], [0, 0, 1, 1], [], []>} : vector<2x32xf32>, vector<32x96xf32>, vector<2x96xf32> -> vector<2x96xf32>
    %140 = tpu.reciprocal %138 {approx = true} : vector<2x1xf32> -> vector<2x1xf32>
    %141 = vector.broadcast %140 : vector<2x1xf32> to vector<2x96xf32>
    %142 = arith.mulf %139, %141 : vector<2x96xf32>
    %143 = vector.broadcast %7 : vector<1x96xf32> to vector<2x96xf32>
    %144 = arith.addf %142, %143 : vector<2x96xf32>
    %145 = vector.extract_strided_slice %144 {offsets = [0, 0], sizes = [2, 32], strides = [1, 1]} : vector<2x96xf32> to vector<2x32xf32>
    %146 = vector.extract_strided_slice %122 {offsets = [0, 0], sizes = [2, 32], strides = [1, 1]} : vector<2x96xf32> to vector<2x32xf32>
    %147 = arith.addf %145, %146 : vector<2x32xf32>
    %148 = arith.negf %147 : vector<2x32xf32>
    %149 = math.exp %148 : vector<2x32xf32>
    %cst_43 = arith.constant 1.000000e+00 : f32
    %150 = vector.broadcast %cst_43 : f32 to vector<2x32xf32>
    %151 = arith.addf %150, %149 : vector<2x32xf32>
    %152 = arith.divf %150, %151 : vector<2x32xf32>
    %153 = vector.extract_strided_slice %144 {offsets = [0, 32], sizes = [2, 32], strides = [1, 1]} : vector<2x96xf32> to vector<2x32xf32>
    %154 = vector.extract_strided_slice %122 {offsets = [0, 32], sizes = [2, 32], strides = [1, 1]} : vector<2x96xf32> to vector<2x32xf32>
    %155 = arith.addf %153, %154 : vector<2x32xf32>
    %156 = arith.negf %155 : vector<2x32xf32>
    %157 = math.exp %156 : vector<2x32xf32>
    %cst_44 = arith.constant 1.000000e+00 : f32
    %158 = vector.broadcast %cst_44 : f32 to vector<2x32xf32>
    %159 = arith.addf %158, %157 : vector<2x32xf32>
    %160 = arith.divf %158, %159 : vector<2x32xf32>
    %161 = vector.extract_strided_slice %144 {offsets = [0, 64], sizes = [2, 32], strides = [1, 1]} : vector<2x96xf32> to vector<2x32xf32>
    %162 = vector.extract_strided_slice %122 {offsets = [0, 64], sizes = [2, 32], strides = [1, 1]} : vector<2x96xf32> to vector<2x32xf32>
    %163 = arith.mulf %152, %162 : vector<2x32xf32>
    %164 = arith.addf %161, %163 : vector<2x32xf32>
    %165 = math.tanh %164 : vector<2x32xf32>
    %cst_45 = arith.constant 1.000000e+00 : f32
    %166 = vector.broadcast %cst_45 : f32 to vector<2x32xf32>
    %167 = arith.subf %166, %160 : vector<2x32xf32>
    %168 = arith.mulf %167, %165 : vector<2x32xf32>
    %169 = arith.mulf %160, %116 : vector<2x32xf32>
    %170 = arith.addf %168, %169 : vector<2x32xf32>
    %c4 = arith.constant 4 : index
    %c0_46 = arith.constant 0 : index
    %171 = vector.load %arg12[%c4, %c0_46] : memref<40x32xf32, #tpu.memory_space<vmem>>, vector<2x32xf32>
    tpu.vector_store %arg12[%c4, %c0_46], %170 {strides = array<i32>} : memref<40x32xf32, #tpu.memory_space<vmem>>, vector<2x32xf32>,
    %cst_47 = arith.constant dense<0.000000e+00> : vector<2x128xf32>
    %172 = tpu.matmul %170, %3, %cst_47 {dimension_numbers = #tpu.dot_dimension_numbers<[1], [0], [0], [1], [0, 0, 1, 1], [], []>} : vector<2x32xf32>, vector<32x128xf32>, vector<2x128xf32> -> vector<2x128xf32>
    %173 = vector.broadcast %4 : vector<1x128xf32> to vector<2x128xf32>
    %174 = arith.addf %172, %173 : vector<2x128xf32>
    %175 = vector.extract_strided_slice %174 {offsets = [0, 0], sizes = [2, 32], strides = [1, 1]} : vector<2x128xf32> to vector<2x32xf32>
    %176 = vector.extract_strided_slice %174 {offsets = [0, 32], sizes = [2, 96], strides = [1, 1]} : vector<2x128xf32> to vector<2x96xf32>
    %177 = tpu.concatenate %175, %175, %175, %175, %175, %175, %175, %175 in 0 : vector<2x32xf32>, vector<2x32xf32>, vector<2x32xf32>, vector<2x32xf32>, vector<2x32xf32>, vector<2x32xf32>, vector<2x32xf32>, vector<2x32xf32> -> vector<16x32xf32>
    %178 = arith.addf %2, %177 : vector<16x32xf32>
    %179 = math.tanh %178 : vector<16x32xf32>
    %cst_48 = arith.constant dense<0.000000e+00> : vector<16x1xf32>
    %180 = tpu.matmul %179, %5, %cst_48 {dimension_numbers = #tpu.dot_dimension_numbers<[1], [0], [0], [1], [0, 0, 1, 1], [], []>} : vector<16x32xf32>, vector<32x1xf32>, vector<16x1xf32> -> vector<16x1xf32>
    %181 = vector.shape_cast %180 : vector<16x1xf32> to vector<1x16x1xf32>
    %cst_49 = arith.constant dense<0xFF800000> : vector<1xf32>
    %182 = vector.multi_reduction <maximumf>, %181, %cst_49 [1, 2] : vector<1x16x1xf32> to vector<1xf32>
    %183 = vector.shape_cast %182 : vector<1xf32> to vector<1x1x1xf32>
    %184 = vector.extract %183[0, 0, 0] : f32 from vector<1x1x1xf32>
    %185 = vector.broadcast %184 : f32 to vector<1x1xf32>
    %186 = vector.broadcast %185 : vector<1x1xf32> to vector<16x1xf32>
    %187 = arith.subf %180, %186 : vector<16x1xf32>
    %188 = math.exp %187 : vector<16x1xf32>
    %189 = vector.broadcast %188 : vector<16x1xf32> to vector<16x32xf32>
    %190 = arith.mulf %0, %189 : vector<16x32xf32>
    %cst_50 = arith.constant dense<0.000000e+00> : vector<2x32xf32>
    %191 = tpu.matmul %8, %190, %cst_50 {dimension_numbers = #tpu.dot_dimension_numbers<[1], [0], [0], [1], [0, 0, 1, 1], [], []>} : vector<2x16xf32>, vector<16x32xf32>, vector<2x32xf32> -> vector<2x32xf32>
    %cst_51 = arith.constant dense<0.000000e+00> : vector<2x1xf32>
    %192 = tpu.matmul %8, %188, %cst_51 {dimension_numbers = #tpu.dot_dimension_numbers<[1], [0], [0], [1], [0, 0, 1, 1], [], []>} : vector<2x16xf32>, vector<16x1xf32>, vector<2x1xf32> -> vector<2x1xf32>
    %cst_52 = arith.constant dense<0.000000e+00> : vector<2x96xf32>
    %193 = tpu.matmul %191, %6, %cst_52 {dimension_numbers = #tpu.dot_dimension_numbers<[1], [0], [0], [1], [0, 0, 1, 1], [], []>} : vector<2x32xf32>, vector<32x96xf32>, vector<2x96xf32> -> vector<2x96xf32>
    %194 = tpu.reciprocal %192 {approx = true} : vector<2x1xf32> -> vector<2x1xf32>
    %195 = vector.broadcast %194 : vector<2x1xf32> to vector<2x96xf32>
    %196 = arith.mulf %193, %195 : vector<2x96xf32>
    %197 = vector.broadcast %7 : vector<1x96xf32> to vector<2x96xf32>
    %198 = arith.addf %196, %197 : vector<2x96xf32>
    %199 = vector.extract_strided_slice %198 {offsets = [0, 0], sizes = [2, 32], strides = [1, 1]} : vector<2x96xf32> to vector<2x32xf32>
    %200 = vector.extract_strided_slice %176 {offsets = [0, 0], sizes = [2, 32], strides = [1, 1]} : vector<2x96xf32> to vector<2x32xf32>
    %201 = arith.addf %199, %200 : vector<2x32xf32>
    %202 = arith.negf %201 : vector<2x32xf32>
    %203 = math.exp %202 : vector<2x32xf32>
    %cst_53 = arith.constant 1.000000e+00 : f32
    %204 = vector.broadcast %cst_53 : f32 to vector<2x32xf32>
    %205 = arith.addf %204, %203 : vector<2x32xf32>
    %206 = arith.divf %204, %205 : vector<2x32xf32>
    %207 = vector.extract_strided_slice %198 {offsets = [0, 32], sizes = [2, 32], strides = [1, 1]} : vector<2x96xf32> to vector<2x32xf32>
    %208 = vector.extract_strided_slice %176 {offsets = [0, 32], sizes = [2, 32], strides = [1, 1]} : vector<2x96xf32> to vector<2x32xf32>
    %209 = arith.addf %207, %208 : vector<2x32xf32>
    %210 = arith.negf %209 : vector<2x32xf32>
    %211 = math.exp %210 : vector<2x32xf32>
    %cst_54 = arith.constant 1.000000e+00 : f32
    %212 = vector.broadcast %cst_54 : f32 to vector<2x32xf32>
    %213 = arith.addf %212, %211 : vector<2x32xf32>
    %214 = arith.divf %212, %213 : vector<2x32xf32>
    %215 = vector.extract_strided_slice %198 {offsets = [0, 64], sizes = [2, 32], strides = [1, 1]} : vector<2x96xf32> to vector<2x32xf32>
    %216 = vector.extract_strided_slice %176 {offsets = [0, 64], sizes = [2, 32], strides = [1, 1]} : vector<2x96xf32> to vector<2x32xf32>
    %217 = arith.mulf %206, %216 : vector<2x32xf32>
    %218 = arith.addf %215, %217 : vector<2x32xf32>
    %219 = math.tanh %218 : vector<2x32xf32>
    %cst_55 = arith.constant 1.000000e+00 : f32
    %220 = vector.broadcast %cst_55 : f32 to vector<2x32xf32>
    %221 = arith.subf %220, %214 : vector<2x32xf32>
    %222 = arith.mulf %221, %219 : vector<2x32xf32>
    %223 = arith.mulf %214, %170 : vector<2x32xf32>
    %224 = arith.addf %222, %223 : vector<2x32xf32>
    %c6 = arith.constant 6 : index
    %c0_56 = arith.constant 0 : index
    %225 = vector.load %arg12[%c6, %c0_56] : memref<40x32xf32, #tpu.memory_space<vmem>>, vector<2x32xf32>
    tpu.vector_store %arg12[%c6, %c0_56], %224 {strides = array<i32>} : memref<40x32xf32, #tpu.memory_space<vmem>>, vector<2x32xf32>,
    %cst_57 = arith.constant dense<0.000000e+00> : vector<2x128xf32>
    %226 = tpu.matmul %224, %3, %cst_57 {dimension_numbers = #tpu.dot_dimension_numbers<[1], [0], [0], [1], [0, 0, 1, 1], [], []>} : vector<2x32xf32>, vector<32x128xf32>, vector<2x128xf32> -> vector<2x128xf32>
    %227 = vector.broadcast %4 : vector<1x128xf32> to vector<2x128xf32>
    %228 = arith.addf %226, %227 : vector<2x128xf32>
    %229 = vector.extract_strided_slice %228 {offsets = [0, 0], sizes = [2, 32], strides = [1, 1]} : vector<2x128xf32> to vector<2x32xf32>
    %230 = vector.extract_strided_slice %228 {offsets = [0, 32], sizes = [2, 96], strides = [1, 1]} : vector<2x128xf32> to vector<2x96xf32>
    %231 = tpu.concatenate %229, %229, %229, %229, %229, %229, %229, %229 in 0 : vector<2x32xf32>, vector<2x32xf32>, vector<2x32xf32>, vector<2x32xf32>, vector<2x32xf32>, vector<2x32xf32>, vector<2x32xf32>, vector<2x32xf32> -> vector<16x32xf32>
    %232 = arith.addf %2, %231 : vector<16x32xf32>
    %233 = math.tanh %232 : vector<16x32xf32>
    %cst_58 = arith.constant dense<0.000000e+00> : vector<16x1xf32>
    %234 = tpu.matmul %233, %5, %cst_58 {dimension_numbers = #tpu.dot_dimension_numbers<[1], [0], [0], [1], [0, 0, 1, 1], [], []>} : vector<16x32xf32>, vector<32x1xf32>, vector<16x1xf32> -> vector<16x1xf32>
    %235 = vector.shape_cast %234 : vector<16x1xf32> to vector<1x16x1xf32>
    %cst_59 = arith.constant dense<0xFF800000> : vector<1xf32>
    %236 = vector.multi_reduction <maximumf>, %235, %cst_59 [1, 2] : vector<1x16x1xf32> to vector<1xf32>
    %237 = vector.shape_cast %236 : vector<1xf32> to vector<1x1x1xf32>
    %238 = vector.extract %237[0, 0, 0] : f32 from vector<1x1x1xf32>
    %239 = vector.broadcast %238 : f32 to vector<1x1xf32>
    %240 = vector.broadcast %239 : vector<1x1xf32> to vector<16x1xf32>
    %241 = arith.subf %234, %240 : vector<16x1xf32>
    %242 = math.exp %241 : vector<16x1xf32>
    %243 = vector.broadcast %242 : vector<16x1xf32> to vector<16x32xf32>
    %244 = arith.mulf %0, %243 : vector<16x32xf32>
    %cst_60 = arith.constant dense<0.000000e+00> : vector<2x32xf32>
    %245 = tpu.matmul %8, %244, %cst_60 {dimension_numbers = #tpu.dot_dimension_numbers<[1], [0], [0], [1], [0, 0, 1, 1], [], []>} : vector<2x16xf32>, vector<16x32xf32>, vector<2x32xf32> -> vector<2x32xf32>
    %cst_61 = arith.constant dense<0.000000e+00> : vector<2x1xf32>
    %246 = tpu.matmul %8, %242, %cst_61 {dimension_numbers = #tpu.dot_dimension_numbers<[1], [0], [0], [1], [0, 0, 1, 1], [], []>} : vector<2x16xf32>, vector<16x1xf32>, vector<2x1xf32> -> vector<2x1xf32>
    %cst_62 = arith.constant dense<0.000000e+00> : vector<2x96xf32>
    %247 = tpu.matmul %245, %6, %cst_62 {dimension_numbers = #tpu.dot_dimension_numbers<[1], [0], [0], [1], [0, 0, 1, 1], [], []>} : vector<2x32xf32>, vector<32x96xf32>, vector<2x96xf32> -> vector<2x96xf32>
    %248 = tpu.reciprocal %246 {approx = true} : vector<2x1xf32> -> vector<2x1xf32>
    %249 = vector.broadcast %248 : vector<2x1xf32> to vector<2x96xf32>
    %250 = arith.mulf %247, %249 : vector<2x96xf32>
    %251 = vector.broadcast %7 : vector<1x96xf32> to vector<2x96xf32>
    %252 = arith.addf %250, %251 : vector<2x96xf32>
    %253 = vector.extract_strided_slice %252 {offsets = [0, 0], sizes = [2, 32], strides = [1, 1]} : vector<2x96xf32> to vector<2x32xf32>
    %254 = vector.extract_strided_slice %230 {offsets = [0, 0], sizes = [2, 32], strides = [1, 1]} : vector<2x96xf32> to vector<2x32xf32>
    %255 = arith.addf %253, %254 : vector<2x32xf32>
    %256 = arith.negf %255 : vector<2x32xf32>
    %257 = math.exp %256 : vector<2x32xf32>
    %cst_63 = arith.constant 1.000000e+00 : f32
    %258 = vector.broadcast %cst_63 : f32 to vector<2x32xf32>
    %259 = arith.addf %258, %257 : vector<2x32xf32>
    %260 = arith.divf %258, %259 : vector<2x32xf32>
    %261 = vector.extract_strided_slice %252 {offsets = [0, 32], sizes = [2, 32], strides = [1, 1]} : vector<2x96xf32> to vector<2x32xf32>
    %262 = vector.extract_strided_slice %230 {offsets = [0, 32], sizes = [2, 32], strides = [1, 1]} : vector<2x96xf32> to vector<2x32xf32>
    %263 = arith.addf %261, %262 : vector<2x32xf32>
    %264 = arith.negf %263 : vector<2x32xf32>
    %265 = math.exp %264 : vector<2x32xf32>
    %cst_64 = arith.constant 1.000000e+00 : f32
    %266 = vector.broadcast %cst_64 : f32 to vector<2x32xf32>
    %267 = arith.addf %266, %265 : vector<2x32xf32>
    %268 = arith.divf %266, %267 : vector<2x32xf32>
    %269 = vector.extract_strided_slice %252 {offsets = [0, 64], sizes = [2, 32], strides = [1, 1]} : vector<2x96xf32> to vector<2x32xf32>
    %270 = vector.extract_strided_slice %230 {offsets = [0, 64], sizes = [2, 32], strides = [1, 1]} : vector<2x96xf32> to vector<2x32xf32>
    %271 = arith.mulf %260, %270 : vector<2x32xf32>
    %272 = arith.addf %269, %271 : vector<2x32xf32>
    %273 = math.tanh %272 : vector<2x32xf32>
    %cst_65 = arith.constant 1.000000e+00 : f32
    %274 = vector.broadcast %cst_65 : f32 to vector<2x32xf32>
    %275 = arith.subf %274, %268 : vector<2x32xf32>
    %276 = arith.mulf %275, %273 : vector<2x32xf32>
    %277 = arith.mulf %268, %224 : vector<2x32xf32>
    %278 = arith.addf %276, %277 : vector<2x32xf32>
    %c8 = arith.constant 8 : index
    %c0_66 = arith.constant 0 : index
    %279 = vector.load %arg12[%c8, %c0_66] : memref<40x32xf32, #tpu.memory_space<vmem>>, vector<2x32xf32>
    tpu.vector_store %arg12[%c8, %c0_66], %278 {strides = array<i32>} : memref<40x32xf32, #tpu.memory_space<vmem>>, vector<2x32xf32>,
    %cst_67 = arith.constant dense<0.000000e+00> : vector<2x128xf32>
    %280 = tpu.matmul %278, %3, %cst_67 {dimension_numbers = #tpu.dot_dimension_numbers<[1], [0], [0], [1], [0, 0, 1, 1], [], []>} : vector<2x32xf32>, vector<32x128xf32>, vector<2x128xf32> -> vector<2x128xf32>
    %281 = vector.broadcast %4 : vector<1x128xf32> to vector<2x128xf32>
    %282 = arith.addf %280, %281 : vector<2x128xf32>
    %283 = vector.extract_strided_slice %282 {offsets = [0, 0], sizes = [2, 32], strides = [1, 1]} : vector<2x128xf32> to vector<2x32xf32>
    %284 = vector.extract_strided_slice %282 {offsets = [0, 32], sizes = [2, 96], strides = [1, 1]} : vector<2x128xf32> to vector<2x96xf32>
    %285 = tpu.concatenate %283, %283, %283, %283, %283, %283, %283, %283 in 0 : vector<2x32xf32>, vector<2x32xf32>, vector<2x32xf32>, vector<2x32xf32>, vector<2x32xf32>, vector<2x32xf32>, vector<2x32xf32>, vector<2x32xf32> -> vector<16x32xf32>
    %286 = arith.addf %2, %285 : vector<16x32xf32>
    %287 = math.tanh %286 : vector<16x32xf32>
    %cst_68 = arith.constant dense<0.000000e+00> : vector<16x1xf32>
    %288 = tpu.matmul %287, %5, %cst_68 {dimension_numbers = #tpu.dot_dimension_numbers<[1], [0], [0], [1], [0, 0, 1, 1], [], []>} : vector<16x32xf32>, vector<32x1xf32>, vector<16x1xf32> -> vector<16x1xf32>
    %289 = vector.shape_cast %288 : vector<16x1xf32> to vector<1x16x1xf32>
    %cst_69 = arith.constant dense<0xFF800000> : vector<1xf32>
    %290 = vector.multi_reduction <maximumf>, %289, %cst_69 [1, 2] : vector<1x16x1xf32> to vector<1xf32>
    %291 = vector.shape_cast %290 : vector<1xf32> to vector<1x1x1xf32>
    %292 = vector.extract %291[0, 0, 0] : f32 from vector<1x1x1xf32>
    %293 = vector.broadcast %292 : f32 to vector<1x1xf32>
    %294 = vector.broadcast %293 : vector<1x1xf32> to vector<16x1xf32>
    %295 = arith.subf %288, %294 : vector<16x1xf32>
    %296 = math.exp %295 : vector<16x1xf32>
    %297 = vector.broadcast %296 : vector<16x1xf32> to vector<16x32xf32>
    %298 = arith.mulf %0, %297 : vector<16x32xf32>
    %cst_70 = arith.constant dense<0.000000e+00> : vector<2x32xf32>
    %299 = tpu.matmul %8, %298, %cst_70 {dimension_numbers = #tpu.dot_dimension_numbers<[1], [0], [0], [1], [0, 0, 1, 1], [], []>} : vector<2x16xf32>, vector<16x32xf32>, vector<2x32xf32> -> vector<2x32xf32>
    %cst_71 = arith.constant dense<0.000000e+00> : vector<2x1xf32>
    %300 = tpu.matmul %8, %296, %cst_71 {dimension_numbers = #tpu.dot_dimension_numbers<[1], [0], [0], [1], [0, 0, 1, 1], [], []>} : vector<2x16xf32>, vector<16x1xf32>, vector<2x1xf32> -> vector<2x1xf32>
    %cst_72 = arith.constant dense<0.000000e+00> : vector<2x96xf32>
    %301 = tpu.matmul %299, %6, %cst_72 {dimension_numbers = #tpu.dot_dimension_numbers<[1], [0], [0], [1], [0, 0, 1, 1], [], []>} : vector<2x32xf32>, vector<32x96xf32>, vector<2x96xf32> -> vector<2x96xf32>
    %302 = tpu.reciprocal %300 {approx = true} : vector<2x1xf32> -> vector<2x1xf32>
    %303 = vector.broadcast %302 : vector<2x1xf32> to vector<2x96xf32>
    %304 = arith.mulf %301, %303 : vector<2x96xf32>
    %305 = vector.broadcast %7 : vector<1x96xf32> to vector<2x96xf32>
    %306 = arith.addf %304, %305 : vector<2x96xf32>
    %307 = vector.extract_strided_slice %306 {offsets = [0, 0], sizes = [2, 32], strides = [1, 1]} : vector<2x96xf32> to vector<2x32xf32>
    %308 = vector.extract_strided_slice %284 {offsets = [0, 0], sizes = [2, 32], strides = [1, 1]} : vector<2x96xf32> to vector<2x32xf32>
    %309 = arith.addf %307, %308 : vector<2x32xf32>
    %310 = arith.negf %309 : vector<2x32xf32>
    %311 = math.exp %310 : vector<2x32xf32>
    %cst_73 = arith.constant 1.000000e+00 : f32
    %312 = vector.broadcast %cst_73 : f32 to vector<2x32xf32>
    %313 = arith.addf %312, %311 : vector<2x32xf32>
    %314 = arith.divf %312, %313 : vector<2x32xf32>
    %315 = vector.extract_strided_slice %306 {offsets = [0, 32], sizes = [2, 32], strides = [1, 1]} : vector<2x96xf32> to vector<2x32xf32>
    %316 = vector.extract_strided_slice %284 {offsets = [0, 32], sizes = [2, 32], strides = [1, 1]} : vector<2x96xf32> to vector<2x32xf32>
    %317 = arith.addf %315, %316 : vector<2x32xf32>
    %318 = arith.negf %317 : vector<2x32xf32>
    %319 = math.exp %318 : vector<2x32xf32>
    %cst_74 = arith.constant 1.000000e+00 : f32
    %320 = vector.broadcast %cst_74 : f32 to vector<2x32xf32>
    %321 = arith.addf %320, %319 : vector<2x32xf32>
    %322 = arith.divf %320, %321 : vector<2x32xf32>
    %323 = vector.extract_strided_slice %306 {offsets = [0, 64], sizes = [2, 32], strides = [1, 1]} : vector<2x96xf32> to vector<2x32xf32>
    %324 = vector.extract_strided_slice %284 {offsets = [0, 64], sizes = [2, 32], strides = [1, 1]} : vector<2x96xf32> to vector<2x32xf32>
    %325 = arith.mulf %314, %324 : vector<2x32xf32>
    %326 = arith.addf %323, %325 : vector<2x32xf32>
    %327 = math.tanh %326 : vector<2x32xf32>
    %cst_75 = arith.constant 1.000000e+00 : f32
    %328 = vector.broadcast %cst_75 : f32 to vector<2x32xf32>
    %329 = arith.subf %328, %322 : vector<2x32xf32>
    %330 = arith.mulf %329, %327 : vector<2x32xf32>
    %331 = arith.mulf %322, %278 : vector<2x32xf32>
    %332 = arith.addf %330, %331 : vector<2x32xf32>
    %c10 = arith.constant 10 : index
    %c0_76 = arith.constant 0 : index
    %333 = vector.load %arg12[%c10, %c0_76] : memref<40x32xf32, #tpu.memory_space<vmem>>, vector<2x32xf32>
    tpu.vector_store %arg12[%c10, %c0_76], %332 {strides = array<i32>} : memref<40x32xf32, #tpu.memory_space<vmem>>, vector<2x32xf32>,
    %cst_77 = arith.constant dense<0.000000e+00> : vector<2x128xf32>
    %334 = tpu.matmul %332, %3, %cst_77 {dimension_numbers = #tpu.dot_dimension_numbers<[1], [0], [0], [1], [0, 0, 1, 1], [], []>} : vector<2x32xf32>, vector<32x128xf32>, vector<2x128xf32> -> vector<2x128xf32>
    %335 = vector.broadcast %4 : vector<1x128xf32> to vector<2x128xf32>
    %336 = arith.addf %334, %335 : vector<2x128xf32>
    %337 = vector.extract_strided_slice %336 {offsets = [0, 0], sizes = [2, 32], strides = [1, 1]} : vector<2x128xf32> to vector<2x32xf32>
    %338 = vector.extract_strided_slice %336 {offsets = [0, 32], sizes = [2, 96], strides = [1, 1]} : vector<2x128xf32> to vector<2x96xf32>
    %339 = tpu.concatenate %337, %337, %337, %337, %337, %337, %337, %337 in 0 : vector<2x32xf32>, vector<2x32xf32>, vector<2x32xf32>, vector<2x32xf32>, vector<2x32xf32>, vector<2x32xf32>, vector<2x32xf32>, vector<2x32xf32> -> vector<16x32xf32>
    %340 = arith.addf %2, %339 : vector<16x32xf32>
    %341 = math.tanh %340 : vector<16x32xf32>
    %cst_78 = arith.constant dense<0.000000e+00> : vector<16x1xf32>
    %342 = tpu.matmul %341, %5, %cst_78 {dimension_numbers = #tpu.dot_dimension_numbers<[1], [0], [0], [1], [0, 0, 1, 1], [], []>} : vector<16x32xf32>, vector<32x1xf32>, vector<16x1xf32> -> vector<16x1xf32>
    %343 = vector.shape_cast %342 : vector<16x1xf32> to vector<1x16x1xf32>
    %cst_79 = arith.constant dense<0xFF800000> : vector<1xf32>
    %344 = vector.multi_reduction <maximumf>, %343, %cst_79 [1, 2] : vector<1x16x1xf32> to vector<1xf32>
    %345 = vector.shape_cast %344 : vector<1xf32> to vector<1x1x1xf32>
    %346 = vector.extract %345[0, 0, 0] : f32 from vector<1x1x1xf32>
    %347 = vector.broadcast %346 : f32 to vector<1x1xf32>
    %348 = vector.broadcast %347 : vector<1x1xf32> to vector<16x1xf32>
    %349 = arith.subf %342, %348 : vector<16x1xf32>
    %350 = math.exp %349 : vector<16x1xf32>
    %351 = vector.broadcast %350 : vector<16x1xf32> to vector<16x32xf32>
    %352 = arith.mulf %0, %351 : vector<16x32xf32>
    %cst_80 = arith.constant dense<0.000000e+00> : vector<2x32xf32>
    %353 = tpu.matmul %8, %352, %cst_80 {dimension_numbers = #tpu.dot_dimension_numbers<[1], [0], [0], [1], [0, 0, 1, 1], [], []>} : vector<2x16xf32>, vector<16x32xf32>, vector<2x32xf32> -> vector<2x32xf32>
    %cst_81 = arith.constant dense<0.000000e+00> : vector<2x1xf32>
    %354 = tpu.matmul %8, %350, %cst_81 {dimension_numbers = #tpu.dot_dimension_numbers<[1], [0], [0], [1], [0, 0, 1, 1], [], []>} : vector<2x16xf32>, vector<16x1xf32>, vector<2x1xf32> -> vector<2x1xf32>
    %cst_82 = arith.constant dense<0.000000e+00> : vector<2x96xf32>
    %355 = tpu.matmul %353, %6, %cst_82 {dimension_numbers = #tpu.dot_dimension_numbers<[1], [0], [0], [1], [0, 0, 1, 1], [], []>} : vector<2x32xf32>, vector<32x96xf32>, vector<2x96xf32> -> vector<2x96xf32>
    %356 = tpu.reciprocal %354 {approx = true} : vector<2x1xf32> -> vector<2x1xf32>
    %357 = vector.broadcast %356 : vector<2x1xf32> to vector<2x96xf32>
    %358 = arith.mulf %355, %357 : vector<2x96xf32>
    %359 = vector.broadcast %7 : vector<1x96xf32> to vector<2x96xf32>
    %360 = arith.addf %358, %359 : vector<2x96xf32>
    %361 = vector.extract_strided_slice %360 {offsets = [0, 0], sizes = [2, 32], strides = [1, 1]} : vector<2x96xf32> to vector<2x32xf32>
    %362 = vector.extract_strided_slice %338 {offsets = [0, 0], sizes = [2, 32], strides = [1, 1]} : vector<2x96xf32> to vector<2x32xf32>
    %363 = arith.addf %361, %362 : vector<2x32xf32>
    %364 = arith.negf %363 : vector<2x32xf32>
    %365 = math.exp %364 : vector<2x32xf32>
    %cst_83 = arith.constant 1.000000e+00 : f32
    %366 = vector.broadcast %cst_83 : f32 to vector<2x32xf32>
    %367 = arith.addf %366, %365 : vector<2x32xf32>
    %368 = arith.divf %366, %367 : vector<2x32xf32>
    %369 = vector.extract_strided_slice %360 {offsets = [0, 32], sizes = [2, 32], strides = [1, 1]} : vector<2x96xf32> to vector<2x32xf32>
    %370 = vector.extract_strided_slice %338 {offsets = [0, 32], sizes = [2, 32], strides = [1, 1]} : vector<2x96xf32> to vector<2x32xf32>
    %371 = arith.addf %369, %370 : vector<2x32xf32>
    %372 = arith.negf %371 : vector<2x32xf32>
    %373 = math.exp %372 : vector<2x32xf32>
    %cst_84 = arith.constant 1.000000e+00 : f32
    %374 = vector.broadcast %cst_84 : f32 to vector<2x32xf32>
    %375 = arith.addf %374, %373 : vector<2x32xf32>
    %376 = arith.divf %374, %375 : vector<2x32xf32>
    %377 = vector.extract_strided_slice %360 {offsets = [0, 64], sizes = [2, 32], strides = [1, 1]} : vector<2x96xf32> to vector<2x32xf32>
    %378 = vector.extract_strided_slice %338 {offsets = [0, 64], sizes = [2, 32], strides = [1, 1]} : vector<2x96xf32> to vector<2x32xf32>
    %379 = arith.mulf %368, %378 : vector<2x32xf32>
    %380 = arith.addf %377, %379 : vector<2x32xf32>
    %381 = math.tanh %380 : vector<2x32xf32>
    %cst_85 = arith.constant 1.000000e+00 : f32
    %382 = vector.broadcast %cst_85 : f32 to vector<2x32xf32>
    %383 = arith.subf %382, %376 : vector<2x32xf32>
    %384 = arith.mulf %383, %381 : vector<2x32xf32>
    %385 = arith.mulf %376, %332 : vector<2x32xf32>
    %386 = arith.addf %384, %385 : vector<2x32xf32>
    %c12 = arith.constant 12 : index
    %c0_86 = arith.constant 0 : index
    %387 = vector.load %arg12[%c12, %c0_86] : memref<40x32xf32, #tpu.memory_space<vmem>>, vector<2x32xf32>
    tpu.vector_store %arg12[%c12, %c0_86], %386 {strides = array<i32>} : memref<40x32xf32, #tpu.memory_space<vmem>>, vector<2x32xf32>,
    %cst_87 = arith.constant dense<0.000000e+00> : vector<2x128xf32>
    %388 = tpu.matmul %386, %3, %cst_87 {dimension_numbers = #tpu.dot_dimension_numbers<[1], [0], [0], [1], [0, 0, 1, 1], [], []>} : vector<2x32xf32>, vector<32x128xf32>, vector<2x128xf32> -> vector<2x128xf32>
    %389 = vector.broadcast %4 : vector<1x128xf32> to vector<2x128xf32>
    %390 = arith.addf %388, %389 : vector<2x128xf32>
    %391 = vector.extract_strided_slice %390 {offsets = [0, 0], sizes = [2, 32], strides = [1, 1]} : vector<2x128xf32> to vector<2x32xf32>
    %392 = vector.extract_strided_slice %390 {offsets = [0, 32], sizes = [2, 96], strides = [1, 1]} : vector<2x128xf32> to vector<2x96xf32>
    %393 = tpu.concatenate %391, %391, %391, %391, %391, %391, %391, %391 in 0 : vector<2x32xf32>, vector<2x32xf32>, vector<2x32xf32>, vector<2x32xf32>, vector<2x32xf32>, vector<2x32xf32>, vector<2x32xf32>, vector<2x32xf32> -> vector<16x32xf32>
    %394 = arith.addf %2, %393 : vector<16x32xf32>
    %395 = math.tanh %394 : vector<16x32xf32>
    %cst_88 = arith.constant dense<0.000000e+00> : vector<16x1xf32>
    %396 = tpu.matmul %395, %5, %cst_88 {dimension_numbers = #tpu.dot_dimension_numbers<[1], [0], [0], [1], [0, 0, 1, 1], [], []>} : vector<16x32xf32>, vector<32x1xf32>, vector<16x1xf32> -> vector<16x1xf32>
    %397 = vector.shape_cast %396 : vector<16x1xf32> to vector<1x16x1xf32>
    %cst_89 = arith.constant dense<0xFF800000> : vector<1xf32>
    %398 = vector.multi_reduction <maximumf>, %397, %cst_89 [1, 2] : vector<1x16x1xf32> to vector<1xf32>
    %399 = vector.shape_cast %398 : vector<1xf32> to vector<1x1x1xf32>
    %400 = vector.extract %399[0, 0, 0] : f32 from vector<1x1x1xf32>
    %401 = vector.broadcast %400 : f32 to vector<1x1xf32>
    %402 = vector.broadcast %401 : vector<1x1xf32> to vector<16x1xf32>
    %403 = arith.subf %396, %402 : vector<16x1xf32>
    %404 = math.exp %403 : vector<16x1xf32>
    %405 = vector.broadcast %404 : vector<16x1xf32> to vector<16x32xf32>
    %406 = arith.mulf %0, %405 : vector<16x32xf32>
    %cst_90 = arith.constant dense<0.000000e+00> : vector<2x32xf32>
    %407 = tpu.matmul %8, %406, %cst_90 {dimension_numbers = #tpu.dot_dimension_numbers<[1], [0], [0], [1], [0, 0, 1, 1], [], []>} : vector<2x16xf32>, vector<16x32xf32>, vector<2x32xf32> -> vector<2x32xf32>
    %cst_91 = arith.constant dense<0.000000e+00> : vector<2x1xf32>
    %408 = tpu.matmul %8, %404, %cst_91 {dimension_numbers = #tpu.dot_dimension_numbers<[1], [0], [0], [1], [0, 0, 1, 1], [], []>} : vector<2x16xf32>, vector<16x1xf32>, vector<2x1xf32> -> vector<2x1xf32>
    %cst_92 = arith.constant dense<0.000000e+00> : vector<2x96xf32>
    %409 = tpu.matmul %407, %6, %cst_92 {dimension_numbers = #tpu.dot_dimension_numbers<[1], [0], [0], [1], [0, 0, 1, 1], [], []>} : vector<2x32xf32>, vector<32x96xf32>, vector<2x96xf32> -> vector<2x96xf32>
    %410 = tpu.reciprocal %408 {approx = true} : vector<2x1xf32> -> vector<2x1xf32>
    %411 = vector.broadcast %410 : vector<2x1xf32> to vector<2x96xf32>
    %412 = arith.mulf %409, %411 : vector<2x96xf32>
    %413 = vector.broadcast %7 : vector<1x96xf32> to vector<2x96xf32>
    %414 = arith.addf %412, %413 : vector<2x96xf32>
    %415 = vector.extract_strided_slice %414 {offsets = [0, 0], sizes = [2, 32], strides = [1, 1]} : vector<2x96xf32> to vector<2x32xf32>
    %416 = vector.extract_strided_slice %392 {offsets = [0, 0], sizes = [2, 32], strides = [1, 1]} : vector<2x96xf32> to vector<2x32xf32>
    %417 = arith.addf %415, %416 : vector<2x32xf32>
    %418 = arith.negf %417 : vector<2x32xf32>
    %419 = math.exp %418 : vector<2x32xf32>
    %cst_93 = arith.constant 1.000000e+00 : f32
    %420 = vector.broadcast %cst_93 : f32 to vector<2x32xf32>
    %421 = arith.addf %420, %419 : vector<2x32xf32>
    %422 = arith.divf %420, %421 : vector<2x32xf32>
    %423 = vector.extract_strided_slice %414 {offsets = [0, 32], sizes = [2, 32], strides = [1, 1]} : vector<2x96xf32> to vector<2x32xf32>
    %424 = vector.extract_strided_slice %392 {offsets = [0, 32], sizes = [2, 32], strides = [1, 1]} : vector<2x96xf32> to vector<2x32xf32>
    %425 = arith.addf %423, %424 : vector<2x32xf32>
    %426 = arith.negf %425 : vector<2x32xf32>
    %427 = math.exp %426 : vector<2x32xf32>
    %cst_94 = arith.constant 1.000000e+00 : f32
    %428 = vector.broadcast %cst_94 : f32 to vector<2x32xf32>
    %429 = arith.addf %428, %427 : vector<2x32xf32>
    %430 = arith.divf %428, %429 : vector<2x32xf32>
    %431 = vector.extract_strided_slice %414 {offsets = [0, 64], sizes = [2, 32], strides = [1, 1]} : vector<2x96xf32> to vector<2x32xf32>
    %432 = vector.extract_strided_slice %392 {offsets = [0, 64], sizes = [2, 32], strides = [1, 1]} : vector<2x96xf32> to vector<2x32xf32>
    %433 = arith.mulf %422, %432 : vector<2x32xf32>
    %434 = arith.addf %431, %433 : vector<2x32xf32>
    %435 = math.tanh %434 : vector<2x32xf32>
    %cst_95 = arith.constant 1.000000e+00 : f32
    %436 = vector.broadcast %cst_95 : f32 to vector<2x32xf32>
    %437 = arith.subf %436, %430 : vector<2x32xf32>
    %438 = arith.mulf %437, %435 : vector<2x32xf32>
    %439 = arith.mulf %430, %386 : vector<2x32xf32>
    %440 = arith.addf %438, %439 : vector<2x32xf32>
    %c14 = arith.constant 14 : index
    %c0_96 = arith.constant 0 : index
    %441 = vector.load %arg12[%c14, %c0_96] : memref<40x32xf32, #tpu.memory_space<vmem>>, vector<2x32xf32>
    tpu.vector_store %arg12[%c14, %c0_96], %440 {strides = array<i32>} : memref<40x32xf32, #tpu.memory_space<vmem>>, vector<2x32xf32>,
    %cst_97 = arith.constant dense<0.000000e+00> : vector<2x128xf32>
    %442 = tpu.matmul %440, %3, %cst_97 {dimension_numbers = #tpu.dot_dimension_numbers<[1], [0], [0], [1], [0, 0, 1, 1], [], []>} : vector<2x32xf32>, vector<32x128xf32>, vector<2x128xf32> -> vector<2x128xf32>
    %443 = vector.broadcast %4 : vector<1x128xf32> to vector<2x128xf32>
    %444 = arith.addf %442, %443 : vector<2x128xf32>
    %445 = vector.extract_strided_slice %444 {offsets = [0, 0], sizes = [2, 32], strides = [1, 1]} : vector<2x128xf32> to vector<2x32xf32>
    %446 = vector.extract_strided_slice %444 {offsets = [0, 32], sizes = [2, 96], strides = [1, 1]} : vector<2x128xf32> to vector<2x96xf32>
    %447 = tpu.concatenate %445, %445, %445, %445, %445, %445, %445, %445 in 0 : vector<2x32xf32>, vector<2x32xf32>, vector<2x32xf32>, vector<2x32xf32>, vector<2x32xf32>, vector<2x32xf32>, vector<2x32xf32>, vector<2x32xf32> -> vector<16x32xf32>
    %448 = arith.addf %2, %447 : vector<16x32xf32>
    %449 = math.tanh %448 : vector<16x32xf32>
    %cst_98 = arith.constant dense<0.000000e+00> : vector<16x1xf32>
    %450 = tpu.matmul %449, %5, %cst_98 {dimension_numbers = #tpu.dot_dimension_numbers<[1], [0], [0], [1], [0, 0, 1, 1], [], []>} : vector<16x32xf32>, vector<32x1xf32>, vector<16x1xf32> -> vector<16x1xf32>
    %451 = vector.shape_cast %450 : vector<16x1xf32> to vector<1x16x1xf32>
    %cst_99 = arith.constant dense<0xFF800000> : vector<1xf32>
    %452 = vector.multi_reduction <maximumf>, %451, %cst_99 [1, 2] : vector<1x16x1xf32> to vector<1xf32>
    %453 = vector.shape_cast %452 : vector<1xf32> to vector<1x1x1xf32>
    %454 = vector.extract %453[0, 0, 0] : f32 from vector<1x1x1xf32>
    %455 = vector.broadcast %454 : f32 to vector<1x1xf32>
    %456 = vector.broadcast %455 : vector<1x1xf32> to vector<16x1xf32>
    %457 = arith.subf %450, %456 : vector<16x1xf32>
    %458 = math.exp %457 : vector<16x1xf32>
    %459 = vector.broadcast %458 : vector<16x1xf32> to vector<16x32xf32>
    %460 = arith.mulf %0, %459 : vector<16x32xf32>
    %cst_100 = arith.constant dense<0.000000e+00> : vector<2x32xf32>
    %461 = tpu.matmul %8, %460, %cst_100 {dimension_numbers = #tpu.dot_dimension_numbers<[1], [0], [0], [1], [0, 0, 1, 1], [], []>} : vector<2x16xf32>, vector<16x32xf32>, vector<2x32xf32> -> vector<2x32xf32>
    %cst_101 = arith.constant dense<0.000000e+00> : vector<2x1xf32>
    %462 = tpu.matmul %8, %458, %cst_101 {dimension_numbers = #tpu.dot_dimension_numbers<[1], [0], [0], [1], [0, 0, 1, 1], [], []>} : vector<2x16xf32>, vector<16x1xf32>, vector<2x1xf32> -> vector<2x1xf32>
    %cst_102 = arith.constant dense<0.000000e+00> : vector<2x96xf32>
    %463 = tpu.matmul %461, %6, %cst_102 {dimension_numbers = #tpu.dot_dimension_numbers<[1], [0], [0], [1], [0, 0, 1, 1], [], []>} : vector<2x32xf32>, vector<32x96xf32>, vector<2x96xf32> -> vector<2x96xf32>
    %464 = tpu.reciprocal %462 {approx = true} : vector<2x1xf32> -> vector<2x1xf32>
    %465 = vector.broadcast %464 : vector<2x1xf32> to vector<2x96xf32>
    %466 = arith.mulf %463, %465 : vector<2x96xf32>
    %467 = vector.broadcast %7 : vector<1x96xf32> to vector<2x96xf32>
    %468 = arith.addf %466, %467 : vector<2x96xf32>
    %469 = vector.extract_strided_slice %468 {offsets = [0, 0], sizes = [2, 32], strides = [1, 1]} : vector<2x96xf32> to vector<2x32xf32>
    %470 = vector.extract_strided_slice %446 {offsets = [0, 0], sizes = [2, 32], strides = [1, 1]} : vector<2x96xf32> to vector<2x32xf32>
    %471 = arith.addf %469, %470 : vector<2x32xf32>
    %472 = arith.negf %471 : vector<2x32xf32>
    %473 = math.exp %472 : vector<2x32xf32>
    %cst_103 = arith.constant 1.000000e+00 : f32
    %474 = vector.broadcast %cst_103 : f32 to vector<2x32xf32>
    %475 = arith.addf %474, %473 : vector<2x32xf32>
    %476 = arith.divf %474, %475 : vector<2x32xf32>
    %477 = vector.extract_strided_slice %468 {offsets = [0, 32], sizes = [2, 32], strides = [1, 1]} : vector<2x96xf32> to vector<2x32xf32>
    %478 = vector.extract_strided_slice %446 {offsets = [0, 32], sizes = [2, 32], strides = [1, 1]} : vector<2x96xf32> to vector<2x32xf32>
    %479 = arith.addf %477, %478 : vector<2x32xf32>
    %480 = arith.negf %479 : vector<2x32xf32>
    %481 = math.exp %480 : vector<2x32xf32>
    %cst_104 = arith.constant 1.000000e+00 : f32
    %482 = vector.broadcast %cst_104 : f32 to vector<2x32xf32>
    %483 = arith.addf %482, %481 : vector<2x32xf32>
    %484 = arith.divf %482, %483 : vector<2x32xf32>
    %485 = vector.extract_strided_slice %468 {offsets = [0, 64], sizes = [2, 32], strides = [1, 1]} : vector<2x96xf32> to vector<2x32xf32>
    %486 = vector.extract_strided_slice %446 {offsets = [0, 64], sizes = [2, 32], strides = [1, 1]} : vector<2x96xf32> to vector<2x32xf32>
    %487 = arith.mulf %476, %486 : vector<2x32xf32>
    %488 = arith.addf %485, %487 : vector<2x32xf32>
    %489 = math.tanh %488 : vector<2x32xf32>
    %cst_105 = arith.constant 1.000000e+00 : f32
    %490 = vector.broadcast %cst_105 : f32 to vector<2x32xf32>
    %491 = arith.subf %490, %484 : vector<2x32xf32>
    %492 = arith.mulf %491, %489 : vector<2x32xf32>
    %493 = arith.mulf %484, %440 : vector<2x32xf32>
    %494 = arith.addf %492, %493 : vector<2x32xf32>
    %c16 = arith.constant 16 : index
    %c0_106 = arith.constant 0 : index
    %495 = vector.load %arg12[%c16, %c0_106] : memref<40x32xf32, #tpu.memory_space<vmem>>, vector<2x32xf32>
    tpu.vector_store %arg12[%c16, %c0_106], %494 {strides = array<i32>} : memref<40x32xf32, #tpu.memory_space<vmem>>, vector<2x32xf32>,
    %cst_107 = arith.constant dense<0.000000e+00> : vector<2x128xf32>
    %496 = tpu.matmul %494, %3, %cst_107 {dimension_numbers = #tpu.dot_dimension_numbers<[1], [0], [0], [1], [0, 0, 1, 1], [], []>} : vector<2x32xf32>, vector<32x128xf32>, vector<2x128xf32> -> vector<2x128xf32>
    %497 = vector.broadcast %4 : vector<1x128xf32> to vector<2x128xf32>
    %498 = arith.addf %496, %497 : vector<2x128xf32>
    %499 = vector.extract_strided_slice %498 {offsets = [0, 0], sizes = [2, 32], strides = [1, 1]} : vector<2x128xf32> to vector<2x32xf32>
    %500 = vector.extract_strided_slice %498 {offsets = [0, 32], sizes = [2, 96], strides = [1, 1]} : vector<2x128xf32> to vector<2x96xf32>
    %501 = tpu.concatenate %499, %499, %499, %499, %499, %499, %499, %499 in 0 : vector<2x32xf32>, vector<2x32xf32>, vector<2x32xf32>, vector<2x32xf32>, vector<2x32xf32>, vector<2x32xf32>, vector<2x32xf32>, vector<2x32xf32> -> vector<16x32xf32>
    %502 = arith.addf %2, %501 : vector<16x32xf32>
    %503 = math.tanh %502 : vector<16x32xf32>
    %cst_108 = arith.constant dense<0.000000e+00> : vector<16x1xf32>
    %504 = tpu.matmul %503, %5, %cst_108 {dimension_numbers = #tpu.dot_dimension_numbers<[1], [0], [0], [1], [0, 0, 1, 1], [], []>} : vector<16x32xf32>, vector<32x1xf32>, vector<16x1xf32> -> vector<16x1xf32>
    %505 = vector.shape_cast %504 : vector<16x1xf32> to vector<1x16x1xf32>
    %cst_109 = arith.constant dense<0xFF800000> : vector<1xf32>
    %506 = vector.multi_reduction <maximumf>, %505, %cst_109 [1, 2] : vector<1x16x1xf32> to vector<1xf32>
    %507 = vector.shape_cast %506 : vector<1xf32> to vector<1x1x1xf32>
    %508 = vector.extract %507[0, 0, 0] : f32 from vector<1x1x1xf32>
    %509 = vector.broadcast %508 : f32 to vector<1x1xf32>
    %510 = vector.broadcast %509 : vector<1x1xf32> to vector<16x1xf32>
    %511 = arith.subf %504, %510 : vector<16x1xf32>
    %512 = math.exp %511 : vector<16x1xf32>
    %513 = vector.broadcast %512 : vector<16x1xf32> to vector<16x32xf32>
    %514 = arith.mulf %0, %513 : vector<16x32xf32>
    %cst_110 = arith.constant dense<0.000000e+00> : vector<2x32xf32>
    %515 = tpu.matmul %8, %514, %cst_110 {dimension_numbers = #tpu.dot_dimension_numbers<[1], [0], [0], [1], [0, 0, 1, 1], [], []>} : vector<2x16xf32>, vector<16x32xf32>, vector<2x32xf32> -> vector<2x32xf32>
    %cst_111 = arith.constant dense<0.000000e+00> : vector<2x1xf32>
    %516 = tpu.matmul %8, %512, %cst_111 {dimension_numbers = #tpu.dot_dimension_numbers<[1], [0], [0], [1], [0, 0, 1, 1], [], []>} : vector<2x16xf32>, vector<16x1xf32>, vector<2x1xf32> -> vector<2x1xf32>
    %cst_112 = arith.constant dense<0.000000e+00> : vector<2x96xf32>
    %517 = tpu.matmul %515, %6, %cst_112 {dimension_numbers = #tpu.dot_dimension_numbers<[1], [0], [0], [1], [0, 0, 1, 1], [], []>} : vector<2x32xf32>, vector<32x96xf32>, vector<2x96xf32> -> vector<2x96xf32>
    %518 = tpu.reciprocal %516 {approx = true} : vector<2x1xf32> -> vector<2x1xf32>
    %519 = vector.broadcast %518 : vector<2x1xf32> to vector<2x96xf32>
    %520 = arith.mulf %517, %519 : vector<2x96xf32>
    %521 = vector.broadcast %7 : vector<1x96xf32> to vector<2x96xf32>
    %522 = arith.addf %520, %521 : vector<2x96xf32>
    %523 = vector.extract_strided_slice %522 {offsets = [0, 0], sizes = [2, 32], strides = [1, 1]} : vector<2x96xf32> to vector<2x32xf32>
    %524 = vector.extract_strided_slice %500 {offsets = [0, 0], sizes = [2, 32], strides = [1, 1]} : vector<2x96xf32> to vector<2x32xf32>
    %525 = arith.addf %523, %524 : vector<2x32xf32>
    %526 = arith.negf %525 : vector<2x32xf32>
    %527 = math.exp %526 : vector<2x32xf32>
    %cst_113 = arith.constant 1.000000e+00 : f32
    %528 = vector.broadcast %cst_113 : f32 to vector<2x32xf32>
    %529 = arith.addf %528, %527 : vector<2x32xf32>
    %530 = arith.divf %528, %529 : vector<2x32xf32>
    %531 = vector.extract_strided_slice %522 {offsets = [0, 32], sizes = [2, 32], strides = [1, 1]} : vector<2x96xf32> to vector<2x32xf32>
    %532 = vector.extract_strided_slice %500 {offsets = [0, 32], sizes = [2, 32], strides = [1, 1]} : vector<2x96xf32> to vector<2x32xf32>
    %533 = arith.addf %531, %532 : vector<2x32xf32>
    %534 = arith.negf %533 : vector<2x32xf32>
    %535 = math.exp %534 : vector<2x32xf32>
    %cst_114 = arith.constant 1.000000e+00 : f32
    %536 = vector.broadcast %cst_114 : f32 to vector<2x32xf32>
    %537 = arith.addf %536, %535 : vector<2x32xf32>
    %538 = arith.divf %536, %537 : vector<2x32xf32>
    %539 = vector.extract_strided_slice %522 {offsets = [0, 64], sizes = [2, 32], strides = [1, 1]} : vector<2x96xf32> to vector<2x32xf32>
    %540 = vector.extract_strided_slice %500 {offsets = [0, 64], sizes = [2, 32], strides = [1, 1]} : vector<2x96xf32> to vector<2x32xf32>
    %541 = arith.mulf %530, %540 : vector<2x32xf32>
    %542 = arith.addf %539, %541 : vector<2x32xf32>
    %543 = math.tanh %542 : vector<2x32xf32>
    %cst_115 = arith.constant 1.000000e+00 : f32
    %544 = vector.broadcast %cst_115 : f32 to vector<2x32xf32>
    %545 = arith.subf %544, %538 : vector<2x32xf32>
    %546 = arith.mulf %545, %543 : vector<2x32xf32>
    %547 = arith.mulf %538, %494 : vector<2x32xf32>
    %548 = arith.addf %546, %547 : vector<2x32xf32>
    %c18 = arith.constant 18 : index
    %c0_116 = arith.constant 0 : index
    %549 = vector.load %arg12[%c18, %c0_116] : memref<40x32xf32, #tpu.memory_space<vmem>>, vector<2x32xf32>
    tpu.vector_store %arg12[%c18, %c0_116], %548 {strides = array<i32>} : memref<40x32xf32, #tpu.memory_space<vmem>>, vector<2x32xf32>,
    %cst_117 = arith.constant dense<0.000000e+00> : vector<2x128xf32>
    %550 = tpu.matmul %548, %3, %cst_117 {dimension_numbers = #tpu.dot_dimension_numbers<[1], [0], [0], [1], [0, 0, 1, 1], [], []>} : vector<2x32xf32>, vector<32x128xf32>, vector<2x128xf32> -> vector<2x128xf32>
    %551 = vector.broadcast %4 : vector<1x128xf32> to vector<2x128xf32>
    %552 = arith.addf %550, %551 : vector<2x128xf32>
    %553 = vector.extract_strided_slice %552 {offsets = [0, 0], sizes = [2, 32], strides = [1, 1]} : vector<2x128xf32> to vector<2x32xf32>
    %554 = vector.extract_strided_slice %552 {offsets = [0, 32], sizes = [2, 96], strides = [1, 1]} : vector<2x128xf32> to vector<2x96xf32>
    %555 = tpu.concatenate %553, %553, %553, %553, %553, %553, %553, %553 in 0 : vector<2x32xf32>, vector<2x32xf32>, vector<2x32xf32>, vector<2x32xf32>, vector<2x32xf32>, vector<2x32xf32>, vector<2x32xf32>, vector<2x32xf32> -> vector<16x32xf32>
    %556 = arith.addf %2, %555 : vector<16x32xf32>
    %557 = math.tanh %556 : vector<16x32xf32>
    %cst_118 = arith.constant dense<0.000000e+00> : vector<16x1xf32>
    %558 = tpu.matmul %557, %5, %cst_118 {dimension_numbers = #tpu.dot_dimension_numbers<[1], [0], [0], [1], [0, 0, 1, 1], [], []>} : vector<16x32xf32>, vector<32x1xf32>, vector<16x1xf32> -> vector<16x1xf32>
    %559 = vector.shape_cast %558 : vector<16x1xf32> to vector<1x16x1xf32>
    %cst_119 = arith.constant dense<0xFF800000> : vector<1xf32>
    %560 = vector.multi_reduction <maximumf>, %559, %cst_119 [1, 2] : vector<1x16x1xf32> to vector<1xf32>
    %561 = vector.shape_cast %560 : vector<1xf32> to vector<1x1x1xf32>
    %562 = vector.extract %561[0, 0, 0] : f32 from vector<1x1x1xf32>
    %563 = vector.broadcast %562 : f32 to vector<1x1xf32>
    %564 = vector.broadcast %563 : vector<1x1xf32> to vector<16x1xf32>
    %565 = arith.subf %558, %564 : vector<16x1xf32>
    %566 = math.exp %565 : vector<16x1xf32>
    %567 = vector.broadcast %566 : vector<16x1xf32> to vector<16x32xf32>
    %568 = arith.mulf %0, %567 : vector<16x32xf32>
    %cst_120 = arith.constant dense<0.000000e+00> : vector<2x32xf32>
    %569 = tpu.matmul %8, %568, %cst_120 {dimension_numbers = #tpu.dot_dimension_numbers<[1], [0], [0], [1], [0, 0, 1, 1], [], []>} : vector<2x16xf32>, vector<16x32xf32>, vector<2x32xf32> -> vector<2x32xf32>
    %cst_121 = arith.constant dense<0.000000e+00> : vector<2x1xf32>
    %570 = tpu.matmul %8, %566, %cst_121 {dimension_numbers = #tpu.dot_dimension_numbers<[1], [0], [0], [1], [0, 0, 1, 1], [], []>} : vector<2x16xf32>, vector<16x1xf32>, vector<2x1xf32> -> vector<2x1xf32>
    %cst_122 = arith.constant dense<0.000000e+00> : vector<2x96xf32>
    %571 = tpu.matmul %569, %6, %cst_122 {dimension_numbers = #tpu.dot_dimension_numbers<[1], [0], [0], [1], [0, 0, 1, 1], [], []>} : vector<2x32xf32>, vector<32x96xf32>, vector<2x96xf32> -> vector<2x96xf32>
    %572 = tpu.reciprocal %570 {approx = true} : vector<2x1xf32> -> vector<2x1xf32>
    %573 = vector.broadcast %572 : vector<2x1xf32> to vector<2x96xf32>
    %574 = arith.mulf %571, %573 : vector<2x96xf32>
    %575 = vector.broadcast %7 : vector<1x96xf32> to vector<2x96xf32>
    %576 = arith.addf %574, %575 : vector<2x96xf32>
    %577 = vector.extract_strided_slice %576 {offsets = [0, 0], sizes = [2, 32], strides = [1, 1]} : vector<2x96xf32> to vector<2x32xf32>
    %578 = vector.extract_strided_slice %554 {offsets = [0, 0], sizes = [2, 32], strides = [1, 1]} : vector<2x96xf32> to vector<2x32xf32>
    %579 = arith.addf %577, %578 : vector<2x32xf32>
    %580 = arith.negf %579 : vector<2x32xf32>
    %581 = math.exp %580 : vector<2x32xf32>
    %cst_123 = arith.constant 1.000000e+00 : f32
    %582 = vector.broadcast %cst_123 : f32 to vector<2x32xf32>
    %583 = arith.addf %582, %581 : vector<2x32xf32>
    %584 = arith.divf %582, %583 : vector<2x32xf32>
    %585 = vector.extract_strided_slice %576 {offsets = [0, 32], sizes = [2, 32], strides = [1, 1]} : vector<2x96xf32> to vector<2x32xf32>
    %586 = vector.extract_strided_slice %554 {offsets = [0, 32], sizes = [2, 32], strides = [1, 1]} : vector<2x96xf32> to vector<2x32xf32>
    %587 = arith.addf %585, %586 : vector<2x32xf32>
    %588 = arith.negf %587 : vector<2x32xf32>
    %589 = math.exp %588 : vector<2x32xf32>
    %cst_124 = arith.constant 1.000000e+00 : f32
    %590 = vector.broadcast %cst_124 : f32 to vector<2x32xf32>
    %591 = arith.addf %590, %589 : vector<2x32xf32>
    %592 = arith.divf %590, %591 : vector<2x32xf32>
    %593 = vector.extract_strided_slice %576 {offsets = [0, 64], sizes = [2, 32], strides = [1, 1]} : vector<2x96xf32> to vector<2x32xf32>
    %594 = vector.extract_strided_slice %554 {offsets = [0, 64], sizes = [2, 32], strides = [1, 1]} : vector<2x96xf32> to vector<2x32xf32>
    %595 = arith.mulf %584, %594 : vector<2x32xf32>
    %596 = arith.addf %593, %595 : vector<2x32xf32>
    %597 = math.tanh %596 : vector<2x32xf32>
    %cst_125 = arith.constant 1.000000e+00 : f32
    %598 = vector.broadcast %cst_125 : f32 to vector<2x32xf32>
    %599 = arith.subf %598, %592 : vector<2x32xf32>
    %600 = arith.mulf %599, %597 : vector<2x32xf32>
    %601 = arith.mulf %592, %548 : vector<2x32xf32>
    %602 = arith.addf %600, %601 : vector<2x32xf32>
    %c20 = arith.constant 20 : index
    %c0_126 = arith.constant 0 : index
    %603 = vector.load %arg12[%c20, %c0_126] : memref<40x32xf32, #tpu.memory_space<vmem>>, vector<2x32xf32>
    tpu.vector_store %arg12[%c20, %c0_126], %602 {strides = array<i32>} : memref<40x32xf32, #tpu.memory_space<vmem>>, vector<2x32xf32>,
    %cst_127 = arith.constant dense<0.000000e+00> : vector<2x128xf32>
    %604 = tpu.matmul %602, %3, %cst_127 {dimension_numbers = #tpu.dot_dimension_numbers<[1], [0], [0], [1], [0, 0, 1, 1], [], []>} : vector<2x32xf32>, vector<32x128xf32>, vector<2x128xf32> -> vector<2x128xf32>
    %605 = vector.broadcast %4 : vector<1x128xf32> to vector<2x128xf32>
    %606 = arith.addf %604, %605 : vector<2x128xf32>
    %607 = vector.extract_strided_slice %606 {offsets = [0, 0], sizes = [2, 32], strides = [1, 1]} : vector<2x128xf32> to vector<2x32xf32>
    %608 = vector.extract_strided_slice %606 {offsets = [0, 32], sizes = [2, 96], strides = [1, 1]} : vector<2x128xf32> to vector<2x96xf32>
    %609 = tpu.concatenate %607, %607, %607, %607, %607, %607, %607, %607 in 0 : vector<2x32xf32>, vector<2x32xf32>, vector<2x32xf32>, vector<2x32xf32>, vector<2x32xf32>, vector<2x32xf32>, vector<2x32xf32>, vector<2x32xf32> -> vector<16x32xf32>
    %610 = arith.addf %2, %609 : vector<16x32xf32>
    %611 = math.tanh %610 : vector<16x32xf32>
    %cst_128 = arith.constant dense<0.000000e+00> : vector<16x1xf32>
    %612 = tpu.matmul %611, %5, %cst_128 {dimension_numbers = #tpu.dot_dimension_numbers<[1], [0], [0], [1], [0, 0, 1, 1], [], []>} : vector<16x32xf32>, vector<32x1xf32>, vector<16x1xf32> -> vector<16x1xf32>
    %613 = vector.shape_cast %612 : vector<16x1xf32> to vector<1x16x1xf32>
    %cst_129 = arith.constant dense<0xFF800000> : vector<1xf32>
    %614 = vector.multi_reduction <maximumf>, %613, %cst_129 [1, 2] : vector<1x16x1xf32> to vector<1xf32>
    %615 = vector.shape_cast %614 : vector<1xf32> to vector<1x1x1xf32>
    %616 = vector.extract %615[0, 0, 0] : f32 from vector<1x1x1xf32>
    %617 = vector.broadcast %616 : f32 to vector<1x1xf32>
    %618 = vector.broadcast %617 : vector<1x1xf32> to vector<16x1xf32>
    %619 = arith.subf %612, %618 : vector<16x1xf32>
    %620 = math.exp %619 : vector<16x1xf32>
    %621 = vector.broadcast %620 : vector<16x1xf32> to vector<16x32xf32>
    %622 = arith.mulf %0, %621 : vector<16x32xf32>
    %cst_130 = arith.constant dense<0.000000e+00> : vector<2x32xf32>
    %623 = tpu.matmul %8, %622, %cst_130 {dimension_numbers = #tpu.dot_dimension_numbers<[1], [0], [0], [1], [0, 0, 1, 1], [], []>} : vector<2x16xf32>, vector<16x32xf32>, vector<2x32xf32> -> vector<2x32xf32>
    %cst_131 = arith.constant dense<0.000000e+00> : vector<2x1xf32>
    %624 = tpu.matmul %8, %620, %cst_131 {dimension_numbers = #tpu.dot_dimension_numbers<[1], [0], [0], [1], [0, 0, 1, 1], [], []>} : vector<2x16xf32>, vector<16x1xf32>, vector<2x1xf32> -> vector<2x1xf32>
    %cst_132 = arith.constant dense<0.000000e+00> : vector<2x96xf32>
    %625 = tpu.matmul %623, %6, %cst_132 {dimension_numbers = #tpu.dot_dimension_numbers<[1], [0], [0], [1], [0, 0, 1, 1], [], []>} : vector<2x32xf32>, vector<32x96xf32>, vector<2x96xf32> -> vector<2x96xf32>
    %626 = tpu.reciprocal %624 {approx = true} : vector<2x1xf32> -> vector<2x1xf32>
    %627 = vector.broadcast %626 : vector<2x1xf32> to vector<2x96xf32>
    %628 = arith.mulf %625, %627 : vector<2x96xf32>
    %629 = vector.broadcast %7 : vector<1x96xf32> to vector<2x96xf32>
    %630 = arith.addf %628, %629 : vector<2x96xf32>
    %631 = vector.extract_strided_slice %630 {offsets = [0, 0], sizes = [2, 32], strides = [1, 1]} : vector<2x96xf32> to vector<2x32xf32>
    %632 = vector.extract_strided_slice %608 {offsets = [0, 0], sizes = [2, 32], strides = [1, 1]} : vector<2x96xf32> to vector<2x32xf32>
    %633 = arith.addf %631, %632 : vector<2x32xf32>
    %634 = arith.negf %633 : vector<2x32xf32>
    %635 = math.exp %634 : vector<2x32xf32>
    %cst_133 = arith.constant 1.000000e+00 : f32
    %636 = vector.broadcast %cst_133 : f32 to vector<2x32xf32>
    %637 = arith.addf %636, %635 : vector<2x32xf32>
    %638 = arith.divf %636, %637 : vector<2x32xf32>
    %639 = vector.extract_strided_slice %630 {offsets = [0, 32], sizes = [2, 32], strides = [1, 1]} : vector<2x96xf32> to vector<2x32xf32>
    %640 = vector.extract_strided_slice %608 {offsets = [0, 32], sizes = [2, 32], strides = [1, 1]} : vector<2x96xf32> to vector<2x32xf32>
    %641 = arith.addf %639, %640 : vector<2x32xf32>
    %642 = arith.negf %641 : vector<2x32xf32>
    %643 = math.exp %642 : vector<2x32xf32>
    %cst_134 = arith.constant 1.000000e+00 : f32
    %644 = vector.broadcast %cst_134 : f32 to vector<2x32xf32>
    %645 = arith.addf %644, %643 : vector<2x32xf32>
    %646 = arith.divf %644, %645 : vector<2x32xf32>
    %647 = vector.extract_strided_slice %630 {offsets = [0, 64], sizes = [2, 32], strides = [1, 1]} : vector<2x96xf32> to vector<2x32xf32>
    %648 = vector.extract_strided_slice %608 {offsets = [0, 64], sizes = [2, 32], strides = [1, 1]} : vector<2x96xf32> to vector<2x32xf32>
    %649 = arith.mulf %638, %648 : vector<2x32xf32>
    %650 = arith.addf %647, %649 : vector<2x32xf32>
    %651 = math.tanh %650 : vector<2x32xf32>
    %cst_135 = arith.constant 1.000000e+00 : f32
    %652 = vector.broadcast %cst_135 : f32 to vector<2x32xf32>
    %653 = arith.subf %652, %646 : vector<2x32xf32>
    %654 = arith.mulf %653, %651 : vector<2x32xf32>
    %655 = arith.mulf %646, %602 : vector<2x32xf32>
    %656 = arith.addf %654, %655 : vector<2x32xf32>
    %c22 = arith.constant 22 : index
    %c0_136 = arith.constant 0 : index
    %657 = vector.load %arg12[%c22, %c0_136] : memref<40x32xf32, #tpu.memory_space<vmem>>, vector<2x32xf32>
    tpu.vector_store %arg12[%c22, %c0_136], %656 {strides = array<i32>} : memref<40x32xf32, #tpu.memory_space<vmem>>, vector<2x32xf32>,
    %cst_137 = arith.constant dense<0.000000e+00> : vector<2x128xf32>
    %658 = tpu.matmul %656, %3, %cst_137 {dimension_numbers = #tpu.dot_dimension_numbers<[1], [0], [0], [1], [0, 0, 1, 1], [], []>} : vector<2x32xf32>, vector<32x128xf32>, vector<2x128xf32> -> vector<2x128xf32>
    %659 = vector.broadcast %4 : vector<1x128xf32> to vector<2x128xf32>
    %660 = arith.addf %658, %659 : vector<2x128xf32>
    %661 = vector.extract_strided_slice %660 {offsets = [0, 0], sizes = [2, 32], strides = [1, 1]} : vector<2x128xf32> to vector<2x32xf32>
    %662 = vector.extract_strided_slice %660 {offsets = [0, 32], sizes = [2, 96], strides = [1, 1]} : vector<2x128xf32> to vector<2x96xf32>
    %663 = tpu.concatenate %661, %661, %661, %661, %661, %661, %661, %661 in 0 : vector<2x32xf32>, vector<2x32xf32>, vector<2x32xf32>, vector<2x32xf32>, vector<2x32xf32>, vector<2x32xf32>, vector<2x32xf32>, vector<2x32xf32> -> vector<16x32xf32>
    %664 = arith.addf %2, %663 : vector<16x32xf32>
    %665 = math.tanh %664 : vector<16x32xf32>
    %cst_138 = arith.constant dense<0.000000e+00> : vector<16x1xf32>
    %666 = tpu.matmul %665, %5, %cst_138 {dimension_numbers = #tpu.dot_dimension_numbers<[1], [0], [0], [1], [0, 0, 1, 1], [], []>} : vector<16x32xf32>, vector<32x1xf32>, vector<16x1xf32> -> vector<16x1xf32>
    %667 = vector.shape_cast %666 : vector<16x1xf32> to vector<1x16x1xf32>
    %cst_139 = arith.constant dense<0xFF800000> : vector<1xf32>
    %668 = vector.multi_reduction <maximumf>, %667, %cst_139 [1, 2] : vector<1x16x1xf32> to vector<1xf32>
    %669 = vector.shape_cast %668 : vector<1xf32> to vector<1x1x1xf32>
    %670 = vector.extract %669[0, 0, 0] : f32 from vector<1x1x1xf32>
    %671 = vector.broadcast %670 : f32 to vector<1x1xf32>
    %672 = vector.broadcast %671 : vector<1x1xf32> to vector<16x1xf32>
    %673 = arith.subf %666, %672 : vector<16x1xf32>
    %674 = math.exp %673 : vector<16x1xf32>
    %675 = vector.broadcast %674 : vector<16x1xf32> to vector<16x32xf32>
    %676 = arith.mulf %0, %675 : vector<16x32xf32>
    %cst_140 = arith.constant dense<0.000000e+00> : vector<2x32xf32>
    %677 = tpu.matmul %8, %676, %cst_140 {dimension_numbers = #tpu.dot_dimension_numbers<[1], [0], [0], [1], [0, 0, 1, 1], [], []>} : vector<2x16xf32>, vector<16x32xf32>, vector<2x32xf32> -> vector<2x32xf32>
    %cst_141 = arith.constant dense<0.000000e+00> : vector<2x1xf32>
    %678 = tpu.matmul %8, %674, %cst_141 {dimension_numbers = #tpu.dot_dimension_numbers<[1], [0], [0], [1], [0, 0, 1, 1], [], []>} : vector<2x16xf32>, vector<16x1xf32>, vector<2x1xf32> -> vector<2x1xf32>
    %cst_142 = arith.constant dense<0.000000e+00> : vector<2x96xf32>
    %679 = tpu.matmul %677, %6, %cst_142 {dimension_numbers = #tpu.dot_dimension_numbers<[1], [0], [0], [1], [0, 0, 1, 1], [], []>} : vector<2x32xf32>, vector<32x96xf32>, vector<2x96xf32> -> vector<2x96xf32>
    %680 = tpu.reciprocal %678 {approx = true} : vector<2x1xf32> -> vector<2x1xf32>
    %681 = vector.broadcast %680 : vector<2x1xf32> to vector<2x96xf32>
    %682 = arith.mulf %679, %681 : vector<2x96xf32>
    %683 = vector.broadcast %7 : vector<1x96xf32> to vector<2x96xf32>
    %684 = arith.addf %682, %683 : vector<2x96xf32>
    %685 = vector.extract_strided_slice %684 {offsets = [0, 0], sizes = [2, 32], strides = [1, 1]} : vector<2x96xf32> to vector<2x32xf32>
    %686 = vector.extract_strided_slice %662 {offsets = [0, 0], sizes = [2, 32], strides = [1, 1]} : vector<2x96xf32> to vector<2x32xf32>
    %687 = arith.addf %685, %686 : vector<2x32xf32>
    %688 = arith.negf %687 : vector<2x32xf32>
    %689 = math.exp %688 : vector<2x32xf32>
    %cst_143 = arith.constant 1.000000e+00 : f32
    %690 = vector.broadcast %cst_143 : f32 to vector<2x32xf32>
    %691 = arith.addf %690, %689 : vector<2x32xf32>
    %692 = arith.divf %690, %691 : vector<2x32xf32>
    %693 = vector.extract_strided_slice %684 {offsets = [0, 32], sizes = [2, 32], strides = [1, 1]} : vector<2x96xf32> to vector<2x32xf32>
    %694 = vector.extract_strided_slice %662 {offsets = [0, 32], sizes = [2, 32], strides = [1, 1]} : vector<2x96xf32> to vector<2x32xf32>
    %695 = arith.addf %693, %694 : vector<2x32xf32>
    %696 = arith.negf %695 : vector<2x32xf32>
    %697 = math.exp %696 : vector<2x32xf32>
    %cst_144 = arith.constant 1.000000e+00 : f32
    %698 = vector.broadcast %cst_144 : f32 to vector<2x32xf32>
    %699 = arith.addf %698, %697 : vector<2x32xf32>
    %700 = arith.divf %698, %699 : vector<2x32xf32>
    %701 = vector.extract_strided_slice %684 {offsets = [0, 64], sizes = [2, 32], strides = [1, 1]} : vector<2x96xf32> to vector<2x32xf32>
    %702 = vector.extract_strided_slice %662 {offsets = [0, 64], sizes = [2, 32], strides = [1, 1]} : vector<2x96xf32> to vector<2x32xf32>
    %703 = arith.mulf %692, %702 : vector<2x32xf32>
    %704 = arith.addf %701, %703 : vector<2x32xf32>
    %705 = math.tanh %704 : vector<2x32xf32>
    %cst_145 = arith.constant 1.000000e+00 : f32
    %706 = vector.broadcast %cst_145 : f32 to vector<2x32xf32>
    %707 = arith.subf %706, %700 : vector<2x32xf32>
    %708 = arith.mulf %707, %705 : vector<2x32xf32>
    %709 = arith.mulf %700, %656 : vector<2x32xf32>
    %710 = arith.addf %708, %709 : vector<2x32xf32>
    %c24 = arith.constant 24 : index
    %c0_146 = arith.constant 0 : index
    %711 = vector.load %arg12[%c24, %c0_146] : memref<40x32xf32, #tpu.memory_space<vmem>>, vector<2x32xf32>
    tpu.vector_store %arg12[%c24, %c0_146], %710 {strides = array<i32>} : memref<40x32xf32, #tpu.memory_space<vmem>>, vector<2x32xf32>,
    %cst_147 = arith.constant dense<0.000000e+00> : vector<2x128xf32>
    %712 = tpu.matmul %710, %3, %cst_147 {dimension_numbers = #tpu.dot_dimension_numbers<[1], [0], [0], [1], [0, 0, 1, 1], [], []>} : vector<2x32xf32>, vector<32x128xf32>, vector<2x128xf32> -> vector<2x128xf32>
    %713 = vector.broadcast %4 : vector<1x128xf32> to vector<2x128xf32>
    %714 = arith.addf %712, %713 : vector<2x128xf32>
    %715 = vector.extract_strided_slice %714 {offsets = [0, 0], sizes = [2, 32], strides = [1, 1]} : vector<2x128xf32> to vector<2x32xf32>
    %716 = vector.extract_strided_slice %714 {offsets = [0, 32], sizes = [2, 96], strides = [1, 1]} : vector<2x128xf32> to vector<2x96xf32>
    %717 = tpu.concatenate %715, %715, %715, %715, %715, %715, %715, %715 in 0 : vector<2x32xf32>, vector<2x32xf32>, vector<2x32xf32>, vector<2x32xf32>, vector<2x32xf32>, vector<2x32xf32>, vector<2x32xf32>, vector<2x32xf32> -> vector<16x32xf32>
    %718 = arith.addf %2, %717 : vector<16x32xf32>
    %719 = math.tanh %718 : vector<16x32xf32>
    %cst_148 = arith.constant dense<0.000000e+00> : vector<16x1xf32>
    %720 = tpu.matmul %719, %5, %cst_148 {dimension_numbers = #tpu.dot_dimension_numbers<[1], [0], [0], [1], [0, 0, 1, 1], [], []>} : vector<16x32xf32>, vector<32x1xf32>, vector<16x1xf32> -> vector<16x1xf32>
    %721 = vector.shape_cast %720 : vector<16x1xf32> to vector<1x16x1xf32>
    %cst_149 = arith.constant dense<0xFF800000> : vector<1xf32>
    %722 = vector.multi_reduction <maximumf>, %721, %cst_149 [1, 2] : vector<1x16x1xf32> to vector<1xf32>
    %723 = vector.shape_cast %722 : vector<1xf32> to vector<1x1x1xf32>
    %724 = vector.extract %723[0, 0, 0] : f32 from vector<1x1x1xf32>
    %725 = vector.broadcast %724 : f32 to vector<1x1xf32>
    %726 = vector.broadcast %725 : vector<1x1xf32> to vector<16x1xf32>
    %727 = arith.subf %720, %726 : vector<16x1xf32>
    %728 = math.exp %727 : vector<16x1xf32>
    %729 = vector.broadcast %728 : vector<16x1xf32> to vector<16x32xf32>
    %730 = arith.mulf %0, %729 : vector<16x32xf32>
    %cst_150 = arith.constant dense<0.000000e+00> : vector<2x32xf32>
    %731 = tpu.matmul %8, %730, %cst_150 {dimension_numbers = #tpu.dot_dimension_numbers<[1], [0], [0], [1], [0, 0, 1, 1], [], []>} : vector<2x16xf32>, vector<16x32xf32>, vector<2x32xf32> -> vector<2x32xf32>
    %cst_151 = arith.constant dense<0.000000e+00> : vector<2x1xf32>
    %732 = tpu.matmul %8, %728, %cst_151 {dimension_numbers = #tpu.dot_dimension_numbers<[1], [0], [0], [1], [0, 0, 1, 1], [], []>} : vector<2x16xf32>, vector<16x1xf32>, vector<2x1xf32> -> vector<2x1xf32>
    %cst_152 = arith.constant dense<0.000000e+00> : vector<2x96xf32>
    %733 = tpu.matmul %731, %6, %cst_152 {dimension_numbers = #tpu.dot_dimension_numbers<[1], [0], [0], [1], [0, 0, 1, 1], [], []>} : vector<2x32xf32>, vector<32x96xf32>, vector<2x96xf32> -> vector<2x96xf32>
    %734 = tpu.reciprocal %732 {approx = true} : vector<2x1xf32> -> vector<2x1xf32>
    %735 = vector.broadcast %734 : vector<2x1xf32> to vector<2x96xf32>
    %736 = arith.mulf %733, %735 : vector<2x96xf32>
    %737 = vector.broadcast %7 : vector<1x96xf32> to vector<2x96xf32>
    %738 = arith.addf %736, %737 : vector<2x96xf32>
    %739 = vector.extract_strided_slice %738 {offsets = [0, 0], sizes = [2, 32], strides = [1, 1]} : vector<2x96xf32> to vector<2x32xf32>
    %740 = vector.extract_strided_slice %716 {offsets = [0, 0], sizes = [2, 32], strides = [1, 1]} : vector<2x96xf32> to vector<2x32xf32>
    %741 = arith.addf %739, %740 : vector<2x32xf32>
    %742 = arith.negf %741 : vector<2x32xf32>
    %743 = math.exp %742 : vector<2x32xf32>
    %cst_153 = arith.constant 1.000000e+00 : f32
    %744 = vector.broadcast %cst_153 : f32 to vector<2x32xf32>
    %745 = arith.addf %744, %743 : vector<2x32xf32>
    %746 = arith.divf %744, %745 : vector<2x32xf32>
    %747 = vector.extract_strided_slice %738 {offsets = [0, 32], sizes = [2, 32], strides = [1, 1]} : vector<2x96xf32> to vector<2x32xf32>
    %748 = vector.extract_strided_slice %716 {offsets = [0, 32], sizes = [2, 32], strides = [1, 1]} : vector<2x96xf32> to vector<2x32xf32>
    %749 = arith.addf %747, %748 : vector<2x32xf32>
    %750 = arith.negf %749 : vector<2x32xf32>
    %751 = math.exp %750 : vector<2x32xf32>
    %cst_154 = arith.constant 1.000000e+00 : f32
    %752 = vector.broadcast %cst_154 : f32 to vector<2x32xf32>
    %753 = arith.addf %752, %751 : vector<2x32xf32>
    %754 = arith.divf %752, %753 : vector<2x32xf32>
    %755 = vector.extract_strided_slice %738 {offsets = [0, 64], sizes = [2, 32], strides = [1, 1]} : vector<2x96xf32> to vector<2x32xf32>
    %756 = vector.extract_strided_slice %716 {offsets = [0, 64], sizes = [2, 32], strides = [1, 1]} : vector<2x96xf32> to vector<2x32xf32>
    %757 = arith.mulf %746, %756 : vector<2x32xf32>
    %758 = arith.addf %755, %757 : vector<2x32xf32>
    %759 = math.tanh %758 : vector<2x32xf32>
    %cst_155 = arith.constant 1.000000e+00 : f32
    %760 = vector.broadcast %cst_155 : f32 to vector<2x32xf32>
    %761 = arith.subf %760, %754 : vector<2x32xf32>
    %762 = arith.mulf %761, %759 : vector<2x32xf32>
    %763 = arith.mulf %754, %710 : vector<2x32xf32>
    %764 = arith.addf %762, %763 : vector<2x32xf32>
    %c26 = arith.constant 26 : index
    %c0_156 = arith.constant 0 : index
    %765 = vector.load %arg12[%c26, %c0_156] : memref<40x32xf32, #tpu.memory_space<vmem>>, vector<2x32xf32>
    tpu.vector_store %arg12[%c26, %c0_156], %764 {strides = array<i32>} : memref<40x32xf32, #tpu.memory_space<vmem>>, vector<2x32xf32>,
    %cst_157 = arith.constant dense<0.000000e+00> : vector<2x128xf32>
    %766 = tpu.matmul %764, %3, %cst_157 {dimension_numbers = #tpu.dot_dimension_numbers<[1], [0], [0], [1], [0, 0, 1, 1], [], []>} : vector<2x32xf32>, vector<32x128xf32>, vector<2x128xf32> -> vector<2x128xf32>
    %767 = vector.broadcast %4 : vector<1x128xf32> to vector<2x128xf32>
    %768 = arith.addf %766, %767 : vector<2x128xf32>
    %769 = vector.extract_strided_slice %768 {offsets = [0, 0], sizes = [2, 32], strides = [1, 1]} : vector<2x128xf32> to vector<2x32xf32>
    %770 = vector.extract_strided_slice %768 {offsets = [0, 32], sizes = [2, 96], strides = [1, 1]} : vector<2x128xf32> to vector<2x96xf32>
    %771 = tpu.concatenate %769, %769, %769, %769, %769, %769, %769, %769 in 0 : vector<2x32xf32>, vector<2x32xf32>, vector<2x32xf32>, vector<2x32xf32>, vector<2x32xf32>, vector<2x32xf32>, vector<2x32xf32>, vector<2x32xf32> -> vector<16x32xf32>
    %772 = arith.addf %2, %771 : vector<16x32xf32>
    %773 = math.tanh %772 : vector<16x32xf32>
    %cst_158 = arith.constant dense<0.000000e+00> : vector<16x1xf32>
    %774 = tpu.matmul %773, %5, %cst_158 {dimension_numbers = #tpu.dot_dimension_numbers<[1], [0], [0], [1], [0, 0, 1, 1], [], []>} : vector<16x32xf32>, vector<32x1xf32>, vector<16x1xf32> -> vector<16x1xf32>
    %775 = vector.shape_cast %774 : vector<16x1xf32> to vector<1x16x1xf32>
    %cst_159 = arith.constant dense<0xFF800000> : vector<1xf32>
    %776 = vector.multi_reduction <maximumf>, %775, %cst_159 [1, 2] : vector<1x16x1xf32> to vector<1xf32>
    %777 = vector.shape_cast %776 : vector<1xf32> to vector<1x1x1xf32>
    %778 = vector.extract %777[0, 0, 0] : f32 from vector<1x1x1xf32>
    %779 = vector.broadcast %778 : f32 to vector<1x1xf32>
    %780 = vector.broadcast %779 : vector<1x1xf32> to vector<16x1xf32>
    %781 = arith.subf %774, %780 : vector<16x1xf32>
    %782 = math.exp %781 : vector<16x1xf32>
    %783 = vector.broadcast %782 : vector<16x1xf32> to vector<16x32xf32>
    %784 = arith.mulf %0, %783 : vector<16x32xf32>
    %cst_160 = arith.constant dense<0.000000e+00> : vector<2x32xf32>
    %785 = tpu.matmul %8, %784, %cst_160 {dimension_numbers = #tpu.dot_dimension_numbers<[1], [0], [0], [1], [0, 0, 1, 1], [], []>} : vector<2x16xf32>, vector<16x32xf32>, vector<2x32xf32> -> vector<2x32xf32>
    %cst_161 = arith.constant dense<0.000000e+00> : vector<2x1xf32>
    %786 = tpu.matmul %8, %782, %cst_161 {dimension_numbers = #tpu.dot_dimension_numbers<[1], [0], [0], [1], [0, 0, 1, 1], [], []>} : vector<2x16xf32>, vector<16x1xf32>, vector<2x1xf32> -> vector<2x1xf32>
    %cst_162 = arith.constant dense<0.000000e+00> : vector<2x96xf32>
    %787 = tpu.matmul %785, %6, %cst_162 {dimension_numbers = #tpu.dot_dimension_numbers<[1], [0], [0], [1], [0, 0, 1, 1], [], []>} : vector<2x32xf32>, vector<32x96xf32>, vector<2x96xf32> -> vector<2x96xf32>
    %788 = tpu.reciprocal %786 {approx = true} : vector<2x1xf32> -> vector<2x1xf32>
    %789 = vector.broadcast %788 : vector<2x1xf32> to vector<2x96xf32>
    %790 = arith.mulf %787, %789 : vector<2x96xf32>
    %791 = vector.broadcast %7 : vector<1x96xf32> to vector<2x96xf32>
    %792 = arith.addf %790, %791 : vector<2x96xf32>
    %793 = vector.extract_strided_slice %792 {offsets = [0, 0], sizes = [2, 32], strides = [1, 1]} : vector<2x96xf32> to vector<2x32xf32>
    %794 = vector.extract_strided_slice %770 {offsets = [0, 0], sizes = [2, 32], strides = [1, 1]} : vector<2x96xf32> to vector<2x32xf32>
    %795 = arith.addf %793, %794 : vector<2x32xf32>
    %796 = arith.negf %795 : vector<2x32xf32>
    %797 = math.exp %796 : vector<2x32xf32>
    %cst_163 = arith.constant 1.000000e+00 : f32
    %798 = vector.broadcast %cst_163 : f32 to vector<2x32xf32>
    %799 = arith.addf %798, %797 : vector<2x32xf32>
    %800 = arith.divf %798, %799 : vector<2x32xf32>
    %801 = vector.extract_strided_slice %792 {offsets = [0, 32], sizes = [2, 32], strides = [1, 1]} : vector<2x96xf32> to vector<2x32xf32>
    %802 = vector.extract_strided_slice %770 {offsets = [0, 32], sizes = [2, 32], strides = [1, 1]} : vector<2x96xf32> to vector<2x32xf32>
    %803 = arith.addf %801, %802 : vector<2x32xf32>
    %804 = arith.negf %803 : vector<2x32xf32>
    %805 = math.exp %804 : vector<2x32xf32>
    %cst_164 = arith.constant 1.000000e+00 : f32
    %806 = vector.broadcast %cst_164 : f32 to vector<2x32xf32>
    %807 = arith.addf %806, %805 : vector<2x32xf32>
    %808 = arith.divf %806, %807 : vector<2x32xf32>
    %809 = vector.extract_strided_slice %792 {offsets = [0, 64], sizes = [2, 32], strides = [1, 1]} : vector<2x96xf32> to vector<2x32xf32>
    %810 = vector.extract_strided_slice %770 {offsets = [0, 64], sizes = [2, 32], strides = [1, 1]} : vector<2x96xf32> to vector<2x32xf32>
    %811 = arith.mulf %800, %810 : vector<2x32xf32>
    %812 = arith.addf %809, %811 : vector<2x32xf32>
    %813 = math.tanh %812 : vector<2x32xf32>
    %cst_165 = arith.constant 1.000000e+00 : f32
    %814 = vector.broadcast %cst_165 : f32 to vector<2x32xf32>
    %815 = arith.subf %814, %808 : vector<2x32xf32>
    %816 = arith.mulf %815, %813 : vector<2x32xf32>
    %817 = arith.mulf %808, %764 : vector<2x32xf32>
    %818 = arith.addf %816, %817 : vector<2x32xf32>
    %c28 = arith.constant 28 : index
    %c0_166 = arith.constant 0 : index
    %819 = vector.load %arg12[%c28, %c0_166] : memref<40x32xf32, #tpu.memory_space<vmem>>, vector<2x32xf32>
    tpu.vector_store %arg12[%c28, %c0_166], %818 {strides = array<i32>} : memref<40x32xf32, #tpu.memory_space<vmem>>, vector<2x32xf32>,
    %cst_167 = arith.constant dense<0.000000e+00> : vector<2x128xf32>
    %820 = tpu.matmul %818, %3, %cst_167 {dimension_numbers = #tpu.dot_dimension_numbers<[1], [0], [0], [1], [0, 0, 1, 1], [], []>} : vector<2x32xf32>, vector<32x128xf32>, vector<2x128xf32> -> vector<2x128xf32>
    %821 = vector.broadcast %4 : vector<1x128xf32> to vector<2x128xf32>
    %822 = arith.addf %820, %821 : vector<2x128xf32>
    %823 = vector.extract_strided_slice %822 {offsets = [0, 0], sizes = [2, 32], strides = [1, 1]} : vector<2x128xf32> to vector<2x32xf32>
    %824 = vector.extract_strided_slice %822 {offsets = [0, 32], sizes = [2, 96], strides = [1, 1]} : vector<2x128xf32> to vector<2x96xf32>
    %825 = tpu.concatenate %823, %823, %823, %823, %823, %823, %823, %823 in 0 : vector<2x32xf32>, vector<2x32xf32>, vector<2x32xf32>, vector<2x32xf32>, vector<2x32xf32>, vector<2x32xf32>, vector<2x32xf32>, vector<2x32xf32> -> vector<16x32xf32>
    %826 = arith.addf %2, %825 : vector<16x32xf32>
    %827 = math.tanh %826 : vector<16x32xf32>
    %cst_168 = arith.constant dense<0.000000e+00> : vector<16x1xf32>
    %828 = tpu.matmul %827, %5, %cst_168 {dimension_numbers = #tpu.dot_dimension_numbers<[1], [0], [0], [1], [0, 0, 1, 1], [], []>} : vector<16x32xf32>, vector<32x1xf32>, vector<16x1xf32> -> vector<16x1xf32>
    %829 = vector.shape_cast %828 : vector<16x1xf32> to vector<1x16x1xf32>
    %cst_169 = arith.constant dense<0xFF800000> : vector<1xf32>
    %830 = vector.multi_reduction <maximumf>, %829, %cst_169 [1, 2] : vector<1x16x1xf32> to vector<1xf32>
    %831 = vector.shape_cast %830 : vector<1xf32> to vector<1x1x1xf32>
    %832 = vector.extract %831[0, 0, 0] : f32 from vector<1x1x1xf32>
    %833 = vector.broadcast %832 : f32 to vector<1x1xf32>
    %834 = vector.broadcast %833 : vector<1x1xf32> to vector<16x1xf32>
    %835 = arith.subf %828, %834 : vector<16x1xf32>
    %836 = math.exp %835 : vector<16x1xf32>
    %837 = vector.broadcast %836 : vector<16x1xf32> to vector<16x32xf32>
    %838 = arith.mulf %0, %837 : vector<16x32xf32>
    %cst_170 = arith.constant dense<0.000000e+00> : vector<2x32xf32>
    %839 = tpu.matmul %8, %838, %cst_170 {dimension_numbers = #tpu.dot_dimension_numbers<[1], [0], [0], [1], [0, 0, 1, 1], [], []>} : vector<2x16xf32>, vector<16x32xf32>, vector<2x32xf32> -> vector<2x32xf32>
    %cst_171 = arith.constant dense<0.000000e+00> : vector<2x1xf32>
    %840 = tpu.matmul %8, %836, %cst_171 {dimension_numbers = #tpu.dot_dimension_numbers<[1], [0], [0], [1], [0, 0, 1, 1], [], []>} : vector<2x16xf32>, vector<16x1xf32>, vector<2x1xf32> -> vector<2x1xf32>
    %cst_172 = arith.constant dense<0.000000e+00> : vector<2x96xf32>
    %841 = tpu.matmul %839, %6, %cst_172 {dimension_numbers = #tpu.dot_dimension_numbers<[1], [0], [0], [1], [0, 0, 1, 1], [], []>} : vector<2x32xf32>, vector<32x96xf32>, vector<2x96xf32> -> vector<2x96xf32>
    %842 = tpu.reciprocal %840 {approx = true} : vector<2x1xf32> -> vector<2x1xf32>
    %843 = vector.broadcast %842 : vector<2x1xf32> to vector<2x96xf32>
    %844 = arith.mulf %841, %843 : vector<2x96xf32>
    %845 = vector.broadcast %7 : vector<1x96xf32> to vector<2x96xf32>
    %846 = arith.addf %844, %845 : vector<2x96xf32>
    %847 = vector.extract_strided_slice %846 {offsets = [0, 0], sizes = [2, 32], strides = [1, 1]} : vector<2x96xf32> to vector<2x32xf32>
    %848 = vector.extract_strided_slice %824 {offsets = [0, 0], sizes = [2, 32], strides = [1, 1]} : vector<2x96xf32> to vector<2x32xf32>
    %849 = arith.addf %847, %848 : vector<2x32xf32>
    %850 = arith.negf %849 : vector<2x32xf32>
    %851 = math.exp %850 : vector<2x32xf32>
    %cst_173 = arith.constant 1.000000e+00 : f32
    %852 = vector.broadcast %cst_173 : f32 to vector<2x32xf32>
    %853 = arith.addf %852, %851 : vector<2x32xf32>
    %854 = arith.divf %852, %853 : vector<2x32xf32>
    %855 = vector.extract_strided_slice %846 {offsets = [0, 32], sizes = [2, 32], strides = [1, 1]} : vector<2x96xf32> to vector<2x32xf32>
    %856 = vector.extract_strided_slice %824 {offsets = [0, 32], sizes = [2, 32], strides = [1, 1]} : vector<2x96xf32> to vector<2x32xf32>
    %857 = arith.addf %855, %856 : vector<2x32xf32>
    %858 = arith.negf %857 : vector<2x32xf32>
    %859 = math.exp %858 : vector<2x32xf32>
    %cst_174 = arith.constant 1.000000e+00 : f32
    %860 = vector.broadcast %cst_174 : f32 to vector<2x32xf32>
    %861 = arith.addf %860, %859 : vector<2x32xf32>
    %862 = arith.divf %860, %861 : vector<2x32xf32>
    %863 = vector.extract_strided_slice %846 {offsets = [0, 64], sizes = [2, 32], strides = [1, 1]} : vector<2x96xf32> to vector<2x32xf32>
    %864 = vector.extract_strided_slice %824 {offsets = [0, 64], sizes = [2, 32], strides = [1, 1]} : vector<2x96xf32> to vector<2x32xf32>
    %865 = arith.mulf %854, %864 : vector<2x32xf32>
    %866 = arith.addf %863, %865 : vector<2x32xf32>
    %867 = math.tanh %866 : vector<2x32xf32>
    %cst_175 = arith.constant 1.000000e+00 : f32
    %868 = vector.broadcast %cst_175 : f32 to vector<2x32xf32>
    %869 = arith.subf %868, %862 : vector<2x32xf32>
    %870 = arith.mulf %869, %867 : vector<2x32xf32>
    %871 = arith.mulf %862, %818 : vector<2x32xf32>
    %872 = arith.addf %870, %871 : vector<2x32xf32>
    %c30 = arith.constant 30 : index
    %c0_176 = arith.constant 0 : index
    %873 = vector.load %arg12[%c30, %c0_176] : memref<40x32xf32, #tpu.memory_space<vmem>>, vector<2x32xf32>
    tpu.vector_store %arg12[%c30, %c0_176], %872 {strides = array<i32>} : memref<40x32xf32, #tpu.memory_space<vmem>>, vector<2x32xf32>,
    %cst_177 = arith.constant dense<0.000000e+00> : vector<2x128xf32>
    %874 = tpu.matmul %872, %3, %cst_177 {dimension_numbers = #tpu.dot_dimension_numbers<[1], [0], [0], [1], [0, 0, 1, 1], [], []>} : vector<2x32xf32>, vector<32x128xf32>, vector<2x128xf32> -> vector<2x128xf32>
    %875 = vector.broadcast %4 : vector<1x128xf32> to vector<2x128xf32>
    %876 = arith.addf %874, %875 : vector<2x128xf32>
    %877 = vector.extract_strided_slice %876 {offsets = [0, 0], sizes = [2, 32], strides = [1, 1]} : vector<2x128xf32> to vector<2x32xf32>
    %878 = vector.extract_strided_slice %876 {offsets = [0, 32], sizes = [2, 96], strides = [1, 1]} : vector<2x128xf32> to vector<2x96xf32>
    %879 = tpu.concatenate %877, %877, %877, %877, %877, %877, %877, %877 in 0 : vector<2x32xf32>, vector<2x32xf32>, vector<2x32xf32>, vector<2x32xf32>, vector<2x32xf32>, vector<2x32xf32>, vector<2x32xf32>, vector<2x32xf32> -> vector<16x32xf32>
    %880 = arith.addf %2, %879 : vector<16x32xf32>
    %881 = math.tanh %880 : vector<16x32xf32>
    %cst_178 = arith.constant dense<0.000000e+00> : vector<16x1xf32>
    %882 = tpu.matmul %881, %5, %cst_178 {dimension_numbers = #tpu.dot_dimension_numbers<[1], [0], [0], [1], [0, 0, 1, 1], [], []>} : vector<16x32xf32>, vector<32x1xf32>, vector<16x1xf32> -> vector<16x1xf32>
    %883 = vector.shape_cast %882 : vector<16x1xf32> to vector<1x16x1xf32>
    %cst_179 = arith.constant dense<0xFF800000> : vector<1xf32>
    %884 = vector.multi_reduction <maximumf>, %883, %cst_179 [1, 2] : vector<1x16x1xf32> to vector<1xf32>
    %885 = vector.shape_cast %884 : vector<1xf32> to vector<1x1x1xf32>
    %886 = vector.extract %885[0, 0, 0] : f32 from vector<1x1x1xf32>
    %887 = vector.broadcast %886 : f32 to vector<1x1xf32>
    %888 = vector.broadcast %887 : vector<1x1xf32> to vector<16x1xf32>
    %889 = arith.subf %882, %888 : vector<16x1xf32>
    %890 = math.exp %889 : vector<16x1xf32>
    %891 = vector.broadcast %890 : vector<16x1xf32> to vector<16x32xf32>
    %892 = arith.mulf %0, %891 : vector<16x32xf32>
    %cst_180 = arith.constant dense<0.000000e+00> : vector<2x32xf32>
    %893 = tpu.matmul %8, %892, %cst_180 {dimension_numbers = #tpu.dot_dimension_numbers<[1], [0], [0], [1], [0, 0, 1, 1], [], []>} : vector<2x16xf32>, vector<16x32xf32>, vector<2x32xf32> -> vector<2x32xf32>
    %cst_181 = arith.constant dense<0.000000e+00> : vector<2x1xf32>
    %894 = tpu.matmul %8, %890, %cst_181 {dimension_numbers = #tpu.dot_dimension_numbers<[1], [0], [0], [1], [0, 0, 1, 1], [], []>} : vector<2x16xf32>, vector<16x1xf32>, vector<2x1xf32> -> vector<2x1xf32>
    %cst_182 = arith.constant dense<0.000000e+00> : vector<2x96xf32>
    %895 = tpu.matmul %893, %6, %cst_182 {dimension_numbers = #tpu.dot_dimension_numbers<[1], [0], [0], [1], [0, 0, 1, 1], [], []>} : vector<2x32xf32>, vector<32x96xf32>, vector<2x96xf32> -> vector<2x96xf32>
    %896 = tpu.reciprocal %894 {approx = true} : vector<2x1xf32> -> vector<2x1xf32>
    %897 = vector.broadcast %896 : vector<2x1xf32> to vector<2x96xf32>
    %898 = arith.mulf %895, %897 : vector<2x96xf32>
    %899 = vector.broadcast %7 : vector<1x96xf32> to vector<2x96xf32>
    %900 = arith.addf %898, %899 : vector<2x96xf32>
    %901 = vector.extract_strided_slice %900 {offsets = [0, 0], sizes = [2, 32], strides = [1, 1]} : vector<2x96xf32> to vector<2x32xf32>
    %902 = vector.extract_strided_slice %878 {offsets = [0, 0], sizes = [2, 32], strides = [1, 1]} : vector<2x96xf32> to vector<2x32xf32>
    %903 = arith.addf %901, %902 : vector<2x32xf32>
    %904 = arith.negf %903 : vector<2x32xf32>
    %905 = math.exp %904 : vector<2x32xf32>
    %cst_183 = arith.constant 1.000000e+00 : f32
    %906 = vector.broadcast %cst_183 : f32 to vector<2x32xf32>
    %907 = arith.addf %906, %905 : vector<2x32xf32>
    %908 = arith.divf %906, %907 : vector<2x32xf32>
    %909 = vector.extract_strided_slice %900 {offsets = [0, 32], sizes = [2, 32], strides = [1, 1]} : vector<2x96xf32> to vector<2x32xf32>
    %910 = vector.extract_strided_slice %878 {offsets = [0, 32], sizes = [2, 32], strides = [1, 1]} : vector<2x96xf32> to vector<2x32xf32>
    %911 = arith.addf %909, %910 : vector<2x32xf32>
    %912 = arith.negf %911 : vector<2x32xf32>
    %913 = math.exp %912 : vector<2x32xf32>
    %cst_184 = arith.constant 1.000000e+00 : f32
    %914 = vector.broadcast %cst_184 : f32 to vector<2x32xf32>
    %915 = arith.addf %914, %913 : vector<2x32xf32>
    %916 = arith.divf %914, %915 : vector<2x32xf32>
    %917 = vector.extract_strided_slice %900 {offsets = [0, 64], sizes = [2, 32], strides = [1, 1]} : vector<2x96xf32> to vector<2x32xf32>
    %918 = vector.extract_strided_slice %878 {offsets = [0, 64], sizes = [2, 32], strides = [1, 1]} : vector<2x96xf32> to vector<2x32xf32>
    %919 = arith.mulf %908, %918 : vector<2x32xf32>
    %920 = arith.addf %917, %919 : vector<2x32xf32>
    %921 = math.tanh %920 : vector<2x32xf32>
    %cst_185 = arith.constant 1.000000e+00 : f32
    %922 = vector.broadcast %cst_185 : f32 to vector<2x32xf32>
    %923 = arith.subf %922, %916 : vector<2x32xf32>
    %924 = arith.mulf %923, %921 : vector<2x32xf32>
    %925 = arith.mulf %916, %872 : vector<2x32xf32>
    %926 = arith.addf %924, %925 : vector<2x32xf32>
    %c32 = arith.constant 32 : index
    %c0_186 = arith.constant 0 : index
    %927 = vector.load %arg12[%c32, %c0_186] : memref<40x32xf32, #tpu.memory_space<vmem>>, vector<2x32xf32>
    tpu.vector_store %arg12[%c32, %c0_186], %926 {strides = array<i32>} : memref<40x32xf32, #tpu.memory_space<vmem>>, vector<2x32xf32>,
    %cst_187 = arith.constant dense<0.000000e+00> : vector<2x128xf32>
    %928 = tpu.matmul %926, %3, %cst_187 {dimension_numbers = #tpu.dot_dimension_numbers<[1], [0], [0], [1], [0, 0, 1, 1], [], []>} : vector<2x32xf32>, vector<32x128xf32>, vector<2x128xf32> -> vector<2x128xf32>
    %929 = vector.broadcast %4 : vector<1x128xf32> to vector<2x128xf32>
    %930 = arith.addf %928, %929 : vector<2x128xf32>
    %931 = vector.extract_strided_slice %930 {offsets = [0, 0], sizes = [2, 32], strides = [1, 1]} : vector<2x128xf32> to vector<2x32xf32>
    %932 = vector.extract_strided_slice %930 {offsets = [0, 32], sizes = [2, 96], strides = [1, 1]} : vector<2x128xf32> to vector<2x96xf32>
    %933 = tpu.concatenate %931, %931, %931, %931, %931, %931, %931, %931 in 0 : vector<2x32xf32>, vector<2x32xf32>, vector<2x32xf32>, vector<2x32xf32>, vector<2x32xf32>, vector<2x32xf32>, vector<2x32xf32>, vector<2x32xf32> -> vector<16x32xf32>
    %934 = arith.addf %2, %933 : vector<16x32xf32>
    %935 = math.tanh %934 : vector<16x32xf32>
    %cst_188 = arith.constant dense<0.000000e+00> : vector<16x1xf32>
    %936 = tpu.matmul %935, %5, %cst_188 {dimension_numbers = #tpu.dot_dimension_numbers<[1], [0], [0], [1], [0, 0, 1, 1], [], []>} : vector<16x32xf32>, vector<32x1xf32>, vector<16x1xf32> -> vector<16x1xf32>
    %937 = vector.shape_cast %936 : vector<16x1xf32> to vector<1x16x1xf32>
    %cst_189 = arith.constant dense<0xFF800000> : vector<1xf32>
    %938 = vector.multi_reduction <maximumf>, %937, %cst_189 [1, 2] : vector<1x16x1xf32> to vector<1xf32>
    %939 = vector.shape_cast %938 : vector<1xf32> to vector<1x1x1xf32>
    %940 = vector.extract %939[0, 0, 0] : f32 from vector<1x1x1xf32>
    %941 = vector.broadcast %940 : f32 to vector<1x1xf32>
    %942 = vector.broadcast %941 : vector<1x1xf32> to vector<16x1xf32>
    %943 = arith.subf %936, %942 : vector<16x1xf32>
    %944 = math.exp %943 : vector<16x1xf32>
    %945 = vector.broadcast %944 : vector<16x1xf32> to vector<16x32xf32>
    %946 = arith.mulf %0, %945 : vector<16x32xf32>
    %cst_190 = arith.constant dense<0.000000e+00> : vector<2x32xf32>
    %947 = tpu.matmul %8, %946, %cst_190 {dimension_numbers = #tpu.dot_dimension_numbers<[1], [0], [0], [1], [0, 0, 1, 1], [], []>} : vector<2x16xf32>, vector<16x32xf32>, vector<2x32xf32> -> vector<2x32xf32>
    %cst_191 = arith.constant dense<0.000000e+00> : vector<2x1xf32>
    %948 = tpu.matmul %8, %944, %cst_191 {dimension_numbers = #tpu.dot_dimension_numbers<[1], [0], [0], [1], [0, 0, 1, 1], [], []>} : vector<2x16xf32>, vector<16x1xf32>, vector<2x1xf32> -> vector<2x1xf32>
    %cst_192 = arith.constant dense<0.000000e+00> : vector<2x96xf32>
    %949 = tpu.matmul %947, %6, %cst_192 {dimension_numbers = #tpu.dot_dimension_numbers<[1], [0], [0], [1], [0, 0, 1, 1], [], []>} : vector<2x32xf32>, vector<32x96xf32>, vector<2x96xf32> -> vector<2x96xf32>
    %950 = tpu.reciprocal %948 {approx = true} : vector<2x1xf32> -> vector<2x1xf32>
    %951 = vector.broadcast %950 : vector<2x1xf32> to vector<2x96xf32>
    %952 = arith.mulf %949, %951 : vector<2x96xf32>
    %953 = vector.broadcast %7 : vector<1x96xf32> to vector<2x96xf32>
    %954 = arith.addf %952, %953 : vector<2x96xf32>
    %955 = vector.extract_strided_slice %954 {offsets = [0, 0], sizes = [2, 32], strides = [1, 1]} : vector<2x96xf32> to vector<2x32xf32>
    %956 = vector.extract_strided_slice %932 {offsets = [0, 0], sizes = [2, 32], strides = [1, 1]} : vector<2x96xf32> to vector<2x32xf32>
    %957 = arith.addf %955, %956 : vector<2x32xf32>
    %958 = arith.negf %957 : vector<2x32xf32>
    %959 = math.exp %958 : vector<2x32xf32>
    %cst_193 = arith.constant 1.000000e+00 : f32
    %960 = vector.broadcast %cst_193 : f32 to vector<2x32xf32>
    %961 = arith.addf %960, %959 : vector<2x32xf32>
    %962 = arith.divf %960, %961 : vector<2x32xf32>
    %963 = vector.extract_strided_slice %954 {offsets = [0, 32], sizes = [2, 32], strides = [1, 1]} : vector<2x96xf32> to vector<2x32xf32>
    %964 = vector.extract_strided_slice %932 {offsets = [0, 32], sizes = [2, 32], strides = [1, 1]} : vector<2x96xf32> to vector<2x32xf32>
    %965 = arith.addf %963, %964 : vector<2x32xf32>
    %966 = arith.negf %965 : vector<2x32xf32>
    %967 = math.exp %966 : vector<2x32xf32>
    %cst_194 = arith.constant 1.000000e+00 : f32
    %968 = vector.broadcast %cst_194 : f32 to vector<2x32xf32>
    %969 = arith.addf %968, %967 : vector<2x32xf32>
    %970 = arith.divf %968, %969 : vector<2x32xf32>
    %971 = vector.extract_strided_slice %954 {offsets = [0, 64], sizes = [2, 32], strides = [1, 1]} : vector<2x96xf32> to vector<2x32xf32>
    %972 = vector.extract_strided_slice %932 {offsets = [0, 64], sizes = [2, 32], strides = [1, 1]} : vector<2x96xf32> to vector<2x32xf32>
    %973 = arith.mulf %962, %972 : vector<2x32xf32>
    %974 = arith.addf %971, %973 : vector<2x32xf32>
    %975 = math.tanh %974 : vector<2x32xf32>
    %cst_195 = arith.constant 1.000000e+00 : f32
    %976 = vector.broadcast %cst_195 : f32 to vector<2x32xf32>
    %977 = arith.subf %976, %970 : vector<2x32xf32>
    %978 = arith.mulf %977, %975 : vector<2x32xf32>
    %979 = arith.mulf %970, %926 : vector<2x32xf32>
    %980 = arith.addf %978, %979 : vector<2x32xf32>
    %c34 = arith.constant 34 : index
    %c0_196 = arith.constant 0 : index
    %981 = vector.load %arg12[%c34, %c0_196] : memref<40x32xf32, #tpu.memory_space<vmem>>, vector<2x32xf32>
    tpu.vector_store %arg12[%c34, %c0_196], %980 {strides = array<i32>} : memref<40x32xf32, #tpu.memory_space<vmem>>, vector<2x32xf32>,
    %cst_197 = arith.constant dense<0.000000e+00> : vector<2x128xf32>
    %982 = tpu.matmul %980, %3, %cst_197 {dimension_numbers = #tpu.dot_dimension_numbers<[1], [0], [0], [1], [0, 0, 1, 1], [], []>} : vector<2x32xf32>, vector<32x128xf32>, vector<2x128xf32> -> vector<2x128xf32>
    %983 = vector.broadcast %4 : vector<1x128xf32> to vector<2x128xf32>
    %984 = arith.addf %982, %983 : vector<2x128xf32>
    %985 = vector.extract_strided_slice %984 {offsets = [0, 0], sizes = [2, 32], strides = [1, 1]} : vector<2x128xf32> to vector<2x32xf32>
    %986 = vector.extract_strided_slice %984 {offsets = [0, 32], sizes = [2, 96], strides = [1, 1]} : vector<2x128xf32> to vector<2x96xf32>
    %987 = tpu.concatenate %985, %985, %985, %985, %985, %985, %985, %985 in 0 : vector<2x32xf32>, vector<2x32xf32>, vector<2x32xf32>, vector<2x32xf32>, vector<2x32xf32>, vector<2x32xf32>, vector<2x32xf32>, vector<2x32xf32> -> vector<16x32xf32>
    %988 = arith.addf %2, %987 : vector<16x32xf32>
    %989 = math.tanh %988 : vector<16x32xf32>
    %cst_198 = arith.constant dense<0.000000e+00> : vector<16x1xf32>
    %990 = tpu.matmul %989, %5, %cst_198 {dimension_numbers = #tpu.dot_dimension_numbers<[1], [0], [0], [1], [0, 0, 1, 1], [], []>} : vector<16x32xf32>, vector<32x1xf32>, vector<16x1xf32> -> vector<16x1xf32>
    %991 = vector.shape_cast %990 : vector<16x1xf32> to vector<1x16x1xf32>
    %cst_199 = arith.constant dense<0xFF800000> : vector<1xf32>
    %992 = vector.multi_reduction <maximumf>, %991, %cst_199 [1, 2] : vector<1x16x1xf32> to vector<1xf32>
    %993 = vector.shape_cast %992 : vector<1xf32> to vector<1x1x1xf32>
    %994 = vector.extract %993[0, 0, 0] : f32 from vector<1x1x1xf32>
    %995 = vector.broadcast %994 : f32 to vector<1x1xf32>
    %996 = vector.broadcast %995 : vector<1x1xf32> to vector<16x1xf32>
    %997 = arith.subf %990, %996 : vector<16x1xf32>
    %998 = math.exp %997 : vector<16x1xf32>
    %999 = vector.broadcast %998 : vector<16x1xf32> to vector<16x32xf32>
    %1000 = arith.mulf %0, %999 : vector<16x32xf32>
    %cst_200 = arith.constant dense<0.000000e+00> : vector<2x32xf32>
    %1001 = tpu.matmul %8, %1000, %cst_200 {dimension_numbers = #tpu.dot_dimension_numbers<[1], [0], [0], [1], [0, 0, 1, 1], [], []>} : vector<2x16xf32>, vector<16x32xf32>, vector<2x32xf32> -> vector<2x32xf32>
    %cst_201 = arith.constant dense<0.000000e+00> : vector<2x1xf32>
    %1002 = tpu.matmul %8, %998, %cst_201 {dimension_numbers = #tpu.dot_dimension_numbers<[1], [0], [0], [1], [0, 0, 1, 1], [], []>} : vector<2x16xf32>, vector<16x1xf32>, vector<2x1xf32> -> vector<2x1xf32>
    %cst_202 = arith.constant dense<0.000000e+00> : vector<2x96xf32>
    %1003 = tpu.matmul %1001, %6, %cst_202 {dimension_numbers = #tpu.dot_dimension_numbers<[1], [0], [0], [1], [0, 0, 1, 1], [], []>} : vector<2x32xf32>, vector<32x96xf32>, vector<2x96xf32> -> vector<2x96xf32>
    %1004 = tpu.reciprocal %1002 {approx = true} : vector<2x1xf32> -> vector<2x1xf32>
    %1005 = vector.broadcast %1004 : vector<2x1xf32> to vector<2x96xf32>
    %1006 = arith.mulf %1003, %1005 : vector<2x96xf32>
    %1007 = vector.broadcast %7 : vector<1x96xf32> to vector<2x96xf32>
    %1008 = arith.addf %1006, %1007 : vector<2x96xf32>
    %1009 = vector.extract_strided_slice %1008 {offsets = [0, 0], sizes = [2, 32], strides = [1, 1]} : vector<2x96xf32> to vector<2x32xf32>
    %1010 = vector.extract_strided_slice %986 {offsets = [0, 0], sizes = [2, 32], strides = [1, 1]} : vector<2x96xf32> to vector<2x32xf32>
    %1011 = arith.addf %1009, %1010 : vector<2x32xf32>
    %1012 = arith.negf %1011 : vector<2x32xf32>
    %1013 = math.exp %1012 : vector<2x32xf32>
    %cst_203 = arith.constant 1.000000e+00 : f32
    %1014 = vector.broadcast %cst_203 : f32 to vector<2x32xf32>
    %1015 = arith.addf %1014, %1013 : vector<2x32xf32>
    %1016 = arith.divf %1014, %1015 : vector<2x32xf32>
    %1017 = vector.extract_strided_slice %1008 {offsets = [0, 32], sizes = [2, 32], strides = [1, 1]} : vector<2x96xf32> to vector<2x32xf32>
    %1018 = vector.extract_strided_slice %986 {offsets = [0, 32], sizes = [2, 32], strides = [1, 1]} : vector<2x96xf32> to vector<2x32xf32>
    %1019 = arith.addf %1017, %1018 : vector<2x32xf32>
    %1020 = arith.negf %1019 : vector<2x32xf32>
    %1021 = math.exp %1020 : vector<2x32xf32>
    %cst_204 = arith.constant 1.000000e+00 : f32
    %1022 = vector.broadcast %cst_204 : f32 to vector<2x32xf32>
    %1023 = arith.addf %1022, %1021 : vector<2x32xf32>
    %1024 = arith.divf %1022, %1023 : vector<2x32xf32>
    %1025 = vector.extract_strided_slice %1008 {offsets = [0, 64], sizes = [2, 32], strides = [1, 1]} : vector<2x96xf32> to vector<2x32xf32>
    %1026 = vector.extract_strided_slice %986 {offsets = [0, 64], sizes = [2, 32], strides = [1, 1]} : vector<2x96xf32> to vector<2x32xf32>
    %1027 = arith.mulf %1016, %1026 : vector<2x32xf32>
    %1028 = arith.addf %1025, %1027 : vector<2x32xf32>
    %1029 = math.tanh %1028 : vector<2x32xf32>
    %cst_205 = arith.constant 1.000000e+00 : f32
    %1030 = vector.broadcast %cst_205 : f32 to vector<2x32xf32>
    %1031 = arith.subf %1030, %1024 : vector<2x32xf32>
    %1032 = arith.mulf %1031, %1029 : vector<2x32xf32>
    %1033 = arith.mulf %1024, %980 : vector<2x32xf32>
    %1034 = arith.addf %1032, %1033 : vector<2x32xf32>
    %c36 = arith.constant 36 : index
    %c0_206 = arith.constant 0 : index
    %1035 = vector.load %arg12[%c36, %c0_206] : memref<40x32xf32, #tpu.memory_space<vmem>>, vector<2x32xf32>
    tpu.vector_store %arg12[%c36, %c0_206], %1034 {strides = array<i32>} : memref<40x32xf32, #tpu.memory_space<vmem>>, vector<2x32xf32>,
    %cst_207 = arith.constant dense<0.000000e+00> : vector<2x128xf32>
    %1036 = tpu.matmul %1034, %3, %cst_207 {dimension_numbers = #tpu.dot_dimension_numbers<[1], [0], [0], [1], [0, 0, 1, 1], [], []>} : vector<2x32xf32>, vector<32x128xf32>, vector<2x128xf32> -> vector<2x128xf32>
    %1037 = vector.broadcast %4 : vector<1x128xf32> to vector<2x128xf32>
    %1038 = arith.addf %1036, %1037 : vector<2x128xf32>
    %1039 = vector.extract_strided_slice %1038 {offsets = [0, 0], sizes = [2, 32], strides = [1, 1]} : vector<2x128xf32> to vector<2x32xf32>
    %1040 = vector.extract_strided_slice %1038 {offsets = [0, 32], sizes = [2, 96], strides = [1, 1]} : vector<2x128xf32> to vector<2x96xf32>
    %1041 = tpu.concatenate %1039, %1039, %1039, %1039, %1039, %1039, %1039, %1039 in 0 : vector<2x32xf32>, vector<2x32xf32>, vector<2x32xf32>, vector<2x32xf32>, vector<2x32xf32>, vector<2x32xf32>, vector<2x32xf32>, vector<2x32xf32> -> vector<16x32xf32>
    %1042 = arith.addf %2, %1041 : vector<16x32xf32>
    %1043 = math.tanh %1042 : vector<16x32xf32>
    %cst_208 = arith.constant dense<0.000000e+00> : vector<16x1xf32>
    %1044 = tpu.matmul %1043, %5, %cst_208 {dimension_numbers = #tpu.dot_dimension_numbers<[1], [0], [0], [1], [0, 0, 1, 1], [], []>} : vector<16x32xf32>, vector<32x1xf32>, vector<16x1xf32> -> vector<16x1xf32>
    %1045 = vector.shape_cast %1044 : vector<16x1xf32> to vector<1x16x1xf32>
    %cst_209 = arith.constant dense<0xFF800000> : vector<1xf32>
    %1046 = vector.multi_reduction <maximumf>, %1045, %cst_209 [1, 2] : vector<1x16x1xf32> to vector<1xf32>
    %1047 = vector.shape_cast %1046 : vector<1xf32> to vector<1x1x1xf32>
    %1048 = vector.extract %1047[0, 0, 0] : f32 from vector<1x1x1xf32>
    %1049 = vector.broadcast %1048 : f32 to vector<1x1xf32>
    %1050 = vector.broadcast %1049 : vector<1x1xf32> to vector<16x1xf32>
    %1051 = arith.subf %1044, %1050 : vector<16x1xf32>
    %1052 = math.exp %1051 : vector<16x1xf32>
    %1053 = vector.broadcast %1052 : vector<16x1xf32> to vector<16x32xf32>
    %1054 = arith.mulf %0, %1053 : vector<16x32xf32>
    %cst_210 = arith.constant dense<0.000000e+00> : vector<2x32xf32>
    %1055 = tpu.matmul %8, %1054, %cst_210 {dimension_numbers = #tpu.dot_dimension_numbers<[1], [0], [0], [1], [0, 0, 1, 1], [], []>} : vector<2x16xf32>, vector<16x32xf32>, vector<2x32xf32> -> vector<2x32xf32>
    %cst_211 = arith.constant dense<0.000000e+00> : vector<2x1xf32>
    %1056 = tpu.matmul %8, %1052, %cst_211 {dimension_numbers = #tpu.dot_dimension_numbers<[1], [0], [0], [1], [0, 0, 1, 1], [], []>} : vector<2x16xf32>, vector<16x1xf32>, vector<2x1xf32> -> vector<2x1xf32>
    %cst_212 = arith.constant dense<0.000000e+00> : vector<2x96xf32>
    %1057 = tpu.matmul %1055, %6, %cst_212 {dimension_numbers = #tpu.dot_dimension_numbers<[1], [0], [0], [1], [0, 0, 1, 1], [], []>} : vector<2x32xf32>, vector<32x96xf32>, vector<2x96xf32> -> vector<2x96xf32>
    %1058 = tpu.reciprocal %1056 {approx = true} : vector<2x1xf32> -> vector<2x1xf32>
    %1059 = vector.broadcast %1058 : vector<2x1xf32> to vector<2x96xf32>
    %1060 = arith.mulf %1057, %1059 : vector<2x96xf32>
    %1061 = vector.broadcast %7 : vector<1x96xf32> to vector<2x96xf32>
    %1062 = arith.addf %1060, %1061 : vector<2x96xf32>
    %1063 = vector.extract_strided_slice %1062 {offsets = [0, 0], sizes = [2, 32], strides = [1, 1]} : vector<2x96xf32> to vector<2x32xf32>
    %1064 = vector.extract_strided_slice %1040 {offsets = [0, 0], sizes = [2, 32], strides = [1, 1]} : vector<2x96xf32> to vector<2x32xf32>
    %1065 = arith.addf %1063, %1064 : vector<2x32xf32>
    %1066 = arith.negf %1065 : vector<2x32xf32>
    %1067 = math.exp %1066 : vector<2x32xf32>
    %cst_213 = arith.constant 1.000000e+00 : f32
    %1068 = vector.broadcast %cst_213 : f32 to vector<2x32xf32>
    %1069 = arith.addf %1068, %1067 : vector<2x32xf32>
    %1070 = arith.divf %1068, %1069 : vector<2x32xf32>
    %1071 = vector.extract_strided_slice %1062 {offsets = [0, 32], sizes = [2, 32], strides = [1, 1]} : vector<2x96xf32> to vector<2x32xf32>
    %1072 = vector.extract_strided_slice %1040 {offsets = [0, 32], sizes = [2, 32], strides = [1, 1]} : vector<2x96xf32> to vector<2x32xf32>
    %1073 = arith.addf %1071, %1072 : vector<2x32xf32>
    %1074 = arith.negf %1073 : vector<2x32xf32>
    %1075 = math.exp %1074 : vector<2x32xf32>
    %cst_214 = arith.constant 1.000000e+00 : f32
    %1076 = vector.broadcast %cst_214 : f32 to vector<2x32xf32>
    %1077 = arith.addf %1076, %1075 : vector<2x32xf32>
    %1078 = arith.divf %1076, %1077 : vector<2x32xf32>
    %1079 = vector.extract_strided_slice %1062 {offsets = [0, 64], sizes = [2, 32], strides = [1, 1]} : vector<2x96xf32> to vector<2x32xf32>
    %1080 = vector.extract_strided_slice %1040 {offsets = [0, 64], sizes = [2, 32], strides = [1, 1]} : vector<2x96xf32> to vector<2x32xf32>
    %1081 = arith.mulf %1070, %1080 : vector<2x32xf32>
    %1082 = arith.addf %1079, %1081 : vector<2x32xf32>
    %1083 = math.tanh %1082 : vector<2x32xf32>
    %cst_215 = arith.constant 1.000000e+00 : f32
    %1084 = vector.broadcast %cst_215 : f32 to vector<2x32xf32>
    %1085 = arith.subf %1084, %1078 : vector<2x32xf32>
    %1086 = arith.mulf %1085, %1083 : vector<2x32xf32>
    %1087 = arith.mulf %1078, %1034 : vector<2x32xf32>
    %1088 = arith.addf %1086, %1087 : vector<2x32xf32>
    %c38 = arith.constant 38 : index
    %c0_216 = arith.constant 0 : index
    %1089 = vector.load %arg12[%c38, %c0_216] : memref<40x32xf32, #tpu.memory_space<vmem>>, vector<2x32xf32>
    tpu.vector_store %arg12[%c38, %c0_216], %1088 {strides = array<i32>} : memref<40x32xf32, #tpu.memory_space<vmem>>, vector<2x32xf32>,
    %c0_217 = arith.constant 0 : index
    %c0_218 = arith.constant 0 : index
    %1090 = vector.load %arg12[%c0_217, %c0_218] : memref<40x32xf32, #tpu.memory_space<vmem>>, vector<40x32xf32>
    %c0_219 = arith.constant 0 : index
    %c0_220 = arith.constant 0 : index
    %1091 = vector.load %arg8[%c0_219, %c0_220] : memref<32x32xf32, #tpu.memory_space<vmem>>, vector<32x32xf32>
    %cst_221 = arith.constant dense<0.000000e+00> : vector<40x32xf32>
    %1092 = tpu.matmul %1090, %1091, %cst_221 {dimension_numbers = #tpu.dot_dimension_numbers<[1], [0], [0], [1], [0, 0, 1, 1], [], []>} : vector<40x32xf32>, vector<32x32xf32>, vector<40x32xf32> -> vector<40x32xf32>
    %c0_222 = arith.constant 0 : index
    %c0_223 = arith.constant 0 : index
    %1093 = vector.load %arg9[%c0_222, %c0_223] : memref<1x32xf32, #tpu.memory_space<vmem>>, vector<1x32xf32>
    %1094 = vector.broadcast %1093 : vector<1x32xf32> to vector<40x32xf32>
    %1095 = arith.addf %1092, %1094 : vector<40x32xf32>
    %c0_224 = arith.constant 0 : index
    %c0_225 = arith.constant 0 : index
    %1096 = vector.load %arg11[%c0_224, %c0_225] : memref<40x32xf32, #tpu.memory_space<vmem>>, vector<40x32xf32>
    tpu.vector_store %arg11[%c0_224, %c0_225], %1095 {strides = array<i32>} : memref<40x32xf32, #tpu.memory_space<vmem>>, vector<40x32xf32>,
    return
  }
  func.func @transform_0(%arg0: i32) -> (i32, i32) {
    %c0_i32 = arith.constant 0 : i32
    %c0_i32_0 = arith.constant 0 : i32
    %c0_i32_1 = arith.constant 0 : i32
    return %c0_i32, %c0_i32_0 : i32, i32
  }
  func.func @transform_1(%arg0: i32) -> (i32, i32) {
    %c0_i32 = arith.constant 0 : i32
    %c0_i32_0 = arith.constant 0 : i32
    %c0_i32_1 = arith.constant 0 : i32
    return %c0_i32, %c0_i32_0 : i32, i32
  }
  func.func @transform_2(%arg0: i32) -> (i32, i32) {
    %c0_i32 = arith.constant 0 : i32
    %c0_i32_0 = arith.constant 0 : i32
    %c0_i32_1 = arith.constant 0 : i32
    return %c0_i32, %c0_i32_0 : i32, i32
  }
  func.func @transform_3(%arg0: i32) -> (i32, i32) {
    %c0_i32 = arith.constant 0 : i32
    %c0_i32_0 = arith.constant 0 : i32
    %c0_i32_1 = arith.constant 0 : i32
    return %c0_i32, %c0_i32_0 : i32, i32
  }
  func.func @transform_4(%arg0: i32) -> (i32, i32) {
    %c0_i32 = arith.constant 0 : i32
    %c0_i32_0 = arith.constant 0 : i32
    %c0_i32_1 = arith.constant 0 : i32
    return %c0_i32, %c0_i32_0 : i32, i32
  }
  func.func @transform_5(%arg0: i32) -> (i32, i32) {
    %c0_i32 = arith.constant 0 : i32
    %c0_i32_0 = arith.constant 0 : i32
    %c0_i32_1 = arith.constant 0 : i32
    return %c0_i32, %c0_i32_0 : i32, i32
  }
  func.func @transform_6(%arg0: i32) -> (i32, i32) {
    %c0_i32 = arith.constant 0 : i32
    %c0_i32_0 = arith.constant 0 : i32
    %c0_i32_1 = arith.constant 0 : i32
    return %c0_i32, %c0_i32_0 : i32, i32
  }
  func.func @transform_7(%arg0: i32) -> (i32, i32) {
    %c0_i32 = arith.constant 0 : i32
    %c0_i32_0 = arith.constant 0 : i32
    %c0_i32_1 = arith.constant 0 : i32
    return %c0_i32, %c0_i32_0 : i32, i32
  }
  func.func @transform_8(%arg0: i32) -> (i32, i32) {
    %c0_i32 = arith.constant 0 : i32
    %c0_i32_0 = arith.constant 0 : i32
    %c0_i32_1 = arith.constant 0 : i32
    return %c0_i32, %c0_i32_0 : i32, i32
  }
  func.func @transform_9(%arg0: i32) -> (i32, i32) {
    %c0_i32 = arith.constant 0 : i32
    %c0_i32_0 = arith.constant 0 : i32
    %c0_i32_1 = arith.constant 0 : i32
    return %c0_i32, %c0_i32_0 : i32, i32
  }
  func.func @transform_10(%arg0: i32) -> (i32, i32) {
    %c0_i32 = arith.constant 0 : i32
    %c0_i32_0 = arith.constant 0 : i32
    %c0_i32_1 = arith.constant 0 : i32
    return %c0_i32, %c0_i32_0 : i32, i32
  }
}

</mosaic_0001>

<llo_original>
// kernel: tpu_custom_call.1
$region0: #{tpu_custom_call.1}
  #allocation0 [shape = 'u32[]', space=smem, size = 0x4, offset = 0x4, fixed_abs, tag = 'smem constant byte address 0x4 - core index']
  #allocation1 [shape = 'u32[144,128]{1,0:T(1,128)}', space=vmem, size = 0x12000, scoped, tag = 'internal scratch']
  #allocation2 [shape = 'f32[40,32]{1,0:T(8,128)}', space=vmem, size = 0x5000, scoped, tag = 'scratch operand']
  %s0 = inlined_call_operand.hbm [shape: f32[16,32], index: 0, kind: input, shape index: {}]
  %s1 = inlined_call_operand.vmem [shape: f32[32,32], index: 1, kind: input, shape index: {}]
  %s2 = inlined_call_operand.hbm [shape: f32[32,128], index: 2, kind: input, shape index: {}]
  %s3 = inlined_call_operand.vmem [shape: f32[1,128], index: 3, kind: input, shape index: {}]
  %s4 = inlined_call_operand.vmem [shape: f32[32,1], index: 4, kind: input, shape index: {}]
  %s5 = inlined_call_operand.hbm [shape: f32[32,96], index: 5, kind: input, shape index: {}]
  %s6 = inlined_call_operand.vmem [shape: f32[1,96], index: 6, kind: input, shape index: {}]
  %s7 = inlined_call_operand.hbm [shape: f32[32,32], index: 7, kind: input, shape index: {}]
  %s8 = inlined_call_operand.vmem [shape: f32[1,32], index: 8, kind: input, shape index: {}]
  %s9 = inlined_call_operand.vmem [shape: f32[2,16], index: 9, kind: input, shape index: {}]
  %s10 = inlined_call_operand.vmem [shape: f32[40,32], index: 10, kind: output, shape index: {}]
  %s11 = sld [smem:[#allocation0]]
  $region66: #{tpu_custom_call.1} parent=0
    _
  %s13 = ssub.s32 1, %s11
  %s14 = scalar_select 0, %s13, %s11
  $region1: #{tpu_custom_call.1} parent=0
    #allocation3 [shape = 'u8[8192]{0}', space=vmem, size = 0x2000, scoped, tag = 'input window, operand 0, single buffered']
    #allocation4 [shape = 's32[1]{0}', space=sflag, size = 0x4, scoped, tag = 'scoped memory for tpu_custom_call.1']
    #allocation5 [shape = 'u8[16384]{0}', space=vmem, size = 0x4000, scoped, tag = 'input window, operand 2, single buffered']
    #allocation6 [shape = 's32[1]{0}', space=sflag, size = 0x4, scoped, tag = 'scoped memory for tpu_custom_call.1']
    #allocation7 [shape = 'u8[16384]{0}', space=vmem, size = 0x4000, scoped, tag = 'input window, operand 5, single buffered']
    #allocation8 [shape = 'u8[16384]{0}', space=vmem, size = 0x4000, scoped, tag = 'input window, operand 7, single buffered']
    #allocation9 [shape = 's32[1]{0}', space=sflag, size = 0x4, scoped, tag = 'scoped memory for tpu_custom_call.1']
    %15 = vsyncpa [#allocation4], 0
    %16 = vsyncpa [#allocation6], 0
    %17 = vsyncpa [#allocation9], 0
    // Predicated region
    $region2: #{tpu_custom_call.1} parent=1 // pred_check
      _
    $region3: #{tpu_custom_call.1} parent=1 // pred_check_branch
      %19 = sbr.rel (0) target = $region5
    $region4: #{tpu_custom_call.1} parent=1 // pred_region
      %s21 = ssub.s32 256, 256
      %22 = vsyncadd [#allocation4], %s21
      %s23 = sshll.u32 [#allocation3], 4
      %s24 = int_to_ptr.vmem [resolvable:$true] %s23
      %29 = dma.hbm_to_vmem [thread:$0]  %s0, 256, %s24, [#allocation4], 128, 128, 8
    $region5: #{tpu_custom_call.1} parent=1 // pred_fallthru
      _
    // Predicated region
    $region6: #{tpu_custom_call.1} parent=1 // pred_check
      _
    $region7: #{tpu_custom_call.1} parent=1 // pred_check_branch
      %31 = sbr.rel (0) target = $region9
    $region8: #{tpu_custom_call.1} parent=1 // pred_region
      _
    $region9: #{tpu_custom_call.1} parent=1 // pred_fallthru
      _
    // Predicated region
    $region10: #{tpu_custom_call.1} parent=1 // pred_check
      _
    $region11: #{tpu_custom_call.1} parent=1 // pred_check_branch
      %33 = sbr.rel (0) target = $region13
    $region12: #{tpu_custom_call.1} parent=1 // pred_region
      %s35 = ssub.s32 512, 512
      %36 = vsyncadd [#allocation6], %s35
      %s37 = sshll.u32 [#allocation5], 4
      %s38 = int_to_ptr.vmem [resolvable:$true] %s37
      %43 = dma.hbm_to_vmem [thread:$0]  %s2, 512, %s38, [#allocation6], 128, 128, 8
    $region13: #{tpu_custom_call.1} parent=1 // pred_fallthru
      _
    // Predicated region
    $region14: #{tpu_custom_call.1} parent=1 // pred_check
      _
    $region15: #{tpu_custom_call.1} parent=1 // pred_check_branch
      %45 = sbr.rel (0) target = $region17
    $region16: #{tpu_custom_call.1} parent=1 // pred_region
      _
    $region17: #{tpu_custom_call.1} parent=1 // pred_fallthru
      _
    // Predicated region
    $region18: #{tpu_custom_call.1} parent=1 // pred_check
      _
    $region19: #{tpu_custom_call.1} parent=1 // pred_check_branch
      %47 = sbr.rel (0) target = $region21
    $region20: #{tpu_custom_call.1} parent=1 // pred_region
      _
    $region21: #{tpu_custom_call.1} parent=1 // pred_fallthru
      _
    // Predicated region
    $region22: #{tpu_custom_call.1} parent=1 // pred_check
      _
    $region23: #{tpu_custom_call.1} parent=1 // pred_check_branch
      %49 = sbr.rel (0) target = $region25
    $region24: #{tpu_custom_call.1} parent=1 // pred_region
      %s51 = ssub.s32 512, 512
      %52 = vsyncadd [#allocation6], %s51
      %s53 = sshll.u32 [#allocation7], 4
      %s54 = int_to_ptr.vmem [resolvable:$true] %s53
      %59 = dma.hbm_to_vmem [thread:$0]  %s5, 512, %s54, [#allocation6], 128, 128, 8
    $region25: #{tpu_custom_call.1} parent=1 // pred_fallthru
      _
    // Predicated region
    $region26: #{tpu_custom_call.1} parent=1 // pred_check
      _
    $region27: #{tpu_custom_call.1} parent=1 // pred_check_branch
      %61 = sbr.rel (0) target = $region29
    $region28: #{tpu_custom_call.1} parent=1 // pred_region
      _
    $region29: #{tpu_custom_call.1} parent=1 // pred_fallthru
      _
    // Predicated region
    $region30: #{tpu_custom_call.1} parent=1 // pred_check
      _
    $region31: #{tpu_custom_call.1} parent=1 // pred_check_branch
      %63 = sbr.rel (0) target = $region33
    $region32: #{tpu_custom_call.1} parent=1 // pred_region
      %s65 = ssub.s32 512, 512
      %66 = vsyncadd [#allocation9], %s65
      %s67 = sshll.u32 [#allocation8], 4
      %s68 = int_to_ptr.vmem [resolvable:$true] %s67
      %73 = dma.hbm_to_vmem [thread:$0]  %s7, 512, %s68, [#allocation9], 128, 128, 8
    $region33: #{tpu_custom_call.1} parent=1 // pred_fallthru
      _
    // Predicated region
    $region34: #{tpu_custom_call.1} parent=1 // pred_check
      _
    $region35: #{tpu_custom_call.1} parent=1 // pred_check_branch
      %75 = sbr.rel (0) target = $region37
    $region36: #{tpu_custom_call.1} parent=1 // pred_region
      _
    $region37: #{tpu_custom_call.1} parent=1 // pred_fallthru
      _
    // Predicated region
    $region38: #{tpu_custom_call.1} parent=1 // pred_check
      _
    $region39: #{tpu_custom_call.1} parent=1 // pred_check_branch
      %77 = sbr.rel (0) target = $region41
    $region40: #{tpu_custom_call.1} parent=1 // pred_region
      _
    $region41: #{tpu_custom_call.1} parent=1 // pred_fallthru
      _
    // Predicated region
    $region42: #{tpu_custom_call.1} parent=1 // pred_check
      _
    $region43: #{tpu_custom_call.1} parent=1 // pred_check_branch
      %79 = sbr.rel (0) target = $region45
    $region44: #{tpu_custom_call.1} parent=1 // pred_region
      %80 = dma.done [#allocation4], 256
    $region45: #{tpu_custom_call.1} parent=1 // pred_fallthru
      _
    // Predicated region
    $region46: #{tpu_custom_call.1} parent=1 // pred_check
      _
    $region47: #{tpu_custom_call.1} parent=1 // pred_check_branch
      %82 = sbr.rel (0) target = $region49
    $region48: #{tpu_custom_call.1} parent=1 // pred_region
      %83 = dma.done [#allocation6], 512
    $region49: #{tpu_custom_call.1} parent=1 // pred_fallthru
      _
    // Predicated region
    $region50: #{tpu_custom_call.1} parent=1 // pred_check
      _
    $region51: #{tpu_custom_call.1} parent=1 // pred_check_branch
      %85 = sbr.rel (0) target = $region53
    $region52: #{tpu_custom_call.1} parent=1 // pred_region
      %86 = dma.done [#allocation6], 512
    $region53: #{tpu_custom_call.1} parent=1 // pred_fallthru
      _
    // Predicated region
    $region54: #{tpu_custom_call.1} parent=1 // pred_check
      _
    $region55: #{tpu_custom_call.1} parent=1 // pred_check_branch
      %88 = sbr.rel (0) target = $region57
    $region56: #{tpu_custom_call.1} parent=1 // pred_region
      %89 = dma.done [#allocation9], 512
    $region57: #{tpu_custom_call.1} parent=1 // pred_fallthru
      _
    %v90 = vld [vmem:[#allocation3] sm:$0xff]
    %v91 = vld [vmem:[#allocation3 + $0x8] sm:$0xff]
    %v92 = vld [vmem:[%s1] sm:$0xff]
    %v93 = vld [vmem:[%s1 + $0x8] sm:$0xff]
    %v94 = vld [vmem:[%s1 + $0x10] sm:$0xff]
    %v95 = vld [vmem:[%s1 + $0x18] sm:$0xff]
    %vm96 = vcmask 261120
    %v98 = vsel %vm96, %v90, 0
    %v101 = vsel %vm96, %v91, 0
    %103 = vmatprep.subr.mxu0 0.0
    %104 = vmatpush1.msra.mxu0 0.0
    %105 = vmatprep.subr.mxu0 0.0
    %106 = vmatpush1.msra.mxu0 0.0
    %107 = vmatprep.subr.mxu0 0.0
    %108 = vmatpush1.msra.mxu0 0.0
    %109 = vmatprep.subr.mxu0 0.0
    %110 = vmatpush1.msra.mxu0 0.0
    %111 = vmatprep.subr.mxu0 0.0
    %112 = vmatpush1.msra.mxu0 0.0
    %113 = vmatprep.subr.mxu0 0.0
    %114 = vmatpush1.msra.mxu0 0.0
    %115 = vmatprep.subr.mxu0 0.0
    %116 = vmatpush1.msra.mxu0 0.0
    %117 = vmatprep.subr.mxu0 0.0
    %118 = vmatpush1.msra.mxu0 0.0
    %119 = vmatprep.subr.mxu0 0.0
    %120 = vmatpush1.msra.mxu0 0.0
    %121 = vmatprep.subr.mxu0 0.0
    %122 = vmatpush1.msra.mxu0 0.0
    %123 = vmatprep.subr.mxu0 0.0
    %124 = vmatpush1.msra.mxu0 0.0
    %125 = vmatprep.subr.mxu0 0.0
    %126 = vmatpush1.msra.mxu0 0.0
    %127 = vmatprep.subr.mxu0 0.0
    %128 = vmatpush1.msra.mxu0 %v95
    %129 = vmatprep.subr.mxu0 0.0
    %130 = vmatpush1.msra.mxu0 %v94
    %131 = vmatprep.subr.mxu0 0.0
    %132 = vmatpush1.msra.mxu0 %v93
    %133 = vmatprep.subr.mxu0 0.0
    %134 = vmatpush1.msra.mxu0 %v92
    %135 = vmatprep.subr.mxu0 0.0
    %136 = vmatpush2.msra.mxu0 0.0
    %137 = vmatprep.subr.mxu0 0.0
    %138 = vmatpush2.msra.mxu0 0.0
    %139 = vmatprep.subr.mxu0 0.0
    %140 = vmatpush2.msra.mxu0 0.0
    %141 = vmatprep.subr.mxu0 0.0
    %142 = vmatpush2.msra.mxu0 0.0
    %143 = vmatprep.subr.mxu0 0.0
    %144 = vmatpush2.msra.mxu0 0.0
    %145 = vmatprep.subr.mxu0 0.0
    %146 = vmatpush2.msra.mxu0 0.0
    %147 = vmatprep.subr.mxu0 0.0
    %148 = vmatpush2.msra.mxu0 0.0
    %149 = vmatprep.subr.mxu0 0.0
    %150 = vmatpush2.msra.mxu0 0.0
    %151 = vmatprep.subr.mxu0 0.0
    %152 = vmatpush2.msra.mxu0 0.0
    %153 = vmatprep.subr.mxu0 0.0
    %154 = vmatpush2.msra.mxu0 0.0
    %155 = vmatprep.subr.mxu0 0.0
    %156 = vmatpush2.msra.mxu0 0.0
    %157 = vmatprep.subr.mxu0 0.0
    %158 = vmatpush2.msra.mxu0 0.0
    %159 = vmatprep.subr.mxu0 0.0
    %160 = vmatpush2.msra.mxu0 0.0
    %161 = vmatprep.subr.mxu0 0.0
    %162 = vmatpush2.msra.mxu0 0.0
    %163 = vmatprep.subr.mxu0 0.0
    %164 = vmatpush2.msra.mxu0 0.0
    %165 = vmatprep.subr.mxu0 0.0
    %166 = vmatpush2.msra.mxu0 0.0
    %167 = vmatprep.mubr.f32.mxu0 0.0
    %168 = vmatmul.mubr.f32.gmra.mxu0 %v98
    %v169 = vpop.f32.mrf.mxu0
    %v170 = vadd.f32 0.0, %v169
    %v171 = vpop.f32.mrf.mxu0
    %172 = vmatprep.mubr.f32.mxu0 0.0
    %173 = vmatmul.mubr.f32.gmra.mxu0 %v101
    %v174 = vpop.f32.mrf.mxu0
    %v175 = vadd.f32 0.0, %v174
    %v176 = vpop.f32.mrf.mxu0
    %177 = vdwg.mxu0
    %v178 = vld [vmem:[#allocation5] sm:$0xff]
    %v179 = vld [vmem:[#allocation5 + $0x8] sm:$0xff]
    %v180 = vld [vmem:[#allocation5 + $0x10] sm:$0xff]
    %v181 = vld [vmem:[#allocation5 + $0x18] sm:$0xff]
    %v182 = vld [vmem:[%s3] sm:$0x1]
    %v183 = vld [vmem:[%s4] sm:$0xff]
    %v184 = vld [vmem:[%s4 + $0x8] sm:$0xff]
    %v185 = vld [vmem:[%s4 + $0x10] sm:$0xff]
    %v186 = vld [vmem:[%s4 + $0x18] sm:$0xff]
    %v187 = vld [vmem:[#allocation7] sm:$0xff]
    %v188 = vld [vmem:[#allocation7 + $0x8] sm:$0xff]
    %v189 = vld [vmem:[#allocation7 + $0x10] sm:$0xff]
    %v190 = vld [vmem:[#allocation7 + $0x18] sm:$0xff]
    %v191 = vld [vmem:[%s6] sm:$0x1]
    %v192 = vld [vmem:[%s9] sm:$0x3]
    %v194 = vlaneseq
    %v195 = vshrl.u32 %v194, 7
    %v196 = vsub.s32 0, %v195
    %v197 = vrot.slane %v182, %v196
    %v200 = vsel %vm96, 0.0, 0
    %202 = vmatprep.subr.mxu0 0.0
    %203 = vmatpush1.msra.mxu0 0.0
    %204 = vmatprep.subr.mxu0 0.0
    %205 = vmatpush1.msra.mxu0 0.0
    %206 = vmatprep.subr.mxu0 0.0
    %207 = vmatpush1.msra.mxu0 0.0
    %208 = vmatprep.subr.mxu0 0.0
    %209 = vmatpush1.msra.mxu0 0.0
    %210 = vmatprep.subr.mxu0 0.0
    %211 = vmatpush1.msra.mxu0 0.0
    %212 = vmatprep.subr.mxu0 0.0
    %213 = vmatpush1.msra.mxu0 0.0
    %214 = vmatprep.subr.mxu0 0.0
    %215 = vmatpush1.msra.mxu0 0.0
    %216 = vmatprep.subr.mxu0 0.0
    %217 = vmatpush1.msra.mxu0 0.0
    %218 = vmatprep.subr.mxu0 0.0
    %219 = vmatpush1.msra.mxu0 0.0
    %220 = vmatprep.subr.mxu0 0.0
    %221 = vmatpush1.msra.mxu0 0.0
    %222 = vmatprep.subr.mxu0 0.0
    %223 = vmatpush1.msra.mxu0 0.0
    %224 = vmatprep.subr.mxu0 0.0
    %225 = vmatpush1.msra.mxu0 0.0
    %226 = vmatprep.subr.mxu0 0.0
    %227 = vmatpush1.msra.mxu0 %v181
    %228 = vmatprep.subr.mxu0 0.0
    %229 = vmatpush1.msra.mxu0 %v180
    %230 = vmatprep.subr.mxu0 0.0
    %231 = vmatpush1.msra.mxu0 %v179
    %232 = vmatprep.subr.mxu0 0.0
    %233 = vmatpush1.msra.mxu0 %v178
    %234 = vmatprep.subr.mxu0 0.0
    %235 = vmatpush2.msra.mxu0 0.0
    %236 = vmatprep.subr.mxu0 0.0
    %237 = vmatpush2.msra.mxu0 0.0
    %238 = vmatprep.subr.mxu0 0.0
    %239 = vmatpush2.msra.mxu0 0.0
    %240 = vmatprep.subr.mxu0 0.0
    %241 = vmatpush2.msra.mxu0 0.0
    %242 = vmatprep.subr.mxu0 0.0
    %243 = vmatpush2.msra.mxu0 0.0
    %244 = vmatprep.subr.mxu0 0.0
    %245 = vmatpush2.msra.mxu0 0.0
    %246 = vmatprep.subr.mxu0 0.0
    %247 = vmatpush2.msra.mxu0 0.0
    %248 = vmatprep.subr.mxu0 0.0
    %249 = vmatpush2.msra.mxu0 0.0
    %250 = vmatprep.subr.mxu0 0.0
    %251 = vmatpush2.msra.mxu0 0.0
    %252 = vmatprep.subr.mxu0 0.0
    %253 = vmatpush2.msra.mxu0 0.0
    %254 = vmatprep.subr.mxu0 0.0
    %255 = vmatpush2.msra.mxu0 0.0
    %256 = vmatprep.subr.mxu0 0.0
    %257 = vmatpush2.msra.mxu0 0.0
    %258 = vmatprep.subr.mxu0 0.0
    %259 = vmatpush2.msra.mxu0 0.0
    %260 = vmatprep.subr.mxu0 0.0
    %261 = vmatpush2.msra.mxu0 0.0
    %262 = vmatprep.subr.mxu0 0.0
    %263 = vmatpush2.msra.mxu0 0.0
    %264 = vmatprep.subr.mxu0 0.0
    %265 = vmatpush2.msra.mxu0 0.0
    %266 = vmatprep.mubr.f32.mxu0 0.0
    %267 = vmatmul.mubr.f32.gmra.mxu0 %v200
    %v268 = vpop.f32.mrf.mxu0
    %v269 = vadd.f32 %v197, %v268
    %v270 = vpop.f32.mrf.mxu0
    %271 = vdwg.mxu0
    %v273 = vrot.slane %v269, 6
    %v275 = vrot.slane %v269, 4
    %v277 = vrot.slane %v269, 2
    %vm279 = vcmask 1041408
    %v280 = vsel %vm279, %v269, %v273
    %vm281 = vcmask 1043456
    %v282 = vsel %vm281, %v280, %v275
    %vm283 = vcmask 1045504
    %v284 = vsel %vm283, %v282, %v277
    %v285 = vadd.f32 %v170, %v284
    %v286 = vadd.f32 %v175, %v284
    %v287 = vtanh.pop %v285
    %v288 = vtanh.pop %v286
    %v290 = vsel %vm96, %v287, 0
    %v293 = vsel %vm96, %v288, 0
    %295 = vmatprep.subr.mxu0 0.0
    %296 = vmatpush1.msra.mxu0 0.0
    %297 = vmatprep.subr.mxu0 0.0
    %298 = vmatpush1.msra.mxu0 0.0
    %299 = vmatprep.subr.mxu0 0.0
    %300 = vmatpush1.msra.mxu0 0.0
    %301 = vmatprep.subr.mxu0 0.0
    %302 = vmatpush1.msra.mxu0 0.0
    %303 = vmatprep.subr.mxu0 0.0
    %304 = vmatpush1.msra.mxu0 0.0
    %305 = vmatprep.subr.mxu0 0.0
    %306 = vmatpush1.msra.mxu0 0.0
    %307 = vmatprep.subr.mxu0 0.0
    %308 = vmatpush1.msra.mxu0 0.0
    %309 = vmatprep.subr.mxu0 0.0
    %310 = vmatpush1.msra.mxu0 0.0
    %311 = vmatprep.subr.mxu0 0.0
    %312 = vmatpush1.msra.mxu0 0.0
    %313 = vmatprep.subr.mxu0 0.0
    %314 = vmatpush1.msra.mxu0 0.0
    %315 = vmatprep.subr.mxu0 0.0
    %316 = vmatpush1.msra.mxu0 0.0
    %317 = vmatprep.subr.mxu0 0.0
    %318 = vmatpush1.msra.mxu0 0.0
    %319 = vmatprep.subr.mxu0 0.0
    %320 = vmatpush1.msra.mxu0 %v186
    %321 = vmatprep.subr.mxu0 0.0
    %322 = vmatpush1.msra.mxu0 %v185
    %323 = vmatprep.subr.mxu0 0.0
    %324 = vmatpush1.msra.mxu0 %v184
    %325 = vmatprep.subr.mxu0 0.0
    %326 = vmatpush1.msra.mxu0 %v183
    %327 = vmatprep.subr.mxu0 0.0
    %328 = vmatpush2.msra.mxu0 0.0
    %329 = vmatprep.subr.mxu0 0.0
    %330 = vmatpush2.msra.mxu0 0.0
    %331 = vmatprep.subr.mxu0 0.0
    %332 = vmatpush2.msra.mxu0 0.0
    %333 = vmatprep.subr.mxu0 0.0
    %334 = vmatpush2.msra.mxu0 0.0
    %335 = vmatprep.subr.mxu0 0.0
    %336 = vmatpush2.msra.mxu0 0.0
    %337 = vmatprep.subr.mxu0 0.0
    %338 = vmatpush2.msra.mxu0 0.0
    %339 = vmatprep.subr.mxu0 0.0
    %340 = vmatpush2.msra.mxu0 0.0
    %341 = vmatprep.subr.mxu0 0.0
    %342 = vmatpush2.msra.mxu0 0.0
    %343 = vmatprep.subr.mxu0 0.0
    %344 = vmatpush2.msra.mxu0 0.0
    %345 = vmatprep.subr.mxu0 0.0
    %346 = vmatpush2.msra.mxu0 0.0
    %347 = vmatprep.subr.mxu0 0.0
    %348 = vmatpush2.msra.mxu0 0.0
    %349 = vmatprep.subr.mxu0 0.0
    %350 = vmatpush2.msra.mxu0 0.0
    %351 = vmatprep.subr.mxu0 0.0
    %352 = vmatpush2.msra.mxu0 0.0
    %353 = vmatprep.subr.mxu0 0.0
    %354 = vmatpush2.msra.mxu0 0.0
    %355 = vmatprep.subr.mxu0 0.0
    %356 = vmatpush2.msra.mxu0 0.0
    %357 = vmatprep.subr.mxu0 0.0
    %358 = vmatpush2.msra.mxu0 0.0
    %359 = vmatprep.mubr.f32.mxu0 0.0
    %360 = vmatmul.mubr.f32.gmra.mxu0 %v290
    %v361 = vpop.f32.mrf.mxu0
    %v362 = vadd.f32 0.0, %v361
    %v363 = vpop.f32.mrf.mxu0
    %364 = vmatprep.mubr.f32.mxu0 0.0
    %365 = vmatmul.mubr.f32.gmra.mxu0 %v293
    %v366 = vpop.f32.mrf.mxu0
    %v367 = vadd.f32 0.0, %v366
    %v368 = vpop.f32.mrf.mxu0
    %369 = vdwg.mxu0
    %vm370 = vcmask 7168
    %v371 = vsel %vm370, %v362, -inf
    %v372 = vsel %vm370, %v367, -inf
    %v373 = vmax.f32 %v371, %v372
    %374 = vmax.xlane.f32.xlu0 %v373
    %v375 = vpop.xlane.xlu0 %374
    %v376 = vrot.slane %v375, 4
    %v377 = vmax.f32 %v375, %v376
    %v378 = vrot.slane %v377, 2
    %v379 = vmax.f32 %v377, %v378
    %v380 = vrot.slane %v379, 1
    %v381 = vmax.f32 %v379, %v380
    %s382 = vtos %v381
    %v383 = vstv %s382
    %v384 = vsub.f32 %v362, %v383
    %v385 = vsub.f32 %v367, %v383
    %v386 = vmul.f32 %v384, 1.442695
    %v387 = vpow.pop %v386
    %v388 = vmul.f32 %v385, 1.442695
    %v389 = vpow.pop %v388
    %391 = vset.pattern.permute.xlu0 0
    %392 = vperm.xlu0 %391, %v387
    %v393 = vpop.permute.xlu0 %392
    %396 = vset.pattern.permute.xlu0 0
    %397 = vperm.xlu0 %396, %v389
    %v398 = vpop.permute.xlu0 %397
    %v400 = vmul.f32 %v90, %v393
    %v401 = vmul.f32 %v91, %v398
    %vm402 = vcmask 130048
    %v404 = vsel %vm402, %v192, 0
    %406 = vmatprep.subr.mxu0 0.0
    %407 = vmatpush1.msra.mxu0 0.0
    %408 = vmatprep.subr.mxu0 0.0
    %409 = vmatpush1.msra.mxu0 0.0
    %410 = vmatprep.subr.mxu0 0.0
    %411 = vmatpush1.msra.mxu0 0.0
    %412 = vmatprep.subr.mxu0 0.0
    %413 = vmatpush1.msra.mxu0 0.0
    %414 = vmatprep.subr.mxu0 0.0
    %415 = vmatpush1.msra.mxu0 0.0
    %416 = vmatprep.subr.mxu0 0.0
    %417 = vmatpush1.msra.mxu0 0.0
    %418 = vmatprep.subr.mxu0 0.0
    %419 = vmatpush1.msra.mxu0 0.0
    %420 = vmatprep.subr.mxu0 0.0
    %421 = vmatpush1.msra.mxu0 0.0
    %422 = vmatprep.subr.mxu0 0.0
    %423 = vmatpush1.msra.mxu0 0.0
    %424 = vmatprep.subr.mxu0 0.0
    %425 = vmatpush1.msra.mxu0 0.0
    %426 = vmatprep.subr.mxu0 0.0
    %427 = vmatpush1.msra.mxu0 0.0
    %428 = vmatprep.subr.mxu0 0.0
    %429 = vmatpush1.msra.mxu0 0.0
    %430 = vmatprep.subr.mxu0 0.0
    %431 = vmatpush1.msra.mxu0 0.0
    %432 = vmatprep.subr.mxu0 0.0
    %433 = vmatpush1.msra.mxu0 0.0
    %434 = vmatprep.subr.mxu0 0.0
    %435 = vmatpush1.msra.mxu0 %v401
    %436 = vmatprep.subr.mxu0 0.0
    %437 = vmatpush1.msra.mxu0 %v400
    %438 = vmatprep.subr.mxu0 0.0
    %439 = vmatpush2.msra.mxu0 0.0
    %440 = vmatprep.subr.mxu0 0.0
    %441 = vmatpush2.msra.mxu0 0.0
    %442 = vmatprep.subr.mxu0 0.0
    %443 = vmatpush2.msra.mxu0 0.0
    %444 = vmatprep.subr.mxu0 0.0
    %445 = vmatpush2.msra.mxu0 0.0
    %446 = vmatprep.subr.mxu0 0.0
    %447 = vmatpush2.msra.mxu0 0.0
    %448 = vmatprep.subr.mxu0 0.0
    %449 = vmatpush2.msra.mxu0 0.0
    %450 = vmatprep.subr.mxu0 0.0
    %451 = vmatpush2.msra.mxu0 0.0
    %452 = vmatprep.subr.mxu0 0.0
    %453 = vmatpush2.msra.mxu0 0.0
    %454 = vmatprep.subr.mxu0 0.0
    %455 = vmatpush2.msra.mxu0 0.0
    %456 = vmatprep.subr.mxu0 0.0
    %457 = vmatpush2.msra.mxu0 0.0
    %458 = vmatprep.subr.mxu0 0.0
    %459 = vmatpush2.msra.mxu0 0.0
    %460 = vmatprep.subr.mxu0 0.0
    %461 = vmatpush2.msra.mxu0 0.0
    %462 = vmatprep.subr.mxu0 0.0
    %463 = vmatpush2.msra.mxu0 0.0
    %464 = vmatprep.subr.mxu0 0.0
    %465 = vmatpush2.msra.mxu0 0.0
    %466 = vmatprep.subr.mxu0 0.0
    %467 = vmatpush2.msra.mxu0 0.0
    %468 = vmatprep.subr.mxu0 0.0
    %469 = vmatpush2.msra.mxu0 0.0
    %470 = vmatprep.mubr.f32.mxu0 0.0
    %471 = vmatmul.mubr.f32.gmra.mxu0 %v404
    %v472 = vpop.f32.mrf.mxu0
    %v473 = vadd.f32 0.0, %v472
    %v474 = vpop.f32.mrf.mxu0
    %475 = vdwg.mxu0
    %476 = vmatprep.subr.mxu0 0.0
    %477 = vmatpush1.msra.mxu0 0.0
    %478 = vmatprep.subr.mxu0 0.0
    %479 = vmatpush1.msra.mxu0 0.0
    %480 = vmatprep.subr.mxu0 0.0
    %481 = vmatpush1.msra.mxu0 0.0
    %482 = vmatprep.subr.mxu0 0.0
    %483 = vmatpush1.msra.mxu0 0.0
    %484 = vmatprep.subr.mxu0 0.0
    %485 = vmatpush1.msra.mxu0 0.0
    %486 = vmatprep.subr.mxu0 0.0
    %487 = vmatpush1.msra.mxu0 0.0
    %488 = vmatprep.subr.mxu0 0.0
    %489 = vmatpush1.msra.mxu0 0.0
    %490 = vmatprep.subr.mxu0 0.0
    %491 = vmatpush1.msra.mxu0 0.0
    %492 = vmatprep.subr.mxu0 0.0
    %493 = vmatpush1.msra.mxu0 0.0
    %494 = vmatprep.subr.mxu0 0.0
    %495 = vmatpush1.msra.mxu0 0.0
    %496 = vmatprep.subr.mxu0 0.0
    %497 = vmatpush1.msra.mxu0 0.0
    %498 = vmatprep.subr.mxu0 0.0
    %499 = vmatpush1.msra.mxu0 0.0
    %500 = vmatprep.subr.mxu0 0.0
    %501 = vmatpush1.msra.mxu0 0.0
    %502 = vmatprep.subr.mxu0 0.0
    %503 = vmatpush1.msra.mxu0 0.0
    %504 = vmatprep.subr.mxu0 0.0
    %505 = vmatpush1.msra.mxu0 %v389
    %506 = vmatprep.subr.mxu0 0.0
    %507 = vmatpush1.msra.mxu0 %v387
    %508 = vmatprep.subr.mxu0 0.0
    %509 = vmatpush2.msra.mxu0 0.0
    %510 = vmatprep.subr.mxu0 0.0
    %511 = vmatpush2.msra.mxu0 0.0
    %512 = vmatprep.subr.mxu0 0.0
    %513 = vmatpush2.msra.mxu0 0.0
    %514 = vmatprep.subr.mxu0 0.0
    %515 = vmatpush2.msra.mxu0 0.0
    %516 = vmatprep.subr.mxu0 0.0
    %517 = vmatpush2.msra.mxu0 0.0
    %518 = vmatprep.subr.mxu0 0.0
    %519 = vmatpush2.msra.mxu0 0.0
    %520 = vmatprep.subr.mxu0 0.0
    %521 = vmatpush2.msra.mxu0 0.0
    %522 = vmatprep.subr.mxu0 0.0
    %523 = vmatpush2.msra.mxu0 0.0
    %524 = vmatprep.subr.mxu0 0.0
    %525 = vmatpush2.msra.mxu0 0.0
    %526 = vmatprep.subr.mxu0 0.0
    %527 = vmatpush2.msra.mxu0 0.0
    %528 = vmatprep.subr.mxu0 0.0
    %529 = vmatpush2.msra.mxu0 0.0
    %530 = vmatprep.subr.mxu0 0.0
    %531 = vmatpush2.msra.mxu0 0.0
    %532 = vmatprep.subr.mxu0 0.0
    %533 = vmatpush2.msra.mxu0 0.0
    %534 = vmatprep.subr.mxu0 0.0
    %535 = vmatpush2.msra.mxu0 0.0
    %536 = vmatprep.subr.mxu0 0.0
    %537 = vmatpush2.msra.mxu0 0.0
    %538 = vmatprep.subr.mxu0 0.0
    %539 = vmatpush2.msra.mxu0 0.0
    %540 = vmatprep.mubr.f32.mxu0 0.0
    %541 = vmatmul.mubr.f32.gmra.mxu0 %v404
    %v542 = vpop.f32.mrf.mxu0
    %v543 = vadd.f32 0.0, %v542
    %v544 = vpop.f32.mrf.mxu0
    %545 = vdwg.mxu0
    %v547 = vsel %vm96, %v473, 0
    %549 = vmatprep.subr.mxu0 0.0
    %550 = vmatpush1.msra.mxu0 0.0
    %551 = vmatprep.subr.mxu0 0.0
    %552 = vmatpush1.msra.mxu0 0.0
    %553 = vmatprep.subr.mxu0 0.0
    %554 = vmatpush1.msra.mxu0 0.0
    %555 = vmatprep.subr.mxu0 0.0
    %556 = vmatpush1.msra.mxu0 0.0
    %557 = vmatprep.subr.mxu0 0.0
    %558 = vmatpush1.msra.mxu0 0.0
    %559 = vmatprep.subr.mxu0 0.0
    %560 = vmatpush1.msra.mxu0 0.0
    %561 = vmatprep.subr.mxu0 0.0
    %562 = vmatpush1.msra.mxu0 0.0
    %563 = vmatprep.subr.mxu0 0.0
    %564 = vmatpush1.msra.mxu0 0.0
    %565 = vmatprep.subr.mxu0 0.0
    %566 = vmatpush1.msra.mxu0 0.0
    %567 = vmatprep.subr.mxu0 0.0
    %568 = vmatpush1.msra.mxu0 0.0
    %569 = vmatprep.subr.mxu0 0.0
    %570 = vmatpush1.msra.mxu0 0.0
    %571 = vmatprep.subr.mxu0 0.0
    %572 = vmatpush1.msra.mxu0 0.0
    %573 = vmatprep.subr.mxu0 0.0
    %574 = vmatpush1.msra.mxu0 %v190
    %575 = vmatprep.subr.mxu0 0.0
    %576 = vmatpush1.msra.mxu0 %v189
    %577 = vmatprep.subr.mxu0 0.0
    %578 = vmatpush1.msra.mxu0 %v188
    %579 = vmatprep.subr.mxu0 0.0
    %580 = vmatpush1.msra.mxu0 %v187
    %581 = vmatprep.subr.mxu0 0.0
    %582 = vmatpush2.msra.mxu0 0.0
    %583 = vmatprep.subr.mxu0 0.0
    %584 = vmatpush2.msra.mxu0 0.0
    %585 = vmatprep.subr.mxu0 0.0
    %586 = vmatpush2.msra.mxu0 0.0
    %587 = vmatprep.subr.mxu0 0.0
    %588 = vmatpush2.msra.mxu0 0.0
    %589 = vmatprep.subr.mxu0 0.0
    %590 = vmatpush2.msra.mxu0 0.0
    %591 = vmatprep.subr.mxu0 0.0
    %592 = vmatpush2.msra.mxu0 0.0
    %593 = vmatprep.subr.mxu0 0.0
    %594 = vmatpush2.msra.mxu0 0.0
    %595 = vmatprep.subr.mxu0 0.0
    %596 = vmatpush2.msra.mxu0 0.0
    %597 = vmatprep.subr.mxu0 0.0
    %598 = vmatpush2.msra.mxu0 0.0
    %599 = vmatprep.subr.mxu0 0.0
    %600 = vmatpush2.msra.mxu0 0.0
    %601 = vmatprep.subr.mxu0 0.0
    %602 = vmatpush2.msra.mxu0 0.0
    %603 = vmatprep.subr.mxu0 0.0
    %604 = vmatpush2.msra.mxu0 0.0
    %605 = vmatprep.subr.mxu0 0.0
    %606 = vmatpush2.msra.mxu0 0.0
    %607 = vmatprep.subr.mxu0 0.0
    %608 = vmatpush2.msra.mxu0 0.0
    %609 = vmatprep.subr.mxu0 0.0
    %610 = vmatpush2.msra.mxu0 0.0
    %611 = vmatprep.subr.mxu0 0.0
    %612 = vmatpush2.msra.mxu0 0.0
    %613 = vmatprep.mubr.f32.mxu0 0.0
    %614 = vmatmul.mubr.f32.gmra.mxu0 %v547
    %v615 = vpop.f32.mrf.mxu0
    %v616 = vadd.f32 0.0, %v615
    %v617 = vpop.f32.mrf.mxu0
    %618 = vdwg.mxu0
    %v619 = vrcp.pop %v543
    %621 = vset.pattern.permute.xlu0 0
    %622 = vperm.xlu0 %621, %v619
    %v623 = vpop.permute.xlu0 %622
    %v625 = vmul.f32 %v616, %v623
    %v627 = vlaneseq
    %v628 = vshrl.u32 %v627, 7
    %v629 = vsub.s32 0, %v628
    %v630 = vrot.slane %v191, %v629
    %v632 = vadd.f32 %v625, %v630
    %633 = vrot.lane.b32.xlu0 %v269, 96
    %v634 = vpop.permute.xlu0 %633
    %v636 = vadd.f32 %v632, %v634
    %v637 = vxor.u32 %v636, 2147483648
    %v638 = vmul.f32 %v637, 1.442695
    %v639 = vpow.pop %v638
    %v640 = vadd.f32 %v639, 1.0
    %v641 = vrcp.pop %v640
    %v642 = vmul.f32 1.0, %v641
    %643 = vrot.lane.b32.xlu0 %v269, 32
    %v644 = vpop.permute.xlu0 %643
    %v646 = vmul.f32 %v642, %v644
    %648 = vrot.lane.b32.xlu0 %v646, 64
    %v649 = vpop.permute.xlu0 %648
    %v651 = vadd.f32 %v632, %v649
    %v652 = vtanh.pop %v651
    %v653 = vsub.f32 1.0, %v642
    %655 = vrot.lane.b32.xlu0 %v652, 96
    %v656 = vpop.permute.xlu0 %655
    %v658 = vmul.f32 %v653, %v656
    %v659 = vmul.f32 %v642, 0.0
    %v660 = vadd.f32 %v658, %v659
    %662 = vrot.lane.b32.xlu0 %v660, 96
    %v663 = vpop.permute.xlu0 %662
    %vm665 = vcmask 254976
    %666 = vst.msk [vmem:[#allocation2] sm:$0x3] %vm665, %v663
    %v667 = vsel %vm96, %v663, 0
    %669 = vmatprep.subr.mxu0 0.0
    %670 = vmatpush1.msra.mxu0 0.0
    %671 = vmatprep.subr.mxu0 0.0
    %672 = vmatpush1.msra.mxu0 0.0
    %673 = vmatprep.subr.mxu0 0.0
    %674 = vmatpush1.msra.mxu0 0.0
    %675 = vmatprep.subr.mxu0 0.0
    %676 = vmatpush1.msra.mxu0 0.0
    %677 = vmatprep.subr.mxu0 0.0
    %678 = vmatpush1.msra.mxu0 0.0
    %679 = vmatprep.subr.mxu0 0.0
    %680 = vmatpush1.msra.mxu0 0.0
    %681 = vmatprep.subr.mxu0 0.0
    %682 = vmatpush1.msra.mxu0 0.0
    %683 = vmatprep.subr.mxu0 0.0
    %684 = vmatpush1.msra.mxu0 0.0
    %685 = vmatprep.subr.mxu0 0.0
    %686 = vmatpush1.msra.mxu0 0.0
    %687 = vmatprep.subr.mxu0 0.0
    %688 = vmatpush1.msra.mxu0 0.0
    %689 = vmatprep.subr.mxu0 0.0
    %690 = vmatpush1.msra.mxu0 0.0
    %691 = vmatprep.subr.mxu0 0.0
    %692 = vmatpush1.msra.mxu0 0.0
    %693 = vmatprep.subr.mxu0 0.0
    %694 = vmatpush1.msra.mxu0 %v181
    %695 = vmatprep.subr.mxu0 0.0
    %696 = vmatpush1.msra.mxu0 %v180
    %697 = vmatprep.subr.mxu0 0.0
    %698 = vmatpush1.msra.mxu0 %v179
    %699 = vmatprep.subr.mxu0 0.0
    %700 = vmatpush1.msra.mxu0 %v178
    %701 = vmatprep.subr.mxu0 0.0
    %702 = vmatpush2.msra.mxu0 0.0
    %703 = vmatprep.subr.mxu0 0.0
    %704 = vmatpush2.msra.mxu0 0.0
    %705 = vmatprep.subr.mxu0 0.0
    %706 = vmatpush2.msra.mxu0 0.0
    %707 = vmatprep.subr.mxu0 0.0
    %708 = vmatpush2.msra.mxu0 0.0
    %709 = vmatprep.subr.mxu0 0.0
    %710 = vmatpush2.msra.mxu0 0.0
    %711 = vmatprep.subr.mxu0 0.0
    %712 = vmatpush2.msra.mxu0 0.0
    %713 = vmatprep.subr.mxu0 0.0
    %714 = vmatpush2.msra.mxu0 0.0
    %715 = vmatprep.subr.mxu0 0.0
    %716 = vmatpush2.msra.mxu0 0.0
    %717 = vmatprep.subr.mxu0 0.0
    %718 = vmatpush2.msra.mxu0 0.0
    %719 = vmatprep.subr.mxu0 0.0
    %720 = vmatpush2.msra.mxu0 0.0
    %721 = vmatprep.subr.mxu0 0.0
    %722 = vmatpush2.msra.mxu0 0.0
    %723 = vmatprep.subr.mxu0 0.0
    %724 = vmatpush2.msra.mxu0 0.0
    %725 = vmatprep.subr.mxu0 0.0
    %726 = vmatpush2.msra.mxu0 0.0
    %727 = vmatprep.subr.mxu0 0.0
    %728 = vmatpush2.msra.mxu0 0.0
    %729 = vmatprep.subr.mxu0 0.0
    %730 = vmatpush2.msra.mxu0 0.0
    %731 = vmatprep.subr.mxu0 0.0
    %732 = vmatpush2.msra.mxu0 0.0
    %733 = vmatprep.mubr.f32.mxu0 0.0
    %734 = vmatmul.mubr.f32.gmra.mxu0 %v667
    %v735 = vpop.f32.mrf.mxu0
    %v736 = vadd.f32 %v197, %v735
    %v737 = vpop.f32.mrf.mxu0
    %738 = vdwg.mxu0
    %v740 = vrot.slane %v736, 6
    %v742 = vrot.slane %v736, 4
    %v744 = vrot.slane %v736, 2
    %v746 = vsel %vm279, %v736, %v740
    %v747 = vsel %vm281, %v746, %v742
    %v748 = vsel %vm283, %v747, %v744
    %v749 = vadd.f32 %v170, %v748
    %v750 = vadd.f32 %v175, %v748
    %v751 = vtanh.pop %v749
    %v752 = vtanh.pop %v750
    %v754 = vsel %vm96, %v751, 0
    %v757 = vsel %vm96, %v752, 0
    %759 = vmatprep.subr.mxu0 0.0
    %760 = vmatpush1.msra.mxu0 0.0
    %761 = vmatprep.subr.mxu0 0.0
    %762 = vmatpush1.msra.mxu0 0.0
    %763 = vmatprep.subr.mxu0 0.0
    %764 = vmatpush1.msra.mxu0 0.0
    %765 = vmatprep.subr.mxu0 0.0
    %766 = vmatpush1.msra.mxu0 0.0
    %767 = vmatprep.subr.mxu0 0.0
    %768 = vmatpush1.msra.mxu0 0.0
    %769 = vmatprep.subr.mxu0 0.0
    %770 = vmatpush1.msra.mxu0 0.0
    %771 = vmatprep.subr.mxu0 0.0
    %772 = vmatpush1.msra.mxu0 0.0
    %773 = vmatprep.subr.mxu0 0.0
    %774 = vmatpush1.msra.mxu0 0.0
    %775 = vmatprep.subr.mxu0 0.0
    %776 = vmatpush1.msra.mxu0 0.0
    %777 = vmatprep.subr.mxu0 0.0
    %778 = vmatpush1.msra.mxu0 0.0
    %779 = vmatprep.subr.mxu0 0.0
    %780 = vmatpush1.msra.mxu0 0.0
    %781 = vmatprep.subr.mxu0 0.0
    %782 = vmatpush1.msra.mxu0 0.0
    %783 = vmatprep.subr.mxu0 0.0
    %784 = vmatpush1.msra.mxu0 %v186
    %785 = vmatprep.subr.mxu0 0.0
    %786 = vmatpush1.msra.mxu0 %v185
    %787 = vmatprep.subr.mxu0 0.0
    %788 = vmatpush1.msra.mxu0 %v184
    %789 = vmatprep.subr.mxu0 0.0
    %790 = vmatpush1.msra.mxu0 %v183
    %791 = vmatprep.subr.mxu0 0.0
    %792 = vmatpush2.msra.mxu0 0.0
    %793 = vmatprep.subr.mxu0 0.0
    %794 = vmatpush2.msra.mxu0 0.0
    %795 = vmatprep.subr.mxu0 0.0
    %796 = vmatpush2.msra.mxu0 0.0
    %797 = vmatprep.subr.mxu0 0.0
    %798 = vmatpush2.msra.mxu0 0.0
    %799 = vmatprep.subr.mxu0 0.0
    %800 = vmatpush2.msra.mxu0 0.0
    %801 = vmatprep.subr.mxu0 0.0
    %802 = vmatpush2.msra.mxu0 0.0
    %803 = vmatprep.subr.mxu0 0.0
    %804 = vmatpush2.msra.mxu0 0.0
    %805 = vmatprep.subr.mxu0 0.0
    %806 = vmatpush2.msra.mxu0 0.0
    %807 = vmatprep.subr.mxu0 0.0
    %808 = vmatpush2.msra.mxu0 0.0
    %809 = vmatprep.subr.mxu0 0.0
    %810 = vmatpush2.msra.mxu0 0.0
    %811 = vmatprep.subr.mxu0 0.0
    %812 = vmatpush2.msra.mxu0 0.0
    %813 = vmatprep.subr.mxu0 0.0
    %814 = vmatpush2.msra.mxu0 0.0
    %815 = vmatprep.subr.mxu0 0.0
    %816 = vmatpush2.msra.mxu0 0.0
    %817 = vmatprep.subr.mxu0 0.0
    %818 = vmatpush2.msra.mxu0 0.0
    %819 = vmatprep.subr.mxu0 0.0
    %820 = vmatpush2.msra.mxu0 0.0
    %821 = vmatprep.subr.mxu0 0.0
    %822 = vmatpush2.msra.mxu0 0.0
    %823 = vmatprep.mubr.f32.mxu0 0.0
    %824 = vmatmul.mubr.f32.gmra.mxu0 %v754
    %v825 = vpop.f32.mrf.mxu0
    %v826 = vadd.f32 0.0, %v825
    %v827 = vpop.f32.mrf.mxu0
    %828 = vmatprep.mubr.f32.mxu0 0.0
    %829 = vmatmul.mubr.f32.gmra.mxu0 %v757
    %v830 = vpop.f32.mrf.mxu0
    %v831 = vadd.f32 0.0, %v830
    %v832 = vpop.f32.mrf.mxu0
    %833 = vdwg.mxu0
    %v834 = vsel %vm370, %v826, -inf
    %v835 = vsel %vm370, %v831, -inf
    %v836 = vmax.f32 %v834, %v835
    %837 = vmax.xlane.f32.xlu0 %v836
    %v838 = vpop.xlane.xlu0 %837
    %v839 = vrot.slane %v838, 4
    %v840 = vmax.f32 %v838, %v839
    %v841 = vrot.slane %v840, 2
    %v842 = vmax.f32 %v840, %v841
    %v843 = vrot.slane %v842, 1
    %v844 = vmax.f32 %v842, %v843
    %s845 = vtos %v844
    %v846 = vstv %s845
    %v847 = vsub.f32 %v826, %v846
    %v848 = vsub.f32 %v831, %v846
    %v849 = vmul.f32 %v847, 1.442695
    %v850 = vpow.pop %v849
    %v851 = vmul.f32 %v848, 1.442695
    %v852 = vpow.pop %v851
    %854 = vset.pattern.permute.xlu0 0
    %855 = vperm.xlu0 %854, %v850
    %v856 = vpop.permute.xlu0 %855
    %859 = vset.pattern.permute.xlu0 0
    %860 = vperm.xlu0 %859, %v852
    %v861 = vpop.permute.xlu0 %860
    %v863 = vmul.f32 %v90, %v856
    %v864 = vmul.f32 %v91, %v861
    %865 = vmatprep.subr.mxu0 0.0
    %866 = vmatpush1.msra.mxu0 0.0
    %867 = vmatprep.subr.mxu0 0.0
    %868 = vmatpush1.msra.mxu0 0.0
    %869 = vmatprep.subr.mxu0 0.0
    %870 = vmatpush1.msra.mxu0 0.0
    %871 = vmatprep.subr.mxu0 0.0
    %872 = vmatpush1.msra.mxu0 0.0
    %873 = vmatprep.subr.mxu0 0.0
    %874 = vmatpush1.msra.mxu0 0.0
    %875 = vmatprep.subr.mxu0 0.0
    %876 = vmatpush1.msra.mxu0 0.0
    %877 = vmatprep.subr.mxu0 0.0
    %878 = vmatpush1.msra.mxu0 0.0
    %879 = vmatprep.subr.mxu0 0.0
    %880 = vmatpush1.msra.mxu0 0.0
    %881 = vmatprep.subr.mxu0 0.0
    %882 = vmatpush1.msra.mxu0 0.0
    %883 = vmatprep.subr.mxu0 0.0
    %884 = vmatpush1.msra.mxu0 0.0
    %885 = vmatprep.subr.mxu0 0.0
    %886 = vmatpush1.msra.mxu0 0.0
    %887 = vmatprep.subr.mxu0 0.0
    %888 = vmatpush1.msra.mxu0 0.0
    %889 = vmatprep.subr.mxu0 0.0
    %890 = vmatpush1.msra.mxu0 0.0
    %891 = vmatprep.subr.mxu0 0.0
    %892 = vmatpush1.msra.mxu0 0.0
    %893 = vmatprep.subr.mxu0 0.0
    %894 = vmatpush1.msra.mxu0 %v864
    %895 = vmatprep.subr.mxu0 0.0
    %896 = vmatpush1.msra.mxu0 %v863
    %897 = vmatprep.subr.mxu0 0.0
    %898 = vmatpush2.msra.mxu0 0.0
    %899 = vmatprep.subr.mxu0 0.0
    %900 = vmatpush2.msra.mxu0 0.0
    %901 = vmatprep.subr.mxu0 0.0
    %902 = vmatpush2.msra.mxu0 0.0
    %903 = vmatprep.subr.mxu0 0.0
    %904 = vmatpush2.msra.mxu0 0.0
    %905 = vmatprep.subr.mxu0 0.0
    %906 = vmatpush2.msra.mxu0 0.0
    %907 = vmatprep.subr.mxu0 0.0
    %908 = vmatpush2.msra.mxu0 0.0
    %909 = vmatprep.subr.mxu0 0.0
    %910 = vmatpush2.msra.mxu0 0.0
    %911 = vmatprep.subr.mxu0 0.0
    %912 = vmatpush2.msra.mxu0 0.0
    %913 = vmatprep.subr.mxu0 0.0
    %914 = vmatpush2.msra.mxu0 0.0
    %915 = vmatprep.subr.mxu0 0.0
    %916 = vmatpush2.msra.mxu0 0.0
    %917 = vmatprep.subr.mxu0 0.0
    %918 = vmatpush2.msra.mxu0 0.0
    %919 = vmatprep.subr.mxu0 0.0
    %920 = vmatpush2.msra.mxu0 0.0
    %921 = vmatprep.subr.mxu0 0.0
    %922 = vmatpush2.msra.mxu0 0.0
    %923 = vmatprep.subr.mxu0 0.0
    %924 = vmatpush2.msra.mxu0 0.0
    %925 = vmatprep.subr.mxu0 0.0
    %926 = vmatpush2.msra.mxu0 0.0
    %927 = vmatprep.subr.mxu0 0.0
    %928 = vmatpush2.msra.mxu0 0.0
    %929 = vmatprep.mubr.f32.mxu0 0.0
    %930 = vmatmul.mubr.f32.gmra.mxu0 %v404
    %v931 = vpop.f32.mrf.mxu0
    %v932 = vadd.f32 0.0, %v931
    %v933 = vpop.f32.mrf.mxu0
    %934 = vdwg.mxu0
    %935 = vmatprep.subr.mxu0 0.0
    %936 = vmatpush1.msra.mxu0 0.0
    %937 = vmatprep.subr.mxu0 0.0
    %938 = vmatpush1.msra.mxu0 0.0
    %939 = vmatprep.subr.mxu0 0.0
    %940 = vmatpush1.msra.mxu0 0.0
    %941 = vmatprep.subr.mxu0 0.0
    %942 = vmatpush1.msra.mxu0 0.0
    %943 = vmatprep.subr.mxu0 0.0
    %944 = vmatpush1.msra.mxu0 0.0
    %945 = vmatprep.subr.mxu0 0.0
    %946 = vmatpush1.msra.mxu0 0.0
    %947 = vmatprep.subr.mxu0 0.0
    %948 = vmatpush1.msra.mxu0 0.0
    %949 = vmatprep.subr.mxu0 0.0
    %950 = vmatpush1.msra.mxu0 0.0
    %951 = vmatprep.subr.mxu0 0.0
    %952 = vmatpush1.msra.mxu0 0.0
    %953 = vmatprep.subr.mxu0 0.0
    %954 = vmatpush1.msra.mxu0 0.0
    %955 = vmatprep.subr.mxu0 0.0
    %956 = vmatpush1.msra.mxu0 0.0
    %957 = vmatprep.subr.mxu0 0.0
    %958 = vmatpush1.msra.mxu0 0.0
    %959 = vmatprep.subr.mxu0 0.0
    %960 = vmatpush1.msra.mxu0 0.0
    %961 = vmatprep.subr.mxu0 0.0
    %962 = vmatpush1.msra.mxu0 0.0
    %963 = vmatprep.subr.mxu0 0.0
    %964 = vmatpush1.msra.mxu0 %v852
    %965 = vmatprep.subr.mxu0 0.0
    %966 = vmatpush1.msra.mxu0 %v850
    %967 = vmatprep.subr.mxu0 0.0
    %968 = vmatpush2.msra.mxu0 0.0
    %969 = vmatprep.subr.mxu0 0.0
    %970 = vmatpush2.msra.mxu0 0.0
    %971 = vmatprep.subr.mxu0 0.0
    %972 = vmatpush2.msra.mxu0 0.0
    %973 = vmatprep.subr.mxu0 0.0
    %974 = vmatpush2.msra.mxu0 0.0
    %975 = vmatprep.subr.mxu0 0.0
    %976 = vmatpush2.msra.mxu0 0.0
    %977 = vmatprep.subr.mxu0 0.0
    %978 = vmatpush2.msra.mxu0 0.0
    %979 = vmatprep.subr.mxu0 0.0
    %980 = vmatpush2.msra.mxu0 0.0
    %981 = vmatprep.subr.mxu0 0.0
    %982 = vmatpush2.msra.mxu0 0.0
    %983 = vmatprep.subr.mxu0 0.0
    %984 = vmatpush2.msra.mxu0 0.0
    %985 = vmatprep.subr.mxu0 0.0
    %986 = vmatpush2.msra.mxu0 0.0
    %987 = vmatprep.subr.mxu0 0.0
    %988 = vmatpush2.msra.mxu0 0.0
    %989 = vmatprep.subr.mxu0 0.0
    %990 = vmatpush2.msra.mxu0 0.0
    %991 = vmatprep.subr.mxu0 0.0
    %992 = vmatpush2.msra.mxu0 0.0
    %993 = vmatprep.subr.mxu0 0.0
    %994 = vmatpush2.msra.mxu0 0.0
    %995 = vmatprep.subr.mxu0 0.0
    %996 = vmatpush2.msra.mxu0 0.0
    %997 = vmatprep.subr.mxu0 0.0
    %998 = vmatpush2.msra.mxu0 0.0
    %999 = vmatprep.mubr.f32.mxu0 0.0
    %1000 = vmatmul.mubr.f32.gmra.mxu0 %v404
    %v1001 = vpop.f32.mrf.mxu0
    %v1002 = vadd.f32 0.0, %v1001
    %v1003 = vpop.f32.mrf.mxu0
    %1004 = vdwg.mxu0
    %v1006 = vsel %vm96, %v932, 0
    %1008 = vmatprep.subr.mxu0 0.0
    %1009 = vmatpush1.msra.mxu0 0.0
    %1010 = vmatprep.subr.mxu0 0.0
    %1011 = vmatpush1.msra.mxu0 0.0
    %1012 = vmatprep.subr.mxu0 0.0
    %1013 = vmatpush1.msra.mxu0 0.0
    %1014 = vmatprep.subr.mxu0 0.0
    %1015 = vmatpush1.msra.mxu0 0.0
    %1016 = vmatprep.subr.mxu0 0.0
    %1017 = vmatpush1.msra.mxu0 0.0
    %1018 = vmatprep.subr.mxu0 0.0
    %1019 = vmatpush1.msra.mxu0 0.0
    %1020 = vmatprep.subr.mxu0 0.0
    %1021 = vmatpush1.msra.mxu0 0.0
    %1022 = vmatprep.subr.mxu0 0.0
    %1023 = vmatpush1.msra.mxu0 0.0
    %1024 = vmatprep.subr.mxu0 0.0
    %1025 = vmatpush1.msra.mxu0 0.0
    %1026 = vmatprep.subr.mxu0 0.0
    %1027 = vmatpush1.msra.mxu0 0.0
    %1028 = vmatprep.subr.mxu0 0.0
    %1029 = vmatpush1.msra.mxu0 0.0
    %1030 = vmatprep.subr.mxu0 0.0
    %1031 = vmatpush1.msra.mxu0 0.0
    %1032 = vmatprep.subr.mxu0 0.0
    %1033 = vmatpush1.msra.mxu0 %v190
    %1034 = vmatprep.subr.mxu0 0.0
    %1035 = vmatpush1.msra.mxu0 %v189
    %1036 = vmatprep.subr.mxu0 0.0
    %1037 = vmatpush1.msra.mxu0 %v188
    %1038 = vmatprep.subr.mxu0 0.0
    %1039 = vmatpush1.msra.mxu0 %v187
    %1040 = vmatprep.subr.mxu0 0.0
    %1041 = vmatpush2.msra.mxu0 0.0
    %1042 = vmatprep.subr.mxu0 0.0
    %1043 = vmatpush2.msra.mxu0 0.0
    %1044 = vmatprep.subr.mxu0 0.0
    %1045 = vmatpush2.msra.mxu0 0.0
    %1046 = vmatprep.subr.mxu0 0.0
    %1047 = vmatpush2.msra.mxu0 0.0
    %1048 = vmatprep.subr.mxu0 0.0
    %1049 = vmatpush2.msra.mxu0 0.0
    %1050 = vmatprep.subr.mxu0 0.0
    %1051 = vmatpush2.msra.mxu0 0.0
    %1052 = vmatprep.subr.mxu0 0.0
    %1053 = vmatpush2.msra.mxu0 0.0
    %1054 = vmatprep.subr.mxu0 0.0
    %1055 = vmatpush2.msra.mxu0 0.0
    %1056 = vmatprep.subr.mxu0 0.0
    %1057 = vmatpush2.msra.mxu0 0.0
    %1058 = vmatprep.subr.mxu0 0.0
    %1059 = vmatpush2.msra.mxu0 0.0
    %1060 = vmatprep.subr.mxu0 0.0
    %1061 = vmatpush2.msra.mxu0 0.0
    %1062 = vmatprep.subr.mxu0 0.0
    %1063 = vmatpush2.msra.mxu0 0.0
    %1064 = vmatprep.subr.mxu0 0.0
    %1065 = vmatpush2.msra.mxu0 0.0
    %1066 = vmatprep.subr.mxu0 0.0
    %1067 = vmatpush2.msra.mxu0 0.0
    %1068 = vmatprep.subr.mxu0 0.0
    %1069 = vmatpush2.msra.mxu0 0.0
    %1070 = vmatprep.subr.mxu0 0.0
    %1071 = vmatpush2.msra.mxu0 0.0
    %1072 = vmatprep.mubr.f32.mxu0 0.0
    %1073 = vmatmul.mubr.f32.gmra.mxu0 %v1006
    %v1074 = vpop.f32.mrf.mxu0
    %v1075 = vadd.f32 0.0, %v1074
    %v1076 = vpop.f32.mrf.mxu0
    %1077 = vdwg.mxu0
    %v1078 = vrcp.pop %v1002
    %1080 = vset.pattern.permute.xlu0 0
    %1081 = vperm.xlu0 %1080, %v1078
    %v1082 = vpop.permute.xlu0 %1081
    %v1084 = vmul.f32 %v1075, %v1082
    %v1085 = vadd.f32 %v1084, %v630
    %1086 = vrot.lane.b32.xlu0 %v736, 96
    %v1087 = vpop.permute.xlu0 %1086
    %v1089 = vadd.f32 %v1085, %v1087
    %v1090 = vxor.u32 %v1089, 2147483648
    %v1091 = vmul.f32 %v1090, 1.442695
    %v1092 = vpow.pop %v1091
    %v1093 = vadd.f32 %v1092, 1.0
    %v1094 = vrcp.pop %v1093
    %v1095 = vmul.f32 1.0, %v1094
    %1096 = vrot.lane.b32.xlu0 %v736, 32
    %v1097 = vpop.permute.xlu0 %1096
    %v1099 = vmul.f32 %v1095, %v1097
    %1101 = vrot.lane.b32.xlu0 %v1099, 64
    %v1102 = vpop.permute.xlu0 %1101
    %v1104 = vadd.f32 %v1085, %v1102
    %v1105 = vtanh.pop %v1104
    %v1106 = vsub.f32 1.0, %v1095
    %1108 = vrot.lane.b32.xlu0 %v1105, 96
    %v1109 = vpop.permute.xlu0 %1108
    %v1111 = vmul.f32 %v1106, %v1109
    %v1112 = vmul.f32 %v1095, %v660
    %v1113 = vadd.f32 %v1111, %v1112
    %1115 = vrot.lane.b32.xlu0 %v1113, 96
    %v1116 = vpop.permute.xlu0 %1115
    %1118 = vst.msk [vmem:[#allocation2 + $0x2] sm:$0x3] %vm665, %v1116
    %v1119 = vsel %vm96, %v1116, 0
    %1121 = vmatprep.subr.mxu0 0.0
    %1122 = vmatpush1.msra.mxu0 0.0
    %1123 = vmatprep.subr.mxu0 0.0
    %1124 = vmatpush1.msra.mxu0 0.0
    %1125 = vmatprep.subr.mxu0 0.0
    %1126 = vmatpush1.msra.mxu0 0.0
    %1127 = vmatprep.subr.mxu0 0.0
    %1128 = vmatpush1.msra.mxu0 0.0
    %1129 = vmatprep.subr.mxu0 0.0
    %1130 = vmatpush1.msra.mxu0 0.0
    %1131 = vmatprep.subr.mxu0 0.0
    %1132 = vmatpush1.msra.mxu0 0.0
    %1133 = vmatprep.subr.mxu0 0.0
    %1134 = vmatpush1.msra.mxu0 0.0
    %1135 = vmatprep.subr.mxu0 0.0
    %1136 = vmatpush1.msra.mxu0 0.0
    %1137 = vmatprep.subr.mxu0 0.0
    %1138 = vmatpush1.msra.mxu0 0.0
    %1139 = vmatprep.subr.mxu0 0.0
    %1140 = vmatpush1.msra.mxu0 0.0
    %1141 = vmatprep.subr.mxu0 0.0
    %1142 = vmatpush1.msra.mxu0 0.0
    %1143 = vmatprep.subr.mxu0 0.0
    %1144 = vmatpush1.msra.mxu0 0.0
    %1145 = vmatprep.subr.mxu0 0.0
    %1146 = vmatpush1.msra.mxu0 %v181
    %1147 = vmatprep.subr.mxu0 0.0
    %1148 = vmatpush1.msra.mxu0 %v180
    %1149 = vmatprep.subr.mxu0 0.0
    %1150 = vmatpush1.msra.mxu0 %v179
    %1151 = vmatprep.subr.mxu0 0.0
    %1152 = vmatpush1.msra.mxu0 %v178
    %1153 = vmatprep.subr.mxu0 0.0
    %1154 = vmatpush2.msra.mxu0 0.0
    %1155 = vmatprep.subr.mxu0 0.0
    %1156 = vmatpush2.msra.mxu0 0.0
    %1157 = vmatprep.subr.mxu0 0.0
    %1158 = vmatpush2.msra.mxu0 0.0
    %1159 = vmatprep.subr.mxu0 0.0
    %1160 = vmatpush2.msra.mxu0 0.0
    %1161 = vmatprep.subr.mxu0 0.0
    %1162 = vmatpush2.msra.mxu0 0.0
    %1163 = vmatprep.subr.mxu0 0.0
    %1164 = vmatpush2.msra.mxu0 0.0
    %1165 = vmatprep.subr.mxu0 0.0
    %1166 = vmatpush2.msra.mxu0 0.0
    %1167 = vmatprep.subr.mxu0 0.0
    %1168 = vmatpush2.msra.mxu0 0.0
    %1169 = vmatprep.subr.mxu0 0.0
    %1170 = vmatpush2.msra.mxu0 0.0
    %1171 = vmatprep.subr.mxu0 0.0
    %1172 = vmatpush2.msra.mxu0 0.0
    %1173 = vmatprep.subr.mxu0 0.0
    %1174 = vmatpush2.msra.mxu0 0.0
    %1175 = vmatprep.subr.mxu0 0.0
    %1176 = vmatpush2.msra.mxu0 0.0
    %1177 = vmatprep.subr.mxu0 0.0
    %1178 = vmatpush2.msra.mxu0 0.0
    %1179 = vmatprep.subr.mxu0 0.0
    %1180 = vmatpush2.msra.mxu0 0.0
    %1181 = vmatprep.subr.mxu0 0.0
    %1182 = vmatpush2.msra.mxu0 0.0
    %1183 = vmatprep.subr.mxu0 0.0
    %1184 = vmatpush2.msra.mxu0 0.0
    %1185 = vmatprep.mubr.f32.mxu0 0.0
    %1186 = vmatmul.mubr.f32.gmra.mxu0 %v1119
    %v1187 = vpop.f32.mrf.mxu0
    %v1188 = vadd.f32 %v197, %v1187
    %v1189 = vpop.f32.mrf.mxu0
    %1190 = vdwg.mxu0
    %v1192 = vrot.slane %v1188, 6
    %v1194 = vrot.slane %v1188, 4
    %v1196 = vrot.slane %v1188, 2
    %v1198 = vsel %vm279, %v1188, %v1192
    %v1199 = vsel %vm281, %v1198, %v1194
    %v1200 = vsel %vm283, %v1199, %v1196
    %v1201 = vadd.f32 %v170, %v1200
    %v1202 = vadd.f32 %v175, %v1200
    %v1203 = vtanh.pop %v1201
    %v1204 = vtanh.pop %v1202
    %v1206 = vsel %vm96, %v1203, 0
    %v1209 = vsel %vm96, %v1204, 0
    %1211 = vmatprep.subr.mxu0 0.0
    %1212 = vmatpush1.msra.mxu0 0.0
    %1213 = vmatprep.subr.mxu0 0.0
    %1214 = vmatpush1.msra.mxu0 0.0
    %1215 = vmatprep.subr.mxu0 0.0
    %1216 = vmatpush1.msra.mxu0 0.0
    %1217 = vmatprep.subr.mxu0 0.0
    %1218 = vmatpush1.msra.mxu0 0.0
    %1219 = vmatprep.subr.mxu0 0.0
    %1220 = vmatpush1.msra.mxu0 0.0
    %1221 = vmatprep.subr.mxu0 0.0
    %1222 = vmatpush1.msra.mxu0 0.0
    %1223 = vmatprep.subr.mxu0 0.0
    %1224 = vmatpush1.msra.mxu0 0.0
    %1225 = vmatprep.subr.mxu0 0.0
    %1226 = vmatpush1.msra.mxu0 0.0
    %1227 = vmatprep.subr.mxu0 0.0
    %1228 = vmatpush1.msra.mxu0 0.0
    %1229 = vmatprep.subr.mxu0 0.0
    %1230 = vmatpush1.msra.mxu0 0.0
    %1231 = vmatprep.subr.mxu0 0.0
    %1232 = vmatpush1.msra.mxu0 0.0
    %1233 = vmatprep.subr.mxu0 0.0
    %1234 = vmatpush1.msra.mxu0 0.0
    %1235 = vmatprep.subr.mxu0 0.0
    %1236 = vmatpush1.msra.mxu0 %v186
    %1237 = vmatprep.subr.mxu0 0.0
    %1238 = vmatpush1.msra.mxu0 %v185
    %1239 = vmatprep.subr.mxu0 0.0
    %1240 = vmatpush1.msra.mxu0 %v184
    %1241 = vmatprep.subr.mxu0 0.0
    %1242 = vmatpush1.msra.mxu0 %v183
    %1243 = vmatprep.subr.mxu0 0.0
    %1244 = vmatpush2.msra.mxu0 0.0
    %1245 = vmatprep.subr.mxu0 0.0
    %1246 = vmatpush2.msra.mxu0 0.0
    %1247 = vmatprep.subr.mxu0 0.0
    %1248 = vmatpush2.msra.mxu0 0.0
    %1249 = vmatprep.subr.mxu0 0.0
    %1250 = vmatpush2.msra.mxu0 0.0
    %1251 = vmatprep.subr.mxu0 0.0
    %1252 = vmatpush2.msra.mxu0 0.0
    %1253 = vmatprep.subr.mxu0 0.0
    %1254 = vmatpush2.msra.mxu0 0.0
    %1255 = vmatprep.subr.mxu0 0.0
    %1256 = vmatpush2.msra.mxu0 0.0
    %1257 = vmatprep.subr.mxu0 0.0
    %1258 = vmatpush2.msra.mxu0 0.0
    %1259 = vmatprep.subr.mxu0 0.0
    %1260 = vmatpush2.msra.mxu0 0.0
    %1261 = vmatprep.subr.mxu0 0.0
    %1262 = vmatpush2.msra.mxu0 0.0
    %1263 = vmatprep.subr.mxu0 0.0
    %1264 = vmatpush2.msra.mxu0 0.0
    %1265 = vmatprep.subr.mxu0 0.0
    %1266 = vmatpush2.msra.mxu0 0.0
    %1267 = vmatprep.subr.mxu0 0.0
    %1268 = vmatpush2.msra.mxu0 0.0
    %1269 = vmatprep.subr.mxu0 0.0
    %1270 = vmatpush2.msra.mxu0 0.0
    %1271 = vmatprep.subr.mxu0 0.0
    %1272 = vmatpush2.msra.mxu0 0.0
    %1273 = vmatprep.subr.mxu0 0.0
    %1274 = vmatpush2.msra.mxu0 0.0
    %1275 = vmatprep.mubr.f32.mxu0 0.0
    %1276 = vmatmul.mubr.f32.gmra.mxu0 %v1206
    %v1277 = vpop.f32.mrf.mxu0
    %v1278 = vadd.f32 0.0, %v1277
    %v1279 = vpop.f32.mrf.mxu0
    %1280 = vmatprep.mubr.f32.mxu0 0.0
    %1281 = vmatmul.mubr.f32.gmra.mxu0 %v1209
    %v1282 = vpop.f32.mrf.mxu0
    %v1283 = vadd.f32 0.0, %v1282
    %v1284 = vpop.f32.mrf.mxu0
    %1285 = vdwg.mxu0
    %v1286 = vsel %vm370, %v1278, -inf
    %v1287 = vsel %vm370, %v1283, -inf
    %v1288 = vmax.f32 %v1286, %v1287
    %1289 = vmax.xlane.f32.xlu0 %v1288
    %v1290 = vpop.xlane.xlu0 %1289
    %v1291 = vrot.slane %v1290, 4
    %v1292 = vmax.f32 %v1290, %v1291
    %v1293 = vrot.slane %v1292, 2
    %v1294 = vmax.f32 %v1292, %v1293
    %v1295 = vrot.slane %v1294, 1
    %v1296 = vmax.f32 %v1294, %v1295
    %s1297 = vtos %v1296
    %v1298 = vstv %s1297
    %v1299 = vsub.f32 %v1278, %v1298
    %v1300 = vsub.f32 %v1283, %v1298
    %v1301 = vmul.f32 %v1299, 1.442695
    %v1302 = vpow.pop %v1301
    %v1303 = vmul.f32 %v1300, 1.442695
    %v1304 = vpow.pop %v1303
    %1306 = vset.pattern.permute.xlu0 0
    %1307 = vperm.xlu0 %1306, %v1302
    %v1308 = vpop.permute.xlu0 %1307
    %1311 = vset.pattern.permute.xlu0 0
    %1312 = vperm.xlu0 %1311, %v1304
    %v1313 = vpop.permute.xlu0 %1312
    %v1315 = vmul.f32 %v90, %v1308
    %v1316 = vmul.f32 %v91, %v1313
    %1317 = vmatprep.subr.mxu0 0.0
    %1318 = vmatpush1.msra.mxu0 0.0
    %1319 = vmatprep.subr.mxu0 0.0
    %1320 = vmatpush1.msra.mxu0 0.0
    %1321 = vmatprep.subr.mxu0 0.0
    %1322 = vmatpush1.msra.mxu0 0.0
    %1323 = vmatprep.subr.mxu0 0.0
    %1324 = vmatpush1.msra.mxu0 0.0
    %1325 = vmatprep.subr.mxu0 0.0
    %1326 = vmatpush1.msra.mxu0 0.0
    %1327 = vmatprep.subr.mxu0 0.0
    %1328 = vmatpush1.msra.mxu0 0.0
    %1329 = vmatprep.subr.mxu0 0.0
    %1330 = vmatpush1.msra.mxu0 0.0
    %1331 = vmatprep.subr.mxu0 0.0
    %1332 = vmatpush1.msra.mxu0 0.0
    %1333 = vmatprep.subr.mxu0 0.0
    %1334 = vmatpush1.msra.mxu0 0.0
    %1335 = vmatprep.subr.mxu0 0.0
    %1336 = vmatpush1.msra.mxu0 0.0
    %1337 = vmatprep.subr.mxu0 0.0
    %1338 = vmatpush1.msra.mxu0 0.0
    %1339 = vmatprep.subr.mxu0 0.0
    %1340 = vmatpush1.msra.mxu0 0.0
    %1341 = vmatprep.subr.mxu0 0.0
    %1342 = vmatpush1.msra.mxu0 0.0
    %1343 = vmatprep.subr.mxu0 0.0
    %1344 = vmatpush1.msra.mxu0 0.0
    %1345 = vmatprep.subr.mxu0 0.0
    %1346 = vmatpush1.msra.mxu0 %v1316
    %1347 = vmatprep.subr.mxu0 0.0
    %1348 = vmatpush1.msra.mxu0 %v1315
    %1349 = vmatprep.subr.mxu0 0.0
    %1350 = vmatpush2.msra.mxu0 0.0
    %1351 = vmatprep.subr.mxu0 0.0
    %1352 = vmatpush2.msra.mxu0 0.0
    %1353 = vmatprep.subr.mxu0 0.0
    %1354 = vmatpush2.msra.mxu0 0.0
    %1355 = vmatprep.subr.mxu0 0.0
    %1356 = vmatpush2.msra.mxu0 0.0
    %1357 = vmatprep.subr.mxu0 0.0
    %1358 = vmatpush2.msra.mxu0 0.0
    %1359 = vmatprep.subr.mxu0 0.0
    %1360 = vmatpush2.msra.mxu0 0.0
    %1361 = vmatprep.subr.mxu0 0.0
    %1362 = vmatpush2.msra.mxu0 0.0
    %1363 = vmatprep.subr.mxu0 0.0
    %1364 = vmatpush2.msra.mxu0 0.0
    %1365 = vmatprep.subr.mxu0 0.0
    %1366 = vmatpush2.msra.mxu0 0.0
    %1367 = vmatprep.subr.mxu0 0.0
    %1368 = vmatpush2.msra.mxu0 0.0
    %1369 = vmatprep.subr.mxu0 0.0
    %1370 = vmatpush2.msra.mxu0 0.0
    %1371 = vmatprep.subr.mxu0 0.0
    %1372 = vmatpush2.msra.mxu0 0.0
    %1373 = vmatprep.subr.mxu0 0.0
    %1374 = vmatpush2.msra.mxu0 0.0
    %1375 = vmatprep.subr.mxu0 0.0
    %1376 = vmatpush2.msra.mxu0 0.0
    %1377 = vmatprep.subr.mxu0 0.0
    %1378 = vmatpush2.msra.mxu0 0.0
    %1379 = vmatprep.subr.mxu0 0.0
    %1380 = vmatpush2.msra.mxu0 0.0
    %1381 = vmatprep.mubr.f32.mxu0 0.0
    %1382 = vmatmul.mubr.f32.gmra.mxu0 %v404
    %v1383 = vpop.f32.mrf.mxu0
    %v1384 = vadd.f32 0.0, %v1383
    %v1385 = vpop.f32.mrf.mxu0
    %1386 = vdwg.mxu0
    %1387 = vmatprep.subr.mxu0 0.0
    %1388 = vmatpush1.msra.mxu0 0.0
    %1389 = vmatprep.subr.mxu0 0.0
    %1390 = vmatpush1.msra.mxu0 0.0
    %1391 = vmatprep.subr.mxu0 0.0
    %1392 = vmatpush1.msra.mxu0 0.0
    %1393 = vmatprep.subr.mxu0 0.0
    %1394 = vmatpush1.msra.mxu0 0.0
    %1395 = vmatprep.subr.mxu0 0.0
    %1396 = vmatpush1.msra.mxu0 0.0
    %1397 = vmatprep.subr.mxu0 0.0
    %1398 = vmatpush1.msra.mxu0 0.0
    %1399 = vmatprep.subr.mxu0 0.0
    %1400 = vmatpush1.msra.mxu0 0.0
    %1401 = vmatprep.subr.mxu0 0.0
    %1402 = vmatpush1.msra.mxu0 0.0
    %1403 = vmatprep.subr.mxu0 0.0
    %1404 = vmatpush1.msra.mxu0 0.0
    %1405 = vmatprep.subr.mxu0 0.0
    %1406 = vmatpush1.msra.mxu0 0.0
    %1407 = vmatprep.subr.mxu0 0.0
    %1408 = vmatpush1.msra.mxu0 0.0
    %1409 = vmatprep.subr.mxu0 0.0
    %1410 = vmatpush1.msra.mxu0 0.0
    %1411 = vmatprep.subr.mxu0 0.0
    %1412 = vmatpush1.msra.mxu0 0.0
    %1413 = vmatprep.subr.mxu0 0.0
    %1414 = vmatpush1.msra.mxu0 0.0
    %1415 = vmatprep.subr.mxu0 0.0
    %1416 = vmatpush1.msra.mxu0 %v1304
    %1417 = vmatprep.subr.mxu0 0.0
    %1418 = vmatpush1.msra.mxu0 %v1302
    %1419 = vmatprep.subr.mxu0 0.0
    %1420 = vmatpush2.msra.mxu0 0.0
    %1421 = vmatprep.subr.mxu0 0.0
    %1422 = vmatpush2.msra.mxu0 0.0
    %1423 = vmatprep.subr.mxu0 0.0
    %1424 = vmatpush2.msra.mxu0 0.0
    %1425 = vmatprep.subr.mxu0 0.0
    %1426 = vmatpush2.msra.mxu0 0.0
    %1427 = vmatprep.subr.mxu0 0.0
    %1428 = vmatpush2.msra.mxu0 0.0
    %1429 = vmatprep.subr.mxu0 0.0
    %1430 = vmatpush2.msra.mxu0 0.0
    %1431 = vmatprep.subr.mxu0 0.0
    %1432 = vmatpush2.msra.mxu0 0.0
    %1433 = vmatprep.subr.mxu0 0.0
    %1434 = vmatpush2.msra.mxu0 0.0
    %1435 = vmatprep.subr.mxu0 0.0
    %1436 = vmatpush2.msra.mxu0 0.0
    %1437 = vmatprep.subr.mxu0 0.0
    %1438 = vmatpush2.msra.mxu0 0.0
    %1439 = vmatprep.subr.mxu0 0.0
    %1440 = vmatpush2.msra.mxu0 0.0
    %1441 = vmatprep.subr.mxu0 0.0
    %1442 = vmatpush2.msra.mxu0 0.0
    %1443 = vmatprep.subr.mxu0 0.0
    %1444 = vmatpush2.msra.mxu0 0.0
    %1445 = vmatprep.subr.mxu0 0.0
    %1446 = vmatpush2.msra.mxu0 0.0
    %1447 = vmatprep.subr.mxu0 0.0
    %1448 = vmatpush2.msra.mxu0 0.0
    %1449 = vmatprep.subr.mxu0 0.0
    %1450 = vmatpush2.msra.mxu0 0.0
    %1451 = vmatprep.mubr.f32.mxu0 0.0
    %1452 = vmatmul.mubr.f32.gmra.mxu0 %v404
    %v1453 = vpop.f32.mrf.mxu0
    %v1454 = vadd.f32 0.0, %v1453
    %v1455 = vpop.f32.mrf.mxu0
    %1456 = vdwg.mxu0
    %v1458 = vsel %vm96, %v1384, 0
    %1460 = vmatprep.subr.mxu0 0.0
    %1461 = vmatpush1.msra.mxu0 0.0
    %1462 = vmatprep.subr.mxu0 0.0
    %1463 = vmatpush1.msra.mxu0 0.0
    %1464 = vmatprep.subr.mxu0 0.0
    %1465 = vmatpush1.msra.mxu0 0.0
    %1466 = vmatprep.subr.mxu0 0.0
    %1467 = vmatpush1.msra.mxu0 0.0
    %1468 = vmatprep.subr.mxu0 0.0
    %1469 = vmatpush1.msra.mxu0 0.0
    %1470 = vmatprep.subr.mxu0 0.0
    %1471 = vmatpush1.msra.mxu0 0.0
    %1472 = vmatprep.subr.mxu0 0.0
    %1473 = vmatpush1.msra.mxu0 0.0
    %1474 = vmatprep.subr.mxu0 0.0
    %1475 = vmatpush1.msra.mxu0 0.0
    %1476 = vmatprep.subr.mxu0 0.0
    %1477 = vmatpush1.msra.mxu0 0.0
    %1478 = vmatprep.subr.mxu0 0.0
    %1479 = vmatpush1.msra.mxu0 0.0
    %1480 = vmatprep.subr.mxu0 0.0
    %1481 = vmatpush1.msra.mxu0 0.0
    %1482 = vmatprep.subr.mxu0 0.0
    %1483 = vmatpush1.msra.mxu0 0.0
    %1484 = vmatprep.subr.mxu0 0.0
    %1485 = vmatpush1.msra.mxu0 %v190
    %1486 = vmatprep.subr.mxu0 0.0
    %1487 = vmatpush1.msra.mxu0 %v189
    %1488 = vmatprep.subr.mxu0 0.0
    %1489 = vmatpush1.msra.mxu0 %v188
    %1490 = vmatprep.subr.mxu0 0.0
    %1491 = vmatpush1.msra.mxu0 %v187
    %1492 = vmatprep.subr.mxu0 0.0
    %1493 = vmatpush2.msra.mxu0 0.0
    %1494 = vmatprep.subr.mxu0 0.0
    %1495 = vmatpush2.msra.mxu0 0.0
    %1496 = vmatprep.subr.mxu0 0.0
    %1497 = vmatpush2.msra.mxu0 0.0
    %1498 = vmatprep.subr.mxu0 0.0
    %1499 = vmatpush2.msra.mxu0 0.0
    %1500 = vmatprep.subr.mxu0 0.0
    %1501 = vmatpush2.msra.mxu0 0.0
    %1502 = vmatprep.subr.mxu0 0.0
    %1503 = vmatpush2.msra.mxu0 0.0
    %1504 = vmatprep.subr.mxu0 0.0
    %1505 = vmatpush2.msra.mxu0 0.0
    %1506 = vmatprep.subr.mxu0 0.0
    %1507 = vmatpush2.msra.mxu0 0.0
    %1508 = vmatprep.subr.mxu0 0.0
    %1509 = vmatpush2.msra.mxu0 0.0
    %1510 = vmatprep.subr.mxu0 0.0
    %1511 = vmatpush2.msra.mxu0 0.0
    %1512 = vmatprep.subr.mxu0 0.0
    %1513 = vmatpush2.msra.mxu0 0.0
    %1514 = vmatprep.subr.mxu0 0.0
    %1515 = vmatpush2.msra.mxu0 0.0
    %1516 = vmatprep.subr.mxu0 0.0
    %1517 = vmatpush2.msra.mxu0 0.0
    %1518 = vmatprep.subr.mxu0 0.0
    %1519 = vmatpush2.msra.mxu0 0.0
    %1520 = vmatprep.subr.mxu0 0.0
    %1521 = vmatpush2.msra.mxu0 0.0
    %1522 = vmatprep.subr.mxu0 0.0
    %1523 = vmatpush2.msra.mxu0 0.0
    %1524 = vmatprep.mubr.f32.mxu0 0.0
    %1525 = vmatmul.mubr.f32.gmra.mxu0 %v1458
    %v1526 = vpop.f32.mrf.mxu0
    %v1527 = vadd.f32 0.0, %v1526
    %v1528 = vpop.f32.mrf.mxu0
    %1529 = vdwg.mxu0
    %v1530 = vrcp.pop %v1454
    %1532 = vset.pattern.permute.xlu0 0
    %1533 = vperm.xlu0 %1532, %v1530
    %v1534 = vpop.permute.xlu0 %1533
    %v1536 = vmul.f32 %v1527, %v1534
    %v1537 = vadd.f32 %v1536, %v630
    %1538 = vrot.lane.b32.xlu0 %v1188, 96
    %v1539 = vpop.permute.xlu0 %1538
    %v1541 = vadd.f32 %v1537, %v1539
    %v1542 = vxor.u32 %v1541, 2147483648
    %v1543 = vmul.f32 %v1542, 1.442695
    %v1544 = vpow.pop %v1543
    %v1545 = vadd.f32 %v1544, 1.0
    %v1546 = vrcp.pop %v1545
    %v1547 = vmul.f32 1.0, %v1546
    %1548 = vrot.lane.b32.xlu0 %v1188, 32
    %v1549 = vpop.permute.xlu0 %1548
    %v1551 = vmul.f32 %v1547, %v1549
    %1553 = vrot.lane.b32.xlu0 %v1551, 64
    %v1554 = vpop.permute.xlu0 %1553
    %v1556 = vadd.f32 %v1537, %v1554
    %v1557 = vtanh.pop %v1556
    %v1558 = vsub.f32 1.0, %v1547
    %1560 = vrot.lane.b32.xlu0 %v1557, 96
    %v1561 = vpop.permute.xlu0 %1560
    %v1563 = vmul.f32 %v1558, %v1561
    %v1564 = vmul.f32 %v1547, %v1113
    %v1565 = vadd.f32 %v1563, %v1564
    %1567 = vrot.lane.b32.xlu0 %v1565, 96
    %v1568 = vpop.permute.xlu0 %1567
    %1570 = vst.msk [vmem:[#allocation2 + $0x4] sm:$0x3] %vm665, %v1568
    %v1571 = vsel %vm96, %v1568, 0
    %1573 = vmatprep.subr.mxu0 0.0
    %1574 = vmatpush1.msra.mxu0 0.0
    %1575 = vmatprep.subr.mxu0 0.0
    %1576 = vmatpush1.msra.mxu0 0.0
    %1577 = vmatprep.subr.mxu0 0.0
    %1578 = vmatpush1.msra.mxu0 0.0
    %1579 = vmatprep.subr.mxu0 0.0
    %1580 = vmatpush1.msra.mxu0 0.0
    %1581 = vmatprep.subr.mxu0 0.0
    %1582 = vmatpush1.msra.mxu0 0.0
    %1583 = vmatprep.subr.mxu0 0.0
    %1584 = vmatpush1.msra.mxu0 0.0
    %1585 = vmatprep.subr.mxu0 0.0
    %1586 = vmatpush1.msra.mxu0 0.0
    %1587 = vmatprep.subr.mxu0 0.0
    %1588 = vmatpush1.msra.mxu0 0.0
    %1589 = vmatprep.subr.mxu0 0.0
    %1590 = vmatpush1.msra.mxu0 0.0
    %1591 = vmatprep.subr.mxu0 0.0
    %1592 = vmatpush1.msra.mxu0 0.0
    %1593 = vmatprep.subr.mxu0 0.0
    %1594 = vmatpush1.msra.mxu0 0.0
    %1595 = vmatprep.subr.mxu0 0.0
    %1596 = vmatpush1.msra.mxu0 0.0
    %1597 = vmatprep.subr.mxu0 0.0
    %1598 = vmatpush1.msra.mxu0 %v181
    %1599 = vmatprep.subr.mxu0 0.0
    %1600 = vmatpush1.msra.mxu0 %v180
    %1601 = vmatprep.subr.mxu0 0.0
    %1602 = vmatpush1.msra.mxu0 %v179
    %1603 = vmatprep.subr.mxu0 0.0
    %1604 = vmatpush1.msra.mxu0 %v178
    %1605 = vmatprep.subr.mxu0 0.0
    %1606 = vmatpush2.msra.mxu0 0.0
    %1607 = vmatprep.subr.mxu0 0.0
    %1608 = vmatpush2.msra.mxu0 0.0
    %1609 = vmatprep.subr.mxu0 0.0
    %1610 = vmatpush2.msra.mxu0 0.0
    %1611 = vmatprep.subr.mxu0 0.0
    %1612 = vmatpush2.msra.mxu0 0.0
    %1613 = vmatprep.subr.mxu0 0.0
    %1614 = vmatpush2.msra.mxu0 0.0
    %1615 = vmatprep.subr.mxu0 0.0
    %1616 = vmatpush2.msra.mxu0 0.0
    %1617 = vmatprep.subr.mxu0 0.0
    %1618 = vmatpush2.msra.mxu0 0.0
    %1619 = vmatprep.subr.mxu0 0.0
    %1620 = vmatpush2.msra.mxu0 0.0
    %1621 = vmatprep.subr.mxu0 0.0
    %1622 = vmatpush2.msra.mxu0 0.0
    %1623 = vmatprep.subr.mxu0 0.0
    %1624 = vmatpush2.msra.mxu0 0.0
    %1625 = vmatprep.subr.mxu0 0.0
    %1626 = vmatpush2.msra.mxu0 0.0
    %1627 = vmatprep.subr.mxu0 0.0
    %1628 = vmatpush2.msra.mxu0 0.0
    %1629 = vmatprep.subr.mxu0 0.0
    %1630 = vmatpush2.msra.mxu0 0.0
    %1631 = vmatprep.subr.mxu0 0.0
    %1632 = vmatpush2.msra.mxu0 0.0
    %1633 = vmatprep.subr.mxu0 0.0
    %1634 = vmatpush2.msra.mxu0 0.0
    %1635 = vmatprep.subr.mxu0 0.0
    %1636 = vmatpush2.msra.mxu0 0.0
    %1637 = vmatprep.mubr.f32.mxu0 0.0
    %1638 = vmatmul.mubr.f32.gmra.mxu0 %v1571
    %v1639 = vpop.f32.mrf.mxu0
    %v1640 = vadd.f32 %v197, %v1639
    %v1641 = vpop.f32.mrf.mxu0
    %1642 = vdwg.mxu0
    %v1644 = vrot.slane %v1640, 6
    %v1646 = vrot.slane %v1640, 4
    %v1648 = vrot.slane %v1640, 2
    %v1650 = vsel %vm279, %v1640, %v1644
    %v1651 = vsel %vm281, %v1650, %v1646
    %v1652 = vsel %vm283, %v1651, %v1648
    %v1653 = vadd.f32 %v170, %v1652
    %v1654 = vadd.f32 %v175, %v1652
    %v1655 = vtanh.pop %v1653
    %v1656 = vtanh.pop %v1654
    %v1658 = vsel %vm96, %v1655, 0
    %v1661 = vsel %vm96, %v1656, 0
    %1663 = vmatprep.subr.mxu0 0.0
    %1664 = vmatpush1.msra.mxu0 0.0
    %1665 = vmatprep.subr.mxu0 0.0
    %1666 = vmatpush1.msra.mxu0 0.0
    %1667 = vmatprep.subr.mxu0 0.0
    %1668 = vmatpush1.msra.mxu0 0.0
    %1669 = vmatprep.subr.mxu0 0.0
    %1670 = vmatpush1.msra.mxu0 0.0
    %1671 = vmatprep.subr.mxu0 0.0
    %1672 = vmatpush1.msra.mxu0 0.0
    %1673 = vmatprep.subr.mxu0 0.0
    %1674 = vmatpush1.msra.mxu0 0.0
    %1675 = vmatprep.subr.mxu0 0.0
    %1676 = vmatpush1.msra.mxu0 0.0
    %1677 = vmatprep.subr.mxu0 0.0
    %1678 = vmatpush1.msra.mxu0 0.0
    %1679 = vmatprep.subr.mxu0 0.0
    %1680 = vmatpush1.msra.mxu0 0.0
    %1681 = vmatprep.subr.mxu0 0.0
    %1682 = vmatpush1.msra.mxu0 0.0
    %1683 = vmatprep.subr.mxu0 0.0
    %1684 = vmatpush1.msra.mxu0 0.0
    %1685 = vmatprep.subr.mxu0 0.0
    %1686 = vmatpush1.msra.mxu0 0.0
    %1687 = vmatprep.subr.mxu0 0.0
    %1688 = vmatpush1.msra.mxu0 %v186
    %1689 = vmatprep.subr.mxu0 0.0
    %1690 = vmatpush1.msra.mxu0 %v185
    %1691 = vmatprep.subr.mxu0 0.0
    %1692 = vmatpush1.msra.mxu0 %v184
    %1693 = vmatprep.subr.mxu0 0.0
    %1694 = vmatpush1.msra.mxu0 %v183
    %1695 = vmatprep.subr.mxu0 0.0
    %1696 = vmatpush2.msra.mxu0 0.0
    %1697 = vmatprep.subr.mxu0 0.0
    %1698 = vmatpush2.msra.mxu0 0.0
    %1699 = vmatprep.subr.mxu0 0.0
    %1700 = vmatpush2.msra.mxu0 0.0
    %1701 = vmatprep.subr.mxu0 0.0
    %1702 = vmatpush2.msra.mxu0 0.0
    %1703 = vmatprep.subr.mxu0 0.0
    %1704 = vmatpush2.msra.mxu0 0.0
    %1705 = vmatprep.subr.mxu0 0.0
    %1706 = vmatpush2.msra.mxu0 0.0
    %1707 = vmatprep.subr.mxu0 0.0
    %1708 = vmatpush2.msra.mxu0 0.0
    %1709 = vmatprep.subr.mxu0 0.0
    %1710 = vmatpush2.msra.mxu0 0.0
    %1711 = vmatprep.subr.mxu0 0.0
    %1712 = vmatpush2.msra.mxu0 0.0
    %1713 = vmatprep.subr.mxu0 0.0
    %1714 = vmatpush2.msra.mxu0 0.0
    %1715 = vmatprep.subr.mxu0 0.0
    %1716 = vmatpush2.msra.mxu0 0.0
    %1717 = vmatprep.subr.mxu0 0.0
    %1718 = vmatpush2.msra.mxu0 0.0
    %1719 = vmatprep.subr.mxu0 0.0
    %1720 = vmatpush2.msra.mxu0 0.0
    %1721 = vmatprep.subr.mxu0 0.0
    %1722 = vmatpush2.msra.mxu0 0.0
    %1723 = vmatprep.subr.mxu0 0.0
    %1724 = vmatpush2.msra.mxu0 0.0
    %1725 = vmatprep.subr.mxu0 0.0
    %1726 = vmatpush2.msra.mxu0 0.0
    %1727 = vmatprep.mubr.f32.mxu0 0.0
    %1728 = vmatmul.mubr.f32.gmra.mxu0 %v1658
    %v1729 = vpop.f32.mrf.mxu0
    %v1730 = vadd.f32 0.0, %v1729
    %v1731 = vpop.f32.mrf.mxu0
    %1732 = vmatprep.mubr.f32.mxu0 0.0
    %1733 = vmatmul.mubr.f32.gmra.mxu0 %v1661
    %v1734 = vpop.f32.mrf.mxu0
    %v1735 = vadd.f32 0.0, %v1734
    %v1736 = vpop.f32.mrf.mxu0
    %1737 = vdwg.mxu0
    %v1738 = vsel %vm370, %v1730, -inf
    %v1739 = vsel %vm370, %v1735, -inf
    %v1740 = vmax.f32 %v1738, %v1739
    %1741 = vmax.xlane.f32.xlu0 %v1740
    %v1742 = vpop.xlane.xlu0 %1741
    %v1743 = vrot.slane %v1742, 4
    %v1744 = vmax.f32 %v1742, %v1743
    %v1745 = vrot.slane %v1744, 2
    %v1746 = vmax.f32 %v1744, %v1745
    %v1747 = vrot.slane %v1746, 1
    %v1748 = vmax.f32 %v1746, %v1747
    %s1749 = vtos %v1748
    %v1750 = vstv %s1749
    %v1751 = vsub.f32 %v1730, %v1750
    %v1752 = vsub.f32 %v1735, %v1750
    %v1753 = vmul.f32 %v1751, 1.442695
    %v1754 = vpow.pop %v1753
    %v1755 = vmul.f32 %v1752, 1.442695
    %v1756 = vpow.pop %v1755
    %1758 = vset.pattern.permute.xlu0 0
    %1759 = vperm.xlu0 %1758, %v1754
    %v1760 = vpop.permute.xlu0 %1759
    %1763 = vset.pattern.permute.xlu0 0
    %1764 = vperm.xlu0 %1763, %v1756
    %v1765 = vpop.permute.xlu0 %1764
    %v1767 = vmul.f32 %v90, %v1760
    %v1768 = vmul.f32 %v91, %v1765
    %1769 = vmatprep.subr.mxu0 0.0
    %1770 = vmatpush1.msra.mxu0 0.0
    %1771 = vmatprep.subr.mxu0 0.0
    %1772 = vmatpush1.msra.mxu0 0.0
    %1773 = vmatprep.subr.mxu0 0.0
    %1774 = vmatpush1.msra.mxu0 0.0
    %1775 = vmatprep.subr.mxu0 0.0
    %1776 = vmatpush1.msra.mxu0 0.0
    %1777 = vmatprep.subr.mxu0 0.0
    %1778 = vmatpush1.msra.mxu0 0.0
    %1779 = vmatprep.subr.mxu0 0.0
    %1780 = vmatpush1.msra.mxu0 0.0
    %1781 = vmatprep.subr.mxu0 0.0
    %1782 = vmatpush1.msra.mxu0 0.0
    %1783 = vmatprep.subr.mxu0 0.0
    %1784 = vmatpush1.msra.mxu0 0.0
    %1785 = vmatprep.subr.mxu0 0.0
    %1786 = vmatpush1.msra.mxu0 0.0
    %1787 = vmatprep.subr.mxu0 0.0
    %1788 = vmatpush1.msra.mxu0 0.0
    %1789 = vmatprep.subr.mxu0 0.0
    %1790 = vmatpush1.msra.mxu0 0.0
    %1791 = vmatprep.subr.mxu0 0.0
    %1792 = vmatpush1.msra.mxu0 0.0
    %1793 = vmatprep.subr.mxu0 0.0
    %1794 = vmatpush1.msra.mxu0 0.0
    %1795 = vmatprep.subr.mxu0 0.0
    %1796 = vmatpush1.msra.mxu0 0.0
    %1797 = vmatprep.subr.mxu0 0.0
    %1798 = vmatpush1.msra.mxu0 %v1768
    %1799 = vmatprep.subr.mxu0 0.0
    %1800 = vmatpush1.msra.mxu0 %v1767
    %1801 = vmatprep.subr.mxu0 0.0
    %1802 = vmatpush2.msra.mxu0 0.0
    %1803 = vmatprep.subr.mxu0 0.0
    %1804 = vmatpush2.msra.mxu0 0.0
    %1805 = vmatprep.subr.mxu0 0.0
    %1806 = vmatpush2.msra.mxu0 0.0
    %1807 = vmatprep.subr.mxu0 0.0
    %1808 = vmatpush2.msra.mxu0 0.0
    %1809 = vmatprep.subr.mxu0 0.0
    %1810 = vmatpush2.msra.mxu0 0.0
    %1811 = vmatprep.subr.mxu0 0.0
    %1812 = vmatpush2.msra.mxu0 0.0
    %1813 = vmatprep.subr.mxu0 0.0
    %1814 = vmatpush2.msra.mxu0 0.0
    %1815 = vmatprep.subr.mxu0 0.0
    %1816 = vmatpush2.msra.mxu0 0.0
    %1817 = vmatprep.subr.mxu0 0.0
    %1818 = vmatpush2.msra.mxu0 0.0
    %1819 = vmatprep.subr.mxu0 0.0
    %1820 = vmatpush2.msra.mxu0 0.0
    %1821 = vmatprep.subr.mxu0 0.0
    %1822 = vmatpush2.msra.mxu0 0.0
    %1823 = vmatprep.subr.mxu0 0.0
    %1824 = vmatpush2.msra.mxu0 0.0
    %1825 = vmatprep.subr.mxu0 0.0
    %1826 = vmatpush2.msra.mxu0 0.0
    %1827 = vmatprep.subr.mxu0 0.0
    %1828 = vmatpush2.msra.mxu0 0.0
    %1829 = vmatprep.subr.mxu0 0.0
    %1830 = vmatpush2.msra.mxu0 0.0
    %1831 = vmatprep.subr.mxu0 0.0
    %1832 = vmatpush2.msra.mxu0 0.0
    %1833 = vmatprep.mubr.f32.mxu0 0.0
    %1834 = vmatmul.mubr.f32.gmra.mxu0 %v404
    %v1835 = vpop.f32.mrf.mxu0
    %v1836 = vadd.f32 0.0, %v1835
    %v1837 = vpop.f32.mrf.mxu0
    %1838 = vdwg.mxu0
    %1839 = vmatprep.subr.mxu0 0.0
    %1840 = vmatpush1.msra.mxu0 0.0
    %1841 = vmatprep.subr.mxu0 0.0
    %1842 = vmatpush1.msra.mxu0 0.0
    %1843 = vmatprep.subr.mxu0 0.0
    %1844 = vmatpush1.msra.mxu0 0.0
    %1845 = vmatprep.subr.mxu0 0.0
    %1846 = vmatpush1.msra.mxu0 0.0
    %1847 = vmatprep.subr.mxu0 0.0
    %1848 = vmatpush1.msra.mxu0 0.0
    %1849 = vmatprep.subr.mxu0 0.0
    %1850 = vmatpush1.msra.mxu0 0.0
    %1851 = vmatprep.subr.mxu0 0.0
    %1852 = vmatpush1.msra.mxu0 0.0
    %1853 = vmatprep.subr.mxu0 0.0
    %1854 = vmatpush1.msra.mxu0 0.0
    %1855 = vmatprep.subr.mxu0 0.0
    %1856 = vmatpush1.msra.mxu0 0.0
    %1857 = vmatprep.subr.mxu0 0.0
    %1858 = vmatpush1.msra.mxu0 0.0
    %1859 = vmatprep.subr.mxu0 0.0
    %1860 = vmatpush1.msra.mxu0 0.0
    %1861 = vmatprep.subr.mxu0 0.0
    %1862 = vmatpush1.msra.mxu0 0.0
    %1863 = vmatprep.subr.mxu0 0.0
    %1864 = vmatpush1.msra.mxu0 0.0
    %1865 = vmatprep.subr.mxu0 0.0
    %1866 = vmatpush1.msra.mxu0 0.0
    %1867 = vmatprep.subr.mxu0 0.0
    %1868 = vmatpush1.msra.mxu0 %v1756
    %1869 = vmatprep.subr.mxu0 0.0
    %1870 = vmatpush1.msra.mxu0 %v1754
    %1871 = vmatprep.subr.mxu0 0.0
    %1872 = vmatpush2.msra.mxu0 0.0
    %1873 = vmatprep.subr.mxu0 0.0
    %1874 = vmatpush2.msra.mxu0 0.0
    %1875 = vmatprep.subr.mxu0 0.0
    %1876 = vmatpush2.msra.mxu0 0.0
    %1877 = vmatprep.subr.mxu0 0.0
    %1878 = vmatpush2.msra.mxu0 0.0
    %1879 = vmatprep.subr.mxu0 0.0
    %1880 = vmatpush2.msra.mxu0 0.0
    %1881 = vmatprep.subr.mxu0 0.0
    %1882 = vmatpush2.msra.mxu0 0.0
    %1883 = vmatprep.subr.mxu0 0.0
    %1884 = vmatpush2.msra.mxu0 0.0
    %1885 = vmatprep.subr.mxu0 0.0
    %1886 = vmatpush2.msra.mxu0 0.0
    %1887 = vmatprep.subr.mxu0 0.0
    %1888 = vmatpush2.msra.mxu0 0.0
    %1889 = vmatprep.subr.mxu0 0.0
    %1890 = vmatpush2.msra.mxu0 0.0
    %1891 = vmatprep.subr.mxu0 0.0
    %1892 = vmatpush2.msra.mxu0 0.0
    %1893 = vmatprep.subr.mxu0 0.0
    %1894 = vmatpush2.msra.mxu0 0.0
    %1895 = vmatprep.subr.mxu0 0.0
    %1896 = vmatpush2.msra.mxu0 0.0
    %1897 = vmatprep.subr.mxu0 0.0
    %1898 = vmatpush2.msra.mxu0 0.0
    %1899 = vmatprep.subr.mxu0 0.0
    %1900 = vmatpush2.msra.mxu0 0.0
    %1901 = vmatprep.subr.mxu0 0.0
    %1902 = vmatpush2.msra.mxu0 0.0
    %1903 = vmatprep.mubr.f32.mxu0 0.0
    %1904 = vmatmul.mubr.f32.gmra.mxu0 %v404
    %v1905 = vpop.f32.mrf.mxu0
    %v1906 = vadd.f32 0.0, %v1905
    %v1907 = vpop.f32.mrf.mxu0
    %1908 = vdwg.mxu0
    %v1910 = vsel %vm96, %v1836, 0
    %1912 = vmatprep.subr.mxu0 0.0
    %1913 = vmatpush1.msra.mxu0 0.0
    %1914 = vmatprep.subr.mxu0 0.0
    %1915 = vmatpush1.msra.mxu0 0.0
    %1916 = vmatprep.subr.mxu0 0.0
    %1917 = vmatpush1.msra.mxu0 0.0
    %1918 = vmatprep.subr.mxu0 0.0
    %1919 = vmatpush1.msra.mxu0 0.0
    %1920 = vmatprep.subr.mxu0 0.0
    %1921 = vmatpush1.msra.mxu0 0.0
    %1922 = vmatprep.subr.mxu0 0.0
    %1923 = vmatpush1.msra.mxu0 0.0
    %1924 = vmatprep.subr.mxu0 0.0
    %1925 = vmatpush1.msra.mxu0 0.0
    %1926 = vmatprep.subr.mxu0 0.0
    %1927 = vmatpush1.msra.mxu0 0.0
    %1928 = vmatprep.subr.mxu0 0.0
    %1929 = vmatpush1.msra.mxu0 0.0
    %1930 = vmatprep.subr.mxu0 0.0
    %1931 = vmatpush1.msra.mxu0 0.0
    %1932 = vmatprep.subr.mxu0 0.0
    %1933 = vmatpush1.msra.mxu0 0.0
    %1934 = vmatprep.subr.mxu0 0.0
    %1935 = vmatpush1.msra.mxu0 0.0
    %1936 = vmatprep.subr.mxu0 0.0
    %1937 = vmatpush1.msra.mxu0 %v190
    %1938 = vmatprep.subr.mxu0 0.0
    %1939 = vmatpush1.msra.mxu0 %v189
    %1940 = vmatprep.subr.mxu0 0.0
    %1941 = vmatpush1.msra.mxu0 %v188
    %1942 = vmatprep.subr.mxu0 0.0
    %1943 = vmatpush1.msra.mxu0 %v187
    %1944 = vmatprep.subr.mxu0 0.0
    %1945 = vmatpush2.msra.mxu0 0.0
    %1946 = vmatprep.subr.mxu0 0.0
    %1947 = vmatpush2.msra.mxu0 0.0
    %1948 = vmatprep.subr.mxu0 0.0
    %1949 = vmatpush2.msra.mxu0 0.0
    %1950 = vmatprep.subr.mxu0 0.0
    %1951 = vmatpush2.msra.mxu0 0.0
    %1952 = vmatprep.subr.mxu0 0.0
    %1953 = vmatpush2.msra.mxu0 0.0
    %1954 = vmatprep.subr.mxu0 0.0
    %1955 = vmatpush2.msra.mxu0 0.0
    %1956 = vmatprep.subr.mxu0 0.0
    %1957 = vmatpush2.msra.mxu0 0.0
    %1958 = vmatprep.subr.mxu0 0.0
    %1959 = vmatpush2.msra.mxu0 0.0
    %1960 = vmatprep.subr.mxu0 0.0
    %1961 = vmatpush2.msra.mxu0 0.0
    %1962 = vmatprep.subr.mxu0 0.0
    %1963 = vmatpush2.msra.mxu0 0.0
    %1964 = vmatprep.subr.mxu0 0.0
    %1965 = vmatpush2.msra.mxu0 0.0
    %1966 = vmatprep.subr.mxu0 0.0
    %1967 = vmatpush2.msra.mxu0 0.0
    %1968 = vmatprep.subr.mxu0 0.0
    %1969 = vmatpush2.msra.mxu0 0.0
    %1970 = vmatprep.subr.mxu0 0.0
    %1971 = vmatpush2.msra.mxu0 0.0
    %1972 = vmatprep.subr.mxu0 0.0
    %1973 = vmatpush2.msra.mxu0 0.0
    %1974 = vmatprep.subr.mxu0 0.0
    %1975 = vmatpush2.msra.mxu0 0.0
    %1976 = vmatprep.mubr.f32.mxu0 0.0
    %1977 = vmatmul.mubr.f32.gmra.mxu0 %v1910
    %v1978 = vpop.f32.mrf.mxu0
    %v1979 = vadd.f32 0.0, %v1978
    %v1980 = vpop.f32.mrf.mxu0
    %1981 = vdwg.mxu0
    %v1982 = vrcp.pop %v1906
    %1984 = vset.pattern.permute.xlu0 0
    %1985 = vperm.xlu0 %1984, %v1982
    %v1986 = vpop.permute.xlu0 %1985
    %v1988 = vmul.f32 %v1979, %v1986
    %v1989 = vadd.f32 %v1988, %v630
    %1990 = vrot.lane.b32.xlu0 %v1640, 96
    %v1991 = vpop.permute.xlu0 %1990
    %v1993 = vadd.f32 %v1989, %v1991
    %v1994 = vxor.u32 %v1993, 2147483648
    %v1995 = vmul.f32 %v1994, 1.442695
    %v1996 = vpow.pop %v1995
    %v1997 = vadd.f32 %v1996, 1.0
    %v1998 = vrcp.pop %v1997
    %v1999 = vmul.f32 1.0, %v1998
    %2000 = vrot.lane.b32.xlu0 %v1640, 32
    %v2001 = vpop.permute.xlu0 %2000
    %v2003 = vmul.f32 %v1999, %v2001
    %2005 = vrot.lane.b32.xlu0 %v2003, 64
    %v2006 = vpop.permute.xlu0 %2005
    %v2008 = vadd.f32 %v1989, %v2006
    %v2009 = vtanh.pop %v2008
    %v2010 = vsub.f32 1.0, %v1999
    %2012 = vrot.lane.b32.xlu0 %v2009, 96
    %v2013 = vpop.permute.xlu0 %2012
    %v2015 = vmul.f32 %v2010, %v2013
    %v2016 = vmul.f32 %v1999, %v1565
    %v2017 = vadd.f32 %v2015, %v2016
    %2019 = vrot.lane.b32.xlu0 %v2017, 96
    %v2020 = vpop.permute.xlu0 %2019
    %2022 = vst.msk [vmem:[#allocation2 + $0x6] sm:$0x3] %vm665, %v2020
    %v2023 = vsel %vm96, %v2020, 0
    %2025 = vmatprep.subr.mxu0 0.0
    %2026 = vmatpush1.msra.mxu0 0.0
    %2027 = vmatprep.subr.mxu0 0.0
    %2028 = vmatpush1.msra.mxu0 0.0
    %2029 = vmatprep.subr.mxu0 0.0
    %2030 = vmatpush1.msra.mxu0 0.0
    %2031 = vmatprep.subr.mxu0 0.0
    %2032 = vmatpush1.msra.mxu0 0.0
    %2033 = vmatprep.subr.mxu0 0.0
    %2034 = vmatpush1.msra.mxu0 0.0
    %2035 = vmatprep.subr.mxu0 0.0
    %2036 = vmatpush1.msra.mxu0 0.0
    %2037 = vmatprep.subr.mxu0 0.0
    %2038 = vmatpush1.msra.mxu0 0.0
    %2039 = vmatprep.subr.mxu0 0.0
    %2040 = vmatpush1.msra.mxu0 0.0
    %2041 = vmatprep.subr.mxu0 0.0
    %2042 = vmatpush1.msra.mxu0 0.0
    %2043 = vmatprep.subr.mxu0 0.0
    %2044 = vmatpush1.msra.mxu0 0.0
    %2045 = vmatprep.subr.mxu0 0.0
    %2046 = vmatpush1.msra.mxu0 0.0
    %2047 = vmatprep.subr.mxu0 0.0
    %2048 = vmatpush1.msra.mxu0 0.0
    %2049 = vmatprep.subr.mxu0 0.0
    %2050 = vmatpush1.msra.mxu0 %v181
    %2051 = vmatprep.subr.mxu0 0.0
    %2052 = vmatpush1.msra.mxu0 %v180
    %2053 = vmatprep.subr.mxu0 0.0
    %2054 = vmatpush1.msra.mxu0 %v179
    %2055 = vmatprep.subr.mxu0 0.0
    %2056 = vmatpush1.msra.mxu0 %v178
    %2057 = vmatprep.subr.mxu0 0.0
    %2058 = vmatpush2.msra.mxu0 0.0
    %2059 = vmatprep.subr.mxu0 0.0
    %2060 = vmatpush2.msra.mxu0 0.0
    %2061 = vmatprep.subr.mxu0 0.0
    %2062 = vmatpush2.msra.mxu0 0.0
    %2063 = vmatprep.subr.mxu0 0.0
    %2064 = vmatpush2.msra.mxu0 0.0
    %2065 = vmatprep.subr.mxu0 0.0
    %2066 = vmatpush2.msra.mxu0 0.0
    %2067 = vmatprep.subr.mxu0 0.0
    %2068 = vmatpush2.msra.mxu0 0.0
    %2069 = vmatprep.subr.mxu0 0.0
    %2070 = vmatpush2.msra.mxu0 0.0
    %2071 = vmatprep.subr.mxu0 0.0
    %2072 = vmatpush2.msra.mxu0 0.0
    %2073 = vmatprep.subr.mxu0 0.0
    %2074 = vmatpush2.msra.mxu0 0.0
    %2075 = vmatprep.subr.mxu0 0.0
    %2076 = vmatpush2.msra.mxu0 0.0
    %2077 = vmatprep.subr.mxu0 0.0
    %2078 = vmatpush2.msra.mxu0 0.0
    %2079 = vmatprep.subr.mxu0 0.0
    %2080 = vmatpush2.msra.mxu0 0.0
    %2081 = vmatprep.subr.mxu0 0.0
    %2082 = vmatpush2.msra.mxu0 0.0
    %2083 = vmatprep.subr.mxu0 0.0
    %2084 = vmatpush2.msra.mxu0 0.0
    %2085 = vmatprep.subr.mxu0 0.0
    %2086 = vmatpush2.msra.mxu0 0.0
    %2087 = vmatprep.subr.mxu0 0.0
    %2088 = vmatpush2.msra.mxu0 0.0
    %2089 = vmatprep.mubr.f32.mxu0 0.0
    %2090 = vmatmul.mubr.f32.gmra.mxu0 %v2023
    %v2091 = vpop.f32.mrf.mxu0
    %v2092 = vadd.f32 %v197, %v2091
    %v2093 = vpop.f32.mrf.mxu0
    %2094 = vdwg.mxu0
    %v2096 = vrot.slane %v2092, 6
    %v2098 = vrot.slane %v2092, 4
    %v2100 = vrot.slane %v2092, 2
    %v2102 = vsel %vm279, %v2092, %v2096
    %v2103 = vsel %vm281, %v2102, %v2098
    %v2104 = vsel %vm283, %v2103, %v2100
    %v2105 = vadd.f32 %v170, %v2104
    %v2106 = vadd.f32 %v175, %v2104
    %v2107 = vtanh.pop %v2105
    %v2108 = vtanh.pop %v2106
    %v2110 = vsel %vm96, %v2107, 0
    %v2113 = vsel %vm96, %v2108, 0
    %2115 = vmatprep.subr.mxu0 0.0
    %2116 = vmatpush1.msra.mxu0 0.0
    %2117 = vmatprep.subr.mxu0 0.0
    %2118 = vmatpush1.msra.mxu0 0.0
    %2119 = vmatprep.subr.mxu0 0.0
    %2120 = vmatpush1.msra.mxu0 0.0
    %2121 = vmatprep.subr.mxu0 0.0
    %2122 = vmatpush1.msra.mxu0 0.0
    %2123 = vmatprep.subr.mxu0 0.0
    %2124 = vmatpush1.msra.mxu0 0.0
    %2125 = vmatprep.subr.mxu0 0.0
    %2126 = vmatpush1.msra.mxu0 0.0
    %2127 = vmatprep.subr.mxu0 0.0
    %2128 = vmatpush1.msra.mxu0 0.0
    %2129 = vmatprep.subr.mxu0 0.0
    %2130 = vmatpush1.msra.mxu0 0.0
    %2131 = vmatprep.subr.mxu0 0.0
    %2132 = vmatpush1.msra.mxu0 0.0
    %2133 = vmatprep.subr.mxu0 0.0
    %2134 = vmatpush1.msra.mxu0 0.0
    %2135 = vmatprep.subr.mxu0 0.0
    %2136 = vmatpush1.msra.mxu0 0.0
    %2137 = vmatprep.subr.mxu0 0.0
    %2138 = vmatpush1.msra.mxu0 0.0
    %2139 = vmatprep.subr.mxu0 0.0
    %2140 = vmatpush1.msra.mxu0 %v186
    %2141 = vmatprep.subr.mxu0 0.0
    %2142 = vmatpush1.msra.mxu0 %v185
    %2143 = vmatprep.subr.mxu0 0.0
    %2144 = vmatpush1.msra.mxu0 %v184
    %2145 = vmatprep.subr.mxu0 0.0
    %2146 = vmatpush1.msra.mxu0 %v183
    %2147 = vmatprep.subr.mxu0 0.0
    %2148 = vmatpush2.msra.mxu0 0.0
    %2149 = vmatprep.subr.mxu0 0.0
    %2150 = vmatpush2.msra.mxu0 0.0
    %2151 = vmatprep.subr.mxu0 0.0
    %2152 = vmatpush2.msra.mxu0 0.0
    %2153 = vmatprep.subr.mxu0 0.0
    %2154 = vmatpush2.msra.mxu0 0.0
    %2155 = vmatprep.subr.mxu0 0.0
    %2156 = vmatpush2.msra.mxu0 0.0
    %2157 = vmatprep.subr.mxu0 0.0
    %2158 = vmatpush2.msra.mxu0 0.0
    %2159 = vmatprep.subr.mxu0 0.0
    %2160 = vmatpush2.msra.mxu0 0.0
    %2161 = vmatprep.subr.mxu0 0.0
    %2162 = vmatpush2.msra.mxu0 0.0
    %2163 = vmatprep.subr.mxu0 0.0
    %2164 = vmatpush2.msra.mxu0 0.0
    %2165 = vmatprep.subr.mxu0 0.0
    %2166 = vmatpush2.msra.mxu0 0.0
    %2167 = vmatprep.subr.mxu0 0.0
    %2168 = vmatpush2.msra.mxu0 0.0
    %2169 = vmatprep.subr.mxu0 0.0
    %2170 = vmatpush2.msra.mxu0 0.0
    %2171 = vmatprep.subr.mxu0 0.0
    %2172 = vmatpush2.msra.mxu0 0.0
    %2173 = vmatprep.subr.mxu0 0.0
    %2174 = vmatpush2.msra.mxu0 0.0
    %2175 = vmatprep.subr.mxu0 0.0
    %2176 = vmatpush2.msra.mxu0 0.0
    %2177 = vmatprep.subr.mxu0 0.0
    %2178 = vmatpush2.msra.mxu0 0.0
    %2179 = vmatprep.mubr.f32.mxu0 0.0
    %2180 = vmatmul.mubr.f32.gmra.mxu0 %v2110
    %v2181 = vpop.f32.mrf.mxu0
    %v2182 = vadd.f32 0.0, %v2181
    %v2183 = vpop.f32.mrf.mxu0
    %2184 = vmatprep.mubr.f32.mxu0 0.0
    %2185 = vmatmul.mubr.f32.gmra.mxu0 %v2113
    %v2186 = vpop.f32.mrf.mxu0
    %v2187 = vadd.f32 0.0, %v2186
    %v2188 = vpop.f32.mrf.mxu0
    %2189 = vdwg.mxu0
    %v2190 = vsel %vm370, %v2182, -inf
    %v2191 = vsel %vm370, %v2187, -inf
    %v2192 = vmax.f32 %v2190, %v2191
    %2193 = vmax.xlane.f32.xlu0 %v2192
    %v2194 = vpop.xlane.xlu0 %2193
    %v2195 = vrot.slane %v2194, 4
    %v2196 = vmax.f32 %v2194, %v2195
    %v2197 = vrot.slane %v2196, 2
    %v2198 = vmax.f32 %v2196, %v2197
    %v2199 = vrot.slane %v2198, 1
    %v2200 = vmax.f32 %v2198, %v2199
    %s2201 = vtos %v2200
    %v2202 = vstv %s2201
    %v2203 = vsub.f32 %v2182, %v2202
    %v2204 = vsub.f32 %v2187, %v2202
    %v2205 = vmul.f32 %v2203, 1.442695
    %v2206 = vpow.pop %v2205
    %v2207 = vmul.f32 %v2204, 1.442695
    %v2208 = vpow.pop %v2207
    %2210 = vset.pattern.permute.xlu0 0
    %2211 = vperm.xlu0 %2210, %v2206
    %v2212 = vpop.permute.xlu0 %2211
    %2215 = vset.pattern.permute.xlu0 0
    %2216 = vperm.xlu0 %2215, %v2208
    %v2217 = vpop.permute.xlu0 %2216
    %v2219 = vmul.f32 %v90, %v2212
    %v2220 = vmul.f32 %v91, %v2217
    %2221 = vmatprep.subr.mxu0 0.0
    %2222 = vmatpush1.msra.mxu0 0.0
    %2223 = vmatprep.subr.mxu0 0.0
    %2224 = vmatpush1.msra.mxu0 0.0
    %2225 = vmatprep.subr.mxu0 0.0
    %2226 = vmatpush1.msra.mxu0 0.0
    %2227 = vmatprep.subr.mxu0 0.0
    %2228 = vmatpush1.msra.mxu0 0.0
    %2229 = vmatprep.subr.mxu0 0.0
    %2230 = vmatpush1.msra.mxu0 0.0
    %2231 = vmatprep.subr.mxu0 0.0
    %2232 = vmatpush1.msra.mxu0 0.0
    %2233 = vmatprep.subr.mxu0 0.0
    %2234 = vmatpush1.msra.mxu0 0.0
    %2235 = vmatprep.subr.mxu0 0.0
    %2236 = vmatpush1.msra.mxu0 0.0
    %2237 = vmatprep.subr.mxu0 0.0
    %2238 = vmatpush1.msra.mxu0 0.0
    %2239 = vmatprep.subr.mxu0 0.0
    %2240 = vmatpush1.msra.mxu0 0.0
    %2241 = vmatprep.subr.mxu0 0.0
    %2242 = vmatpush1.msra.mxu0 0.0
    %2243 = vmatprep.subr.mxu0 0.0
    %2244 = vmatpush1.msra.mxu0 0.0
    %2245 = vmatprep.subr.mxu0 0.0
    %2246 = vmatpush1.msra.mxu0 0.0
    %2247 = vmatprep.subr.mxu0 0.0
    %2248 = vmatpush1.msra.mxu0 0.0
    %2249 = vmatprep.subr.mxu0 0.0
    %2250 = vmatpush1.msra.mxu0 %v2220
    %2251 = vmatprep.subr.mxu0 0.0
    %2252 = vmatpush1.msra.mxu0 %v2219
    %2253 = vmatprep.subr.mxu0 0.0
    %2254 = vmatpush2.msra.mxu0 0.0
    %2255 = vmatprep.subr.mxu0 0.0
    %2256 = vmatpush2.msra.mxu0 0.0
    %2257 = vmatprep.subr.mxu0 0.0
    %2258 = vmatpush2.msra.mxu0 0.0
    %2259 = vmatprep.subr.mxu0 0.0
    %2260 = vmatpush2.msra.mxu0 0.0
    %2261 = vmatprep.subr.mxu0 0.0
    %2262 = vmatpush2.msra.mxu0 0.0
    %2263 = vmatprep.subr.mxu0 0.0
    %2264 = vmatpush2.msra.mxu0 0.0
    %2265 = vmatprep.subr.mxu0 0.0
    %2266 = vmatpush2.msra.mxu0 0.0
    %2267 = vmatprep.subr.mxu0 0.0
    %2268 = vmatpush2.msra.mxu0 0.0
    %2269 = vmatprep.subr.mxu0 0.0
    %2270 = vmatpush2.msra.mxu0 0.0
    %2271 = vmatprep.subr.mxu0 0.0
    %2272 = vmatpush2.msra.mxu0 0.0
    %2273 = vmatprep.subr.mxu0 0.0
    %2274 = vmatpush2.msra.mxu0 0.0
    %2275 = vmatprep.subr.mxu0 0.0
    %2276 = vmatpush2.msra.mxu0 0.0
    %2277 = vmatprep.subr.mxu0 0.0
    %2278 = vmatpush2.msra.mxu0 0.0
    %2279 = vmatprep.subr.mxu0 0.0
    %2280 = vmatpush2.msra.mxu0 0.0
    %2281 = vmatprep.subr.mxu0 0.0
    %2282 = vmatpush2.msra.mxu0 0.0
    %2283 = vmatprep.subr.mxu0 0.0
    %2284 = vmatpush2.msra.mxu0 0.0
    %2285 = vmatprep.mubr.f32.mxu0 0.0
    %2286 = vmatmul.mubr.f32.gmra.mxu0 %v404
    %v2287 = vpop.f32.mrf.mxu0
    %v2288 = vadd.f32 0.0, %v2287
    %v2289 = vpop.f32.mrf.mxu0
    %2290 = vdwg.mxu0
    %2291 = vmatprep.subr.mxu0 0.0
    %2292 = vmatpush1.msra.mxu0 0.0
    %2293 = vmatprep.subr.mxu0 0.0
    %2294 = vmatpush1.msra.mxu0 0.0
    %2295 = vmatprep.subr.mxu0 0.0
    %2296 = vmatpush1.msra.mxu0 0.0
    %2297 = vmatprep.subr.mxu0 0.0
    %2298 = vmatpush1.msra.mxu0 0.0
    %2299 = vmatprep.subr.mxu0 0.0
    %2300 = vmatpush1.msra.mxu0 0.0
    %2301 = vmatprep.subr.mxu0 0.0
    %2302 = vmatpush1.msra.mxu0 0.0
    %2303 = vmatprep.subr.mxu0 0.0
    %2304 = vmatpush1.msra.mxu0 0.0
    %2305 = vmatprep.subr.mxu0 0.0
    %2306 = vmatpush1.msra.mxu0 0.0
    %2307 = vmatprep.subr.mxu0 0.0
    %2308 = vmatpush1.msra.mxu0 0.0
    %2309 = vmatprep.subr.mxu0 0.0
    %2310 = vmatpush1.msra.mxu0 0.0
    %2311 = vmatprep.subr.mxu0 0.0
    %2312 = vmatpush1.msra.mxu0 0.0
    %2313 = vmatprep.subr.mxu0 0.0
    %2314 = vmatpush1.msra.mxu0 0.0
    %2315 = vmatprep.subr.mxu0 0.0
    %2316 = vmatpush1.msra.mxu0 0.0
    %2317 = vmatprep.subr.mxu0 0.0
    %2318 = vmatpush1.msra.mxu0 0.0
    %2319 = vmatprep.subr.mxu0 0.0
    %2320 = vmatpush1.msra.mxu0 %v2208
    %2321 = vmatprep.subr.mxu0 0.0
    %2322 = vmatpush1.msra.mxu0 %v2206
    %2323 = vmatprep.subr.mxu0 0.0
    %2324 = vmatpush2.msra.mxu0 0.0
    %2325 = vmatprep.subr.mxu0 0.0
    %2326 = vmatpush2.msra.mxu0 0.0
    %2327 = vmatprep.subr.mxu0 0.0
    %2328 = vmatpush2.msra.mxu0 0.0
    %2329 = vmatprep.subr.mxu0 0.0
    %2330 = vmatpush2.msra.mxu0 0.0
    %2331 = vmatprep.subr.mxu0 0.0
    %2332 = vmatpush2.msra.mxu0 0.0
    %2333 = vmatprep.subr.mxu0 0.0
    %2334 = vmatpush2.msra.mxu0 0.0
    %2335 = vmatprep.subr.mxu0 0.0
    %2336 = vmatpush2.msra.mxu0 0.0
    %2337 = vmatprep.subr.mxu0 0.0
    %2338 = vmatpush2.msra.mxu0 0.0
    %2339 = vmatprep.subr.mxu0 0.0
    %2340 = vmatpush2.msra.mxu0 0.0
    %2341 = vmatprep.subr.mxu0 0.0
    %2342 = vmatpush2.msra.mxu0 0.0
    %2343 = vmatprep.subr.mxu0 0.0
    %2344 = vmatpush2.msra.mxu0 0.0
    %2345 = vmatprep.subr.mxu0 0.0
    %2346 = vmatpush2.msra.mxu0 0.0
    %2347 = vmatprep.subr.mxu0 0.0
    %2348 = vmatpush2.msra.mxu0 0.0
    %2349 = vmatprep.subr.mxu0 0.0
    %2350 = vmatpush2.msra.mxu0 0.0
    %2351 = vmatprep.subr.mxu0 0.0
    %2352 = vmatpush2.msra.mxu0 0.0
    %2353 = vmatprep.subr.mxu0 0.0
    %2354 = vmatpush2.msra.mxu0 0.0
    %2355 = vmatprep.mubr.f32.mxu0 0.0
    %2356 = vmatmul.mubr.f32.gmra.mxu0 %v404
    %v2357 = vpop.f32.mrf.mxu0
    %v2358 = vadd.f32 0.0, %v2357
    %v2359 = vpop.f32.mrf.mxu0
    %2360 = vdwg.mxu0
    %v2362 = vsel %vm96, %v2288, 0
    %2364 = vmatprep.subr.mxu0 0.0
    %2365 = vmatpush1.msra.mxu0 0.0
    %2366 = vmatprep.subr.mxu0 0.0
    %2367 = vmatpush1.msra.mxu0 0.0
    %2368 = vmatprep.subr.mxu0 0.0
    %2369 = vmatpush1.msra.mxu0 0.0
    %2370 = vmatprep.subr.mxu0 0.0
    %2371 = vmatpush1.msra.mxu0 0.0
    %2372 = vmatprep.subr.mxu0 0.0
    %2373 = vmatpush1.msra.mxu0 0.0
    %2374 = vmatprep.subr.mxu0 0.0
    %2375 = vmatpush1.msra.mxu0 0.0
    %2376 = vmatprep.subr.mxu0 0.0
    %2377 = vmatpush1.msra.mxu0 0.0
    %2378 = vmatprep.subr.mxu0 0.0
    %2379 = vmatpush1.msra.mxu0 0.0
    %2380 = vmatprep.subr.mxu0 0.0
    %2381 = vmatpush1.msra.mxu0 0.0
    %2382 = vmatprep.subr.mxu0 0.0
    %2383 = vmatpush1.msra.mxu0 0.0
    %2384 = vmatprep.subr.mxu0 0.0
    %2385 = vmatpush1.msra.mxu0 0.0
    %2386 = vmatprep.subr.mxu0 0.0
    %2387 = vmatpush1.msra.mxu0 0.0
    %2388 = vmatprep.subr.mxu0 0.0
    %2389 = vmatpush1.msra.mxu0 %v190
    %2390 = vmatprep.subr.mxu0 0.0
    %2391 = vmatpush1.msra.mxu0 %v189
    %2392 = vmatprep.subr.mxu0 0.0
    %2393 = vmatpush1.msra.mxu0 %v188
    %2394 = vmatprep.subr.mxu0 0.0
    %2395 = vmatpush1.msra.mxu0 %v187
    %2396 = vmatprep.subr.mxu0 0.0
    %2397 = vmatpush2.msra.mxu0 0.0
    %2398 = vmatprep.subr.mxu0 0.0
    %2399 = vmatpush2.msra.mxu0 0.0
    %2400 = vmatprep.subr.mxu0 0.0
    %2401 = vmatpush2.msra.mxu0 0.0
    %2402 = vmatprep.subr.mxu0 0.0
    %2403 = vmatpush2.msra.mxu0 0.0
    %2404 = vmatprep.subr.mxu0 0.0
    %2405 = vmatpush2.msra.mxu0 0.0
    %2406 = vmatprep.subr.mxu0 0.0
    %2407 = vmatpush2.msra.mxu0 0.0
    %2408 = vmatprep.subr.mxu0 0.0
    %2409 = vmatpush2.msra.mxu0 0.0
    %2410 = vmatprep.subr.mxu0 0.0
    %2411 = vmatpush2.msra.mxu0 0.0
    %2412 = vmatprep.subr.mxu0 0.0
    %2413 = vmatpush2.msra.mxu0 0.0
    %2414 = vmatprep.subr.mxu0 0.0
    %2415 = vmatpush2.msra.mxu0 0.0
    %2416 = vmatprep.subr.mxu0 0.0
    %2417 = vmatpush2.msra.mxu0 0.0
    %2418 = vmatprep.subr.mxu0 0.0
    %2419 = vmatpush2.msra.mxu0 0.0
    %2420 = vmatprep.subr.mxu0 0.0
    %2421 = vmatpush2.msra.mxu0 0.0
    %2422 = vmatprep.subr.mxu0 0.0
    %2423 = vmatpush2.msra.mxu0 0.0
    %2424 = vmatprep.subr.mxu0 0.0
    %2425 = vmatpush2.msra.mxu0 0.0
    %2426 = vmatprep.subr.mxu0 0.0
    %2427 = vmatpush2.msra.mxu0 0.0
    %2428 = vmatprep.mubr.f32.mxu0 0.0
    %2429 = vmatmul.mubr.f32.gmra.mxu0 %v2362
    %v2430 = vpop.f32.mrf.mxu0
    %v2431 = vadd.f32 0.0, %v2430
    %v2432 = vpop.f32.mrf.mxu0
    %2433 = vdwg.mxu0
    %v2434 = vrcp.pop %v2358
    %2436 = vset.pattern.permute.xlu0 0
    %2437 = vperm.xlu0 %2436, %v2434
    %v2438 = vpop.permute.xlu0 %2437
    %v2440 = vmul.f32 %v2431, %v2438
    %v2441 = vadd.f32 %v2440, %v630
    %2442 = vrot.lane.b32.xlu0 %v2092, 96
    %v2443 = vpop.permute.xlu0 %2442
    %v2445 = vadd.f32 %v2441, %v2443
    %v2446 = vxor.u32 %v2445, 2147483648
    %v2447 = vmul.f32 %v2446, 1.442695
    %v2448 = vpow.pop %v2447
    %v2449 = vadd.f32 %v2448, 1.0
    %v2450 = vrcp.pop %v2449
    %v2451 = vmul.f32 1.0, %v2450
    %2452 = vrot.lane.b32.xlu0 %v2092, 32
    %v2453 = vpop.permute.xlu0 %2452
    %v2455 = vmul.f32 %v2451, %v2453
    %2457 = vrot.lane.b32.xlu0 %v2455, 64
    %v2458 = vpop.permute.xlu0 %2457
    %v2460 = vadd.f32 %v2441, %v2458
    %v2461 = vtanh.pop %v2460
    %v2462 = vsub.f32 1.0, %v2451
    %2464 = vrot.lane.b32.xlu0 %v2461, 96
    %v2465 = vpop.permute.xlu0 %2464
    %v2467 = vmul.f32 %v2462, %v2465
    %v2468 = vmul.f32 %v2451, %v2017
    %v2469 = vadd.f32 %v2467, %v2468
    %2471 = vrot.lane.b32.xlu0 %v2469, 96
    %v2472 = vpop.permute.xlu0 %2471
    %2474 = vst.msk [vmem:[#allocation2 + $0x8] sm:$0x3] %vm665, %v2472
    %v2475 = vsel %vm96, %v2472, 0
    %2477 = vmatprep.subr.mxu0 0.0
    %2478 = vmatpush1.msra.mxu0 0.0
    %2479 = vmatprep.subr.mxu0 0.0
    %2480 = vmatpush1.msra.mxu0 0.0
    %2481 = vmatprep.subr.mxu0 0.0
    %2482 = vmatpush1.msra.mxu0 0.0
    %2483 = vmatprep.subr.mxu0 0.0
    %2484 = vmatpush1.msra.mxu0 0.0
    %2485 = vmatprep.subr.mxu0 0.0
    %2486 = vmatpush1.msra.mxu0 0.0
    %2487 = vmatprep.subr.mxu0 0.0
    %2488 = vmatpush1.msra.mxu0 0.0
    %2489 = vmatprep.subr.mxu0 0.0
    %2490 = vmatpush1.msra.mxu0 0.0
    %2491 = vmatprep.subr.mxu0 0.0
    %2492 = vmatpush1.msra.mxu0 0.0
    %2493 = vmatprep.subr.mxu0 0.0
    %2494 = vmatpush1.msra.mxu0 0.0
    %2495 = vmatprep.subr.mxu0 0.0
    %2496 = vmatpush1.msra.mxu0 0.0
    %2497 = vmatprep.subr.mxu0 0.0
    %2498 = vmatpush1.msra.mxu0 0.0
    %2499 = vmatprep.subr.mxu0 0.0
    %2500 = vmatpush1.msra.mxu0 0.0
    %2501 = vmatprep.subr.mxu0 0.0
    %2502 = vmatpush1.msra.mxu0 %v181
    %2503 = vmatprep.subr.mxu0 0.0
    %2504 = vmatpush1.msra.mxu0 %v180
    %2505 = vmatprep.subr.mxu0 0.0
    %2506 = vmatpush1.msra.mxu0 %v179
    %2507 = vmatprep.subr.mxu0 0.0
    %2508 = vmatpush1.msra.mxu0 %v178
    %2509 = vmatprep.subr.mxu0 0.0
    %2510 = vmatpush2.msra.mxu0 0.0
    %2511 = vmatprep.subr.mxu0 0.0
    %2512 = vmatpush2.msra.mxu0 0.0
    %2513 = vmatprep.subr.mxu0 0.0
    %2514 = vmatpush2.msra.mxu0 0.0
    %2515 = vmatprep.subr.mxu0 0.0
    %2516 = vmatpush2.msra.mxu0 0.0
    %2517 = vmatprep.subr.mxu0 0.0
    %2518 = vmatpush2.msra.mxu0 0.0
    %2519 = vmatprep.subr.mxu0 0.0
    %2520 = vmatpush2.msra.mxu0 0.0
    %2521 = vmatprep.subr.mxu0 0.0
    %2522 = vmatpush2.msra.mxu0 0.0
    %2523 = vmatprep.subr.mxu0 0.0
    %2524 = vmatpush2.msra.mxu0 0.0
    %2525 = vmatprep.subr.mxu0 0.0
    %2526 = vmatpush2.msra.mxu0 0.0
    %2527 = vmatprep.subr.mxu0 0.0
    %2528 = vmatpush2.msra.mxu0 0.0
    %2529 = vmatprep.subr.mxu0 0.0
    %2530 = vmatpush2.msra.mxu0 0.0
    %2531 = vmatprep.subr.mxu0 0.0
    %2532 = vmatpush2.msra.mxu0 0.0
    %2533 = vmatprep.subr.mxu0 0.0
    %2534 = vmatpush2.msra.mxu0 0.0
    %2535 = vmatprep.subr.mxu0 0.0
    %2536 = vmatpush2.msra.mxu0 0.0
    %2537 = vmatprep.subr.mxu0 0.0
    %2538 = vmatpush2.msra.mxu0 0.0
    %2539 = vmatprep.subr.mxu0 0.0
    %2540 = vmatpush2.msra.mxu0 0.0
    %2541 = vmatprep.mubr.f32.mxu0 0.0
    %2542 = vmatmul.mubr.f32.gmra.mxu0 %v2475
    %v2543 = vpop.f32.mrf.mxu0
    %v2544 = vadd.f32 %v197, %v2543
    %v2545 = vpop.f32.mrf.mxu0
    %2546 = vdwg.mxu0
    %v2548 = vrot.slane %v2544, 6
    %v2550 = vrot.slane %v2544, 4
    %v2552 = vrot.slane %v2544, 2
    %v2554 = vsel %vm279, %v2544, %v2548
    %v2555 = vsel %vm281, %v2554, %v2550
    %v2556 = vsel %vm283, %v2555, %v2552
    %v2557 = vadd.f32 %v170, %v2556
    %v2558 = vadd.f32 %v175, %v2556
    %v2559 = vtanh.pop %v2557
    %v2560 = vtanh.pop %v2558
    %v2562 = vsel %vm96, %v2559, 0
    %v2565 = vsel %vm96, %v2560, 0
    %2567 = vmatprep.subr.mxu0 0.0
    %2568 = vmatpush1.msra.mxu0 0.0
    %2569 = vmatprep.subr.mxu0 0.0
    %2570 = vmatpush1.msra.mxu0 0.0
    %2571 = vmatprep.subr.mxu0 0.0
    %2572 = vmatpush1.msra.mxu0 0.0
    %2573 = vmatprep.subr.mxu0 0.0
    %2574 = vmatpush1.msra.mxu0 0.0
    %2575 = vmatprep.subr.mxu0 0.0
    %2576 = vmatpush1.msra.mxu0 0.0
    %2577 = vmatprep.subr.mxu0 0.0
    %2578 = vmatpush1.msra.mxu0 0.0
    %2579 = vmatprep.subr.mxu0 0.0
    %2580 = vmatpush1.msra.mxu0 0.0
    %2581 = vmatprep.subr.mxu0 0.0
    %2582 = vmatpush1.msra.mxu0 0.0
    %2583 = vmatprep.subr.mxu0 0.0
    %2584 = vmatpush1.msra.mxu0 0.0
    %2585 = vmatprep.subr.mxu0 0.0
    %2586 = vmatpush1.msra.mxu0 0.0
    %2587 = vmatprep.subr.mxu0 0.0
    %2588 = vmatpush1.msra.mxu0 0.0
    %2589 = vmatprep.subr.mxu0 0.0
    %2590 = vmatpush1.msra.mxu0 0.0
    %2591 = vmatprep.subr.mxu0 0.0
    %2592 = vmatpush1.msra.mxu0 %v186
    %2593 = vmatprep.subr.mxu0 0.0
    %2594 = vmatpush1.msra.mxu0 %v185
    %2595 = vmatprep.subr.mxu0 0.0
    %2596 = vmatpush1.msra.mxu0 %v184
    %2597 = vmatprep.subr.mxu0 0.0
    %2598 = vmatpush1.msra.mxu0 %v183
    %2599 = vmatprep.subr.mxu0 0.0
    %2600 = vmatpush2.msra.mxu0 0.0
    %2601 = vmatprep.subr.mxu0 0.0
    %2602 = vmatpush2.msra.mxu0 0.0
    %2603 = vmatprep.subr.mxu0 0.0
    %2604 = vmatpush2.msra.mxu0 0.0
    %2605 = vmatprep.subr.mxu0 0.0
    %2606 = vmatpush2.msra.mxu0 0.0
    %2607 = vmatprep.subr.mxu0 0.0
    %2608 = vmatpush2.msra.mxu0 0.0
    %2609 = vmatprep.subr.mxu0 0.0
    %2610 = vmatpush2.msra.mxu0 0.0
    %2611 = vmatprep.subr.mxu0 0.0
    %2612 = vmatpush2.msra.mxu0 0.0
    %2613 = vmatprep.subr.mxu0 0.0
    %2614 = vmatpush2.msra.mxu0 0.0
    %2615 = vmatprep.subr.mxu0 0.0
    %2616 = vmatpush2.msra.mxu0 0.0
    %2617 = vmatprep.subr.mxu0 0.0
    %2618 = vmatpush2.msra.mxu0 0.0
    %2619 = vmatprep.subr.mxu0 0.0
    %2620 = vmatpush2.msra.mxu0 0.0
    %2621 = vmatprep.subr.mxu0 0.0
    %2622 = vmatpush2.msra.mxu0 0.0
    %2623 = vmatprep.subr.mxu0 0.0
    %2624 = vmatpush2.msra.mxu0 0.0
    %2625 = vmatprep.subr.mxu0 0.0
    %2626 = vmatpush2.msra.mxu0 0.0
    %2627 = vmatprep.subr.mxu0 0.0
    %2628 = vmatpush2.msra.mxu0 0.0
    %2629 = vmatprep.subr.mxu0 0.0
    %2630 = vmatpush2.msra.mxu0 0.0
    %2631 = vmatprep.mubr.f32.mxu0 0.0
    %2632 = vmatmul.mubr.f32.gmra.mxu0 %v2562
    %v2633 = vpop.f32.mrf.mxu0
    %v2634 = vadd.f32 0.0, %v2633
    %v2635 = vpop.f32.mrf.mxu0
    %2636 = vmatprep.mubr.f32.mxu0 0.0
    %2637 = vmatmul.mubr.f32.gmra.mxu0 %v2565
    %v2638 = vpop.f32.mrf.mxu0
    %v2639 = vadd.f32 0.0, %v2638
    %v2640 = vpop.f32.mrf.mxu0
    %2641 = vdwg.mxu0
    %v2642 = vsel %vm370, %v2634, -inf
    %v2643 = vsel %vm370, %v2639, -inf
    %v2644 = vmax.f32 %v2642, %v2643
    %2645 = vmax.xlane.f32.xlu0 %v2644
    %v2646 = vpop.xlane.xlu0 %2645
    %v2647 = vrot.slane %v2646, 4
    %v2648 = vmax.f32 %v2646, %v2647
    %v2649 = vrot.slane %v2648, 2
    %v2650 = vmax.f32 %v2648, %v2649
    %v2651 = vrot.slane %v2650, 1
    %v2652 = vmax.f32 %v2650, %v2651
    %s2653 = vtos %v2652
    %v2654 = vstv %s2653
    %v2655 = vsub.f32 %v2634, %v2654
    %v2656 = vsub.f32 %v2639, %v2654
    %v2657 = vmul.f32 %v2655, 1.442695
    %v2658 = vpow.pop %v2657
    %v2659 = vmul.f32 %v2656, 1.442695
    %v2660 = vpow.pop %v2659
    %2662 = vset.pattern.permute.xlu0 0
    %2663 = vperm.xlu0 %2662, %v2658
    %v2664 = vpop.permute.xlu0 %2663
    %2667 = vset.pattern.permute.xlu0 0
    %2668 = vperm.xlu0 %2667, %v2660
    %v2669 = vpop.permute.xlu0 %2668
    %v2671 = vmul.f32 %v90, %v2664
    %v2672 = vmul.f32 %v91, %v2669
    %2673 = vmatprep.subr.mxu0 0.0
    %2674 = vmatpush1.msra.mxu0 0.0
    %2675 = vmatprep.subr.mxu0 0.0
    %2676 = vmatpush1.msra.mxu0 0.0
    %2677 = vmatprep.subr.mxu0 0.0
    %2678 = vmatpush1.msra.mxu0 0.0
    %2679 = vmatprep.subr.mxu0 0.0
    %2680 = vmatpush1.msra.mxu0 0.0
    %2681 = vmatprep.subr.mxu0 0.0
    %2682 = vmatpush1.msra.mxu0 0.0
    %2683 = vmatprep.subr.mxu0 0.0
    %2684 = vmatpush1.msra.mxu0 0.0
    %2685 = vmatprep.subr.mxu0 0.0
    %2686 = vmatpush1.msra.mxu0 0.0
    %2687 = vmatprep.subr.mxu0 0.0
    %2688 = vmatpush1.msra.mxu0 0.0
    %2689 = vmatprep.subr.mxu0 0.0
    %2690 = vmatpush1.msra.mxu0 0.0
    %2691 = vmatprep.subr.mxu0 0.0
    %2692 = vmatpush1.msra.mxu0 0.0
    %2693 = vmatprep.subr.mxu0 0.0
    %2694 = vmatpush1.msra.mxu0 0.0
    %2695 = vmatprep.subr.mxu0 0.0
    %2696 = vmatpush1.msra.mxu0 0.0
    %2697 = vmatprep.subr.mxu0 0.0
    %2698 = vmatpush1.msra.mxu0 0.0
    %2699 = vmatprep.subr.mxu0 0.0
    %2700 = vmatpush1.msra.mxu0 0.0
    %2701 = vmatprep.subr.mxu0 0.0
    %2702 = vmatpush1.msra.mxu0 %v2672
    %2703 = vmatprep.subr.mxu0 0.0
    %2704 = vmatpush1.msra.mxu0 %v2671
    %2705 = vmatprep.subr.mxu0 0.0
    %2706 = vmatpush2.msra.mxu0 0.0
    %2707 = vmatprep.subr.mxu0 0.0
    %2708 = vmatpush2.msra.mxu0 0.0
    %2709 = vmatprep.subr.mxu0 0.0
    %2710 = vmatpush2.msra.mxu0 0.0
    %2711 = vmatprep.subr.mxu0 0.0
    %2712 = vmatpush2.msra.mxu0 0.0
    %2713 = vmatprep.subr.mxu0 0.0
    %2714 = vmatpush2.msra.mxu0 0.0
    %2715 = vmatprep.subr.mxu0 0.0
    %2716 = vmatpush2.msra.mxu0 0.0
    %2717 = vmatprep.subr.mxu0 0.0
    %2718 = vmatpush2.msra.mxu0 0.0
    %2719 = vmatprep.subr.mxu0 0.0
    %2720 = vmatpush2.msra.mxu0 0.0
    %2721 = vmatprep.subr.mxu0 0.0
    %2722 = vmatpush2.msra.mxu0 0.0
    %2723 = vmatprep.subr.mxu0 0.0
    %2724 = vmatpush2.msra.mxu0 0.0
    %2725 = vmatprep.subr.mxu0 0.0
    %2726 = vmatpush2.msra.mxu0 0.0
    %2727 = vmatprep.subr.mxu0 0.0
    %2728 = vmatpush2.msra.mxu0 0.0
    %2729 = vmatprep.subr.mxu0 0.0
    %2730 = vmatpush2.msra.mxu0 0.0
    %2731 = vmatprep.subr.mxu0 0.0
    %2732 = vmatpush2.msra.mxu0 0.0
    %2733 = vmatprep.subr.mxu0 0.0
    %2734 = vmatpush2.msra.mxu0 0.0
    %2735 = vmatprep.subr.mxu0 0.0
    %2736 = vmatpush2.msra.mxu0 0.0
    %2737 = vmatprep.mubr.f32.mxu0 0.0
    %2738 = vmatmul.mubr.f32.gmra.mxu0 %v404
    %v2739 = vpop.f32.mrf.mxu0
    %v2740 = vadd.f32 0.0, %v2739
    %v2741 = vpop.f32.mrf.mxu0
    %2742 = vdwg.mxu0
    %2743 = vmatprep.subr.mxu0 0.0
    %2744 = vmatpush1.msra.mxu0 0.0
    %2745 = vmatprep.subr.mxu0 0.0
    %2746 = vmatpush1.msra.mxu0 0.0
    %2747 = vmatprep.subr.mxu0 0.0
    %2748 = vmatpush1.msra.mxu0 0.0
    %2749 = vmatprep.subr.mxu0 0.0
    %2750 = vmatpush1.msra.mxu0 0.0
    %2751 = vmatprep.subr.mxu0 0.0
    %2752 = vmatpush1.msra.mxu0 0.0
    %2753 = vmatprep.subr.mxu0 0.0
    %2754 = vmatpush1.msra.mxu0 0.0
    %2755 = vmatprep.subr.mxu0 0.0
    %2756 = vmatpush1.msra.mxu0 0.0
    %2757 = vmatprep.subr.mxu0 0.0
    %2758 = vmatpush1.msra.mxu0 0.0
    %2759 = vmatprep.subr.mxu0 0.0
    %2760 = vmatpush1.msra.mxu0 0.0
    %2761 = vmatprep.subr.mxu0 0.0
    %2762 = vmatpush1.msra.mxu0 0.0
    %2763 = vmatprep.subr.mxu0 0.0
    %2764 = vmatpush1.msra.mxu0 0.0
    %2765 = vmatprep.subr.mxu0 0.0
    %2766 = vmatpush1.msra.mxu0 0.0
    %2767 = vmatprep.subr.mxu0 0.0
    %2768 = vmatpush1.msra.mxu0 0.0
    %2769 = vmatprep.subr.mxu0 0.0
    %2770 = vmatpush1.msra.mxu0 0.0
    %2771 = vmatprep.subr.mxu0 0.0
    %2772 = vmatpush1.msra.mxu0 %v2660
    %2773 = vmatprep.subr.mxu0 0.0
    %2774 = vmatpush1.msra.mxu0 %v2658
    %2775 = vmatprep.subr.mxu0 0.0
    %2776 = vmatpush2.msra.mxu0 0.0
    %2777 = vmatprep.subr.mxu0 0.0
    %2778 = vmatpush2.msra.mxu0 0.0
    %2779 = vmatprep.subr.mxu0 0.0
    %2780 = vmatpush2.msra.mxu0 0.0
    %2781 = vmatprep.subr.mxu0 0.0
    %2782 = vmatpush2.msra.mxu0 0.0
    %2783 = vmatprep.subr.mxu0 0.0
    %2784 = vmatpush2.msra.mxu0 0.0
    %2785 = vmatprep.subr.mxu0 0.0
    %2786 = vmatpush2.msra.mxu0 0.0
    %2787 = vmatprep.subr.mxu0 0.0
    %2788 = vmatpush2.msra.mxu0 0.0
    %2789 = vmatprep.subr.mxu0 0.0
    %2790 = vmatpush2.msra.mxu0 0.0
    %2791 = vmatprep.subr.mxu0 0.0
    %2792 = vmatpush2.msra.mxu0 0.0
    %2793 = vmatprep.subr.mxu0 0.0
    %2794 = vmatpush2.msra.mxu0 0.0
    %2795 = vmatprep.subr.mxu0 0.0
    %2796 = vmatpush2.msra.mxu0 0.0
    %2797 = vmatprep.subr.mxu0 0.0
    %2798 = vmatpush2.msra.mxu0 0.0
    %2799 = vmatprep.subr.mxu0 0.0
    %2800 = vmatpush2.msra.mxu0 0.0
    %2801 = vmatprep.subr.mxu0 0.0
    %2802 = vmatpush2.msra.mxu0 0.0
    %2803 = vmatprep.subr.mxu0 0.0
    %2804 = vmatpush2.msra.mxu0 0.0
    %2805 = vmatprep.subr.mxu0 0.0
    %2806 = vmatpush2.msra.mxu0 0.0
    %2807 = vmatprep.mubr.f32.mxu0 0.0
    %2808 = vmatmul.mubr.f32.gmra.mxu0 %v404
    %v2809 = vpop.f32.mrf.mxu0
    %v2810 = vadd.f32 0.0, %v2809
    %v2811 = vpop.f32.mrf.mxu0
    %2812 = vdwg.mxu0
    %v2814 = vsel %vm96, %v2740, 0
    %2816 = vmatprep.subr.mxu0 0.0
    %2817 = vmatpush1.msra.mxu0 0.0
    %2818 = vmatprep.subr.mxu0 0.0
    %2819 = vmatpush1.msra.mxu0 0.0
    %2820 = vmatprep.subr.mxu0 0.0
    %2821 = vmatpush1.msra.mxu0 0.0
    %2822 = vmatprep.subr.mxu0 0.0
    %2823 = vmatpush1.msra.mxu0 0.0
    %2824 = vmatprep.subr.mxu0 0.0
    %2825 = vmatpush1.msra.mxu0 0.0
    %2826 = vmatprep.subr.mxu0 0.0
    %2827 = vmatpush1.msra.mxu0 0.0
    %2828 = vmatprep.subr.mxu0 0.0
    %2829 = vmatpush1.msra.mxu0 0.0
    %2830 = vmatprep.subr.mxu0 0.0
    %2831 = vmatpush1.msra.mxu0 0.0
    %2832 = vmatprep.subr.mxu0 0.0
    %2833 = vmatpush1.msra.mxu0 0.0
    %2834 = vmatprep.subr.mxu0 0.0
    %2835 = vmatpush1.msra.mxu0 0.0
    %2836 = vmatprep.subr.mxu0 0.0
    %2837 = vmatpush1.msra.mxu0 0.0
    %2838 = vmatprep.subr.mxu0 0.0
    %2839 = vmatpush1.msra.mxu0 0.0
    %2840 = vmatprep.subr.mxu0 0.0
    %2841 = vmatpush1.msra.mxu0 %v190
    %2842 = vmatprep.subr.mxu0 0.0
    %2843 = vmatpush1.msra.mxu0 %v189
    %2844 = vmatprep.subr.mxu0 0.0
    %2845 = vmatpush1.msra.mxu0 %v188
    %2846 = vmatprep.subr.mxu0 0.0
    %2847 = vmatpush1.msra.mxu0 %v187
    %2848 = vmatprep.subr.mxu0 0.0
    %2849 = vmatpush2.msra.mxu0 0.0
    %2850 = vmatprep.subr.mxu0 0.0
    %2851 = vmatpush2.msra.mxu0 0.0
    %2852 = vmatprep.subr.mxu0 0.0
    %2853 = vmatpush2.msra.mxu0 0.0
    %2854 = vmatprep.subr.mxu0 0.0
    %2855 = vmatpush2.msra.mxu0 0.0
    %2856 = vmatprep.subr.mxu0 0.0
    %2857 = vmatpush2.msra.mxu0 0.0
    %2858 = vmatprep.subr.mxu0 0.0
    %2859 = vmatpush2.msra.mxu0 0.0
    %2860 = vmatprep.subr.mxu0 0.0
    %2861 = vmatpush2.msra.mxu0 0.0
    %2862 = vmatprep.subr.mxu0 0.0
    %2863 = vmatpush2.msra.mxu0 0.0
    %2864 = vmatprep.subr.mxu0 0.0
    %2865 = vmatpush2.msra.mxu0 0.0
    %2866 = vmatprep.subr.mxu0 0.0
    %2867 = vmatpush2.msra.mxu0 0.0
    %2868 = vmatprep.subr.mxu0 0.0
    %2869 = vmatpush2.msra.mxu0 0.0
    %2870 = vmatprep.subr.mxu0 0.0
    %2871 = vmatpush2.msra.mxu0 0.0
    %2872 = vmatprep.subr.mxu0 0.0
    %2873 = vmatpush2.msra.mxu0 0.0
    %2874 = vmatprep.subr.mxu0 0.0
    %2875 = vmatpush2.msra.mxu0 0.0
    %2876 = vmatprep.subr.mxu0 0.0
    %2877 = vmatpush2.msra.mxu0 0.0
    %2878 = vmatprep.subr.mxu0 0.0
    %2879 = vmatpush2.msra.mxu0 0.0
    %2880 = vmatprep.mubr.f32.mxu0 0.0
    %2881 = vmatmul.mubr.f32.gmra.mxu0 %v2814
    %v2882 = vpop.f32.mrf.mxu0
    %v2883 = vadd.f32 0.0, %v2882
    %v2884 = vpop.f32.mrf.mxu0
    %2885 = vdwg.mxu0
    %v2886 = vrcp.pop %v2810
    %2888 = vset.pattern.permute.xlu0 0
    %2889 = vperm.xlu0 %2888, %v2886
    %v2890 = vpop.permute.xlu0 %2889
    %v2892 = vmul.f32 %v2883, %v2890
    %v2893 = vadd.f32 %v2892, %v630
    %2894 = vrot.lane.b32.xlu0 %v2544, 96
    %v2895 = vpop.permute.xlu0 %2894
    %v2897 = vadd.f32 %v2893, %v2895
    %v2898 = vxor.u32 %v2897, 2147483648
    %v2899 = vmul.f32 %v2898, 1.442695
    %v2900 = vpow.pop %v2899
    %v2901 = vadd.f32 %v2900, 1.0
    %v2902 = vrcp.pop %v2901
    %v2903 = vmul.f32 1.0, %v2902
    %2904 = vrot.lane.b32.xlu0 %v2544, 32
    %v2905 = vpop.permute.xlu0 %2904
    %v2907 = vmul.f32 %v2903, %v2905
    %2909 = vrot.lane.b32.xlu0 %v2907, 64
    %v2910 = vpop.permute.xlu0 %2909
    %v2912 = vadd.f32 %v2893, %v2910
    %v2913 = vtanh.pop %v2912
    %v2914 = vsub.f32 1.0, %v2903
    %2916 = vrot.lane.b32.xlu0 %v2913, 96
    %v2917 = vpop.permute.xlu0 %2916
    %v2919 = vmul.f32 %v2914, %v2917
    %v2920 = vmul.f32 %v2903, %v2469
    %v2921 = vadd.f32 %v2919, %v2920
    %2923 = vrot.lane.b32.xlu0 %v2921, 96
    %v2924 = vpop.permute.xlu0 %2923
    %2926 = vst.msk [vmem:[#allocation2 + $0xa] sm:$0x3] %vm665, %v2924
    %v2927 = vsel %vm96, %v2924, 0
    %2929 = vmatprep.subr.mxu0 0.0
    %2930 = vmatpush1.msra.mxu0 0.0
    %2931 = vmatprep.subr.mxu0 0.0
    %2932 = vmatpush1.msra.mxu0 0.0
    %2933 = vmatprep.subr.mxu0 0.0
    %2934 = vmatpush1.msra.mxu0 0.0
    %2935 = vmatprep.subr.mxu0 0.0
    %2936 = vmatpush1.msra.mxu0 0.0
    %2937 = vmatprep.subr.mxu0 0.0
    %2938 = vmatpush1.msra.mxu0 0.0
    %2939 = vmatprep.subr.mxu0 0.0
    %2940 = vmatpush1.msra.mxu0 0.0
    %2941 = vmatprep.subr.mxu0 0.0
    %2942 = vmatpush1.msra.mxu0 0.0
    %2943 = vmatprep.subr.mxu0 0.0
    %2944 = vmatpush1.msra.mxu0 0.0
    %2945 = vmatprep.subr.mxu0 0.0
    %2946 = vmatpush1.msra.mxu0 0.0
    %2947 = vmatprep.subr.mxu0 0.0
    %2948 = vmatpush1.msra.mxu0 0.0
    %2949 = vmatprep.subr.mxu0 0.0
    %2950 = vmatpush1.msra.mxu0 0.0
    %2951 = vmatprep.subr.mxu0 0.0
    %2952 = vmatpush1.msra.mxu0 0.0
    %2953 = vmatprep.subr.mxu0 0.0
    %2954 = vmatpush1.msra.mxu0 %v181
    %2955 = vmatprep.subr.mxu0 0.0
    %2956 = vmatpush1.msra.mxu0 %v180
    %2957 = vmatprep.subr.mxu0 0.0
    %2958 = vmatpush1.msra.mxu0 %v179
    %2959 = vmatprep.subr.mxu0 0.0
    %2960 = vmatpush1.msra.mxu0 %v178
    %2961 = vmatprep.subr.mxu0 0.0
    %2962 = vmatpush2.msra.mxu0 0.0
    %2963 = vmatprep.subr.mxu0 0.0
    %2964 = vmatpush2.msra.mxu0 0.0
    %2965 = vmatprep.subr.mxu0 0.0
    %2966 = vmatpush2.msra.mxu0 0.0
    %2967 = vmatprep.subr.mxu0 0.0
    %2968 = vmatpush2.msra.mxu0 0.0
    %2969 = vmatprep.subr.mxu0 0.0
    %2970 = vmatpush2.msra.mxu0 0.0
    %2971 = vmatprep.subr.mxu0 0.0
    %2972 = vmatpush2.msra.mxu0 0.0
    %2973 = vmatprep.subr.mxu0 0.0
    %2974 = vmatpush2.msra.mxu0 0.0
    %2975 = vmatprep.subr.mxu0 0.0
    %2976 = vmatpush2.msra.mxu0 0.0
    %2977 = vmatprep.subr.mxu0 0.0
    %2978 = vmatpush2.msra.mxu0 0.0
    %2979 = vmatprep.subr.mxu0 0.0
    %2980 = vmatpush2.msra.mxu0 0.0
    %2981 = vmatprep.subr.mxu0 0.0
    %2982 = vmatpush2.msra.mxu0 0.0
    %2983 = vmatprep.subr.mxu0 0.0
    %2984 = vmatpush2.msra.mxu0 0.0
    %2985 = vmatprep.subr.mxu0 0.0
    %2986 = vmatpush2.msra.mxu0 0.0
    %2987 = vmatprep.subr.mxu0 0.0
    %2988 = vmatpush2.msra.mxu0 0.0
    %2989 = vmatprep.subr.mxu0 0.0
    %2990 = vmatpush2.msra.mxu0 0.0
    %2991 = vmatprep.subr.mxu0 0.0
    %2992 = vmatpush2.msra.mxu0 0.0
    %2993 = vmatprep.mubr.f32.mxu0 0.0
    %2994 = vmatmul.mubr.f32.gmra.mxu0 %v2927
    %v2995 = vpop.f32.mrf.mxu0
    %v2996 = vadd.f32 %v197, %v2995
    %v2997 = vpop.f32.mrf.mxu0
    %2998 = vdwg.mxu0
    %v3000 = vrot.slane %v2996, 6
    %v3002 = vrot.slane %v2996, 4
    %v3004 = vrot.slane %v2996, 2
    %v3006 = vsel %vm279, %v2996, %v3000
    %v3007 = vsel %vm281, %v3006, %v3002
    %v3008 = vsel %vm283, %v3007, %v3004
    %v3009 = vadd.f32 %v170, %v3008
    %v3010 = vadd.f32 %v175, %v3008
    %v3011 = vtanh.pop %v3009
    %v3012 = vtanh.pop %v3010
    %v3014 = vsel %vm96, %v3011, 0
    %v3017 = vsel %vm96, %v3012, 0
    %3019 = vmatprep.subr.mxu0 0.0
    %3020 = vmatpush1.msra.mxu0 0.0
    %3021 = vmatprep.subr.mxu0 0.0
    %3022 = vmatpush1.msra.mxu0 0.0
    %3023 = vmatprep.subr.mxu0 0.0
    %3024 = vmatpush1.msra.mxu0 0.0
    %3025 = vmatprep.subr.mxu0 0.0
    %3026 = vmatpush1.msra.mxu0 0.0
    %3027 = vmatprep.subr.mxu0 0.0
    %3028 = vmatpush1.msra.mxu0 0.0
    %3029 = vmatprep.subr.mxu0 0.0
    %3030 = vmatpush1.msra.mxu0 0.0
    %3031 = vmatprep.subr.mxu0 0.0
    %3032 = vmatpush1.msra.mxu0 0.0
    %3033 = vmatprep.subr.mxu0 0.0
    %3034 = vmatpush1.msra.mxu0 0.0
    %3035 = vmatprep.subr.mxu0 0.0
    %3036 = vmatpush1.msra.mxu0 0.0
    %3037 = vmatprep.subr.mxu0 0.0
    %3038 = vmatpush1.msra.mxu0 0.0
    %3039 = vmatprep.subr.mxu0 0.0
    %3040 = vmatpush1.msra.mxu0 0.0
    %3041 = vmatprep.subr.mxu0 0.0
    %3042 = vmatpush1.msra.mxu0 0.0
    %3043 = vmatprep.subr.mxu0 0.0
    %3044 = vmatpush1.msra.mxu0 %v186
    %3045 = vmatprep.subr.mxu0 0.0
    %3046 = vmatpush1.msra.mxu0 %v185
    %3047 = vmatprep.subr.mxu0 0.0
    %3048 = vmatpush1.msra.mxu0 %v184
    %3049 = vmatprep.subr.mxu0 0.0
    %3050 = vmatpush1.msra.mxu0 %v183
    %3051 = vmatprep.subr.mxu0 0.0
    %3052 = vmatpush2.msra.mxu0 0.0
    %3053 = vmatprep.subr.mxu0 0.0
    %3054 = vmatpush2.msra.mxu0 0.0
    %3055 = vmatprep.subr.mxu0 0.0
    %3056 = vmatpush2.msra.mxu0 0.0
    %3057 = vmatprep.subr.mxu0 0.0
    %3058 = vmatpush2.msra.mxu0 0.0
    %3059 = vmatprep.subr.mxu0 0.0
    %3060 = vmatpush2.msra.mxu0 0.0
    %3061 = vmatprep.subr.mxu0 0.0
    %3062 = vmatpush2.msra.mxu0 0.0
    %3063 = vmatprep.subr.mxu0 0.0
    %3064 = vmatpush2.msra.mxu0 0.0
    %3065 = vmatprep.subr.mxu0 0.0
    %3066 = vmatpush2.msra.mxu0 0.0
    %3067 = vmatprep.subr.mxu0 0.0
    %3068 = vmatpush2.msra.mxu0 0.0
    %3069 = vmatprep.subr.mxu0 0.0
    %3070 = vmatpush2.msra.mxu0 0.0
    %3071 = vmatprep.subr.mxu0 0.0
    %3072 = vmatpush2.msra.mxu0 0.0
    %3073 = vmatprep.subr.mxu0 0.0
    %3074 = vmatpush2.msra.mxu0 0.0
    %3075 = vmatprep.subr.mxu0 0.0
    %3076 = vmatpush2.msra.mxu0 0.0
    %3077 = vmatprep.subr.mxu0 0.0
    %3078 = vmatpush2.msra.mxu0 0.0
    %3079 = vmatprep.subr.mxu0 0.0
    %3080 = vmatpush2.msra.mxu0 0.0
    %3081 = vmatprep.subr.mxu0 0.0
    %3082 = vmatpush2.msra.mxu0 0.0
    %3083 = vmatprep.mubr.f32.mxu0 0.0
    %3084 = vmatmul.mubr.f32.gmra.mxu0 %v3014
    %v3085 = vpop.f32.mrf.mxu0
    %v3086 = vadd.f32 0.0, %v3085
    %v3087 = vpop.f32.mrf.mxu0
    %3088 = vmatprep.mubr.f32.mxu0 0.0
    %3089 = vmatmul.mubr.f32.gmra.mxu0 %v3017
    %v3090 = vpop.f32.mrf.mxu0
    %v3091 = vadd.f32 0.0, %v3090
    %v3092 = vpop.f32.mrf.mxu0
    %3093 = vdwg.mxu0
    %v3094 = vsel %vm370, %v3086, -inf
    %v3095 = vsel %vm370, %v3091, -inf
    %v3096 = vmax.f32 %v3094, %v3095
    %3097 = vmax.xlane.f32.xlu0 %v3096
    %v3098 = vpop.xlane.xlu0 %3097
    %v3099 = vrot.slane %v3098, 4
    %v3100 = vmax.f32 %v3098, %v3099
    %v3101 = vrot.slane %v3100, 2
    %v3102 = vmax.f32 %v3100, %v3101
    %v3103 = vrot.slane %v3102, 1
    %v3104 = vmax.f32 %v3102, %v3103
    %s3105 = vtos %v3104
    %v3106 = vstv %s3105
    %v3107 = vsub.f32 %v3086, %v3106
    %v3108 = vsub.f32 %v3091, %v3106
    %v3109 = vmul.f32 %v3107, 1.442695
    %v3110 = vpow.pop %v3109
    %v3111 = vmul.f32 %v3108, 1.442695
    %v3112 = vpow.pop %v3111
    %3114 = vset.pattern.permute.xlu0 0
    %3115 = vperm.xlu0 %3114, %v3110
    %v3116 = vpop.permute.xlu0 %3115
    %3119 = vset.pattern.permute.xlu0 0
    %3120 = vperm.xlu0 %3119, %v3112
    %v3121 = vpop.permute.xlu0 %3120
    %v3123 = vmul.f32 %v90, %v3116
    %v3124 = vmul.f32 %v91, %v3121
    %3125 = vmatprep.subr.mxu0 0.0
    %3126 = vmatpush1.msra.mxu0 0.0
    %3127 = vmatprep.subr.mxu0 0.0
    %3128 = vmatpush1.msra.mxu0 0.0
    %3129 = vmatprep.subr.mxu0 0.0
    %3130 = vmatpush1.msra.mxu0 0.0
    %3131 = vmatprep.subr.mxu0 0.0
    %3132 = vmatpush1.msra.mxu0 0.0
    %3133 = vmatprep.subr.mxu0 0.0
    %3134 = vmatpush1.msra.mxu0 0.0
    %3135 = vmatprep.subr.mxu0 0.0
    %3136 = vmatpush1.msra.mxu0 0.0
    %3137 = vmatprep.subr.mxu0 0.0
    %3138 = vmatpush1.msra.mxu0 0.0
    %3139 = vmatprep.subr.mxu0 0.0
    %3140 = vmatpush1.msra.mxu0 0.0
    %3141 = vmatprep.subr.mxu0 0.0
    %3142 = vmatpush1.msra.mxu0 0.0
    %3143 = vmatprep.subr.mxu0 0.0
    %3144 = vmatpush1.msra.mxu0 0.0
    %3145 = vmatprep.subr.mxu0 0.0
    %3146 = vmatpush1.msra.mxu0 0.0
    %3147 = vmatprep.subr.mxu0 0.0
    %3148 = vmatpush1.msra.mxu0 0.0
    %3149 = vmatprep.subr.mxu0 0.0
    %3150 = vmatpush1.msra.mxu0 0.0
    %3151 = vmatprep.subr.mxu0 0.0
    %3152 = vmatpush1.msra.mxu0 0.0
    %3153 = vmatprep.subr.mxu0 0.0
    %3154 = vmatpush1.msra.mxu0 %v3124
    %3155 = vmatprep.subr.mxu0 0.0
    %3156 = vmatpush1.msra.mxu0 %v3123
    %3157 = vmatprep.subr.mxu0 0.0
    %3158 = vmatpush2.msra.mxu0 0.0
    %3159 = vmatprep.subr.mxu0 0.0
    %3160 = vmatpush2.msra.mxu0 0.0
    %3161 = vmatprep.subr.mxu0 0.0
    %3162 = vmatpush2.msra.mxu0 0.0
    %3163 = vmatprep.subr.mxu0 0.0
    %3164 = vmatpush2.msra.mxu0 0.0
    %3165 = vmatprep.subr.mxu0 0.0
    %3166 = vmatpush2.msra.mxu0 0.0
    %3167 = vmatprep.subr.mxu0 0.0
    %3168 = vmatpush2.msra.mxu0 0.0
    %3169 = vmatprep.subr.mxu0 0.0
    %3170 = vmatpush2.msra.mxu0 0.0
    %3171 = vmatprep.subr.mxu0 0.0
    %3172 = vmatpush2.msra.mxu0 0.0
    %3173 = vmatprep.subr.mxu0 0.0
    %3174 = vmatpush2.msra.mxu0 0.0
    %3175 = vmatprep.subr.mxu0 0.0
    %3176 = vmatpush2.msra.mxu0 0.0
    %3177 = vmatprep.subr.mxu0 0.0
    %3178 = vmatpush2.msra.mxu0 0.0
    %3179 = vmatprep.subr.mxu0 0.0
    %3180 = vmatpush2.msra.mxu0 0.0
    %3181 = vmatprep.subr.mxu0 0.0
    %3182 = vmatpush2.msra.mxu0 0.0
    %3183 = vmatprep.subr.mxu0 0.0
    %3184 = vmatpush2.msra.mxu0 0.0
    %3185 = vmatprep.subr.mxu0 0.0
    %3186 = vmatpush2.msra.mxu0 0.0
    %3187 = vmatprep.subr.mxu0 0.0
    %3188 = vmatpush2.msra.mxu0 0.0
    %3189 = vmatprep.mubr.f32.mxu0 0.0
    %3190 = vmatmul.mubr.f32.gmra.mxu0 %v404
    %v3191 = vpop.f32.mrf.mxu0
    %v3192 = vadd.f32 0.0, %v3191
    %v3193 = vpop.f32.mrf.mxu0
    %3194 = vdwg.mxu0
    %3195 = vmatprep.subr.mxu0 0.0
    %3196 = vmatpush1.msra.mxu0 0.0
    %3197 = vmatprep.subr.mxu0 0.0
    %3198 = vmatpush1.msra.mxu0 0.0
    %3199 = vmatprep.subr.mxu0 0.0
    %3200 = vmatpush1.msra.mxu0 0.0
    %3201 = vmatprep.subr.mxu0 0.0
    %3202 = vmatpush1.msra.mxu0 0.0
    %3203 = vmatprep.subr.mxu0 0.0
    %3204 = vmatpush1.msra.mxu0 0.0
    %3205 = vmatprep.subr.mxu0 0.0
    %3206 = vmatpush1.msra.mxu0 0.0
    %3207 = vmatprep.subr.mxu0 0.0
    %3208 = vmatpush1.msra.mxu0 0.0
    %3209 = vmatprep.subr.mxu0 0.0
    %3210 = vmatpush1.msra.mxu0 0.0
    %3211 = vmatprep.subr.mxu0 0.0
    %3212 = vmatpush1.msra.mxu0 0.0
    %3213 = vmatprep.subr.mxu0 0.0
    %3214 = vmatpush1.msra.mxu0 0.0
    %3215 = vmatprep.subr.mxu0 0.0
    %3216 = vmatpush1.msra.mxu0 0.0
    %3217 = vmatprep.subr.mxu0 0.0
    %3218 = vmatpush1.msra.mxu0 0.0
    %3219 = vmatprep.subr.mxu0 0.0
    %3220 = vmatpush1.msra.mxu0 0.0
    %3221 = vmatprep.subr.mxu0 0.0
    %3222 = vmatpush1.msra.mxu0 0.0
    %3223 = vmatprep.subr.mxu0 0.0
    %3224 = vmatpush1.msra.mxu0 %v3112
    %3225 = vmatprep.subr.mxu0 0.0
    %3226 = vmatpush1.msra.mxu0 %v3110
    %3227 = vmatprep.subr.mxu0 0.0
    %3228 = vmatpush2.msra.mxu0 0.0
    %3229 = vmatprep.subr.mxu0 0.0
    %3230 = vmatpush2.msra.mxu0 0.0
    %3231 = vmatprep.subr.mxu0 0.0
    %3232 = vmatpush2.msra.mxu0 0.0
    %3233 = vmatprep.subr.mxu0 0.0
    %3234 = vmatpush2.msra.mxu0 0.0
    %3235 = vmatprep.subr.mxu0 0.0
    %3236 = vmatpush2.msra.mxu0 0.0
    %3237 = vmatprep.subr.mxu0 0.0
    %3238 = vmatpush2.msra.mxu0 0.0
    %3239 = vmatprep.subr.mxu0 0.0
    %3240 = vmatpush2.msra.mxu0 0.0
    %3241 = vmatprep.subr.mxu0 0.0
    %3242 = vmatpush2.msra.mxu0 0.0
    %3243 = vmatprep.subr.mxu0 0.0
    %3244 = vmatpush2.msra.mxu0 0.0
    %3245 = vmatprep.subr.mxu0 0.0
    %3246 = vmatpush2.msra.mxu0 0.0
    %3247 = vmatprep.subr.mxu0 0.0
    %3248 = vmatpush2.msra.mxu0 0.0
    %3249 = vmatprep.subr.mxu0 0.0
    %3250 = vmatpush2.msra.mxu0 0.0
    %3251 = vmatprep.subr.mxu0 0.0
    %3252 = vmatpush2.msra.mxu0 0.0
    %3253 = vmatprep.subr.mxu0 0.0
    %3254 = vmatpush2.msra.mxu0 0.0
    %3255 = vmatprep.subr.mxu0 0.0
    %3256 = vmatpush2.msra.mxu0 0.0
    %3257 = vmatprep.subr.mxu0 0.0
    %3258 = vmatpush2.msra.mxu0 0.0
    %3259 = vmatprep.mubr.f32.mxu0 0.0
    %3260 = vmatmul.mubr.f32.gmra.mxu0 %v404
    %v3261 = vpop.f32.mrf.mxu0
    %v3262 = vadd.f32 0.0, %v3261
    %v3263 = vpop.f32.mrf.mxu0
    %3264 = vdwg.mxu0
    %v3266 = vsel %vm96, %v3192, 0
    %3268 = vmatprep.subr.mxu0 0.0
    %3269 = vmatpush1.msra.mxu0 0.0
    %3270 = vmatprep.subr.mxu0 0.0
    %3271 = vmatpush1.msra.mxu0 0.0
    %3272 = vmatprep.subr.mxu0 0.0
    %3273 = vmatpush1.msra.mxu0 0.0
    %3274 = vmatprep.subr.mxu0 0.0
    %3275 = vmatpush1.msra.mxu0 0.0
    %3276 = vmatprep.subr.mxu0 0.0
    %3277 = vmatpush1.msra.mxu0 0.0
    %3278 = vmatprep.subr.mxu0 0.0
    %3279 = vmatpush1.msra.mxu0 0.0
    %3280 = vmatprep.subr.mxu0 0.0
    %3281 = vmatpush1.msra.mxu0 0.0
    %3282 = vmatprep.subr.mxu0 0.0
    %3283 = vmatpush1.msra.mxu0 0.0
    %3284 = vmatprep.subr.mxu0 0.0
    %3285 = vmatpush1.msra.mxu0 0.0
    %3286 = vmatprep.subr.mxu0 0.0
    %3287 = vmatpush1.msra.mxu0 0.0
    %3288 = vmatprep.subr.mxu0 0.0
    %3289 = vmatpush1.msra.mxu0 0.0
    %3290 = vmatprep.subr.mxu0 0.0
    %3291 = vmatpush1.msra.mxu0 0.0
    %3292 = vmatprep.subr.mxu0 0.0
    %3293 = vmatpush1.msra.mxu0 %v190
    %3294 = vmatprep.subr.mxu0 0.0
    %3295 = vmatpush1.msra.mxu0 %v189
    %3296 = vmatprep.subr.mxu0 0.0
    %3297 = vmatpush1.msra.mxu0 %v188
    %3298 = vmatprep.subr.mxu0 0.0
    %3299 = vmatpush1.msra.mxu0 %v187
    %3300 = vmatprep.subr.mxu0 0.0
    %3301 = vmatpush2.msra.mxu0 0.0
    %3302 = vmatprep.subr.mxu0 0.0
    %3303 = vmatpush2.msra.mxu0 0.0
    %3304 = vmatprep.subr.mxu0 0.0
    %3305 = vmatpush2.msra.mxu0 0.0
    %3306 = vmatprep.subr.mxu0 0.0
    %3307 = vmatpush2.msra.mxu0 0.0
    %3308 = vmatprep.subr.mxu0 0.0
    %3309 = vmatpush2.msra.mxu0 0.0
    %3310 = vmatprep.subr.mxu0 0.0
    %3311 = vmatpush2.msra.mxu0 0.0
    %3312 = vmatprep.subr.mxu0 0.0
    %3313 = vmatpush2.msra.mxu0 0.0
    %3314 = vmatprep.subr.mxu0 0.0
    %3315 = vmatpush2.msra.mxu0 0.0
    %3316 = vmatprep.subr.mxu0 0.0
    %3317 = vmatpush2.msra.mxu0 0.0
    %3318 = vmatprep.subr.mxu0 0.0
    %3319 = vmatpush2.msra.mxu0 0.0
    %3320 = vmatprep.subr.mxu0 0.0
    %3321 = vmatpush2.msra.mxu0 0.0
    %3322 = vmatprep.subr.mxu0 0.0
    %3323 = vmatpush2.msra.mxu0 0.0
    %3324 = vmatprep.subr.mxu0 0.0
    %3325 = vmatpush2.msra.mxu0 0.0
    %3326 = vmatprep.subr.mxu0 0.0
    %3327 = vmatpush2.msra.mxu0 0.0
    %3328 = vmatprep.subr.mxu0 0.0
    %3329 = vmatpush2.msra.mxu0 0.0
    %3330 = vmatprep.subr.mxu0 0.0
    %3331 = vmatpush2.msra.mxu0 0.0
    %3332 = vmatprep.mubr.f32.mxu0 0.0
    %3333 = vmatmul.mubr.f32.gmra.mxu0 %v3266
    %v3334 = vpop.f32.mrf.mxu0
    %v3335 = vadd.f32 0.0, %v3334
    %v3336 = vpop.f32.mrf.mxu0
    %3337 = vdwg.mxu0
    %v3338 = vrcp.pop %v3262
    %3340 = vset.pattern.permute.xlu0 0
    %3341 = vperm.xlu0 %3340, %v3338
    %v3342 = vpop.permute.xlu0 %3341
    %v3344 = vmul.f32 %v3335, %v3342
    %v3345 = vadd.f32 %v3344, %v630
    %3346 = vrot.lane.b32.xlu0 %v2996, 96
    %v3347 = vpop.permute.xlu0 %3346
    %v3349 = vadd.f32 %v3345, %v3347
    %v3350 = vxor.u32 %v3349, 2147483648
    %v3351 = vmul.f32 %v3350, 1.442695
    %v3352 = vpow.pop %v3351
    %v3353 = vadd.f32 %v3352, 1.0
    %v3354 = vrcp.pop %v3353
    %v3355 = vmul.f32 1.0, %v3354
    %3356 = vrot.lane.b32.xlu0 %v2996, 32
    %v3357 = vpop.permute.xlu0 %3356
    %v3359 = vmul.f32 %v3355, %v3357
    %3361 = vrot.lane.b32.xlu0 %v3359, 64
    %v3362 = vpop.permute.xlu0 %3361
    %v3364 = vadd.f32 %v3345, %v3362
    %v3365 = vtanh.pop %v3364
    %v3366 = vsub.f32 1.0, %v3355
    %3368 = vrot.lane.b32.xlu0 %v3365, 96
    %v3369 = vpop.permute.xlu0 %3368
    %v3371 = vmul.f32 %v3366, %v3369
    %v3372 = vmul.f32 %v3355, %v2921
    %v3373 = vadd.f32 %v3371, %v3372
    %3375 = vrot.lane.b32.xlu0 %v3373, 96
    %v3376 = vpop.permute.xlu0 %3375
    %3378 = vst.msk [vmem:[#allocation2 + $0xc] sm:$0x3] %vm665, %v3376
    %v3379 = vsel %vm96, %v3376, 0
    %3381 = vmatprep.subr.mxu0 0.0
    %3382 = vmatpush1.msra.mxu0 0.0
    %3383 = vmatprep.subr.mxu0 0.0
    %3384 = vmatpush1.msra.mxu0 0.0
    %3385 = vmatprep.subr.mxu0 0.0
    %3386 = vmatpush1.msra.mxu0 0.0
    %3387 = vmatprep.subr.mxu0 0.0
    %3388 = vmatpush1.msra.mxu0 0.0
    %3389 = vmatprep.subr.mxu0 0.0
    %3390 = vmatpush1.msra.mxu0 0.0
    %3391 = vmatprep.subr.mxu0 0.0
    %3392 = vmatpush1.msra.mxu0 0.0
    %3393 = vmatprep.subr.mxu0 0.0
    %3394 = vmatpush1.msra.mxu0 0.0
    %3395 = vmatprep.subr.mxu0 0.0
    %3396 = vmatpush1.msra.mxu0 0.0
    %3397 = vmatprep.subr.mxu0 0.0
    %3398 = vmatpush1.msra.mxu0 0.0
    %3399 = vmatprep.subr.mxu0 0.0
    %3400 = vmatpush1.msra.mxu0 0.0
    %3401 = vmatprep.subr.mxu0 0.0
    %3402 = vmatpush1.msra.mxu0 0.0
    %3403 = vmatprep.subr.mxu0 0.0
    %3404 = vmatpush1.msra.mxu0 0.0
    %3405 = vmatprep.subr.mxu0 0.0
    %3406 = vmatpush1.msra.mxu0 %v181
    %3407 = vmatprep.subr.mxu0 0.0
    %3408 = vmatpush1.msra.mxu0 %v180
    %3409 = vmatprep.subr.mxu0 0.0
    %3410 = vmatpush1.msra.mxu0 %v179
    %3411 = vmatprep.subr.mxu0 0.0
    %3412 = vmatpush1.msra.mxu0 %v178
    %3413 = vmatprep.subr.mxu0 0.0
    %3414 = vmatpush2.msra.mxu0 0.0
    %3415 = vmatprep.subr.mxu0 0.0
    %3416 = vmatpush2.msra.mxu0 0.0
    %3417 = vmatprep.subr.mxu0 0.0
    %3418 = vmatpush2.msra.mxu0 0.0
    %3419 = vmatprep.subr.mxu0 0.0
    %3420 = vmatpush2.msra.mxu0 0.0
    %3421 = vmatprep.subr.mxu0 0.0
    %3422 = vmatpush2.msra.mxu0 0.0
    %3423 = vmatprep.subr.mxu0 0.0
    %3424 = vmatpush2.msra.mxu0 0.0
    %3425 = vmatprep.subr.mxu0 0.0
    %3426 = vmatpush2.msra.mxu0 0.0
    %3427 = vmatprep.subr.mxu0 0.0
    %3428 = vmatpush2.msra.mxu0 0.0
    %3429 = vmatprep.subr.mxu0 0.0
    %3430 = vmatpush2.msra.mxu0 0.0
    %3431 = vmatprep.subr.mxu0 0.0
    %3432 = vmatpush2.msra.mxu0 0.0
    %3433 = vmatprep.subr.mxu0 0.0
    %3434 = vmatpush2.msra.mxu0 0.0
    %3435 = vmatprep.subr.mxu0 0.0
    %3436 = vmatpush2.msra.mxu0 0.0
    %3437 = vmatprep.subr.mxu0 0.0
    %3438 = vmatpush2.msra.mxu0 0.0
    %3439 = vmatprep.subr.mxu0 0.0
    %3440 = vmatpush2.msra.mxu0 0.0
    %3441 = vmatprep.subr.mxu0 0.0
    %3442 = vmatpush2.msra.mxu0 0.0
    %3443 = vmatprep.subr.mxu0 0.0
    %3444 = vmatpush2.msra.mxu0 0.0
    %3445 = vmatprep.mubr.f32.mxu0 0.0
    %3446 = vmatmul.mubr.f32.gmra.mxu0 %v3379
    %v3447 = vpop.f32.mrf.mxu0
    %v3448 = vadd.f32 %v197, %v3447
    %v3449 = vpop.f32.mrf.mxu0
    %3450 = vdwg.mxu0
    %v3452 = vrot.slane %v3448, 6
    %v3454 = vrot.slane %v3448, 4
    %v3456 = vrot.slane %v3448, 2
    %v3458 = vsel %vm279, %v3448, %v3452
    %v3459 = vsel %vm281, %v3458, %v3454
    %v3460 = vsel %vm283, %v3459, %v3456
    %v3461 = vadd.f32 %v170, %v3460
    %v3462 = vadd.f32 %v175, %v3460
    %v3463 = vtanh.pop %v3461
    %v3464 = vtanh.pop %v3462
    %v3466 = vsel %vm96, %v3463, 0
    %v3469 = vsel %vm96, %v3464, 0
    %3471 = vmatprep.subr.mxu0 0.0
    %3472 = vmatpush1.msra.mxu0 0.0
    %3473 = vmatprep.subr.mxu0 0.0
    %3474 = vmatpush1.msra.mxu0 0.0
    %3475 = vmatprep.subr.mxu0 0.0
    %3476 = vmatpush1.msra.mxu0 0.0
    %3477 = vmatprep.subr.mxu0 0.0
    %3478 = vmatpush1.msra.mxu0 0.0
    %3479 = vmatprep.subr.mxu0 0.0
    %3480 = vmatpush1.msra.mxu0 0.0
    %3481 = vmatprep.subr.mxu0 0.0
    %3482 = vmatpush1.msra.mxu0 0.0
    %3483 = vmatprep.subr.mxu0 0.0
    %3484 = vmatpush1.msra.mxu0 0.0
    %3485 = vmatprep.subr.mxu0 0.0
    %3486 = vmatpush1.msra.mxu0 0.0
    %3487 = vmatprep.subr.mxu0 0.0
    %3488 = vmatpush1.msra.mxu0 0.0
    %3489 = vmatprep.subr.mxu0 0.0
    %3490 = vmatpush1.msra.mxu0 0.0
    %3491 = vmatprep.subr.mxu0 0.0
    %3492 = vmatpush1.msra.mxu0 0.0
    %3493 = vmatprep.subr.mxu0 0.0
    %3494 = vmatpush1.msra.mxu0 0.0
    %3495 = vmatprep.subr.mxu0 0.0
    %3496 = vmatpush1.msra.mxu0 %v186
    %3497 = vmatprep.subr.mxu0 0.0
    %3498 = vmatpush1.msra.mxu0 %v185
    %3499 = vmatprep.subr.mxu0 0.0
    %3500 = vmatpush1.msra.mxu0 %v184
    %3501 = vmatprep.subr.mxu0 0.0
    %3502 = vmatpush1.msra.mxu0 %v183
    %3503 = vmatprep.subr.mxu0 0.0
    %3504 = vmatpush2.msra.mxu0 0.0
    %3505 = vmatprep.subr.mxu0 0.0
    %3506 = vmatpush2.msra.mxu0 0.0
    %3507 = vmatprep.subr.mxu0 0.0
    %3508 = vmatpush2.msra.mxu0 0.0
    %3509 = vmatprep.subr.mxu0 0.0
    %3510 = vmatpush2.msra.mxu0 0.0
    %3511 = vmatprep.subr.mxu0 0.0
    %3512 = vmatpush2.msra.mxu0 0.0
    %3513 = vmatprep.subr.mxu0 0.0
    %3514 = vmatpush2.msra.mxu0 0.0
    %3515 = vmatprep.subr.mxu0 0.0
    %3516 = vmatpush2.msra.mxu0 0.0
    %3517 = vmatprep.subr.mxu0 0.0
    %3518 = vmatpush2.msra.mxu0 0.0
    %3519 = vmatprep.subr.mxu0 0.0
    %3520 = vmatpush2.msra.mxu0 0.0
    %3521 = vmatprep.subr.mxu0 0.0
    %3522 = vmatpush2.msra.mxu0 0.0
    %3523 = vmatprep.subr.mxu0 0.0
    %3524 = vmatpush2.msra.mxu0 0.0
    %3525 = vmatprep.subr.mxu0 0.0
    %3526 = vmatpush2.msra.mxu0 0.0
    %3527 = vmatprep.subr.mxu0 0.0
    %3528 = vmatpush2.msra.mxu0 0.0
    %3529 = vmatprep.subr.mxu0 0.0
    %3530 = vmatpush2.msra.mxu0 0.0
    %3531 = vmatprep.subr.mxu0 0.0
    %3532 = vmatpush2.msra.mxu0 0.0
    %3533 = vmatprep.subr.mxu0 0.0
    %3534 = vmatpush2.msra.mxu0 0.0
    %3535 = vmatprep.mubr.f32.mxu0 0.0
    %3536 = vmatmul.mubr.f32.gmra.mxu0 %v3466
    %v3537 = vpop.f32.mrf.mxu0
    %v3538 = vadd.f32 0.0, %v3537
    %v3539 = vpop.f32.mrf.mxu0
    %3540 = vmatprep.mubr.f32.mxu0 0.0
    %3541 = vmatmul.mubr.f32.gmra.mxu0 %v3469
    %v3542 = vpop.f32.mrf.mxu0
    %v3543 = vadd.f32 0.0, %v3542
    %v3544 = vpop.f32.mrf.mxu0
    %3545 = vdwg.mxu0
    %v3546 = vsel %vm370, %v3538, -inf
    %v3547 = vsel %vm370, %v3543, -inf
    %v3548 = vmax.f32 %v3546, %v3547
    %3549 = vmax.xlane.f32.xlu0 %v3548
    %v3550 = vpop.xlane.xlu0 %3549
    %v3551 = vrot.slane %v3550, 4
    %v3552 = vmax.f32 %v3550, %v3551
    %v3553 = vrot.slane %v3552, 2
    %v3554 = vmax.f32 %v3552, %v3553
    %v3555 = vrot.slane %v3554, 1
    %v3556 = vmax.f32 %v3554, %v3555
    %s3557 = vtos %v3556
    %v3558 = vstv %s3557
    %v3559 = vsub.f32 %v3538, %v3558
    %v3560 = vsub.f32 %v3543, %v3558
    %v3561 = vmul.f32 %v3559, 1.442695
    %v3562 = vpow.pop %v3561
    %v3563 = vmul.f32 %v3560, 1.442695
    %v3564 = vpow.pop %v3563
    %3566 = vset.pattern.permute.xlu0 0
    %3567 = vperm.xlu0 %3566, %v3562
    %v3568 = vpop.permute.xlu0 %3567
    %3571 = vset.pattern.permute.xlu0 0
    %3572 = vperm.xlu0 %3571, %v3564
    %v3573 = vpop.permute.xlu0 %3572
    %v3575 = vmul.f32 %v90, %v3568
    %v3576 = vmul.f32 %v91, %v3573
    %3577 = vmatprep.subr.mxu0 0.0
    %3578 = vmatpush1.msra.mxu0 0.0
    %3579 = vmatprep.subr.mxu0 0.0
    %3580 = vmatpush1.msra.mxu0 0.0
    %3581 = vmatprep.subr.mxu0 0.0
    %3582 = vmatpush1.msra.mxu0 0.0
    %3583 = vmatprep.subr.mxu0 0.0
    %3584 = vmatpush1.msra.mxu0 0.0
    %3585 = vmatprep.subr.mxu0 0.0
    %3586 = vmatpush1.msra.mxu0 0.0
    %3587 = vmatprep.subr.mxu0 0.0
    %3588 = vmatpush1.msra.mxu0 0.0
    %3589 = vmatprep.subr.mxu0 0.0
    %3590 = vmatpush1.msra.mxu0 0.0
    %3591 = vmatprep.subr.mxu0 0.0
    %3592 = vmatpush1.msra.mxu0 0.0
    %3593 = vmatprep.subr.mxu0 0.0
    %3594 = vmatpush1.msra.mxu0 0.0
    %3595 = vmatprep.subr.mxu0 0.0
    %3596 = vmatpush1.msra.mxu0 0.0
    %3597 = vmatprep.subr.mxu0 0.0
    %3598 = vmatpush1.msra.mxu0 0.0
    %3599 = vmatprep.subr.mxu0 0.0
    %3600 = vmatpush1.msra.mxu0 0.0
    %3601 = vmatprep.subr.mxu0 0.0
    %3602 = vmatpush1.msra.mxu0 0.0
    %3603 = vmatprep.subr.mxu0 0.0
    %3604 = vmatpush1.msra.mxu0 0.0
    %3605 = vmatprep.subr.mxu0 0.0
    %3606 = vmatpush1.msra.mxu0 %v3576
    %3607 = vmatprep.subr.mxu0 0.0
    %3608 = vmatpush1.msra.mxu0 %v3575
    %3609 = vmatprep.subr.mxu0 0.0
    %3610 = vmatpush2.msra.mxu0 0.0
    %3611 = vmatprep.subr.mxu0 0.0
    %3612 = vmatpush2.msra.mxu0 0.0
    %3613 = vmatprep.subr.mxu0 0.0
    %3614 = vmatpush2.msra.mxu0 0.0
    %3615 = vmatprep.subr.mxu0 0.0
    %3616 = vmatpush2.msra.mxu0 0.0
    %3617 = vmatprep.subr.mxu0 0.0
    %3618 = vmatpush2.msra.mxu0 0.0
    %3619 = vmatprep.subr.mxu0 0.0
    %3620 = vmatpush2.msra.mxu0 0.0
    %3621 = vmatprep.subr.mxu0 0.0
    %3622 = vmatpush2.msra.mxu0 0.0
    %3623 = vmatprep.subr.mxu0 0.0
    %3624 = vmatpush2.msra.mxu0 0.0
    %3625 = vmatprep.subr.mxu0 0.0
    %3626 = vmatpush2.msra.mxu0 0.0
    %3627 = vmatprep.subr.mxu0 0.0
    %3628 = vmatpush2.msra.mxu0 0.0
    %3629 = vmatprep.subr.mxu0 0.0
    %3630 = vmatpush2.msra.mxu0 0.0
    %3631 = vmatprep.subr.mxu0 0.0
    %3632 = vmatpush2.msra.mxu0 0.0
    %3633 = vmatprep.subr.mxu0 0.0
    %3634 = vmatpush2.msra.mxu0 0.0
    %3635 = vmatprep.subr.mxu0 0.0
    %3636 = vmatpush2.msra.mxu0 0.0
    %3637 = vmatprep.subr.mxu0 0.0
    %3638 = vmatpush2.msra.mxu0 0.0
    %3639 = vmatprep.subr.mxu0 0.0
    %3640 = vmatpush2.msra.mxu0 0.0
    %3641 = vmatprep.mubr.f32.mxu0 0.0
    %3642 = vmatmul.mubr.f32.gmra.mxu0 %v404
    %v3643 = vpop.f32.mrf.mxu0
    %v3644 = vadd.f32 0.0, %v3643
    %v3645 = vpop.f32.mrf.mxu0
    %3646 = vdwg.mxu0
    %3647 = vmatprep.subr.mxu0 0.0
    %3648 = vmatpush1.msra.mxu0 0.0
    %3649 = vmatprep.subr.mxu0 0.0
    %3650 = vmatpush1.msra.mxu0 0.0
    %3651 = vmatprep.subr.mxu0 0.0
    %3652 = vmatpush1.msra.mxu0 0.0
    %3653 = vmatprep.subr.mxu0 0.0
    %3654 = vmatpush1.msra.mxu0 0.0
    %3655 = vmatprep.subr.mxu0 0.0
    %3656 = vmatpush1.msra.mxu0 0.0
    %3657 = vmatprep.subr.mxu0 0.0
    %3658 = vmatpush1.msra.mxu0 0.0
    %3659 = vmatprep.subr.mxu0 0.0
    %3660 = vmatpush1.msra.mxu0 0.0
    %3661 = vmatprep.subr.mxu0 0.0
    %3662 = vmatpush1.msra.mxu0 0.0
    %3663 = vmatprep.subr.mxu0 0.0
    %3664 = vmatpush1.msra.mxu0 0.0
    %3665 = vmatprep.subr.mxu0 0.0
    %3666 = vmatpush1.msra.mxu0 0.0
    %3667 = vmatprep.subr.mxu0 0.0
    %3668 = vmatpush1.msra.mxu0 0.0
    %3669 = vmatprep.subr.mxu0 0.0
    %3670 = vmatpush1.msra.mxu0 0.0
    %3671 = vmatprep.subr.mxu0 0.0
    %3672 = vmatpush1.msra.mxu0 0.0
    %3673 = vmatprep.subr.mxu0 0.0
    %3674 = vmatpush1.msra.mxu0 0.0
    %3675 = vmatprep.subr.mxu0 0.0
    %3676 = vmatpush1.msra.mxu0 %v3564
    %3677 = vmatprep.subr.mxu0 0.0
    %3678 = vmatpush1.msra.mxu0 %v3562
    %3679 = vmatprep.subr.mxu0 0.0
    %3680 = vmatpush2.msra.mxu0 0.0
    %3681 = vmatprep.subr.mxu0 0.0
    %3682 = vmatpush2.msra.mxu0 0.0
    %3683 = vmatprep.subr.mxu0 0.0
    %3684 = vmatpush2.msra.mxu0 0.0
    %3685 = vmatprep.subr.mxu0 0.0
    %3686 = vmatpush2.msra.mxu0 0.0
    %3687 = vmatprep.subr.mxu0 0.0
    %3688 = vmatpush2.msra.mxu0 0.0
    %3689 = vmatprep.subr.mxu0 0.0
    %3690 = vmatpush2.msra.mxu0 0.0
    %3691 = vmatprep.subr.mxu0 0.0
    %3692 = vmatpush2.msra.mxu0 0.0
    %3693 = vmatprep.subr.mxu0 0.0
    %3694 = vmatpush2.msra.mxu0 0.0
    %3695 = vmatprep.subr.mxu0 0.0
    %3696 = vmatpush2.msra.mxu0 0.0
    %3697 = vmatprep.subr.mxu0 0.0
    %3698 = vmatpush2.msra.mxu0 0.0
    %3699 = vmatprep.subr.mxu0 0.0
    %3700 = vmatpush2.msra.mxu0 0.0
    %3701 = vmatprep.subr.mxu0 0.0
    %3702 = vmatpush2.msra.mxu0 0.0
    %3703 = vmatprep.subr.mxu0 0.0
    %3704 = vmatpush2.msra.mxu0 0.0
    %3705 = vmatprep.subr.mxu0 0.0
    %3706 = vmatpush2.msra.mxu0 0.0
    %3707 = vmatprep.subr.mxu0 0.0
    %3708 = vmatpush2.msra.mxu0 0.0
    %3709 = vmatprep.subr.mxu0 0.0
    %3710 = vmatpush2.msra.mxu0 0.0
    %3711 = vmatprep.mubr.f32.mxu0 0.0
    %3712 = vmatmul.mubr.f32.gmra.mxu0 %v404
    %v3713 = vpop.f32.mrf.mxu0
    %v3714 = vadd.f32 0.0, %v3713
    %v3715 = vpop.f32.mrf.mxu0
    %3716 = vdwg.mxu0
    %v3718 = vsel %vm96, %v3644, 0
    %3720 = vmatprep.subr.mxu0 0.0
    %3721 = vmatpush1.msra.mxu0 0.0
    %3722 = vmatprep.subr.mxu0 0.0
    %3723 = vmatpush1.msra.mxu0 0.0
    %3724 = vmatprep.subr.mxu0 0.0
    %3725 = vmatpush1.msra.mxu0 0.0
    %3726 = vmatprep.subr.mxu0 0.0
    %3727 = vmatpush1.msra.mxu0 0.0
    %3728 = vmatprep.subr.mxu0 0.0
    %3729 = vmatpush1.msra.mxu0 0.0
    %3730 = vmatprep.subr.mxu0 0.0
    %3731 = vmatpush1.msra.mxu0 0.0
    %3732 = vmatprep.subr.mxu0 0.0
    %3733 = vmatpush1.msra.mxu0 0.0
    %3734 = vmatprep.subr.mxu0 0.0
    %3735 = vmatpush1.msra.mxu0 0.0
    %3736 = vmatprep.subr.mxu0 0.0
    %3737 = vmatpush1.msra.mxu0 0.0
    %3738 = vmatprep.subr.mxu0 0.0
    %3739 = vmatpush1.msra.mxu0 0.0
    %3740 = vmatprep.subr.mxu0 0.0
    %3741 = vmatpush1.msra.mxu0 0.0
    %3742 = vmatprep.subr.mxu0 0.0
    %3743 = vmatpush1.msra.mxu0 0.0
    %3744 = vmatprep.subr.mxu0 0.0
    %3745 = vmatpush1.msra.mxu0 %v190
    %3746 = vmatprep.subr.mxu0 0.0
    %3747 = vmatpush1.msra.mxu0 %v189
    %3748 = vmatprep.subr.mxu0 0.0
    %3749 = vmatpush1.msra.mxu0 %v188
    %3750 = vmatprep.subr.mxu0 0.0
    %3751 = vmatpush1.msra.mxu0 %v187
    %3752 = vmatprep.subr.mxu0 0.0
    %3753 = vmatpush2.msra.mxu0 0.0
    %3754 = vmatprep.subr.mxu0 0.0
    %3755 = vmatpush2.msra.mxu0 0.0
    %3756 = vmatprep.subr.mxu0 0.0
    %3757 = vmatpush2.msra.mxu0 0.0
    %3758 = vmatprep.subr.mxu0 0.0
    %3759 = vmatpush2.msra.mxu0 0.0
    %3760 = vmatprep.subr.mxu0 0.0
    %3761 = vmatpush2.msra.mxu0 0.0
    %3762 = vmatprep.subr.mxu0 0.0
    %3763 = vmatpush2.msra.mxu0 0.0
    %3764 = vmatprep.subr.mxu0 0.0
    %3765 = vmatpush2.msra.mxu0 0.0
    %3766 = vmatprep.subr.mxu0 0.0
    %3767 = vmatpush2.msra.mxu0 0.0
    %3768 = vmatprep.subr.mxu0 0.0
    %3769 = vmatpush2.msra.mxu0 0.0
    %3770 = vmatprep.subr.mxu0 0.0
    %3771 = vmatpush2.msra.mxu0 0.0
    %3772 = vmatprep.subr.mxu0 0.0
    %3773 = vmatpush2.msra.mxu0 0.0
    %3774 = vmatprep.subr.mxu0 0.0
    %3775 = vmatpush2.msra.mxu0 0.0
    %3776 = vmatprep.subr.mxu0 0.0
    %3777 = vmatpush2.msra.mxu0 0.0
    %3778 = vmatprep.subr.mxu0 0.0
    %3779 = vmatpush2.msra.mxu0 0.0
    %3780 = vmatprep.subr.mxu0 0.0
    %3781 = vmatpush2.msra.mxu0 0.0
    %3782 = vmatprep.subr.mxu0 0.0
    %3783 = vmatpush2.msra.mxu0 0.0
    %3784 = vmatprep.mubr.f32.mxu0 0.0
    %3785 = vmatmul.mubr.f32.gmra.mxu0 %v3718
    %v3786 = vpop.f32.mrf.mxu0
    %v3787 = vadd.f32 0.0, %v3786
    %v3788 = vpop.f32.mrf.mxu0
    %3789 = vdwg.mxu0
    %v3790 = vrcp.pop %v3714
    %3792 = vset.pattern.permute.xlu0 0
    %3793 = vperm.xlu0 %3792, %v3790
    %v3794 = vpop.permute.xlu0 %3793
    %v3796 = vmul.f32 %v3787, %v3794
    %v3797 = vadd.f32 %v3796, %v630
    %3798 = vrot.lane.b32.xlu0 %v3448, 96
    %v3799 = vpop.permute.xlu0 %3798
    %v3801 = vadd.f32 %v3797, %v3799
    %v3802 = vxor.u32 %v3801, 2147483648
    %v3803 = vmul.f32 %v3802, 1.442695
    %v3804 = vpow.pop %v3803
    %v3805 = vadd.f32 %v3804, 1.0
    %v3806 = vrcp.pop %v3805
    %v3807 = vmul.f32 1.0, %v3806
    %3808 = vrot.lane.b32.xlu0 %v3448, 32
    %v3809 = vpop.permute.xlu0 %3808
    %v3811 = vmul.f32 %v3807, %v3809
    %3813 = vrot.lane.b32.xlu0 %v3811, 64
    %v3814 = vpop.permute.xlu0 %3813
    %v3816 = vadd.f32 %v3797, %v3814
    %v3817 = vtanh.pop %v3816
    %v3818 = vsub.f32 1.0, %v3807
    %3820 = vrot.lane.b32.xlu0 %v3817, 96
    %v3821 = vpop.permute.xlu0 %3820
    %v3823 = vmul.f32 %v3818, %v3821
    %v3824 = vmul.f32 %v3807, %v3373
    %v3825 = vadd.f32 %v3823, %v3824
    %3827 = vrot.lane.b32.xlu0 %v3825, 96
    %v3828 = vpop.permute.xlu0 %3827
    %3830 = vst.msk [vmem:[#allocation2 + $0xe] sm:$0x3] %vm665, %v3828
    %v3831 = vsel %vm96, %v3828, 0
    %3833 = vmatprep.subr.mxu0 0.0
    %3834 = vmatpush1.msra.mxu0 0.0
    %3835 = vmatprep.subr.mxu0 0.0
    %3836 = vmatpush1.msra.mxu0 0.0
    %3837 = vmatprep.subr.mxu0 0.0
    %3838 = vmatpush1.msra.mxu0 0.0
    %3839 = vmatprep.subr.mxu0 0.0
    %3840 = vmatpush1.msra.mxu0 0.0
    %3841 = vmatprep.subr.mxu0 0.0
    %3842 = vmatpush1.msra.mxu0 0.0
    %3843 = vmatprep.subr.mxu0 0.0
    %3844 = vmatpush1.msra.mxu0 0.0
    %3845 = vmatprep.subr.mxu0 0.0
    %3846 = vmatpush1.msra.mxu0 0.0
    %3847 = vmatprep.subr.mxu0 0.0
    %3848 = vmatpush1.msra.mxu0 0.0
    %3849 = vmatprep.subr.mxu0 0.0
    %3850 = vmatpush1.msra.mxu0 0.0
    %3851 = vmatprep.subr.mxu0 0.0
    %3852 = vmatpush1.msra.mxu0 0.0
    %3853 = vmatprep.subr.mxu0 0.0
    %3854 = vmatpush1.msra.mxu0 0.0
    %3855 = vmatprep.subr.mxu0 0.0
    %3856 = vmatpush1.msra.mxu0 0.0
    %3857 = vmatprep.subr.mxu0 0.0
    %3858 = vmatpush1.msra.mxu0 %v181
    %3859 = vmatprep.subr.mxu0 0.0
    %3860 = vmatpush1.msra.mxu0 %v180
    %3861 = vmatprep.subr.mxu0 0.0
    %3862 = vmatpush1.msra.mxu0 %v179
    %3863 = vmatprep.subr.mxu0 0.0
    %3864 = vmatpush1.msra.mxu0 %v178
    %3865 = vmatprep.subr.mxu0 0.0
    %3866 = vmatpush2.msra.mxu0 0.0
    %3867 = vmatprep.subr.mxu0 0.0
    %3868 = vmatpush2.msra.mxu0 0.0
    %3869 = vmatprep.subr.mxu0 0.0
    %3870 = vmatpush2.msra.mxu0 0.0
    %3871 = vmatprep.subr.mxu0 0.0
    %3872 = vmatpush2.msra.mxu0 0.0
    %3873 = vmatprep.subr.mxu0 0.0
    %3874 = vmatpush2.msra.mxu0 0.0
    %3875 = vmatprep.subr.mxu0 0.0
    %3876 = vmatpush2.msra.mxu0 0.0
    %3877 = vmatprep.subr.mxu0 0.0
    %3878 = vmatpush2.msra.mxu0 0.0
    %3879 = vmatprep.subr.mxu0 0.0
    %3880 = vmatpush2.msra.mxu0 0.0
    %3881 = vmatprep.subr.mxu0 0.0
    %3882 = vmatpush2.msra.mxu0 0.0
    %3883 = vmatprep.subr.mxu0 0.0
    %3884 = vmatpush2.msra.mxu0 0.0
    %3885 = vmatprep.subr.mxu0 0.0
    %3886 = vmatpush2.msra.mxu0 0.0
    %3887 = vmatprep.subr.mxu0 0.0
    %3888 = vmatpush2.msra.mxu0 0.0
    %3889 = vmatprep.subr.mxu0 0.0
    %3890 = vmatpush2.msra.mxu0 0.0
    %3891 = vmatprep.subr.mxu0 0.0
    %3892 = vmatpush2.msra.mxu0 0.0
    %3893 = vmatprep.subr.mxu0 0.0
    %3894 = vmatpush2.msra.mxu0 0.0
    %3895 = vmatprep.subr.mxu0 0.0
    %3896 = vmatpush2.msra.mxu0 0.0
    %3897 = vmatprep.mubr.f32.mxu0 0.0
    %3898 = vmatmul.mubr.f32.gmra.mxu0 %v3831
    %v3899 = vpop.f32.mrf.mxu0
    %v3900 = vadd.f32 %v197, %v3899
    %v3901 = vpop.f32.mrf.mxu0
    %3902 = vdwg.mxu0
    %v3904 = vrot.slane %v3900, 6
    %v3906 = vrot.slane %v3900, 4
    %v3908 = vrot.slane %v3900, 2
    %v3910 = vsel %vm279, %v3900, %v3904
    %v3911 = vsel %vm281, %v3910, %v3906
    %v3912 = vsel %vm283, %v3911, %v3908
    %v3913 = vadd.f32 %v170, %v3912
    %v3914 = vadd.f32 %v175, %v3912
    %v3915 = vtanh.pop %v3913
    %v3916 = vtanh.pop %v3914
    %v3918 = vsel %vm96, %v3915, 0
    %v3921 = vsel %vm96, %v3916, 0
    %3923 = vmatprep.subr.mxu0 0.0
    %3924 = vmatpush1.msra.mxu0 0.0
    %3925 = vmatprep.subr.mxu0 0.0
    %3926 = vmatpush1.msra.mxu0 0.0
    %3927 = vmatprep.subr.mxu0 0.0
    %3928 = vmatpush1.msra.mxu0 0.0
    %3929 = vmatprep.subr.mxu0 0.0
    %3930 = vmatpush1.msra.mxu0 0.0
    %3931 = vmatprep.subr.mxu0 0.0
    %3932 = vmatpush1.msra.mxu0 0.0
    %3933 = vmatprep.subr.mxu0 0.0
    %3934 = vmatpush1.msra.mxu0 0.0
    %3935 = vmatprep.subr.mxu0 0.0
    %3936 = vmatpush1.msra.mxu0 0.0
    %3937 = vmatprep.subr.mxu0 0.0
    %3938 = vmatpush1.msra.mxu0 0.0
    %3939 = vmatprep.subr.mxu0 0.0
    %3940 = vmatpush1.msra.mxu0 0.0
    %3941 = vmatprep.subr.mxu0 0.0
    %3942 = vmatpush1.msra.mxu0 0.0
    %3943 = vmatprep.subr.mxu0 0.0
    %3944 = vmatpush1.msra.mxu0 0.0
    %3945 = vmatprep.subr.mxu0 0.0
    %3946 = vmatpush1.msra.mxu0 0.0
    %3947 = vmatprep.subr.mxu0 0.0
    %3948 = vmatpush1.msra.mxu0 %v186
    %3949 = vmatprep.subr.mxu0 0.0
    %3950 = vmatpush1.msra.mxu0 %v185
    %3951 = vmatprep.subr.mxu0 0.0
    %3952 = vmatpush1.msra.mxu0 %v184
    %3953 = vmatprep.subr.mxu0 0.0
    %3954 = vmatpush1.msra.mxu0 %v183
    %3955 = vmatprep.subr.mxu0 0.0
    %3956 = vmatpush2.msra.mxu0 0.0
    %3957 = vmatprep.subr.mxu0 0.0
    %3958 = vmatpush2.msra.mxu0 0.0
    %3959 = vmatprep.subr.mxu0 0.0
    %3960 = vmatpush2.msra.mxu0 0.0
    %3961 = vmatprep.subr.mxu0 0.0
    %3962 = vmatpush2.msra.mxu0 0.0
    %3963 = vmatprep.subr.mxu0 0.0
    %3964 = vmatpush2.msra.mxu0 0.0
    %3965 = vmatprep.subr.mxu0 0.0
    %3966 = vmatpush2.msra.mxu0 0.0
    %3967 = vmatprep.subr.mxu0 0.0
    %3968 = vmatpush2.msra.mxu0 0.0
    %3969 = vmatprep.subr.mxu0 0.0
    %3970 = vmatpush2.msra.mxu0 0.0
    %3971 = vmatprep.subr.mxu0 0.0
    %3972 = vmatpush2.msra.mxu0 0.0
    %3973 = vmatprep.subr.mxu0 0.0
    %3974 = vmatpush2.msra.mxu0 0.0
    %3975 = vmatprep.subr.mxu0 0.0
    %3976 = vmatpush2.msra.mxu0 0.0
    %3977 = vmatprep.subr.mxu0 0.0
    %3978 = vmatpush2.msra.mxu0 0.0
    %3979 = vmatprep.subr.mxu0 0.0
    %3980 = vmatpush2.msra.mxu0 0.0
    %3981 = vmatprep.subr.mxu0 0.0
    %3982 = vmatpush2.msra.mxu0 0.0
    %3983 = vmatprep.subr.mxu0 0.0
    %3984 = vmatpush2.msra.mxu0 0.0
    %3985 = vmatprep.subr.mxu0 0.0
    %3986 = vmatpush2.msra.mxu0 0.0
    %3987 = vmatprep.mubr.f32.mxu0 0.0
    %3988 = vmatmul.mubr.f32.gmra.mxu0 %v3918
    %v3989 = vpop.f32.mrf.mxu0
    %v3990 = vadd.f32 0.0, %v3989
    %v3991 = vpop.f32.mrf.mxu0
    %3992 = vmatprep.mubr.f32.mxu0 0.0
    %3993 = vmatmul.mubr.f32.gmra.mxu0 %v3921
    %v3994 = vpop.f32.mrf.mxu0
    %v3995 = vadd.f32 0.0, %v3994
    %v3996 = vpop.f32.mrf.mxu0
    %3997 = vdwg.mxu0
    %v3998 = vsel %vm370, %v3990, -inf
    %v3999 = vsel %vm370, %v3995, -inf
    %v4000 = vmax.f32 %v3998, %v3999
    %4001 = vmax.xlane.f32.xlu0 %v4000
    %v4002 = vpop.xlane.xlu0 %4001
    %v4003 = vrot.slane %v4002, 4
    %v4004 = vmax.f32 %v4002, %v4003
    %v4005 = vrot.slane %v4004, 2
    %v4006 = vmax.f32 %v4004, %v4005
    %v4007 = vrot.slane %v4006, 1
    %v4008 = vmax.f32 %v4006, %v4007
    %s4009 = vtos %v4008
    %v4010 = vstv %s4009
    %v4011 = vsub.f32 %v3990, %v4010
    %v4012 = vsub.f32 %v3995, %v4010
    %v4013 = vmul.f32 %v4011, 1.442695
    %v4014 = vpow.pop %v4013
    %v4015 = vmul.f32 %v4012, 1.442695
    %v4016 = vpow.pop %v4015
    %4018 = vset.pattern.permute.xlu0 0
    %4019 = vperm.xlu0 %4018, %v4014
    %v4020 = vpop.permute.xlu0 %4019
    %4023 = vset.pattern.permute.xlu0 0
    %4024 = vperm.xlu0 %4023, %v4016
    %v4025 = vpop.permute.xlu0 %4024
    %v4027 = vmul.f32 %v90, %v4020
    %v4028 = vmul.f32 %v91, %v4025
    %4029 = vmatprep.subr.mxu0 0.0
    %4030 = vmatpush1.msra.mxu0 0.0
    %4031 = vmatprep.subr.mxu0 0.0
    %4032 = vmatpush1.msra.mxu0 0.0
    %4033 = vmatprep.subr.mxu0 0.0
    %4034 = vmatpush1.msra.mxu0 0.0
    %4035 = vmatprep.subr.mxu0 0.0
    %4036 = vmatpush1.msra.mxu0 0.0
    %4037 = vmatprep.subr.mxu0 0.0
    %4038 = vmatpush1.msra.mxu0 0.0
    %4039 = vmatprep.subr.mxu0 0.0
    %4040 = vmatpush1.msra.mxu0 0.0
    %4041 = vmatprep.subr.mxu0 0.0
    %4042 = vmatpush1.msra.mxu0 0.0
    %4043 = vmatprep.subr.mxu0 0.0
    %4044 = vmatpush1.msra.mxu0 0.0
    %4045 = vmatprep.subr.mxu0 0.0
    %4046 = vmatpush1.msra.mxu0 0.0
    %4047 = vmatprep.subr.mxu0 0.0
    %4048 = vmatpush1.msra.mxu0 0.0
    %4049 = vmatprep.subr.mxu0 0.0
    %4050 = vmatpush1.msra.mxu0 0.0
    %4051 = vmatprep.subr.mxu0 0.0
    %4052 = vmatpush1.msra.mxu0 0.0
    %4053 = vmatprep.subr.mxu0 0.0
    %4054 = vmatpush1.msra.mxu0 0.0
    %4055 = vmatprep.subr.mxu0 0.0
    %4056 = vmatpush1.msra.mxu0 0.0
    %4057 = vmatprep.subr.mxu0 0.0
    %4058 = vmatpush1.msra.mxu0 %v4028
    %4059 = vmatprep.subr.mxu0 0.0
    %4060 = vmatpush1.msra.mxu0 %v4027
    %4061 = vmatprep.subr.mxu0 0.0
    %4062 = vmatpush2.msra.mxu0 0.0
    %4063 = vmatprep.subr.mxu0 0.0
    %4064 = vmatpush2.msra.mxu0 0.0
    %4065 = vmatprep.subr.mxu0 0.0
    %4066 = vmatpush2.msra.mxu0 0.0
    %4067 = vmatprep.subr.mxu0 0.0
    %4068 = vmatpush2.msra.mxu0 0.0
    %4069 = vmatprep.subr.mxu0 0.0
    %4070 = vmatpush2.msra.mxu0 0.0
    %4071 = vmatprep.subr.mxu0 0.0
    %4072 = vmatpush2.msra.mxu0 0.0
    %4073 = vmatprep.subr.mxu0 0.0
    %4074 = vmatpush2.msra.mxu0 0.0
    %4075 = vmatprep.subr.mxu0 0.0
    %4076 = vmatpush2.msra.mxu0 0.0
    %4077 = vmatprep.subr.mxu0 0.0
    %4078 = vmatpush2.msra.mxu0 0.0
    %4079 = vmatprep.subr.mxu0 0.0
    %4080 = vmatpush2.msra.mxu0 0.0
    %4081 = vmatprep.subr.mxu0 0.0
    %4082 = vmatpush2.msra.mxu0 0.0
    %4083 = vmatprep.subr.mxu0 0.0
    %4084 = vmatpush2.msra.mxu0 0.0
    %4085 = vmatprep.subr.mxu0 0.0
    %4086 = vmatpush2.msra.mxu0 0.0
    %4087 = vmatprep.subr.mxu0 0.0
    %4088 = vmatpush2.msra.mxu0 0.0
    %4089 = vmatprep.subr.mxu0 0.0
    %4090 = vmatpush2.msra.mxu0 0.0
    %4091 = vmatprep.subr.mxu0 0.0
    %4092 = vmatpush2.msra.mxu0 0.0
    %4093 = vmatprep.mubr.f32.mxu0 0.0
    %4094 = vmatmul.mubr.f32.gmra.mxu0 %v404
    %v4095 = vpop.f32.mrf.mxu0
    %v4096 = vadd.f32 0.0, %v4095
    %v4097 = vpop.f32.mrf.mxu0
    %4098 = vdwg.mxu0
    %4099 = vmatprep.subr.mxu0 0.0
    %4100 = vmatpush1.msra.mxu0 0.0
    %4101 = vmatprep.subr.mxu0 0.0
    %4102 = vmatpush1.msra.mxu0 0.0
    %4103 = vmatprep.subr.mxu0 0.0
    %4104 = vmatpush1.msra.mxu0 0.0
    %4105 = vmatprep.subr.mxu0 0.0
    %4106 = vmatpush1.msra.mxu0 0.0
    %4107 = vmatprep.subr.mxu0 0.0
    %4108 = vmatpush1.msra.mxu0 0.0
    %4109 = vmatprep.subr.mxu0 0.0
    %4110 = vmatpush1.msra.mxu0 0.0
    %4111 = vmatprep.subr.mxu0 0.0
    %4112 = vmatpush1.msra.mxu0 0.0
    %4113 = vmatprep.subr.mxu0 0.0
    %4114 = vmatpush1.msra.mxu0 0.0
    %4115 = vmatprep.subr.mxu0 0.0
    %4116 = vmatpush1.msra.mxu0 0.0
    %4117 = vmatprep.subr.mxu0 0.0
    %4118 = vmatpush1.msra.mxu0 0.0
    %4119 = vmatprep.subr.mxu0 0.0
    %4120 = vmatpush1.msra.mxu0 0.0
    %4121 = vmatprep.subr.mxu0 0.0
    %4122 = vmatpush1.msra.mxu0 0.0
    %4123 = vmatprep.subr.mxu0 0.0
    %4124 = vmatpush1.msra.mxu0 0.0
    %4125 = vmatprep.subr.mxu0 0.0
    %4126 = vmatpush1.msra.mxu0 0.0
    %4127 = vmatprep.subr.mxu0 0.0
    %4128 = vmatpush1.msra.mxu0 %v4016
    %4129 = vmatprep.subr.mxu0 0.0
    %4130 = vmatpush1.msra.mxu0 %v4014
    %4131 = vmatprep.subr.mxu0 0.0
    %4132 = vmatpush2.msra.mxu0 0.0
    %4133 = vmatprep.subr.mxu0 0.0
    %4134 = vmatpush2.msra.mxu0 0.0
    %4135 = vmatprep.subr.mxu0 0.0
    %4136 = vmatpush2.msra.mxu0 0.0
    %4137 = vmatprep.subr.mxu0 0.0
    %4138 = vmatpush2.msra.mxu0 0.0
    %4139 = vmatprep.subr.mxu0 0.0
    %4140 = vmatpush2.msra.mxu0 0.0
    %4141 = vmatprep.subr.mxu0 0.0
    %4142 = vmatpush2.msra.mxu0 0.0
    %4143 = vmatprep.subr.mxu0 0.0
    %4144 = vmatpush2.msra.mxu0 0.0
    %4145 = vmatprep.subr.mxu0 0.0
    %4146 = vmatpush2.msra.mxu0 0.0
    %4147 = vmatprep.subr.mxu0 0.0
    %4148 = vmatpush2.msra.mxu0 0.0
    %4149 = vmatprep.subr.mxu0 0.0
    %4150 = vmatpush2.msra.mxu0 0.0
    %4151 = vmatprep.subr.mxu0 0.0
    %4152 = vmatpush2.msra.mxu0 0.0
    %4153 = vmatprep.subr.mxu0 0.0
    %4154 = vmatpush2.msra.mxu0 0.0
    %4155 = vmatprep.subr.mxu0 0.0
    %4156 = vmatpush2.msra.mxu0 0.0
    %4157 = vmatprep.subr.mxu0 0.0
    %4158 = vmatpush2.msra.mxu0 0.0
    %4159 = vmatprep.subr.mxu0 0.0
    %4160 = vmatpush2.msra.mxu0 0.0
    %4161 = vmatprep.subr.mxu0 0.0
    %4162 = vmatpush2.msra.mxu0 0.0
    %4163 = vmatprep.mubr.f32.mxu0 0.0
    %4164 = vmatmul.mubr.f32.gmra.mxu0 %v404
    %v4165 = vpop.f32.mrf.mxu0
    %v4166 = vadd.f32 0.0, %v4165
    %v4167 = vpop.f32.mrf.mxu0
    %4168 = vdwg.mxu0
    %v4170 = vsel %vm96, %v4096, 0
    %4172 = vmatprep.subr.mxu0 0.0
    %4173 = vmatpush1.msra.mxu0 0.0
    %4174 = vmatprep.subr.mxu0 0.0
    %4175 = vmatpush1.msra.mxu0 0.0
    %4176 = vmatprep.subr.mxu0 0.0
    %4177 = vmatpush1.msra.mxu0 0.0
    %4178 = vmatprep.subr.mxu0 0.0
    %4179 = vmatpush1.msra.mxu0 0.0
    %4180 = vmatprep.subr.mxu0 0.0
    %4181 = vmatpush1.msra.mxu0 0.0
    %4182 = vmatprep.subr.mxu0 0.0
    %4183 = vmatpush1.msra.mxu0 0.0
    %4184 = vmatprep.subr.mxu0 0.0
    %4185 = vmatpush1.msra.mxu0 0.0
    %4186 = vmatprep.subr.mxu0 0.0
    %4187 = vmatpush1.msra.mxu0 0.0
    %4188 = vmatprep.subr.mxu0 0.0
    %4189 = vmatpush1.msra.mxu0 0.0
    %4190 = vmatprep.subr.mxu0 0.0
    %4191 = vmatpush1.msra.mxu0 0.0
    %4192 = vmatprep.subr.mxu0 0.0
    %4193 = vmatpush1.msra.mxu0 0.0
    %4194 = vmatprep.subr.mxu0 0.0
    %4195 = vmatpush1.msra.mxu0 0.0
    %4196 = vmatprep.subr.mxu0 0.0
    %4197 = vmatpush1.msra.mxu0 %v190
    %4198 = vmatprep.subr.mxu0 0.0
    %4199 = vmatpush1.msra.mxu0 %v189
    %4200 = vmatprep.subr.mxu0 0.0
    %4201 = vmatpush1.msra.mxu0 %v188
    %4202 = vmatprep.subr.mxu0 0.0
    %4203 = vmatpush1.msra.mxu0 %v187
    %4204 = vmatprep.subr.mxu0 0.0
    %4205 = vmatpush2.msra.mxu0 0.0
    %4206 = vmatprep.subr.mxu0 0.0
    %4207 = vmatpush2.msra.mxu0 0.0
    %4208 = vmatprep.subr.mxu0 0.0
    %4209 = vmatpush2.msra.mxu0 0.0
    %4210 = vmatprep.subr.mxu0 0.0
    %4211 = vmatpush2.msra.mxu0 0.0
    %4212 = vmatprep.subr.mxu0 0.0
    %4213 = vmatpush2.msra.mxu0 0.0
    %4214 = vmatprep.subr.mxu0 0.0
    %4215 = vmatpush2.msra.mxu0 0.0
    %4216 = vmatprep.subr.mxu0 0.0
    %4217 = vmatpush2.msra.mxu0 0.0
    %4218 = vmatprep.subr.mxu0 0.0
    %4219 = vmatpush2.msra.mxu0 0.0
    %4220 = vmatprep.subr.mxu0 0.0
    %4221 = vmatpush2.msra.mxu0 0.0
    %4222 = vmatprep.subr.mxu0 0.0
    %4223 = vmatpush2.msra.mxu0 0.0
    %4224 = vmatprep.subr.mxu0 0.0
    %4225 = vmatpush2.msra.mxu0 0.0
    %4226 = vmatprep.subr.mxu0 0.0
    %4227 = vmatpush2.msra.mxu0 0.0
    %4228 = vmatprep.subr.mxu0 0.0
    %4229 = vmatpush2.msra.mxu0 0.0
    %4230 = vmatprep.subr.mxu0 0.0
    %4231 = vmatpush2.msra.mxu0 0.0
    %4232 = vmatprep.subr.mxu0 0.0
    %4233 = vmatpush2.msra.mxu0 0.0
    %4234 = vmatprep.subr.mxu0 0.0
    %4235 = vmatpush2.msra.mxu0 0.0
    %4236 = vmatprep.mubr.f32.mxu0 0.0
    %4237 = vmatmul.mubr.f32.gmra.mxu0 %v4170
    %v4238 = vpop.f32.mrf.mxu0
    %v4239 = vadd.f32 0.0, %v4238
    %v4240 = vpop.f32.mrf.mxu0
    %4241 = vdwg.mxu0
    %v4242 = vrcp.pop %v4166
    %4244 = vset.pattern.permute.xlu0 0
    %4245 = vperm.xlu0 %4244, %v4242
    %v4246 = vpop.permute.xlu0 %4245
    %v4248 = vmul.f32 %v4239, %v4246
    %v4249 = vadd.f32 %v4248, %v630
    %4250 = vrot.lane.b32.xlu0 %v3900, 96
    %v4251 = vpop.permute.xlu0 %4250
    %v4253 = vadd.f32 %v4249, %v4251
    %v4254 = vxor.u32 %v4253, 2147483648
    %v4255 = vmul.f32 %v4254, 1.442695
    %v4256 = vpow.pop %v4255
    %v4257 = vadd.f32 %v4256, 1.0
    %v4258 = vrcp.pop %v4257
    %v4259 = vmul.f32 1.0, %v4258
    %4260 = vrot.lane.b32.xlu0 %v3900, 32
    %v4261 = vpop.permute.xlu0 %4260
    %v4263 = vmul.f32 %v4259, %v4261
    %4265 = vrot.lane.b32.xlu0 %v4263, 64
    %v4266 = vpop.permute.xlu0 %4265
    %v4268 = vadd.f32 %v4249, %v4266
    %v4269 = vtanh.pop %v4268
    %v4270 = vsub.f32 1.0, %v4259
    %4272 = vrot.lane.b32.xlu0 %v4269, 96
    %v4273 = vpop.permute.xlu0 %4272
    %v4275 = vmul.f32 %v4270, %v4273
    %v4276 = vmul.f32 %v4259, %v3825
    %v4277 = vadd.f32 %v4275, %v4276
    %4279 = vrot.lane.b32.xlu0 %v4277, 96
    %v4280 = vpop.permute.xlu0 %4279
    %4282 = vst.msk [vmem:[#allocation2 + $0x10] sm:$0x3] %vm665, %v4280
    %v4283 = vsel %vm96, %v4280, 0
    %4285 = vmatprep.subr.mxu0 0.0
    %4286 = vmatpush1.msra.mxu0 0.0
    %4287 = vmatprep.subr.mxu0 0.0
    %4288 = vmatpush1.msra.mxu0 0.0
    %4289 = vmatprep.subr.mxu0 0.0
    %4290 = vmatpush1.msra.mxu0 0.0
    %4291 = vmatprep.subr.mxu0 0.0
    %4292 = vmatpush1.msra.mxu0 0.0
    %4293 = vmatprep.subr.mxu0 0.0
    %4294 = vmatpush1.msra.mxu0 0.0
    %4295 = vmatprep.subr.mxu0 0.0
    %4296 = vmatpush1.msra.mxu0 0.0
    %4297 = vmatprep.subr.mxu0 0.0
    %4298 = vmatpush1.msra.mxu0 0.0
    %4299 = vmatprep.subr.mxu0 0.0
    %4300 = vmatpush1.msra.mxu0 0.0
    %4301 = vmatprep.subr.mxu0 0.0
    %4302 = vmatpush1.msra.mxu0 0.0
    %4303 = vmatprep.subr.mxu0 0.0
    %4304 = vmatpush1.msra.mxu0 0.0
    %4305 = vmatprep.subr.mxu0 0.0
    %4306 = vmatpush1.msra.mxu0 0.0
    %4307 = vmatprep.subr.mxu0 0.0
    %4308 = vmatpush1.msra.mxu0 0.0
    %4309 = vmatprep.subr.mxu0 0.0
    %4310 = vmatpush1.msra.mxu0 %v181
    %4311 = vmatprep.subr.mxu0 0.0
    %4312 = vmatpush1.msra.mxu0 %v180
    %4313 = vmatprep.subr.mxu0 0.0
    %4314 = vmatpush1.msra.mxu0 %v179
    %4315 = vmatprep.subr.mxu0 0.0
    %4316 = vmatpush1.msra.mxu0 %v178
    %4317 = vmatprep.subr.mxu0 0.0
    %4318 = vmatpush2.msra.mxu0 0.0
    %4319 = vmatprep.subr.mxu0 0.0
    %4320 = vmatpush2.msra.mxu0 0.0
    %4321 = vmatprep.subr.mxu0 0.0
    %4322 = vmatpush2.msra.mxu0 0.0
    %4323 = vmatprep.subr.mxu0 0.0
    %4324 = vmatpush2.msra.mxu0 0.0
    %4325 = vmatprep.subr.mxu0 0.0
    %4326 = vmatpush2.msra.mxu0 0.0
    %4327 = vmatprep.subr.mxu0 0.0
    %4328 = vmatpush2.msra.mxu0 0.0
    %4329 = vmatprep.subr.mxu0 0.0
    %4330 = vmatpush2.msra.mxu0 0.0
    %4331 = vmatprep.subr.mxu0 0.0
    %4332 = vmatpush2.msra.mxu0 0.0
    %4333 = vmatprep.subr.mxu0 0.0
    %4334 = vmatpush2.msra.mxu0 0.0
    %4335 = vmatprep.subr.mxu0 0.0
    %4336 = vmatpush2.msra.mxu0 0.0
    %4337 = vmatprep.subr.mxu0 0.0
    %4338 = vmatpush2.msra.mxu0 0.0
    %4339 = vmatprep.subr.mxu0 0.0
    %4340 = vmatpush2.msra.mxu0 0.0
    %4341 = vmatprep.subr.mxu0 0.0
    %4342 = vmatpush2.msra.mxu0 0.0
    %4343 = vmatprep.subr.mxu0 0.0
    %4344 = vmatpush2.msra.mxu0 0.0
    %4345 = vmatprep.subr.mxu0 0.0
    %4346 = vmatpush2.msra.mxu0 0.0
    %4347 = vmatprep.subr.mxu0 0.0
    %4348 = vmatpush2.msra.mxu0 0.0
    %4349 = vmatprep.mubr.f32.mxu0 0.0
    %4350 = vmatmul.mubr.f32.gmra.mxu0 %v4283
    %v4351 = vpop.f32.mrf.mxu0
    %v4352 = vadd.f32 %v197, %v4351
    %v4353 = vpop.f32.mrf.mxu0
    %4354 = vdwg.mxu0
    %v4356 = vrot.slane %v4352, 6
    %v4358 = vrot.slane %v4352, 4
    %v4360 = vrot.slane %v4352, 2
    %v4362 = vsel %vm279, %v4352, %v4356
    %v4363 = vsel %vm281, %v4362, %v4358
    %v4364 = vsel %vm283, %v4363, %v4360
    %v4365 = vadd.f32 %v170, %v4364
    %v4366 = vadd.f32 %v175, %v4364
    %v4367 = vtanh.pop %v4365
    %v4368 = vtanh.pop %v4366
    %v4370 = vsel %vm96, %v4367, 0
    %v4373 = vsel %vm96, %v4368, 0
    %4375 = vmatprep.subr.mxu0 0.0
    %4376 = vmatpush1.msra.mxu0 0.0
    %4377 = vmatprep.subr.mxu0 0.0
    %4378 = vmatpush1.msra.mxu0 0.0
    %4379 = vmatprep.subr.mxu0 0.0
    %4380 = vmatpush1.msra.mxu0 0.0
    %4381 = vmatprep.subr.mxu0 0.0
    %4382 = vmatpush1.msra.mxu0 0.0
    %4383 = vmatprep.subr.mxu0 0.0
    %4384 = vmatpush1.msra.mxu0 0.0
    %4385 = vmatprep.subr.mxu0 0.0
    %4386 = vmatpush1.msra.mxu0 0.0
    %4387 = vmatprep.subr.mxu0 0.0
    %4388 = vmatpush1.msra.mxu0 0.0
    %4389 = vmatprep.subr.mxu0 0.0
    %4390 = vmatpush1.msra.mxu0 0.0
    %4391 = vmatprep.subr.mxu0 0.0
    %4392 = vmatpush1.msra.mxu0 0.0
    %4393 = vmatprep.subr.mxu0 0.0
    %4394 = vmatpush1.msra.mxu0 0.0
    %4395 = vmatprep.subr.mxu0 0.0
    %4396 = vmatpush1.msra.mxu0 0.0
    %4397 = vmatprep.subr.mxu0 0.0
    %4398 = vmatpush1.msra.mxu0 0.0
    %4399 = vmatprep.subr.mxu0 0.0
    %4400 = vmatpush1.msra.mxu0 %v186
    %4401 = vmatprep.subr.mxu0 0.0
    %4402 = vmatpush1.msra.mxu0 %v185
    %4403 = vmatprep.subr.mxu0 0.0
    %4404 = vmatpush1.msra.mxu0 %v184
    %4405 = vmatprep.subr.mxu0 0.0
    %4406 = vmatpush1.msra.mxu0 %v183
    %4407 = vmatprep.subr.mxu0 0.0
    %4408 = vmatpush2.msra.mxu0 0.0
    %4409 = vmatprep.subr.mxu0 0.0
    %4410 = vmatpush2.msra.mxu0 0.0
    %4411 = vmatprep.subr.mxu0 0.0
    %4412 = vmatpush2.msra.mxu0 0.0
    %4413 = vmatprep.subr.mxu0 0.0
    %4414 = vmatpush2.msra.mxu0 0.0
    %4415 = vmatprep.subr.mxu0 0.0
    %4416 = vmatpush2.msra.mxu0 0.0
    %4417 = vmatprep.subr.mxu0 0.0
    %4418 = vmatpush2.msra.mxu0 0.0
    %4419 = vmatprep.subr.mxu0 0.0
    %4420 = vmatpush2.msra.mxu0 0.0
    %4421 = vmatprep.subr.mxu0 0.0
    %4422 = vmatpush2.msra.mxu0 0.0
    %4423 = vmatprep.subr.mxu0 0.0
    %4424 = vmatpush2.msra.mxu0 0.0
    %4425 = vmatprep.subr.mxu0 0.0
    %4426 = vmatpush2.msra.mxu0 0.0
    %4427 = vmatprep.subr.mxu0 0.0
    %4428 = vmatpush2.msra.mxu0 0.0
    %4429 = vmatprep.subr.mxu0 0.0
    %4430 = vmatpush2.msra.mxu0 0.0
    %4431 = vmatprep.subr.mxu0 0.0
    %4432 = vmatpush2.msra.mxu0 0.0
    %4433 = vmatprep.subr.mxu0 0.0
    %4434 = vmatpush2.msra.mxu0 0.0
    %4435 = vmatprep.subr.mxu0 0.0
    %4436 = vmatpush2.msra.mxu0 0.0
    %4437 = vmatprep.subr.mxu0 0.0
    %4438 = vmatpush2.msra.mxu0 0.0
    %4439 = vmatprep.mubr.f32.mxu0 0.0
    %4440 = vmatmul.mubr.f32.gmra.mxu0 %v4370
    %v4441 = vpop.f32.mrf.mxu0
    %v4442 = vadd.f32 0.0, %v4441
    %v4443 = vpop.f32.mrf.mxu0
    %4444 = vmatprep.mubr.f32.mxu0 0.0
    %4445 = vmatmul.mubr.f32.gmra.mxu0 %v4373
    %v4446 = vpop.f32.mrf.mxu0
    %v4447 = vadd.f32 0.0, %v4446
    %v4448 = vpop.f32.mrf.mxu0
    %4449 = vdwg.mxu0
    %v4450 = vsel %vm370, %v4442, -inf
    %v4451 = vsel %vm370, %v4447, -inf
    %v4452 = vmax.f32 %v4450, %v4451
    %4453 = vmax.xlane.f32.xlu0 %v4452
    %v4454 = vpop.xlane.xlu0 %4453
    %v4455 = vrot.slane %v4454, 4
    %v4456 = vmax.f32 %v4454, %v4455
    %v4457 = vrot.slane %v4456, 2
    %v4458 = vmax.f32 %v4456, %v4457
    %v4459 = vrot.slane %v4458, 1
    %v4460 = vmax.f32 %v4458, %v4459
    %s4461 = vtos %v4460
    %v4462 = vstv %s4461
    %v4463 = vsub.f32 %v4442, %v4462
    %v4464 = vsub.f32 %v4447, %v4462
    %v4465 = vmul.f32 %v4463, 1.442695
    %v4466 = vpow.pop %v4465
    %v4467 = vmul.f32 %v4464, 1.442695
    %v4468 = vpow.pop %v4467
    %4470 = vset.pattern.permute.xlu0 0
    %4471 = vperm.xlu0 %4470, %v4466
    %v4472 = vpop.permute.xlu0 %4471
    %4475 = vset.pattern.permute.xlu0 0
    %4476 = vperm.xlu0 %4475, %v4468
    %v4477 = vpop.permute.xlu0 %4476
    %v4479 = vmul.f32 %v90, %v4472
    %v4480 = vmul.f32 %v91, %v4477
    %4481 = vmatprep.subr.mxu0 0.0
    %4482 = vmatpush1.msra.mxu0 0.0
    %4483 = vmatprep.subr.mxu0 0.0
    %4484 = vmatpush1.msra.mxu0 0.0
    %4485 = vmatprep.subr.mxu0 0.0
    %4486 = vmatpush1.msra.mxu0 0.0
    %4487 = vmatprep.subr.mxu0 0.0
    %4488 = vmatpush1.msra.mxu0 0.0
    %4489 = vmatprep.subr.mxu0 0.0
    %4490 = vmatpush1.msra.mxu0 0.0
    %4491 = vmatprep.subr.mxu0 0.0
    %4492 = vmatpush1.msra.mxu0 0.0
    %4493 = vmatprep.subr.mxu0 0.0
    %4494 = vmatpush1.msra.mxu0 0.0
    %4495 = vmatprep.subr.mxu0 0.0
    %4496 = vmatpush1.msra.mxu0 0.0
    %4497 = vmatprep.subr.mxu0 0.0
    %4498 = vmatpush1.msra.mxu0 0.0
    %4499 = vmatprep.subr.mxu0 0.0
    %4500 = vmatpush1.msra.mxu0 0.0
    %4501 = vmatprep.subr.mxu0 0.0
    %4502 = vmatpush1.msra.mxu0 0.0
    %4503 = vmatprep.subr.mxu0 0.0
    %4504 = vmatpush1.msra.mxu0 0.0
    %4505 = vmatprep.subr.mxu0 0.0
    %4506 = vmatpush1.msra.mxu0 0.0
    %4507 = vmatprep.subr.mxu0 0.0
    %4508 = vmatpush1.msra.mxu0 0.0
    %4509 = vmatprep.subr.mxu0 0.0
    %4510 = vmatpush1.msra.mxu0 %v4480
    %4511 = vmatprep.subr.mxu0 0.0
    %4512 = vmatpush1.msra.mxu0 %v4479
    %4513 = vmatprep.subr.mxu0 0.0
    %4514 = vmatpush2.msra.mxu0 0.0
    %4515 = vmatprep.subr.mxu0 0.0
    %4516 = vmatpush2.msra.mxu0 0.0
    %4517 = vmatprep.subr.mxu0 0.0
    %4518 = vmatpush2.msra.mxu0 0.0
    %4519 = vmatprep.subr.mxu0 0.0
    %4520 = vmatpush2.msra.mxu0 0.0
    %4521 = vmatprep.subr.mxu0 0.0
    %4522 = vmatpush2.msra.mxu0 0.0
    %4523 = vmatprep.subr.mxu0 0.0
    %4524 = vmatpush2.msra.mxu0 0.0
    %4525 = vmatprep.subr.mxu0 0.0
    %4526 = vmatpush2.msra.mxu0 0.0
    %4527 = vmatprep.subr.mxu0 0.0
    %4528 = vmatpush2.msra.mxu0 0.0
    %4529 = vmatprep.subr.mxu0 0.0
    %4530 = vmatpush2.msra.mxu0 0.0
    %4531 = vmatprep.subr.mxu0 0.0
    %4532 = vmatpush2.msra.mxu0 0.0
    %4533 = vmatprep.subr.mxu0 0.0
    %4534 = vmatpush2.msra.mxu0 0.0
    %4535 = vmatprep.subr.mxu0 0.0
    %4536 = vmatpush2.msra.mxu0 0.0
    %4537 = vmatprep.subr.mxu0 0.0
    %4538 = vmatpush2.msra.mxu0 0.0
    %4539 = vmatprep.subr.mxu0 0.0
    %4540 = vmatpush2.msra.mxu0 0.0
    %4541 = vmatprep.subr.mxu0 0.0
    %4542 = vmatpush2.msra.mxu0 0.0
    %4543 = vmatprep.subr.mxu0 0.0
    %4544 = vmatpush2.msra.mxu0 0.0
    %4545 = vmatprep.mubr.f32.mxu0 0.0
    %4546 = vmatmul.mubr.f32.gmra.mxu0 %v404
    %v4547 = vpop.f32.mrf.mxu0
    %v4548 = vadd.f32 0.0, %v4547
    %v4549 = vpop.f32.mrf.mxu0
    %4550 = vdwg.mxu0
    %4551 = vmatprep.subr.mxu0 0.0
    %4552 = vmatpush1.msra.mxu0 0.0
    %4553 = vmatprep.subr.mxu0 0.0
    %4554 = vmatpush1.msra.mxu0 0.0
    %4555 = vmatprep.subr.mxu0 0.0
    %4556 = vmatpush1.msra.mxu0 0.0
    %4557 = vmatprep.subr.mxu0 0.0
    %4558 = vmatpush1.msra.mxu0 0.0
    %4559 = vmatprep.subr.mxu0 0.0
    %4560 = vmatpush1.msra.mxu0 0.0
    %4561 = vmatprep.subr.mxu0 0.0
    %4562 = vmatpush1.msra.mxu0 0.0
    %4563 = vmatprep.subr.mxu0 0.0
    %4564 = vmatpush1.msra.mxu0 0.0
    %4565 = vmatprep.subr.mxu0 0.0
    %4566 = vmatpush1.msra.mxu0 0.0
    %4567 = vmatprep.subr.mxu0 0.0
    %4568 = vmatpush1.msra.mxu0 0.0
    %4569 = vmatprep.subr.mxu0 0.0
    %4570 = vmatpush1.msra.mxu0 0.0
    %4571 = vmatprep.subr.mxu0 0.0
    %4572 = vmatpush1.msra.mxu0 0.0
    %4573 = vmatprep.subr.mxu0 0.0
    %4574 = vmatpush1.msra.mxu0 0.0
    %4575 = vmatprep.subr.mxu0 0.0
    %4576 = vmatpush1.msra.mxu0 0.0
    %4577 = vmatprep.subr.mxu0 0.0
    %4578 = vmatpush1.msra.mxu0 0.0
    %4579 = vmatprep.subr.mxu0 0.0
    %4580 = vmatpush1.msra.mxu0 %v4468
    %4581 = vmatprep.subr.mxu0 0.0
    %4582 = vmatpush1.msra.mxu0 %v4466
    %4583 = vmatprep.subr.mxu0 0.0
    %4584 = vmatpush2.msra.mxu0 0.0
    %4585 = vmatprep.subr.mxu0 0.0
    %4586 = vmatpush2.msra.mxu0 0.0
    %4587 = vmatprep.subr.mxu0 0.0
    %4588 = vmatpush2.msra.mxu0 0.0
    %4589 = vmatprep.subr.mxu0 0.0
    %4590 = vmatpush2.msra.mxu0 0.0
    %4591 = vmatprep.subr.mxu0 0.0
    %4592 = vmatpush2.msra.mxu0 0.0
    %4593 = vmatprep.subr.mxu0 0.0
    %4594 = vmatpush2.msra.mxu0 0.0
    %4595 = vmatprep.subr.mxu0 0.0
    %4596 = vmatpush2.msra.mxu0 0.0
    %4597 = vmatprep.subr.mxu0 0.0
    %4598 = vmatpush2.msra.mxu0 0.0
    %4599 = vmatprep.subr.mxu0 0.0
    %4600 = vmatpush2.msra.mxu0 0.0
    %4601 = vmatprep.subr.mxu0 0.0
    %4602 = vmatpush2.msra.mxu0 0.0
    %4603 = vmatprep.subr.mxu0 0.0
    %4604 = vmatpush2.msra.mxu0 0.0
    %4605 = vmatprep.subr.mxu0 0.0
    %4606 = vmatpush2.msra.mxu0 0.0
    %4607 = vmatprep.subr.mxu0 0.0
    %4608 = vmatpush2.msra.mxu0 0.0
    %4609 = vmatprep.subr.mxu0 0.0
    %4610 = vmatpush2.msra.mxu0 0.0
    %4611 = vmatprep.subr.mxu0 0.0
    %4612 = vmatpush2.msra.mxu0 0.0
    %4613 = vmatprep.subr.mxu0 0.0
    %4614 = vmatpush2.msra.mxu0 0.0
    %4615 = vmatprep.mubr.f32.mxu0 0.0
    %4616 = vmatmul.mubr.f32.gmra.mxu0 %v404
    %v4617 = vpop.f32.mrf.mxu0
    %v4618 = vadd.f32 0.0, %v4617
    %v4619 = vpop.f32.mrf.mxu0
    %4620 = vdwg.mxu0
    %v4622 = vsel %vm96, %v4548, 0
    %4624 = vmatprep.subr.mxu0 0.0
    %4625 = vmatpush1.msra.mxu0 0.0
    %4626 = vmatprep.subr.mxu0 0.0
    %4627 = vmatpush1.msra.mxu0 0.0
    %4628 = vmatprep.subr.mxu0 0.0
    %4629 = vmatpush1.msra.mxu0 0.0
    %4630 = vmatprep.subr.mxu0 0.0
    %4631 = vmatpush1.msra.mxu0 0.0
    %4632 = vmatprep.subr.mxu0 0.0
    %4633 = vmatpush1.msra.mxu0 0.0
    %4634 = vmatprep.subr.mxu0 0.0
    %4635 = vmatpush1.msra.mxu0 0.0
    %4636 = vmatprep.subr.mxu0 0.0
    %4637 = vmatpush1.msra.mxu0 0.0
    %4638 = vmatprep.subr.mxu0 0.0
    %4639 = vmatpush1.msra.mxu0 0.0
    %4640 = vmatprep.subr.mxu0 0.0
    %4641 = vmatpush1.msra.mxu0 0.0
    %4642 = vmatprep.subr.mxu0 0.0
    %4643 = vmatpush1.msra.mxu0 0.0
    %4644 = vmatprep.subr.mxu0 0.0
    %4645 = vmatpush1.msra.mxu0 0.0
    %4646 = vmatprep.subr.mxu0 0.0
    %4647 = vmatpush1.msra.mxu0 0.0
    %4648 = vmatprep.subr.mxu0 0.0
    %4649 = vmatpush1.msra.mxu0 %v190
    %4650 = vmatprep.subr.mxu0 0.0
    %4651 = vmatpush1.msra.mxu0 %v189
    %4652 = vmatprep.subr.mxu0 0.0
    %4653 = vmatpush1.msra.mxu0 %v188
    %4654 = vmatprep.subr.mxu0 0.0
    %4655 = vmatpush1.msra.mxu0 %v187
    %4656 = vmatprep.subr.mxu0 0.0
    %4657 = vmatpush2.msra.mxu0 0.0
    %4658 = vmatprep.subr.mxu0 0.0
    %4659 = vmatpush2.msra.mxu0 0.0
    %4660 = vmatprep.subr.mxu0 0.0
    %4661 = vmatpush2.msra.mxu0 0.0
    %4662 = vmatprep.subr.mxu0 0.0
    %4663 = vmatpush2.msra.mxu0 0.0
    %4664 = vmatprep.subr.mxu0 0.0
    %4665 = vmatpush2.msra.mxu0 0.0
    %4666 = vmatprep.subr.mxu0 0.0
    %4667 = vmatpush2.msra.mxu0 0.0
    %4668 = vmatprep.subr.mxu0 0.0
    %4669 = vmatpush2.msra.mxu0 0.0
    %4670 = vmatprep.subr.mxu0 0.0
    %4671 = vmatpush2.msra.mxu0 0.0
    %4672 = vmatprep.subr.mxu0 0.0
    %4673 = vmatpush2.msra.mxu0 0.0
    %4674 = vmatprep.subr.mxu0 0.0
    %4675 = vmatpush2.msra.mxu0 0.0
    %4676 = vmatprep.subr.mxu0 0.0
    %4677 = vmatpush2.msra.mxu0 0.0
    %4678 = vmatprep.subr.mxu0 0.0
    %4679 = vmatpush2.msra.mxu0 0.0
    %4680 = vmatprep.subr.mxu0 0.0
    %4681 = vmatpush2.msra.mxu0 0.0
    %4682 = vmatprep.subr.mxu0 0.0
    %4683 = vmatpush2.msra.mxu0 0.0
    %4684 = vmatprep.subr.mxu0 0.0
    %4685 = vmatpush2.msra.mxu0 0.0
    %4686 = vmatprep.subr.mxu0 0.0
    %4687 = vmatpush2.msra.mxu0 0.0
    %4688 = vmatprep.mubr.f32.mxu0 0.0
    %4689 = vmatmul.mubr.f32.gmra.mxu0 %v4622
    %v4690 = vpop.f32.mrf.mxu0
    %v4691 = vadd.f32 0.0, %v4690
    %v4692 = vpop.f32.mrf.mxu0
    %4693 = vdwg.mxu0
    %v4694 = vrcp.pop %v4618
    %4696 = vset.pattern.permute.xlu0 0
    %4697 = vperm.xlu0 %4696, %v4694
    %v4698 = vpop.permute.xlu0 %4697
    %v4700 = vmul.f32 %v4691, %v4698
    %v4701 = vadd.f32 %v4700, %v630
    %4702 = vrot.lane.b32.xlu0 %v4352, 96
    %v4703 = vpop.permute.xlu0 %4702
    %v4705 = vadd.f32 %v4701, %v4703
    %v4706 = vxor.u32 %v4705, 2147483648
    %v4707 = vmul.f32 %v4706, 1.442695
    %v4708 = vpow.pop %v4707
    %v4709 = vadd.f32 %v4708, 1.0
    %v4710 = vrcp.pop %v4709
    %v4711 = vmul.f32 1.0, %v4710
    %4712 = vrot.lane.b32.xlu0 %v4352, 32
    %v4713 = vpop.permute.xlu0 %4712
    %v4715 = vmul.f32 %v4711, %v4713
    %4717 = vrot.lane.b32.xlu0 %v4715, 64
    %v4718 = vpop.permute.xlu0 %4717
    %v4720 = vadd.f32 %v4701, %v4718
    %v4721 = vtanh.pop %v4720
    %v4722 = vsub.f32 1.0, %v4711
    %4724 = vrot.lane.b32.xlu0 %v4721, 96
    %v4725 = vpop.permute.xlu0 %4724
    %v4727 = vmul.f32 %v4722, %v4725
    %v4728 = vmul.f32 %v4711, %v4277
    %v4729 = vadd.f32 %v4727, %v4728
    %4731 = vrot.lane.b32.xlu0 %v4729, 96
    %v4732 = vpop.permute.xlu0 %4731
    %4734 = vst.msk [vmem:[#allocation2 + $0x12] sm:$0x3] %vm665, %v4732
    %v4735 = vsel %vm96, %v4732, 0
    %4737 = vmatprep.subr.mxu0 0.0
    %4738 = vmatpush1.msra.mxu0 0.0
    %4739 = vmatprep.subr.mxu0 0.0
    %4740 = vmatpush1.msra.mxu0 0.0
    %4741 = vmatprep.subr.mxu0 0.0
    %4742 = vmatpush1.msra.mxu0 0.0
    %4743 = vmatprep.subr.mxu0 0.0
    %4744 = vmatpush1.msra.mxu0 0.0
    %4745 = vmatprep.subr.mxu0 0.0
    %4746 = vmatpush1.msra.mxu0 0.0
    %4747 = vmatprep.subr.mxu0 0.0
    %4748 = vmatpush1.msra.mxu0 0.0
    %4749 = vmatprep.subr.mxu0 0.0
    %4750 = vmatpush1.msra.mxu0 0.0
    %4751 = vmatprep.subr.mxu0 0.0
    %4752 = vmatpush1.msra.mxu0 0.0
    %4753 = vmatprep.subr.mxu0 0.0
    %4754 = vmatpush1.msra.mxu0 0.0
    %4755 = vmatprep.subr.mxu0 0.0
    %4756 = vmatpush1.msra.mxu0 0.0
    %4757 = vmatprep.subr.mxu0 0.0
    %4758 = vmatpush1.msra.mxu0 0.0
    %4759 = vmatprep.subr.mxu0 0.0
    %4760 = vmatpush1.msra.mxu0 0.0
    %4761 = vmatprep.subr.mxu0 0.0
    %4762 = vmatpush1.msra.mxu0 %v181
    %4763 = vmatprep.subr.mxu0 0.0
    %4764 = vmatpush1.msra.mxu0 %v180
    %4765 = vmatprep.subr.mxu0 0.0
    %4766 = vmatpush1.msra.mxu0 %v179
    %4767 = vmatprep.subr.mxu0 0.0
    %4768 = vmatpush1.msra.mxu0 %v178
    %4769 = vmatprep.subr.mxu0 0.0
    %4770 = vmatpush2.msra.mxu0 0.0
    %4771 = vmatprep.subr.mxu0 0.0
    %4772 = vmatpush2.msra.mxu0 0.0
    %4773 = vmatprep.subr.mxu0 0.0
    %4774 = vmatpush2.msra.mxu0 0.0
    %4775 = vmatprep.subr.mxu0 0.0
    %4776 = vmatpush2.msra.mxu0 0.0
    %4777 = vmatprep.subr.mxu0 0.0
    %4778 = vmatpush2.msra.mxu0 0.0
    %4779 = vmatprep.subr.mxu0 0.0
    %4780 = vmatpush2.msra.mxu0 0.0
    %4781 = vmatprep.subr.mxu0 0.0
    %4782 = vmatpush2.msra.mxu0 0.0
    %4783 = vmatprep.subr.mxu0 0.0
    %4784 = vmatpush2.msra.mxu0 0.0
    %4785 = vmatprep.subr.mxu0 0.0
    %4786 = vmatpush2.msra.mxu0 0.0
    %4787 = vmatprep.subr.mxu0 0.0
    %4788 = vmatpush2.msra.mxu0 0.0
    %4789 = vmatprep.subr.mxu0 0.0
    %4790 = vmatpush2.msra.mxu0 0.0
    %4791 = vmatprep.subr.mxu0 0.0
    %4792 = vmatpush2.msra.mxu0 0.0
    %4793 = vmatprep.subr.mxu0 0.0
    %4794 = vmatpush2.msra.mxu0 0.0
    %4795 = vmatprep.subr.mxu0 0.0
    %4796 = vmatpush2.msra.mxu0 0.0
    %4797 = vmatprep.subr.mxu0 0.0
    %4798 = vmatpush2.msra.mxu0 0.0
    %4799 = vmatprep.subr.mxu0 0.0
    %4800 = vmatpush2.msra.mxu0 0.0
    %4801 = vmatprep.mubr.f32.mxu0 0.0
    %4802 = vmatmul.mubr.f32.gmra.mxu0 %v4735
    %v4803 = vpop.f32.mrf.mxu0
    %v4804 = vadd.f32 %v197, %v4803
    %v4805 = vpop.f32.mrf.mxu0
    %4806 = vdwg.mxu0
    %v4808 = vrot.slane %v4804, 6
    %v4810 = vrot.slane %v4804, 4
    %v4812 = vrot.slane %v4804, 2
    %v4814 = vsel %vm279, %v4804, %v4808
    %v4815 = vsel %vm281, %v4814, %v4810
    %v4816 = vsel %vm283, %v4815, %v4812
    %v4817 = vadd.f32 %v170, %v4816
    %v4818 = vadd.f32 %v175, %v4816
    %v4819 = vtanh.pop %v4817
    %v4820 = vtanh.pop %v4818
    %v4822 = vsel %vm96, %v4819, 0
    %v4825 = vsel %vm96, %v4820, 0
    %4827 = vmatprep.subr.mxu0 0.0
    %4828 = vmatpush1.msra.mxu0 0.0
    %4829 = vmatprep.subr.mxu0 0.0
    %4830 = vmatpush1.msra.mxu0 0.0
    %4831 = vmatprep.subr.mxu0 0.0
    %4832 = vmatpush1.msra.mxu0 0.0
    %4833 = vmatprep.subr.mxu0 0.0
    %4834 = vmatpush1.msra.mxu0 0.0
    %4835 = vmatprep.subr.mxu0 0.0
    %4836 = vmatpush1.msra.mxu0 0.0
    %4837 = vmatprep.subr.mxu0 0.0
    %4838 = vmatpush1.msra.mxu0 0.0
    %4839 = vmatprep.subr.mxu0 0.0
    %4840 = vmatpush1.msra.mxu0 0.0
    %4841 = vmatprep.subr.mxu0 0.0
    %4842 = vmatpush1.msra.mxu0 0.0
    %4843 = vmatprep.subr.mxu0 0.0
    %4844 = vmatpush1.msra.mxu0 0.0
    %4845 = vmatprep.subr.mxu0 0.0
    %4846 = vmatpush1.msra.mxu0 0.0
    %4847 = vmatprep.subr.mxu0 0.0
    %4848 = vmatpush1.msra.mxu0 0.0
    %4849 = vmatprep.subr.mxu0 0.0
    %4850 = vmatpush1.msra.mxu0 0.0
    %4851 = vmatprep.subr.mxu0 0.0
    %4852 = vmatpush1.msra.mxu0 %v186
    %4853 = vmatprep.subr.mxu0 0.0
    %4854 = vmatpush1.msra.mxu0 %v185
    %4855 = vmatprep.subr.mxu0 0.0
    %4856 = vmatpush1.msra.mxu0 %v184
    %4857 = vmatprep.subr.mxu0 0.0
    %4858 = vmatpush1.msra.mxu0 %v183
    %4859 = vmatprep.subr.mxu0 0.0
    %4860 = vmatpush2.msra.mxu0 0.0
    %4861 = vmatprep.subr.mxu0 0.0
    %4862 = vmatpush2.msra.mxu0 0.0
    %4863 = vmatprep.subr.mxu0 0.0
    %4864 = vmatpush2.msra.mxu0 0.0
    %4865 = vmatprep.subr.mxu0 0.0
    %4866 = vmatpush2.msra.mxu0 0.0
    %4867 = vmatprep.subr.mxu0 0.0
    %4868 = vmatpush2.msra.mxu0 0.0
    %4869 = vmatprep.subr.mxu0 0.0
    %4870 = vmatpush2.msra.mxu0 0.0
    %4871 = vmatprep.subr.mxu0 0.0
    %4872 = vmatpush2.msra.mxu0 0.0
    %4873 = vmatprep.subr.mxu0 0.0
    %4874 = vmatpush2.msra.mxu0 0.0
    %4875 = vmatprep.subr.mxu0 0.0
    %4876 = vmatpush2.msra.mxu0 0.0
    %4877 = vmatprep.subr.mxu0 0.0
    %4878 = vmatpush2.msra.mxu0 0.0
    %4879 = vmatprep.subr.mxu0 0.0
    %4880 = vmatpush2.msra.mxu0 0.0
    %4881 = vmatprep.subr.mxu0 0.0
    %4882 = vmatpush2.msra.mxu0 0.0
    %4883 = vmatprep.subr.mxu0 0.0
    %4884 = vmatpush2.msra.mxu0 0.0
    %4885 = vmatprep.subr.mxu0 0.0
    %4886 = vmatpush2.msra.mxu0 0.0
    %4887 = vmatprep.subr.mxu0 0.0
    %4888 = vmatpush2.msra.mxu0 0.0
    %4889 = vmatprep.subr.mxu0 0.0
    %4890 = vmatpush2.msra.mxu0 0.0
    %4891 = vmatprep.mubr.f32.mxu0 0.0
    %4892 = vmatmul.mubr.f32.gmra.mxu0 %v4822
    %v4893 = vpop.f32.mrf.mxu0
    %v4894 = vadd.f32 0.0, %v4893
    %v4895 = vpop.f32.mrf.mxu0
    %4896 = vmatprep.mubr.f32.mxu0 0.0
    %4897 = vmatmul.mubr.f32.gmra.mxu0 %v4825
    %v4898 = vpop.f32.mrf.mxu0
    %v4899 = vadd.f32 0.0, %v4898
    %v4900 = vpop.f32.mrf.mxu0
    %4901 = vdwg.mxu0
    %v4902 = vsel %vm370, %v4894, -inf
    %v4903 = vsel %vm370, %v4899, -inf
    %v4904 = vmax.f32 %v4902, %v4903
    %4905 = vmax.xlane.f32.xlu0 %v4904
    %v4906 = vpop.xlane.xlu0 %4905
    %v4907 = vrot.slane %v4906, 4
    %v4908 = vmax.f32 %v4906, %v4907
    %v4909 = vrot.slane %v4908, 2
    %v4910 = vmax.f32 %v4908, %v4909
    %v4911 = vrot.slane %v4910, 1
    %v4912 = vmax.f32 %v4910, %v4911
    %s4913 = vtos %v4912
    %v4914 = vstv %s4913
    %v4915 = vsub.f32 %v4894, %v4914
    %v4916 = vsub.f32 %v4899, %v4914
    %v4917 = vmul.f32 %v4915, 1.442695
    %v4918 = vpow.pop %v4917
    %v4919 = vmul.f32 %v4916, 1.442695
    %v4920 = vpow.pop %v4919
    %4922 = vset.pattern.permute.xlu0 0
    %4923 = vperm.xlu0 %4922, %v4918
    %v4924 = vpop.permute.xlu0 %4923
    %4927 = vset.pattern.permute.xlu0 0
    %4928 = vperm.xlu0 %4927, %v4920
    %v4929 = vpop.permute.xlu0 %4928
    %v4931 = vmul.f32 %v90, %v4924
    %v4932 = vmul.f32 %v91, %v4929
    %4933 = vmatprep.subr.mxu0 0.0
    %4934 = vmatpush1.msra.mxu0 0.0
    %4935 = vmatprep.subr.mxu0 0.0
    %4936 = vmatpush1.msra.mxu0 0.0
    %4937 = vmatprep.subr.mxu0 0.0
    %4938 = vmatpush1.msra.mxu0 0.0
    %4939 = vmatprep.subr.mxu0 0.0
    %4940 = vmatpush1.msra.mxu0 0.0
    %4941 = vmatprep.subr.mxu0 0.0
    %4942 = vmatpush1.msra.mxu0 0.0
    %4943 = vmatprep.subr.mxu0 0.0
    %4944 = vmatpush1.msra.mxu0 0.0
    %4945 = vmatprep.subr.mxu0 0.0
    %4946 = vmatpush1.msra.mxu0 0.0
    %4947 = vmatprep.subr.mxu0 0.0
    %4948 = vmatpush1.msra.mxu0 0.0
    %4949 = vmatprep.subr.mxu0 0.0
    %4950 = vmatpush1.msra.mxu0 0.0
    %4951 = vmatprep.subr.mxu0 0.0
    %4952 = vmatpush1.msra.mxu0 0.0
    %4953 = vmatprep.subr.mxu0 0.0
    %4954 = vmatpush1.msra.mxu0 0.0
    %4955 = vmatprep.subr.mxu0 0.0
    %4956 = vmatpush1.msra.mxu0 0.0
    %4957 = vmatprep.subr.mxu0 0.0
    %4958 = vmatpush1.msra.mxu0 0.0
    %4959 = vmatprep.subr.mxu0 0.0
    %4960 = vmatpush1.msra.mxu0 0.0
    %4961 = vmatprep.subr.mxu0 0.0
    %4962 = vmatpush1.msra.mxu0 %v4932
    %4963 = vmatprep.subr.mxu0 0.0
    %4964 = vmatpush1.msra.mxu0 %v4931
    %4965 = vmatprep.subr.mxu0 0.0
    %4966 = vmatpush2.msra.mxu0 0.0
    %4967 = vmatprep.subr.mxu0 0.0
    %4968 = vmatpush2.msra.mxu0 0.0
    %4969 = vmatprep.subr.mxu0 0.0
    %4970 = vmatpush2.msra.mxu0 0.0
    %4971 = vmatprep.subr.mxu0 0.0
    %4972 = vmatpush2.msra.mxu0 0.0
    %4973 = vmatprep.subr.mxu0 0.0
    %4974 = vmatpush2.msra.mxu0 0.0
    %4975 = vmatprep.subr.mxu0 0.0
    %4976 = vmatpush2.msra.mxu0 0.0
    %4977 = vmatprep.subr.mxu0 0.0
    %4978 = vmatpush2.msra.mxu0 0.0
    %4979 = vmatprep.subr.mxu0 0.0
    %4980 = vmatpush2.msra.mxu0 0.0
    %4981 = vmatprep.subr.mxu0 0.0
    %4982 = vmatpush2.msra.mxu0 0.0
    %4983 = vmatprep.subr.mxu0 0.0
    %4984 = vmatpush2.msra.mxu0 0.0
    %4985 = vmatprep.subr.mxu0 0.0
    %4986 = vmatpush2.msra.mxu0 0.0
    %4987 = vmatprep.subr.mxu0 0.0
    %4988 = vmatpush2.msra.mxu0 0.0
    %4989 = vmatprep.subr.mxu0 0.0
    %4990 = vmatpush2.msra.mxu0 0.0
    %4991 = vmatprep.subr.mxu0 0.0
    %4992 = vmatpush2.msra.mxu0 0.0
    %4993 = vmatprep.subr.mxu0 0.0
    %4994 = vmatpush2.msra.mxu0 0.0
    %4995 = vmatprep.subr.mxu0 0.0
    %4996 = vmatpush2.msra.mxu0 0.0
    %4997 = vmatprep.mubr.f32.mxu0 0.0
    %4998 = vmatmul.mubr.f32.gmra.mxu0 %v404
    %v4999 = vpop.f32.mrf.mxu0
    %v5000 = vadd.f32 0.0, %v4999
    %v5001 = vpop.f32.mrf.mxu0
    %5002 = vdwg.mxu0
    %5003 = vmatprep.subr.mxu0 0.0
    %5004 = vmatpush1.msra.mxu0 0.0
    %5005 = vmatprep.subr.mxu0 0.0
    %5006 = vmatpush1.msra.mxu0 0.0
    %5007 = vmatprep.subr.mxu0 0.0
    %5008 = vmatpush1.msra.mxu0 0.0
    %5009 = vmatprep.subr.mxu0 0.0
    %5010 = vmatpush1.msra.mxu0 0.0
    %5011 = vmatprep.subr.mxu0 0.0
    %5012 = vmatpush1.msra.mxu0 0.0
    %5013 = vmatprep.subr.mxu0 0.0
    %5014 = vmatpush1.msra.mxu0 0.0
    %5015 = vmatprep.subr.mxu0 0.0
    %5016 = vmatpush1.msra.mxu0 0.0
    %5017 = vmatprep.subr.mxu0 0.0
    %5018 = vmatpush1.msra.mxu0 0.0
    %5019 = vmatprep.subr.mxu0 0.0
    %5020 = vmatpush1.msra.mxu0 0.0
    %5021 = vmatprep.subr.mxu0 0.0
    %5022 = vmatpush1.msra.mxu0 0.0
    %5023 = vmatprep.subr.mxu0 0.0
    %5024 = vmatpush1.msra.mxu0 0.0
    %5025 = vmatprep.subr.mxu0 0.0
    %5026 = vmatpush1.msra.mxu0 0.0
    %5027 = vmatprep.subr.mxu0 0.0
    %5028 = vmatpush1.msra.mxu0 0.0
    %5029 = vmatprep.subr.mxu0 0.0
    %5030 = vmatpush1.msra.mxu0 0.0
    %5031 = vmatprep.subr.mxu0 0.0
    %5032 = vmatpush1.msra.mxu0 %v4920
    %5033 = vmatprep.subr.mxu0 0.0
    %5034 = vmatpush1.msra.mxu0 %v4918
    %5035 = vmatprep.subr.mxu0 0.0
    %5036 = vmatpush2.msra.mxu0 0.0
    %5037 = vmatprep.subr.mxu0 0.0
    %5038 = vmatpush2.msra.mxu0 0.0
    %5039 = vmatprep.subr.mxu0 0.0
    %5040 = vmatpush2.msra.mxu0 0.0
    %5041 = vmatprep.subr.mxu0 0.0
    %5042 = vmatpush2.msra.mxu0 0.0
    %5043 = vmatprep.subr.mxu0 0.0
    %5044 = vmatpush2.msra.mxu0 0.0
    %5045 = vmatprep.subr.mxu0 0.0
    %5046 = vmatpush2.msra.mxu0 0.0
    %5047 = vmatprep.subr.mxu0 0.0
    %5048 = vmatpush2.msra.mxu0 0.0
    %5049 = vmatprep.subr.mxu0 0.0
    %5050 = vmatpush2.msra.mxu0 0.0
    %5051 = vmatprep.subr.mxu0 0.0
    %5052 = vmatpush2.msra.mxu0 0.0
    %5053 = vmatprep.subr.mxu0 0.0
    %5054 = vmatpush2.msra.mxu0 0.0
    %5055 = vmatprep.subr.mxu0 0.0
    %5056 = vmatpush2.msra.mxu0 0.0
    %5057 = vmatprep.subr.mxu0 0.0
    %5058 = vmatpush2.msra.mxu0 0.0
    %5059 = vmatprep.subr.mxu0 0.0
    %5060 = vmatpush2.msra.mxu0 0.0
    %5061 = vmatprep.subr.mxu0 0.0
    %5062 = vmatpush2.msra.mxu0 0.0
    %5063 = vmatprep.subr.mxu0 0.0
    %5064 = vmatpush2.msra.mxu0 0.0
    %5065 = vmatprep.subr.mxu0 0.0
    %5066 = vmatpush2.msra.mxu0 0.0
    %5067 = vmatprep.mubr.f32.mxu0 0.0
    %5068 = vmatmul.mubr.f32.gmra.mxu0 %v404
    %v5069 = vpop.f32.mrf.mxu0
    %v5070 = vadd.f32 0.0, %v5069
    %v5071 = vpop.f32.mrf.mxu0
    %5072 = vdwg.mxu0
    %v5074 = vsel %vm96, %v5000, 0
    %5076 = vmatprep.subr.mxu0 0.0
    %5077 = vmatpush1.msra.mxu0 0.0
    %5078 = vmatprep.subr.mxu0 0.0
    %5079 = vmatpush1.msra.mxu0 0.0
    %5080 = vmatprep.subr.mxu0 0.0
    %5081 = vmatpush1.msra.mxu0 0.0
    %5082 = vmatprep.subr.mxu0 0.0
    %5083 = vmatpush1.msra.mxu0 0.0
    %5084 = vmatprep.subr.mxu0 0.0
    %5085 = vmatpush1.msra.mxu0 0.0
    %5086 = vmatprep.subr.mxu0 0.0
    %5087 = vmatpush1.msra.mxu0 0.0
    %5088 = vmatprep.subr.mxu0 0.0
    %5089 = vmatpush1.msra.mxu0 0.0
    %5090 = vmatprep.subr.mxu0 0.0
    %5091 = vmatpush1.msra.mxu0 0.0
    %5092 = vmatprep.subr.mxu0 0.0
    %5093 = vmatpush1.msra.mxu0 0.0
    %5094 = vmatprep.subr.mxu0 0.0
    %5095 = vmatpush1.msra.mxu0 0.0
    %5096 = vmatprep.subr.mxu0 0.0
    %5097 = vmatpush1.msra.mxu0 0.0
    %5098 = vmatprep.subr.mxu0 0.0
    %5099 = vmatpush1.msra.mxu0 0.0
    %5100 = vmatprep.subr.mxu0 0.0
    %5101 = vmatpush1.msra.mxu0 %v190
    %5102 = vmatprep.subr.mxu0 0.0
    %5103 = vmatpush1.msra.mxu0 %v189
    %5104 = vmatprep.subr.mxu0 0.0
    %5105 = vmatpush1.msra.mxu0 %v188
    %5106 = vmatprep.subr.mxu0 0.0
    %5107 = vmatpush1.msra.mxu0 %v187
    %5108 = vmatprep.subr.mxu0 0.0
    %5109 = vmatpush2.msra.mxu0 0.0
    %5110 = vmatprep.subr.mxu0 0.0
    %5111 = vmatpush2.msra.mxu0 0.0
    %5112 = vmatprep.subr.mxu0 0.0
    %5113 = vmatpush2.msra.mxu0 0.0
    %5114 = vmatprep.subr.mxu0 0.0
    %5115 = vmatpush2.msra.mxu0 0.0
    %5116 = vmatprep.subr.mxu0 0.0
    %5117 = vmatpush2.msra.mxu0 0.0
    %5118 = vmatprep.subr.mxu0 0.0
    %5119 = vmatpush2.msra.mxu0 0.0
    %5120 = vmatprep.subr.mxu0 0.0
    %5121 = vmatpush2.msra.mxu0 0.0
    %5122 = vmatprep.subr.mxu0 0.0
    %5123 = vmatpush2.msra.mxu0 0.0
    %5124 = vmatprep.subr.mxu0 0.0
    %5125 = vmatpush2.msra.mxu0 0.0
    %5126 = vmatprep.subr.mxu0 0.0
    %5127 = vmatpush2.msra.mxu0 0.0
    %5128 = vmatprep.subr.mxu0 0.0
    %5129 = vmatpush2.msra.mxu0 0.0
    %5130 = vmatprep.subr.mxu0 0.0
    %5131 = vmatpush2.msra.mxu0 0.0
    %5132 = vmatprep.subr.mxu0 0.0
    %5133 = vmatpush2.msra.mxu0 0.0
    %5134 = vmatprep.subr.mxu0 0.0
    %5135 = vmatpush2.msra.mxu0 0.0
    %5136 = vmatprep.subr.mxu0 0.0
    %5137 = vmatpush2.msra.mxu0 0.0
    %5138 = vmatprep.subr.mxu0 0.0
    %5139 = vmatpush2.msra.mxu0 0.0
    %5140 = vmatprep.mubr.f32.mxu0 0.0
    %5141 = vmatmul.mubr.f32.gmra.mxu0 %v5074
    %v5142 = vpop.f32.mrf.mxu0
    %v5143 = vadd.f32 0.0, %v5142
    %v5144 = vpop.f32.mrf.mxu0
    %5145 = vdwg.mxu0
    %v5146 = vrcp.pop %v5070
    %5148 = vset.pattern.permute.xlu0 0
    %5149 = vperm.xlu0 %5148, %v5146
    %v5150 = vpop.permute.xlu0 %5149
    %v5152 = vmul.f32 %v5143, %v5150
    %v5153 = vadd.f32 %v5152, %v630
    %5154 = vrot.lane.b32.xlu0 %v4804, 96
    %v5155 = vpop.permute.xlu0 %5154
    %v5157 = vadd.f32 %v5153, %v5155
    %v5158 = vxor.u32 %v5157, 2147483648
    %v5159 = vmul.f32 %v5158, 1.442695
    %v5160 = vpow.pop %v5159
    %v5161 = vadd.f32 %v5160, 1.0
    %v5162 = vrcp.pop %v5161
    %v5163 = vmul.f32 1.0, %v5162
    %5164 = vrot.lane.b32.xlu0 %v4804, 32
    %v5165 = vpop.permute.xlu0 %5164
    %v5167 = vmul.f32 %v5163, %v5165
    %5169 = vrot.lane.b32.xlu0 %v5167, 64
    %v5170 = vpop.permute.xlu0 %5169
    %v5172 = vadd.f32 %v5153, %v5170
    %v5173 = vtanh.pop %v5172
    %v5174 = vsub.f32 1.0, %v5163
    %5176 = vrot.lane.b32.xlu0 %v5173, 96
    %v5177 = vpop.permute.xlu0 %5176
    %v5179 = vmul.f32 %v5174, %v5177
    %v5180 = vmul.f32 %v5163, %v4729
    %v5181 = vadd.f32 %v5179, %v5180
    %5183 = vrot.lane.b32.xlu0 %v5181, 96
    %v5184 = vpop.permute.xlu0 %5183
    %5186 = vst.msk [vmem:[#allocation2 + $0x14] sm:$0x3] %vm665, %v5184
    %v5187 = vsel %vm96, %v5184, 0
    %5189 = vmatprep.subr.mxu0 0.0
    %5190 = vmatpush1.msra.mxu0 0.0
    %5191 = vmatprep.subr.mxu0 0.0
    %5192 = vmatpush1.msra.mxu0 0.0
    %5193 = vmatprep.subr.mxu0 0.0
    %5194 = vmatpush1.msra.mxu0 0.0
    %5195 = vmatprep.subr.mxu0 0.0
    %5196 = vmatpush1.msra.mxu0 0.0
    %5197 = vmatprep.subr.mxu0 0.0
    %5198 = vmatpush1.msra.mxu0 0.0
    %5199 = vmatprep.subr.mxu0 0.0
    %5200 = vmatpush1.msra.mxu0 0.0
    %5201 = vmatprep.subr.mxu0 0.0
    %5202 = vmatpush1.msra.mxu0 0.0
    %5203 = vmatprep.subr.mxu0 0.0
    %5204 = vmatpush1.msra.mxu0 0.0
    %5205 = vmatprep.subr.mxu0 0.0
    %5206 = vmatpush1.msra.mxu0 0.0
    %5207 = vmatprep.subr.mxu0 0.0
    %5208 = vmatpush1.msra.mxu0 0.0
    %5209 = vmatprep.subr.mxu0 0.0
    %5210 = vmatpush1.msra.mxu0 0.0
    %5211 = vmatprep.subr.mxu0 0.0
    %5212 = vmatpush1.msra.mxu0 0.0
    %5213 = vmatprep.subr.mxu0 0.0
    %5214 = vmatpush1.msra.mxu0 %v181
    %5215 = vmatprep.subr.mxu0 0.0
    %5216 = vmatpush1.msra.mxu0 %v180
    %5217 = vmatprep.subr.mxu0 0.0
    %5218 = vmatpush1.msra.mxu0 %v179
    %5219 = vmatprep.subr.mxu0 0.0
    %5220 = vmatpush1.msra.mxu0 %v178
    %5221 = vmatprep.subr.mxu0 0.0
    %5222 = vmatpush2.msra.mxu0 0.0
    %5223 = vmatprep.subr.mxu0 0.0
    %5224 = vmatpush2.msra.mxu0 0.0
    %5225 = vmatprep.subr.mxu0 0.0
    %5226 = vmatpush2.msra.mxu0 0.0
    %5227 = vmatprep.subr.mxu0 0.0
    %5228 = vmatpush2.msra.mxu0 0.0
    %5229 = vmatprep.subr.mxu0 0.0
    %5230 = vmatpush2.msra.mxu0 0.0
    %5231 = vmatprep.subr.mxu0 0.0
    %5232 = vmatpush2.msra.mxu0 0.0
    %5233 = vmatprep.subr.mxu0 0.0
    %5234 = vmatpush2.msra.mxu0 0.0
    %5235 = vmatprep.subr.mxu0 0.0
    %5236 = vmatpush2.msra.mxu0 0.0
    %5237 = vmatprep.subr.mxu0 0.0
    %5238 = vmatpush2.msra.mxu0 0.0
    %5239 = vmatprep.subr.mxu0 0.0
    %5240 = vmatpush2.msra.mxu0 0.0
    %5241 = vmatprep.subr.mxu0 0.0
    %5242 = vmatpush2.msra.mxu0 0.0
    %5243 = vmatprep.subr.mxu0 0.0
    %5244 = vmatpush2.msra.mxu0 0.0
    %5245 = vmatprep.subr.mxu0 0.0
    %5246 = vmatpush2.msra.mxu0 0.0
    %5247 = vmatprep.subr.mxu0 0.0
    %5248 = vmatpush2.msra.mxu0 0.0
    %5249 = vmatprep.subr.mxu0 0.0
    %5250 = vmatpush2.msra.mxu0 0.0
    %5251 = vmatprep.subr.mxu0 0.0
    %5252 = vmatpush2.msra.mxu0 0.0
    %5253 = vmatprep.mubr.f32.mxu0 0.0
    %5254 = vmatmul.mubr.f32.gmra.mxu0 %v5187
    %v5255 = vpop.f32.mrf.mxu0
    %v5256 = vadd.f32 %v197, %v5255
    %v5257 = vpop.f32.mrf.mxu0
    %5258 = vdwg.mxu0
    %v5260 = vrot.slane %v5256, 6
    %v5262 = vrot.slane %v5256, 4
    %v5264 = vrot.slane %v5256, 2
    %v5266 = vsel %vm279, %v5256, %v5260
    %v5267 = vsel %vm281, %v5266, %v5262
    %v5268 = vsel %vm283, %v5267, %v5264
    %v5269 = vadd.f32 %v170, %v5268
    %v5270 = vadd.f32 %v175, %v5268
    %v5271 = vtanh.pop %v5269
    %v5272 = vtanh.pop %v5270
    %v5274 = vsel %vm96, %v5271, 0
    %v5277 = vsel %vm96, %v5272, 0
    %5279 = vmatprep.subr.mxu0 0.0
    %5280 = vmatpush1.msra.mxu0 0.0
    %5281 = vmatprep.subr.mxu0 0.0
    %5282 = vmatpush1.msra.mxu0 0.0
    %5283 = vmatprep.subr.mxu0 0.0
    %5284 = vmatpush1.msra.mxu0 0.0
    %5285 = vmatprep.subr.mxu0 0.0
    %5286 = vmatpush1.msra.mxu0 0.0
    %5287 = vmatprep.subr.mxu0 0.0
    %5288 = vmatpush1.msra.mxu0 0.0
    %5289 = vmatprep.subr.mxu0 0.0
    %5290 = vmatpush1.msra.mxu0 0.0
    %5291 = vmatprep.subr.mxu0 0.0
    %5292 = vmatpush1.msra.mxu0 0.0
    %5293 = vmatprep.subr.mxu0 0.0
    %5294 = vmatpush1.msra.mxu0 0.0
    %5295 = vmatprep.subr.mxu0 0.0
    %5296 = vmatpush1.msra.mxu0 0.0
    %5297 = vmatprep.subr.mxu0 0.0
    %5298 = vmatpush1.msra.mxu0 0.0
    %5299 = vmatprep.subr.mxu0 0.0
    %5300 = vmatpush1.msra.mxu0 0.0
    %5301 = vmatprep.subr.mxu0 0.0
    %5302 = vmatpush1.msra.mxu0 0.0
    %5303 = vmatprep.subr.mxu0 0.0
    %5304 = vmatpush1.msra.mxu0 %v186
    %5305 = vmatprep.subr.mxu0 0.0
    %5306 = vmatpush1.msra.mxu0 %v185
    %5307 = vmatprep.subr.mxu0 0.0
    %5308 = vmatpush1.msra.mxu0 %v184
    %5309 = vmatprep.subr.mxu0 0.0
    %5310 = vmatpush1.msra.mxu0 %v183
    %5311 = vmatprep.subr.mxu0 0.0
    %5312 = vmatpush2.msra.mxu0 0.0
    %5313 = vmatprep.subr.mxu0 0.0
    %5314 = vmatpush2.msra.mxu0 0.0
    %5315 = vmatprep.subr.mxu0 0.0
    %5316 = vmatpush2.msra.mxu0 0.0
    %5317 = vmatprep.subr.mxu0 0.0
    %5318 = vmatpush2.msra.mxu0 0.0
    %5319 = vmatprep.subr.mxu0 0.0
    %5320 = vmatpush2.msra.mxu0 0.0
    %5321 = vmatprep.subr.mxu0 0.0
    %5322 = vmatpush2.msra.mxu0 0.0
    %5323 = vmatprep.subr.mxu0 0.0
    %5324 = vmatpush2.msra.mxu0 0.0
    %5325 = vmatprep.subr.mxu0 0.0
    %5326 = vmatpush2.msra.mxu0 0.0
    %5327 = vmatprep.subr.mxu0 0.0
    %5328 = vmatpush2.msra.mxu0 0.0
    %5329 = vmatprep.subr.mxu0 0.0
    %5330 = vmatpush2.msra.mxu0 0.0
    %5331 = vmatprep.subr.mxu0 0.0
    %5332 = vmatpush2.msra.mxu0 0.0
    %5333 = vmatprep.subr.mxu0 0.0
    %5334 = vmatpush2.msra.mxu0 0.0
    %5335 = vmatprep.subr.mxu0 0.0
    %5336 = vmatpush2.msra.mxu0 0.0
    %5337 = vmatprep.subr.mxu0 0.0
    %5338 = vmatpush2.msra.mxu0 0.0
    %5339 = vmatprep.subr.mxu0 0.0
    %5340 = vmatpush2.msra.mxu0 0.0
    %5341 = vmatprep.subr.mxu0 0.0
    %5342 = vmatpush2.msra.mxu0 0.0
    %5343 = vmatprep.mubr.f32.mxu0 0.0
    %5344 = vmatmul.mubr.f32.gmra.mxu0 %v5274
    %v5345 = vpop.f32.mrf.mxu0
    %v5346 = vadd.f32 0.0, %v5345
    %v5347 = vpop.f32.mrf.mxu0
    %5348 = vmatprep.mubr.f32.mxu0 0.0
    %5349 = vmatmul.mubr.f32.gmra.mxu0 %v5277
    %v5350 = vpop.f32.mrf.mxu0
    %v5351 = vadd.f32 0.0, %v5350
    %v5352 = vpop.f32.mrf.mxu0
    %5353 = vdwg.mxu0
    %v5354 = vsel %vm370, %v5346, -inf
    %v5355 = vsel %vm370, %v5351, -inf
    %v5356 = vmax.f32 %v5354, %v5355
    %5357 = vmax.xlane.f32.xlu0 %v5356
    %v5358 = vpop.xlane.xlu0 %5357
    %v5359 = vrot.slane %v5358, 4
    %v5360 = vmax.f32 %v5358, %v5359
    %v5361 = vrot.slane %v5360, 2
    %v5362 = vmax.f32 %v5360, %v5361
    %v5363 = vrot.slane %v5362, 1
    %v5364 = vmax.f32 %v5362, %v5363
    %s5365 = vtos %v5364
    %v5366 = vstv %s5365
    %v5367 = vsub.f32 %v5346, %v5366
    %v5368 = vsub.f32 %v5351, %v5366
    %v5369 = vmul.f32 %v5367, 1.442695
    %v5370 = vpow.pop %v5369
    %v5371 = vmul.f32 %v5368, 1.442695
    %v5372 = vpow.pop %v5371
    %5374 = vset.pattern.permute.xlu0 0
    %5375 = vperm.xlu0 %5374, %v5370
    %v5376 = vpop.permute.xlu0 %5375
    %5379 = vset.pattern.permute.xlu0 0
    %5380 = vperm.xlu0 %5379, %v5372
    %v5381 = vpop.permute.xlu0 %5380
    %v5383 = vmul.f32 %v90, %v5376
    %v5384 = vmul.f32 %v91, %v5381
    %5385 = vmatprep.subr.mxu0 0.0
    %5386 = vmatpush1.msra.mxu0 0.0
    %5387 = vmatprep.subr.mxu0 0.0
    %5388 = vmatpush1.msra.mxu0 0.0
    %5389 = vmatprep.subr.mxu0 0.0
    %5390 = vmatpush1.msra.mxu0 0.0
    %5391 = vmatprep.subr.mxu0 0.0
    %5392 = vmatpush1.msra.mxu0 0.0
    %5393 = vmatprep.subr.mxu0 0.0
    %5394 = vmatpush1.msra.mxu0 0.0
    %5395 = vmatprep.subr.mxu0 0.0
    %5396 = vmatpush1.msra.mxu0 0.0
    %5397 = vmatprep.subr.mxu0 0.0
    %5398 = vmatpush1.msra.mxu0 0.0
    %5399 = vmatprep.subr.mxu0 0.0
    %5400 = vmatpush1.msra.mxu0 0.0
    %5401 = vmatprep.subr.mxu0 0.0
    %5402 = vmatpush1.msra.mxu0 0.0
    %5403 = vmatprep.subr.mxu0 0.0
    %5404 = vmatpush1.msra.mxu0 0.0
    %5405 = vmatprep.subr.mxu0 0.0
    %5406 = vmatpush1.msra.mxu0 0.0
    %5407 = vmatprep.subr.mxu0 0.0
    %5408 = vmatpush1.msra.mxu0 0.0
    %5409 = vmatprep.subr.mxu0 0.0
    %5410 = vmatpush1.msra.mxu0 0.0
    %5411 = vmatprep.subr.mxu0 0.0
    %5412 = vmatpush1.msra.mxu0 0.0
    %5413 = vmatprep.subr.mxu0 0.0
    %5414 = vmatpush1.msra.mxu0 %v5384
    %5415 = vmatprep.subr.mxu0 0.0
    %5416 = vmatpush1.msra.mxu0 %v5383
    %5417 = vmatprep.subr.mxu0 0.0
    %5418 = vmatpush2.msra.mxu0 0.0
    %5419 = vmatprep.subr.mxu0 0.0
    %5420 = vmatpush2.msra.mxu0 0.0
    %5421 = vmatprep.subr.mxu0 0.0
    %5422 = vmatpush2.msra.mxu0 0.0
    %5423 = vmatprep.subr.mxu0 0.0
    %5424 = vmatpush2.msra.mxu0 0.0
    %5425 = vmatprep.subr.mxu0 0.0
    %5426 = vmatpush2.msra.mxu0 0.0
    %5427 = vmatprep.subr.mxu0 0.0
    %5428 = vmatpush2.msra.mxu0 0.0
    %5429 = vmatprep.subr.mxu0 0.0
    %5430 = vmatpush2.msra.mxu0 0.0
    %5431 = vmatprep.subr.mxu0 0.0
    %5432 = vmatpush2.msra.mxu0 0.0
    %5433 = vmatprep.subr.mxu0 0.0
    %5434 = vmatpush2.msra.mxu0 0.0
    %5435 = vmatprep.subr.mxu0 0.0
    %5436 = vmatpush2.msra.mxu0 0.0
    %5437 = vmatprep.subr.mxu0 0.0
    %5438 = vmatpush2.msra.mxu0 0.0
    %5439 = vmatprep.subr.mxu0 0.0
    %5440 = vmatpush2.msra.mxu0 0.0
    %5441 = vmatprep.subr.mxu0 0.0
    %5442 = vmatpush2.msra.mxu0 0.0
    %5443 = vmatprep.subr.mxu0 0.0
    %5444 = vmatpush2.msra.mxu0 0.0
    %5445 = vmatprep.subr.mxu0 0.0
    %5446 = vmatpush2.msra.mxu0 0.0
    %5447 = vmatprep.subr.mxu0 0.0
    %5448 = vmatpush2.msra.mxu0 0.0
    %5449 = vmatprep.mubr.f32.mxu0 0.0
    %5450 = vmatmul.mubr.f32.gmra.mxu0 %v404
    %v5451 = vpop.f32.mrf.mxu0
    %v5452 = vadd.f32 0.0, %v5451
    %v5453 = vpop.f32.mrf.mxu0
    %5454 = vdwg.mxu0
    %5455 = vmatprep.subr.mxu0 0.0
    %5456 = vmatpush1.msra.mxu0 0.0
    %5457 = vmatprep.subr.mxu0 0.0
    %5458 = vmatpush1.msra.mxu0 0.0
    %5459 = vmatprep.subr.mxu0 0.0
    %5460 = vmatpush1.msra.mxu0 0.0
    %5461 = vmatprep.subr.mxu0 0.0
    %5462 = vmatpush1.msra.mxu0 0.0
    %5463 = vmatprep.subr.mxu0 0.0
    %5464 = vmatpush1.msra.mxu0 0.0
    %5465 = vmatprep.subr.mxu0 0.0
    %5466 = vmatpush1.msra.mxu0 0.0
    %5467 = vmatprep.subr.mxu0 0.0
    %5468 = vmatpush1.msra.mxu0 0.0
    %5469 = vmatprep.subr.mxu0 0.0
    %5470 = vmatpush1.msra.mxu0 0.0
    %5471 = vmatprep.subr.mxu0 0.0
    %5472 = vmatpush1.msra.mxu0 0.0
    %5473 = vmatprep.subr.mxu0 0.0
    %5474 = vmatpush1.msra.mxu0 0.0
    %5475 = vmatprep.subr.mxu0 0.0
    %5476 = vmatpush1.msra.mxu0 0.0
    %5477 = vmatprep.subr.mxu0 0.0
    %5478 = vmatpush1.msra.mxu0 0.0
    %5479 = vmatprep.subr.mxu0 0.0
    %5480 = vmatpush1.msra.mxu0 0.0
    %5481 = vmatprep.subr.mxu0 0.0
    %5482 = vmatpush1.msra.mxu0 0.0
    %5483 = vmatprep.subr.mxu0 0.0
    %5484 = vmatpush1.msra.mxu0 %v5372
    %5485 = vmatprep.subr.mxu0 0.0
    %5486 = vmatpush1.msra.mxu0 %v5370
    %5487 = vmatprep.subr.mxu0 0.0
    %5488 = vmatpush2.msra.mxu0 0.0
    %5489 = vmatprep.subr.mxu0 0.0
    %5490 = vmatpush2.msra.mxu0 0.0
    %5491 = vmatprep.subr.mxu0 0.0
    %5492 = vmatpush2.msra.mxu0 0.0
    %5493 = vmatprep.subr.mxu0 0.0
    %5494 = vmatpush2.msra.mxu0 0.0
    %5495 = vmatprep.subr.mxu0 0.0
    %5496 = vmatpush2.msra.mxu0 0.0
    %5497 = vmatprep.subr.mxu0 0.0
    %5498 = vmatpush2.msra.mxu0 0.0
    %5499 = vmatprep.subr.mxu0 0.0
    %5500 = vmatpush2.msra.mxu0 0.0
    %5501 = vmatprep.subr.mxu0 0.0
    %5502 = vmatpush2.msra.mxu0 0.0
    %5503 = vmatprep.subr.mxu0 0.0
    %5504 = vmatpush2.msra.mxu0 0.0
    %5505 = vmatprep.subr.mxu0 0.0
    %5506 = vmatpush2.msra.mxu0 0.0
    %5507 = vmatprep.subr.mxu0 0.0
    %5508 = vmatpush2.msra.mxu0 0.0
    %5509 = vmatprep.subr.mxu0 0.0
    %5510 = vmatpush2.msra.mxu0 0.0
    %5511 = vmatprep.subr.mxu0 0.0
    %5512 = vmatpush2.msra.mxu0 0.0
    %5513 = vmatprep.subr.mxu0 0.0
    %5514 = vmatpush2.msra.mxu0 0.0
    %5515 = vmatprep.subr.mxu0 0.0
    %5516 = vmatpush2.msra.mxu0 0.0
    %5517 = vmatprep.subr.mxu0 0.0
    %5518 = vmatpush2.msra.mxu0 0.0
    %5519 = vmatprep.mubr.f32.mxu0 0.0
    %5520 = vmatmul.mubr.f32.gmra.mxu0 %v404
    %v5521 = vpop.f32.mrf.mxu0
    %v5522 = vadd.f32 0.0, %v5521
    %v5523 = vpop.f32.mrf.mxu0
    %5524 = vdwg.mxu0
    %v5526 = vsel %vm96, %v5452, 0
    %5528 = vmatprep.subr.mxu0 0.0
    %5529 = vmatpush1.msra.mxu0 0.0
    %5530 = vmatprep.subr.mxu0 0.0
    %5531 = vmatpush1.msra.mxu0 0.0
    %5532 = vmatprep.subr.mxu0 0.0
    %5533 = vmatpush1.msra.mxu0 0.0
    %5534 = vmatprep.subr.mxu0 0.0
    %5535 = vmatpush1.msra.mxu0 0.0
    %5536 = vmatprep.subr.mxu0 0.0
    %5537 = vmatpush1.msra.mxu0 0.0
    %5538 = vmatprep.subr.mxu0 0.0
    %5539 = vmatpush1.msra.mxu0 0.0
    %5540 = vmatprep.subr.mxu0 0.0
    %5541 = vmatpush1.msra.mxu0 0.0
    %5542 = vmatprep.subr.mxu0 0.0
    %5543 = vmatpush1.msra.mxu0 0.0
    %5544 = vmatprep.subr.mxu0 0.0
    %5545 = vmatpush1.msra.mxu0 0.0
    %5546 = vmatprep.subr.mxu0 0.0
    %5547 = vmatpush1.msra.mxu0 0.0
    %5548 = vmatprep.subr.mxu0 0.0
    %5549 = vmatpush1.msra.mxu0 0.0
    %5550 = vmatprep.subr.mxu0 0.0
    %5551 = vmatpush1.msra.mxu0 0.0
    %5552 = vmatprep.subr.mxu0 0.0
    %5553 = vmatpush1.msra.mxu0 %v190
    %5554 = vmatprep.subr.mxu0 0.0
    %5555 = vmatpush1.msra.mxu0 %v189
    %5556 = vmatprep.subr.mxu0 0.0
    %5557 = vmatpush1.msra.mxu0 %v188
    %5558 = vmatprep.subr.mxu0 0.0
    %5559 = vmatpush1.msra.mxu0 %v187
    %5560 = vmatprep.subr.mxu0 0.0
    %5561 = vmatpush2.msra.mxu0 0.0
    %5562 = vmatprep.subr.mxu0 0.0
    %5563 = vmatpush2.msra.mxu0 0.0
    %5564 = vmatprep.subr.mxu0 0.0
    %5565 = vmatpush2.msra.mxu0 0.0
    %5566 = vmatprep.subr.mxu0 0.0
    %5567 = vmatpush2.msra.mxu0 0.0
    %5568 = vmatprep.subr.mxu0 0.0
    %5569 = vmatpush2.msra.mxu0 0.0
    %5570 = vmatprep.subr.mxu0 0.0
    %5571 = vmatpush2.msra.mxu0 0.0
    %5572 = vmatprep.subr.mxu0 0.0
    %5573 = vmatpush2.msra.mxu0 0.0
    %5574 = vmatprep.subr.mxu0 0.0
    %5575 = vmatpush2.msra.mxu0 0.0
    %5576 = vmatprep.subr.mxu0 0.0
    %5577 = vmatpush2.msra.mxu0 0.0
    %5578 = vmatprep.subr.mxu0 0.0
    %5579 = vmatpush2.msra.mxu0 0.0
    %5580 = vmatprep.subr.mxu0 0.0
    %5581 = vmatpush2.msra.mxu0 0.0
    %5582 = vmatprep.subr.mxu0 0.0
    %5583 = vmatpush2.msra.mxu0 0.0
    %5584 = vmatprep.subr.mxu0 0.0
    %5585 = vmatpush2.msra.mxu0 0.0
    %5586 = vmatprep.subr.mxu0 0.0
    %5587 = vmatpush2.msra.mxu0 0.0
    %5588 = vmatprep.subr.mxu0 0.0
    %5589 = vmatpush2.msra.mxu0 0.0
    %5590 = vmatprep.subr.mxu0 0.0
    %5591 = vmatpush2.msra.mxu0 0.0
    %5592 = vmatprep.mubr.f32.mxu0 0.0
    %5593 = vmatmul.mubr.f32.gmra.mxu0 %v5526
    %v5594 = vpop.f32.mrf.mxu0
    %v5595 = vadd.f32 0.0, %v5594
    %v5596 = vpop.f32.mrf.mxu0
    %5597 = vdwg.mxu0
    %v5598 = vrcp.pop %v5522
    %5600 = vset.pattern.permute.xlu0 0
    %5601 = vperm.xlu0 %5600, %v5598
    %v5602 = vpop.permute.xlu0 %5601
    %v5604 = vmul.f32 %v5595, %v5602
    %v5605 = vadd.f32 %v5604, %v630
    %5606 = vrot.lane.b32.xlu0 %v5256, 96
    %v5607 = vpop.permute.xlu0 %5606
    %v5609 = vadd.f32 %v5605, %v5607
    %v5610 = vxor.u32 %v5609, 2147483648
    %v5611 = vmul.f32 %v5610, 1.442695
    %v5612 = vpow.pop %v5611
    %v5613 = vadd.f32 %v5612, 1.0
    %v5614 = vrcp.pop %v5613
    %v5615 = vmul.f32 1.0, %v5614
    %5616 = vrot.lane.b32.xlu0 %v5256, 32
    %v5617 = vpop.permute.xlu0 %5616
    %v5619 = vmul.f32 %v5615, %v5617
    %5621 = vrot.lane.b32.xlu0 %v5619, 64
    %v5622 = vpop.permute.xlu0 %5621
    %v5624 = vadd.f32 %v5605, %v5622
    %v5625 = vtanh.pop %v5624
    %v5626 = vsub.f32 1.0, %v5615
    %5628 = vrot.lane.b32.xlu0 %v5625, 96
    %v5629 = vpop.permute.xlu0 %5628
    %v5631 = vmul.f32 %v5626, %v5629
    %v5632 = vmul.f32 %v5615, %v5181
    %v5633 = vadd.f32 %v5631, %v5632
    %5635 = vrot.lane.b32.xlu0 %v5633, 96
    %v5636 = vpop.permute.xlu0 %5635
    %5638 = vst.msk [vmem:[#allocation2 + $0x16] sm:$0x3] %vm665, %v5636
    %v5639 = vsel %vm96, %v5636, 0
    %5641 = vmatprep.subr.mxu0 0.0
    %5642 = vmatpush1.msra.mxu0 0.0
    %5643 = vmatprep.subr.mxu0 0.0
    %5644 = vmatpush1.msra.mxu0 0.0
    %5645 = vmatprep.subr.mxu0 0.0
    %5646 = vmatpush1.msra.mxu0 0.0
    %5647 = vmatprep.subr.mxu0 0.0
    %5648 = vmatpush1.msra.mxu0 0.0
    %5649 = vmatprep.subr.mxu0 0.0
    %5650 = vmatpush1.msra.mxu0 0.0
    %5651 = vmatprep.subr.mxu0 0.0
    %5652 = vmatpush1.msra.mxu0 0.0
    %5653 = vmatprep.subr.mxu0 0.0
    %5654 = vmatpush1.msra.mxu0 0.0
    %5655 = vmatprep.subr.mxu0 0.0
    %5656 = vmatpush1.msra.mxu0 0.0
    %5657 = vmatprep.subr.mxu0 0.0
    %5658 = vmatpush1.msra.mxu0 0.0
    %5659 = vmatprep.subr.mxu0 0.0
    %5660 = vmatpush1.msra.mxu0 0.0
    %5661 = vmatprep.subr.mxu0 0.0
    %5662 = vmatpush1.msra.mxu0 0.0
    %5663 = vmatprep.subr.mxu0 0.0
    %5664 = vmatpush1.msra.mxu0 0.0
    %5665 = vmatprep.subr.mxu0 0.0
    %5666 = vmatpush1.msra.mxu0 %v181
    %5667 = vmatprep.subr.mxu0 0.0
    %5668 = vmatpush1.msra.mxu0 %v180
    %5669 = vmatprep.subr.mxu0 0.0
    %5670 = vmatpush1.msra.mxu0 %v179
    %5671 = vmatprep.subr.mxu0 0.0
    %5672 = vmatpush1.msra.mxu0 %v178
    %5673 = vmatprep.subr.mxu0 0.0
    %5674 = vmatpush2.msra.mxu0 0.0
    %5675 = vmatprep.subr.mxu0 0.0
    %5676 = vmatpush2.msra.mxu0 0.0
    %5677 = vmatprep.subr.mxu0 0.0
    %5678 = vmatpush2.msra.mxu0 0.0
    %5679 = vmatprep.subr.mxu0 0.0
    %5680 = vmatpush2.msra.mxu0 0.0
    %5681 = vmatprep.subr.mxu0 0.0
    %5682 = vmatpush2.msra.mxu0 0.0
    %5683 = vmatprep.subr.mxu0 0.0
    %5684 = vmatpush2.msra.mxu0 0.0
    %5685 = vmatprep.subr.mxu0 0.0
    %5686 = vmatpush2.msra.mxu0 0.0
    %5687 = vmatprep.subr.mxu0 0.0
    %5688 = vmatpush2.msra.mxu0 0.0
    %5689 = vmatprep.subr.mxu0 0.0
    %5690 = vmatpush2.msra.mxu0 0.0
    %5691 = vmatprep.subr.mxu0 0.0
    %5692 = vmatpush2.msra.mxu0 0.0
    %5693 = vmatprep.subr.mxu0 0.0
    %5694 = vmatpush2.msra.mxu0 0.0
    %5695 = vmatprep.subr.mxu0 0.0
    %5696 = vmatpush2.msra.mxu0 0.0
    %5697 = vmatprep.subr.mxu0 0.0
    %5698 = vmatpush2.msra.mxu0 0.0
    %5699 = vmatprep.subr.mxu0 0.0
    %5700 = vmatpush2.msra.mxu0 0.0
    %5701 = vmatprep.subr.mxu0 0.0
    %5702 = vmatpush2.msra.mxu0 0.0
    %5703 = vmatprep.subr.mxu0 0.0
    %5704 = vmatpush2.msra.mxu0 0.0
    %5705 = vmatprep.mubr.f32.mxu0 0.0
    %5706 = vmatmul.mubr.f32.gmra.mxu0 %v5639
    %v5707 = vpop.f32.mrf.mxu0
    %v5708 = vadd.f32 %v197, %v5707
    %v5709 = vpop.f32.mrf.mxu0
    %5710 = vdwg.mxu0
    %v5712 = vrot.slane %v5708, 6
    %v5714 = vrot.slane %v5708, 4
    %v5716 = vrot.slane %v5708, 2
    %v5718 = vsel %vm279, %v5708, %v5712
    %v5719 = vsel %vm281, %v5718, %v5714
    %v5720 = vsel %vm283, %v5719, %v5716
    %v5721 = vadd.f32 %v170, %v5720
    %v5722 = vadd.f32 %v175, %v5720
    %v5723 = vtanh.pop %v5721
    %v5724 = vtanh.pop %v5722
    %v5726 = vsel %vm96, %v5723, 0
    %v5729 = vsel %vm96, %v5724, 0
    %5731 = vmatprep.subr.mxu0 0.0
    %5732 = vmatpush1.msra.mxu0 0.0
    %5733 = vmatprep.subr.mxu0 0.0
    %5734 = vmatpush1.msra.mxu0 0.0
    %5735 = vmatprep.subr.mxu0 0.0
    %5736 = vmatpush1.msra.mxu0 0.0
    %5737 = vmatprep.subr.mxu0 0.0
    %5738 = vmatpush1.msra.mxu0 0.0
    %5739 = vmatprep.subr.mxu0 0.0
    %5740 = vmatpush1.msra.mxu0 0.0
    %5741 = vmatprep.subr.mxu0 0.0
    %5742 = vmatpush1.msra.mxu0 0.0
    %5743 = vmatprep.subr.mxu0 0.0
    %5744 = vmatpush1.msra.mxu0 0.0
    %5745 = vmatprep.subr.mxu0 0.0
    %5746 = vmatpush1.msra.mxu0 0.0
    %5747 = vmatprep.subr.mxu0 0.0
    %5748 = vmatpush1.msra.mxu0 0.0
    %5749 = vmatprep.subr.mxu0 0.0
    %5750 = vmatpush1.msra.mxu0 0.0
    %5751 = vmatprep.subr.mxu0 0.0
    %5752 = vmatpush1.msra.mxu0 0.0
    %5753 = vmatprep.subr.mxu0 0.0
    %5754 = vmatpush1.msra.mxu0 0.0
    %5755 = vmatprep.subr.mxu0 0.0
    %5756 = vmatpush1.msra.mxu0 %v186
    %5757 = vmatprep.subr.mxu0 0.0
    %5758 = vmatpush1.msra.mxu0 %v185
    %5759 = vmatprep.subr.mxu0 0.0
    %5760 = vmatpush1.msra.mxu0 %v184
    %5761 = vmatprep.subr.mxu0 0.0
    %5762 = vmatpush1.msra.mxu0 %v183
    %5763 = vmatprep.subr.mxu0 0.0
    %5764 = vmatpush2.msra.mxu0 0.0
    %5765 = vmatprep.subr.mxu0 0.0
    %5766 = vmatpush2.msra.mxu0 0.0
    %5767 = vmatprep.subr.mxu0 0.0
    %5768 = vmatpush2.msra.mxu0 0.0
    %5769 = vmatprep.subr.mxu0 0.0
    %5770 = vmatpush2.msra.mxu0 0.0
    %5771 = vmatprep.subr.mxu0 0.0
    %5772 = vmatpush2.msra.mxu0 0.0
    %5773 = vmatprep.subr.mxu0 0.0
    %5774 = vmatpush2.msra.mxu0 0.0
    %5775 = vmatprep.subr.mxu0 0.0
    %5776 = vmatpush2.msra.mxu0 0.0
    %5777 = vmatprep.subr.mxu0 0.0
    %5778 = vmatpush2.msra.mxu0 0.0
    %5779 = vmatprep.subr.mxu0 0.0
    %5780 = vmatpush2.msra.mxu0 0.0
    %5781 = vmatprep.subr.mxu0 0.0
    %5782 = vmatpush2.msra.mxu0 0.0
    %5783 = vmatprep.subr.mxu0 0.0
    %5784 = vmatpush2.msra.mxu0 0.0
    %5785 = vmatprep.subr.mxu0 0.0
    %5786 = vmatpush2.msra.mxu0 0.0
    %5787 = vmatprep.subr.mxu0 0.0
    %5788 = vmatpush2.msra.mxu0 0.0
    %5789 = vmatprep.subr.mxu0 0.0
    %5790 = vmatpush2.msra.mxu0 0.0
    %5791 = vmatprep.subr.mxu0 0.0
    %5792 = vmatpush2.msra.mxu0 0.0
    %5793 = vmatprep.subr.mxu0 0.0
    %5794 = vmatpush2.msra.mxu0 0.0
    %5795 = vmatprep.mubr.f32.mxu0 0.0
    %5796 = vmatmul.mubr.f32.gmra.mxu0 %v5726
    %v5797 = vpop.f32.mrf.mxu0
    %v5798 = vadd.f32 0.0, %v5797
    %v5799 = vpop.f32.mrf.mxu0
    %5800 = vmatprep.mubr.f32.mxu0 0.0
    %5801 = vmatmul.mubr.f32.gmra.mxu0 %v5729
    %v5802 = vpop.f32.mrf.mxu0
    %v5803 = vadd.f32 0.0, %v5802
    %v5804 = vpop.f32.mrf.mxu0
    %5805 = vdwg.mxu0
    %v5806 = vsel %vm370, %v5798, -inf
    %v5807 = vsel %vm370, %v5803, -inf
    %v5808 = vmax.f32 %v5806, %v5807
    %5809 = vmax.xlane.f32.xlu0 %v5808
    %v5810 = vpop.xlane.xlu0 %5809
    %v5811 = vrot.slane %v5810, 4
    %v5812 = vmax.f32 %v5810, %v5811
    %v5813 = vrot.slane %v5812, 2
    %v5814 = vmax.f32 %v5812, %v5813
    %v5815 = vrot.slane %v5814, 1
    %v5816 = vmax.f32 %v5814, %v5815
    %s5817 = vtos %v5816
    %v5818 = vstv %s5817
    %v5819 = vsub.f32 %v5798, %v5818
    %v5820 = vsub.f32 %v5803, %v5818
    %v5821 = vmul.f32 %v5819, 1.442695
    %v5822 = vpow.pop %v5821
    %v5823 = vmul.f32 %v5820, 1.442695
    %v5824 = vpow.pop %v5823
    %5826 = vset.pattern.permute.xlu0 0
    %5827 = vperm.xlu0 %5826, %v5822
    %v5828 = vpop.permute.xlu0 %5827
    %5831 = vset.pattern.permute.xlu0 0
    %5832 = vperm.xlu0 %5831, %v5824
    %v5833 = vpop.permute.xlu0 %5832
    %v5835 = vmul.f32 %v90, %v5828
    %v5836 = vmul.f32 %v91, %v5833
    %5837 = vmatprep.subr.mxu0 0.0
    %5838 = vmatpush1.msra.mxu0 0.0
    %5839 = vmatprep.subr.mxu0 0.0
    %5840 = vmatpush1.msra.mxu0 0.0
    %5841 = vmatprep.subr.mxu0 0.0
    %5842 = vmatpush1.msra.mxu0 0.0
    %5843 = vmatprep.subr.mxu0 0.0
    %5844 = vmatpush1.msra.mxu0 0.0
    %5845 = vmatprep.subr.mxu0 0.0
    %5846 = vmatpush1.msra.mxu0 0.0
    %5847 = vmatprep.subr.mxu0 0.0
    %5848 = vmatpush1.msra.mxu0 0.0
    %5849 = vmatprep.subr.mxu0 0.0
    %5850 = vmatpush1.msra.mxu0 0.0
    %5851 = vmatprep.subr.mxu0 0.0
    %5852 = vmatpush1.msra.mxu0 0.0
    %5853 = vmatprep.subr.mxu0 0.0
    %5854 = vmatpush1.msra.mxu0 0.0
    %5855 = vmatprep.subr.mxu0 0.0
    %5856 = vmatpush1.msra.mxu0 0.0
    %5857 = vmatprep.subr.mxu0 0.0
    %5858 = vmatpush1.msra.mxu0 0.0
    %5859 = vmatprep.subr.mxu0 0.0
    %5860 = vmatpush1.msra.mxu0 0.0
    %5861 = vmatprep.subr.mxu0 0.0
    %5862 = vmatpush1.msra.mxu0 0.0
    %5863 = vmatprep.subr.mxu0 0.0
    %5864 = vmatpush1.msra.mxu0 0.0
    %5865 = vmatprep.subr.mxu0 0.0
    %5866 = vmatpush1.msra.mxu0 %v5836
    %5867 = vmatprep.subr.mxu0 0.0
    %5868 = vmatpush1.msra.mxu0 %v5835
    %5869 = vmatprep.subr.mxu0 0.0
    %5870 = vmatpush2.msra.mxu0 0.0
    %5871 = vmatprep.subr.mxu0 0.0
    %5872 = vmatpush2.msra.mxu0 0.0
    %5873 = vmatprep.subr.mxu0 0.0
    %5874 = vmatpush2.msra.mxu0 0.0
    %5875 = vmatprep.subr.mxu0 0.0
    %5876 = vmatpush2.msra.mxu0 0.0
    %5877 = vmatprep.subr.mxu0 0.0
    %5878 = vmatpush2.msra.mxu0 0.0
    %5879 = vmatprep.subr.mxu0 0.0
    %5880 = vmatpush2.msra.mxu0 0.0
    %5881 = vmatprep.subr.mxu0 0.0
    %5882 = vmatpush2.msra.mxu0 0.0
    %5883 = vmatprep.subr.mxu0 0.0
    %5884 = vmatpush2.msra.mxu0 0.0
    %5885 = vmatprep.subr.mxu0 0.0
    %5886 = vmatpush2.msra.mxu0 0.0
    %5887 = vmatprep.subr.mxu0 0.0
    %5888 = vmatpush2.msra.mxu0 0.0
    %5889 = vmatprep.subr.mxu0 0.0
    %5890 = vmatpush2.msra.mxu0 0.0
    %5891 = vmatprep.subr.mxu0 0.0
    %5892 = vmatpush2.msra.mxu0 0.0
    %5893 = vmatprep.subr.mxu0 0.0
    %5894 = vmatpush2.msra.mxu0 0.0
    %5895 = vmatprep.subr.mxu0 0.0
    %5896 = vmatpush2.msra.mxu0 0.0
    %5897 = vmatprep.subr.mxu0 0.0
    %5898 = vmatpush2.msra.mxu0 0.0
    %5899 = vmatprep.subr.mxu0 0.0
    %5900 = vmatpush2.msra.mxu0 0.0
    %5901 = vmatprep.mubr.f32.mxu0 0.0
    %5902 = vmatmul.mubr.f32.gmra.mxu0 %v404
    %v5903 = vpop.f32.mrf.mxu0
    %v5904 = vadd.f32 0.0, %v5903
    %v5905 = vpop.f32.mrf.mxu0
    %5906 = vdwg.mxu0
    %5907 = vmatprep.subr.mxu0 0.0
    %5908 = vmatpush1.msra.mxu0 0.0
    %5909 = vmatprep.subr.mxu0 0.0
    %5910 = vmatpush1.msra.mxu0 0.0
    %5911 = vmatprep.subr.mxu0 0.0
    %5912 = vmatpush1.msra.mxu0 0.0
    %5913 = vmatprep.subr.mxu0 0.0
    %5914 = vmatpush1.msra.mxu0 0.0
    %5915 = vmatprep.subr.mxu0 0.0
    %5916 = vmatpush1.msra.mxu0 0.0
    %5917 = vmatprep.subr.mxu0 0.0
    %5918 = vmatpush1.msra.mxu0 0.0
    %5919 = vmatprep.subr.mxu0 0.0
    %5920 = vmatpush1.msra.mxu0 0.0
    %5921 = vmatprep.subr.mxu0 0.0
    %5922 = vmatpush1.msra.mxu0 0.0
    %5923 = vmatprep.subr.mxu0 0.0
    %5924 = vmatpush1.msra.mxu0 0.0
    %5925 = vmatprep.subr.mxu0 0.0
    %5926 = vmatpush1.msra.mxu0 0.0
    %5927 = vmatprep.subr.mxu0 0.0
    %5928 = vmatpush1.msra.mxu0 0.0
    %5929 = vmatprep.subr.mxu0 0.0
    %5930 = vmatpush1.msra.mxu0 0.0
    %5931 = vmatprep.subr.mxu0 0.0
    %5932 = vmatpush1.msra.mxu0 0.0
    %5933 = vmatprep.subr.mxu0 0.0
    %5934 = vmatpush1.msra.mxu0 0.0
    %5935 = vmatprep.subr.mxu0 0.0
    %5936 = vmatpush1.msra.mxu0 %v5824
    %5937 = vmatprep.subr.mxu0 0.0
    %5938 = vmatpush1.msra.mxu0 %v5822
    %5939 = vmatprep.subr.mxu0 0.0
    %5940 = vmatpush2.msra.mxu0 0.0
    %5941 = vmatprep.subr.mxu0 0.0
    %5942 = vmatpush2.msra.mxu0 0.0
    %5943 = vmatprep.subr.mxu0 0.0
    %5944 = vmatpush2.msra.mxu0 0.0
    %5945 = vmatprep.subr.mxu0 0.0
    %5946 = vmatpush2.msra.mxu0 0.0
    %5947 = vmatprep.subr.mxu0 0.0
    %5948 = vmatpush2.msra.mxu0 0.0
    %5949 = vmatprep.subr.mxu0 0.0
    %5950 = vmatpush2.msra.mxu0 0.0
    %5951 = vmatprep.subr.mxu0 0.0
    %5952 = vmatpush2.msra.mxu0 0.0
    %5953 = vmatprep.subr.mxu0 0.0
    %5954 = vmatpush2.msra.mxu0 0.0
    %5955 = vmatprep.subr.mxu0 0.0
    %5956 = vmatpush2.msra.mxu0 0.0
    %5957 = vmatprep.subr.mxu0 0.0
    %5958 = vmatpush2.msra.mxu0 0.0
    %5959 = vmatprep.subr.mxu0 0.0
    %5960 = vmatpush2.msra.mxu0 0.0
    %5961 = vmatprep.subr.mxu0 0.0
    %5962 = vmatpush2.msra.mxu0 0.0
    %5963 = vmatprep.subr.mxu0 0.0
    %5964 = vmatpush2.msra.mxu0 0.0
    %5965 = vmatprep.subr.mxu0 0.0
    %5966 = vmatpush2.msra.mxu0 0.0
    %5967 = vmatprep.subr.mxu0 0.0
    %5968 = vmatpush2.msra.mxu0 0.0
    %5969 = vmatprep.subr.mxu0 0.0
    %5970 = vmatpush2.msra.mxu0 0.0
    %5971 = vmatprep.mubr.f32.mxu0 0.0
    %5972 = vmatmul.mubr.f32.gmra.mxu0 %v404
    %v5973 = vpop.f32.mrf.mxu0
    %v5974 = vadd.f32 0.0, %v5973
    %v5975 = vpop.f32.mrf.mxu0
    %5976 = vdwg.mxu0
    %v5978 = vsel %vm96, %v5904, 0
    %5980 = vmatprep.subr.mxu0 0.0
    %5981 = vmatpush1.msra.mxu0 0.0
    %5982 = vmatprep.subr.mxu0 0.0
    %5983 = vmatpush1.msra.mxu0 0.0
    %5984 = vmatprep.subr.mxu0 0.0
    %5985 = vmatpush1.msra.mxu0 0.0
    %5986 = vmatprep.subr.mxu0 0.0
    %5987 = vmatpush1.msra.mxu0 0.0
    %5988 = vmatprep.subr.mxu0 0.0
    %5989 = vmatpush1.msra.mxu0 0.0
    %5990 = vmatprep.subr.mxu0 0.0
    %5991 = vmatpush1.msra.mxu0 0.0
    %5992 = vmatprep.subr.mxu0 0.0
    %5993 = vmatpush1.msra.mxu0 0.0
    %5994 = vmatprep.subr.mxu0 0.0
    %5995 = vmatpush1.msra.mxu0 0.0
    %5996 = vmatprep.subr.mxu0 0.0
    %5997 = vmatpush1.msra.mxu0 0.0
    %5998 = vmatprep.subr.mxu0 0.0
    %5999 = vmatpush1.msra.mxu0 0.0
    %6000 = vmatprep.subr.mxu0 0.0
    %6001 = vmatpush1.msra.mxu0 0.0
    %6002 = vmatprep.subr.mxu0 0.0
    %6003 = vmatpush1.msra.mxu0 0.0
    %6004 = vmatprep.subr.mxu0 0.0
    %6005 = vmatpush1.msra.mxu0 %v190
    %6006 = vmatprep.subr.mxu0 0.0
    %6007 = vmatpush1.msra.mxu0 %v189
    %6008 = vmatprep.subr.mxu0 0.0
    %6009 = vmatpush1.msra.mxu0 %v188
    %6010 = vmatprep.subr.mxu0 0.0
    %6011 = vmatpush1.msra.mxu0 %v187
    %6012 = vmatprep.subr.mxu0 0.0
    %6013 = vmatpush2.msra.mxu0 0.0
    %6014 = vmatprep.subr.mxu0 0.0
    %6015 = vmatpush2.msra.mxu0 0.0
    %6016 = vmatprep.subr.mxu0 0.0
    %6017 = vmatpush2.msra.mxu0 0.0
    %6018 = vmatprep.subr.mxu0 0.0
    %6019 = vmatpush2.msra.mxu0 0.0
    %6020 = vmatprep.subr.mxu0 0.0
    %6021 = vmatpush2.msra.mxu0 0.0
    %6022 = vmatprep.subr.mxu0 0.0
    %6023 = vmatpush2.msra.mxu0 0.0
    %6024 = vmatprep.subr.mxu0 0.0
    %6025 = vmatpush2.msra.mxu0 0.0
    %6026 = vmatprep.subr.mxu0 0.0
    %6027 = vmatpush2.msra.mxu0 0.0
    %6028 = vmatprep.subr.mxu0 0.0
    %6029 = vmatpush2.msra.mxu0 0.0
    %6030 = vmatprep.subr.mxu0 0.0
    %6031 = vmatpush2.msra.mxu0 0.0
    %6032 = vmatprep.subr.mxu0 0.0
    %6033 = vmatpush2.msra.mxu0 0.0
    %6034 = vmatprep.subr.mxu0 0.0
    %6035 = vmatpush2.msra.mxu0 0.0
    %6036 = vmatprep.subr.mxu0 0.0
    %6037 = vmatpush2.msra.mxu0 0.0
    %6038 = vmatprep.subr.mxu0 0.0
    %6039 = vmatpush2.msra.mxu0 0.0
    %6040 = vmatprep.subr.mxu0 0.0
    %6041 = vmatpush2.msra.mxu0 0.0
    %6042 = vmatprep.subr.mxu0 0.0
    %6043 = vmatpush2.msra.mxu0 0.0
    %6044 = vmatprep.mubr.f32.mxu0 0.0
    %6045 = vmatmul.mubr.f32.gmra.mxu0 %v5978
    %v6046 = vpop.f32.mrf.mxu0
    %v6047 = vadd.f32 0.0, %v6046
    %v6048 = vpop.f32.mrf.mxu0
    %6049 = vdwg.mxu0
    %v6050 = vrcp.pop %v5974
    %6052 = vset.pattern.permute.xlu0 0
    %6053 = vperm.xlu0 %6052, %v6050
    %v6054 = vpop.permute.xlu0 %6053
    %v6056 = vmul.f32 %v6047, %v6054
    %v6057 = vadd.f32 %v6056, %v630
    %6058 = vrot.lane.b32.xlu0 %v5708, 96
    %v6059 = vpop.permute.xlu0 %6058
    %v6061 = vadd.f32 %v6057, %v6059
    %v6062 = vxor.u32 %v6061, 2147483648
    %v6063 = vmul.f32 %v6062, 1.442695
    %v6064 = vpow.pop %v6063
    %v6065 = vadd.f32 %v6064, 1.0
    %v6066 = vrcp.pop %v6065
    %v6067 = vmul.f32 1.0, %v6066
    %6068 = vrot.lane.b32.xlu0 %v5708, 32
    %v6069 = vpop.permute.xlu0 %6068
    %v6071 = vmul.f32 %v6067, %v6069
    %6073 = vrot.lane.b32.xlu0 %v6071, 64
    %v6074 = vpop.permute.xlu0 %6073
    %v6076 = vadd.f32 %v6057, %v6074
    %v6077 = vtanh.pop %v6076
    %v6078 = vsub.f32 1.0, %v6067
    %6080 = vrot.lane.b32.xlu0 %v6077, 96
    %v6081 = vpop.permute.xlu0 %6080
    %v6083 = vmul.f32 %v6078, %v6081
    %v6084 = vmul.f32 %v6067, %v5633
    %v6085 = vadd.f32 %v6083, %v6084
    %6087 = vrot.lane.b32.xlu0 %v6085, 96
    %v6088 = vpop.permute.xlu0 %6087
    %6090 = vst.msk [vmem:[#allocation2 + $0x18] sm:$0x3] %vm665, %v6088
    %v6091 = vsel %vm96, %v6088, 0
    %6093 = vmatprep.subr.mxu0 0.0
    %6094 = vmatpush1.msra.mxu0 0.0
    %6095 = vmatprep.subr.mxu0 0.0
    %6096 = vmatpush1.msra.mxu0 0.0
    %6097 = vmatprep.subr.mxu0 0.0
    %6098 = vmatpush1.msra.mxu0 0.0
    %6099 = vmatprep.subr.mxu0 0.0
    %6100 = vmatpush1.msra.mxu0 0.0
    %6101 = vmatprep.subr.mxu0 0.0
    %6102 = vmatpush1.msra.mxu0 0.0
    %6103 = vmatprep.subr.mxu0 0.0
    %6104 = vmatpush1.msra.mxu0 0.0
    %6105 = vmatprep.subr.mxu0 0.0
    %6106 = vmatpush1.msra.mxu0 0.0
    %6107 = vmatprep.subr.mxu0 0.0
    %6108 = vmatpush1.msra.mxu0 0.0
    %6109 = vmatprep.subr.mxu0 0.0
    %6110 = vmatpush1.msra.mxu0 0.0
    %6111 = vmatprep.subr.mxu0 0.0
    %6112 = vmatpush1.msra.mxu0 0.0
    %6113 = vmatprep.subr.mxu0 0.0
    %6114 = vmatpush1.msra.mxu0 0.0
    %6115 = vmatprep.subr.mxu0 0.0
    %6116 = vmatpush1.msra.mxu0 0.0
    %6117 = vmatprep.subr.mxu0 0.0
    %6118 = vmatpush1.msra.mxu0 %v181
    %6119 = vmatprep.subr.mxu0 0.0
    %6120 = vmatpush1.msra.mxu0 %v180
    %6121 = vmatprep.subr.mxu0 0.0
    %6122 = vmatpush1.msra.mxu0 %v179
    %6123 = vmatprep.subr.mxu0 0.0
    %6124 = vmatpush1.msra.mxu0 %v178
    %6125 = vmatprep.subr.mxu0 0.0
    %6126 = vmatpush2.msra.mxu0 0.0
    %6127 = vmatprep.subr.mxu0 0.0
    %6128 = vmatpush2.msra.mxu0 0.0
    %6129 = vmatprep.subr.mxu0 0.0
    %6130 = vmatpush2.msra.mxu0 0.0
    %6131 = vmatprep.subr.mxu0 0.0
    %6132 = vmatpush2.msra.mxu0 0.0
    %6133 = vmatprep.subr.mxu0 0.0
    %6134 = vmatpush2.msra.mxu0 0.0
    %6135 = vmatprep.subr.mxu0 0.0
    %6136 = vmatpush2.msra.mxu0 0.0
    %6137 = vmatprep.subr.mxu0 0.0
    %6138 = vmatpush2.msra.mxu0 0.0
    %6139 = vmatprep.subr.mxu0 0.0
    %6140 = vmatpush2.msra.mxu0 0.0
    %6141 = vmatprep.subr.mxu0 0.0
    %6142 = vmatpush2.msra.mxu0 0.0
    %6143 = vmatprep.subr.mxu0 0.0
    %6144 = vmatpush2.msra.mxu0 0.0
    %6145 = vmatprep.subr.mxu0 0.0
    %6146 = vmatpush2.msra.mxu0 0.0
    %6147 = vmatprep.subr.mxu0 0.0
    %6148 = vmatpush2.msra.mxu0 0.0
    %6149 = vmatprep.subr.mxu0 0.0
    %6150 = vmatpush2.msra.mxu0 0.0
    %6151 = vmatprep.subr.mxu0 0.0
    %6152 = vmatpush2.msra.mxu0 0.0
    %6153 = vmatprep.subr.mxu0 0.0
    %6154 = vmatpush2.msra.mxu0 0.0
    %6155 = vmatprep.subr.mxu0 0.0
    %6156 = vmatpush2.msra.mxu0 0.0
    %6157 = vmatprep.mubr.f32.mxu0 0.0
    %6158 = vmatmul.mubr.f32.gmra.mxu0 %v6091
    %v6159 = vpop.f32.mrf.mxu0
    %v6160 = vadd.f32 %v197, %v6159
    %v6161 = vpop.f32.mrf.mxu0
    %6162 = vdwg.mxu0
    %v6164 = vrot.slane %v6160, 6
    %v6166 = vrot.slane %v6160, 4
    %v6168 = vrot.slane %v6160, 2
    %v6170 = vsel %vm279, %v6160, %v6164
    %v6171 = vsel %vm281, %v6170, %v6166
    %v6172 = vsel %vm283, %v6171, %v6168
    %v6173 = vadd.f32 %v170, %v6172
    %v6174 = vadd.f32 %v175, %v6172
    %v6175 = vtanh.pop %v6173
    %v6176 = vtanh.pop %v6174
    %v6178 = vsel %vm96, %v6175, 0
    %v6181 = vsel %vm96, %v6176, 0
    %6183 = vmatprep.subr.mxu0 0.0
    %6184 = vmatpush1.msra.mxu0 0.0
    %6185 = vmatprep.subr.mxu0 0.0
    %6186 = vmatpush1.msra.mxu0 0.0
    %6187 = vmatprep.subr.mxu0 0.0
    %6188 = vmatpush1.msra.mxu0 0.0
    %6189 = vmatprep.subr.mxu0 0.0
    %6190 = vmatpush1.msra.mxu0 0.0
    %6191 = vmatprep.subr.mxu0 0.0
    %6192 = vmatpush1.msra.mxu0 0.0
    %6193 = vmatprep.subr.mxu0 0.0
    %6194 = vmatpush1.msra.mxu0 0.0
    %6195 = vmatprep.subr.mxu0 0.0
    %6196 = vmatpush1.msra.mxu0 0.0
    %6197 = vmatprep.subr.mxu0 0.0
    %6198 = vmatpush1.msra.mxu0 0.0
    %6199 = vmatprep.subr.mxu0 0.0
    %6200 = vmatpush1.msra.mxu0 0.0
    %6201 = vmatprep.subr.mxu0 0.0
    %6202 = vmatpush1.msra.mxu0 0.0
    %6203 = vmatprep.subr.mxu0 0.0
    %6204 = vmatpush1.msra.mxu0 0.0
    %6205 = vmatprep.subr.mxu0 0.0
    %6206 = vmatpush1.msra.mxu0 0.0
    %6207 = vmatprep.subr.mxu0 0.0
    %6208 = vmatpush1.msra.mxu0 %v186
    %6209 = vmatprep.subr.mxu0 0.0
    %6210 = vmatpush1.msra.mxu0 %v185
    %6211 = vmatprep.subr.mxu0 0.0
    %6212 = vmatpush1.msra.mxu0 %v184
    %6213 = vmatprep.subr.mxu0 0.0
    %6214 = vmatpush1.msra.mxu0 %v183
    %6215 = vmatprep.subr.mxu0 0.0
    %6216 = vmatpush2.msra.mxu0 0.0
    %6217 = vmatprep.subr.mxu0 0.0
    %6218 = vmatpush2.msra.mxu0 0.0
    %6219 = vmatprep.subr.mxu0 0.0
    %6220 = vmatpush2.msra.mxu0 0.0
    %6221 = vmatprep.subr.mxu0 0.0
    %6222 = vmatpush2.msra.mxu0 0.0
    %6223 = vmatprep.subr.mxu0 0.0
    %6224 = vmatpush2.msra.mxu0 0.0
    %6225 = vmatprep.subr.mxu0 0.0
    %6226 = vmatpush2.msra.mxu0 0.0
    %6227 = vmatprep.subr.mxu0 0.0
    %6228 = vmatpush2.msra.mxu0 0.0
    %6229 = vmatprep.subr.mxu0 0.0
    %6230 = vmatpush2.msra.mxu0 0.0
    %6231 = vmatprep.subr.mxu0 0.0
    %6232 = vmatpush2.msra.mxu0 0.0
    %6233 = vmatprep.subr.mxu0 0.0
    %6234 = vmatpush2.msra.mxu0 0.0
    %6235 = vmatprep.subr.mxu0 0.0
    %6236 = vmatpush2.msra.mxu0 0.0
    %6237 = vmatprep.subr.mxu0 0.0
    %6238 = vmatpush2.msra.mxu0 0.0
    %6239 = vmatprep.subr.mxu0 0.0
    %6240 = vmatpush2.msra.mxu0 0.0
    %6241 = vmatprep.subr.mxu0 0.0
    %6242 = vmatpush2.msra.mxu0 0.0
    %6243 = vmatprep.subr.mxu0 0.0
    %6244 = vmatpush2.msra.mxu0 0.0
    %6245 = vmatprep.subr.mxu0 0.0
    %6246 = vmatpush2.msra.mxu0 0.0
    %6247 = vmatprep.mubr.f32.mxu0 0.0
    %6248 = vmatmul.mubr.f32.gmra.mxu0 %v6178
    %v6249 = vpop.f32.mrf.mxu0
    %v6250 = vadd.f32 0.0, %v6249
    %v6251 = vpop.f32.mrf.mxu0
    %6252 = vmatprep.mubr.f32.mxu0 0.0
    %6253 = vmatmul.mubr.f32.gmra.mxu0 %v6181
    %v6254 = vpop.f32.mrf.mxu0
    %v6255 = vadd.f32 0.0, %v6254
    %v6256 = vpop.f32.mrf.mxu0
    %6257 = vdwg.mxu0
    %v6258 = vsel %vm370, %v6250, -inf
    %v6259 = vsel %vm370, %v6255, -inf
    %v6260 = vmax.f32 %v6258, %v6259
    %6261 = vmax.xlane.f32.xlu0 %v6260
    %v6262 = vpop.xlane.xlu0 %6261
    %v6263 = vrot.slane %v6262, 4
    %v6264 = vmax.f32 %v6262, %v6263
    %v6265 = vrot.slane %v6264, 2
    %v6266 = vmax.f32 %v6264, %v6265
    %v6267 = vrot.slane %v6266, 1
    %v6268 = vmax.f32 %v6266, %v6267
    %s6269 = vtos %v6268
    %v6270 = vstv %s6269
    %v6271 = vsub.f32 %v6250, %v6270
    %v6272 = vsub.f32 %v6255, %v6270
    %v6273 = vmul.f32 %v6271, 1.442695
    %v6274 = vpow.pop %v6273
    %v6275 = vmul.f32 %v6272, 1.442695
    %v6276 = vpow.pop %v6275
    %6278 = vset.pattern.permute.xlu0 0
    %6279 = vperm.xlu0 %6278, %v6274
    %v6280 = vpop.permute.xlu0 %6279
    %6283 = vset.pattern.permute.xlu0 0
    %6284 = vperm.xlu0 %6283, %v6276
    %v6285 = vpop.permute.xlu0 %6284
    %v6287 = vmul.f32 %v90, %v6280
    %v6288 = vmul.f32 %v91, %v6285
    %6289 = vmatprep.subr.mxu0 0.0
    %6290 = vmatpush1.msra.mxu0 0.0
    %6291 = vmatprep.subr.mxu0 0.0
    %6292 = vmatpush1.msra.mxu0 0.0
    %6293 = vmatprep.subr.mxu0 0.0
    %6294 = vmatpush1.msra.mxu0 0.0
    %6295 = vmatprep.subr.mxu0 0.0
    %6296 = vmatpush1.msra.mxu0 0.0
    %6297 = vmatprep.subr.mxu0 0.0
    %6298 = vmatpush1.msra.mxu0 0.0
    %6299 = vmatprep.subr.mxu0 0.0
    %6300 = vmatpush1.msra.mxu0 0.0
    %6301 = vmatprep.subr.mxu0 0.0
    %6302 = vmatpush1.msra.mxu0 0.0
    %6303 = vmatprep.subr.mxu0 0.0
    %6304 = vmatpush1.msra.mxu0 0.0
    %6305 = vmatprep.subr.mxu0 0.0
    %6306 = vmatpush1.msra.mxu0 0.0
    %6307 = vmatprep.subr.mxu0 0.0
    %6308 = vmatpush1.msra.mxu0 0.0
    %6309 = vmatprep.subr.mxu0 0.0
    %6310 = vmatpush1.msra.mxu0 0.0
    %6311 = vmatprep.subr.mxu0 0.0
    %6312 = vmatpush1.msra.mxu0 0.0
    %6313 = vmatprep.subr.mxu0 0.0
    %6314 = vmatpush1.msra.mxu0 0.0
    %6315 = vmatprep.subr.mxu0 0.0
    %6316 = vmatpush1.msra.mxu0 0.0
    %6317 = vmatprep.subr.mxu0 0.0
    %6318 = vmatpush1.msra.mxu0 %v6288
    %6319 = vmatprep.subr.mxu0 0.0
    %6320 = vmatpush1.msra.mxu0 %v6287
    %6321 = vmatprep.subr.mxu0 0.0
    %6322 = vmatpush2.msra.mxu0 0.0
    %6323 = vmatprep.subr.mxu0 0.0
    %6324 = vmatpush2.msra.mxu0 0.0
    %6325 = vmatprep.subr.mxu0 0.0
    %6326 = vmatpush2.msra.mxu0 0.0
    %6327 = vmatprep.subr.mxu0 0.0
    %6328 = vmatpush2.msra.mxu0 0.0
    %6329 = vmatprep.subr.mxu0 0.0
    %6330 = vmatpush2.msra.mxu0 0.0
    %6331 = vmatprep.subr.mxu0 0.0
    %6332 = vmatpush2.msra.mxu0 0.0
    %6333 = vmatprep.subr.mxu0 0.0
    %6334 = vmatpush2.msra.mxu0 0.0
    %6335 = vmatprep.subr.mxu0 0.0
    %6336 = vmatpush2.msra.mxu0 0.0
    %6337 = vmatprep.subr.mxu0 0.0
    %6338 = vmatpush2.msra.mxu0 0.0
    %6339 = vmatprep.subr.mxu0 0.0
    %6340 = vmatpush2.msra.mxu0 0.0
    %6341 = vmatprep.subr.mxu0 0.0
    %6342 = vmatpush2.msra.mxu0 0.0
    %6343 = vmatprep.subr.mxu0 0.0
    %6344 = vmatpush2.msra.mxu0 0.0
    %6345 = vmatprep.subr.mxu0 0.0
    %6346 = vmatpush2.msra.mxu0 0.0
    %6347 = vmatprep.subr.mxu0 0.0
    %6348 = vmatpush2.msra.mxu0 0.0
    %6349 = vmatprep.subr.mxu0 0.0
    %6350 = vmatpush2.msra.mxu0 0.0
    %6351 = vmatprep.subr.mxu0 0.0
    %6352 = vmatpush2.msra.mxu0 0.0
    %6353 = vmatprep.mubr.f32.mxu0 0.0
    %6354 = vmatmul.mubr.f32.gmra.mxu0 %v404
    %v6355 = vpop.f32.mrf.mxu0
    %v6356 = vadd.f32 0.0, %v6355
    %v6357 = vpop.f32.mrf.mxu0
    %6358 = vdwg.mxu0
    %6359 = vmatprep.subr.mxu0 0.0
    %6360 = vmatpush1.msra.mxu0 0.0
    %6361 = vmatprep.subr.mxu0 0.0
    %6362 = vmatpush1.msra.mxu0 0.0
    %6363 = vmatprep.subr.mxu0 0.0
    %6364 = vmatpush1.msra.mxu0 0.0
    %6365 = vmatprep.subr.mxu0 0.0
    %6366 = vmatpush1.msra.mxu0 0.0
    %6367 = vmatprep.subr.mxu0 0.0
    %6368 = vmatpush1.msra.mxu0 0.0
    %6369 = vmatprep.subr.mxu0 0.0
    %6370 = vmatpush1.msra.mxu0 0.0
    %6371 = vmatprep.subr.mxu0 0.0
    %6372 = vmatpush1.msra.mxu0 0.0
    %6373 = vmatprep.subr.mxu0 0.0
    %6374 = vmatpush1.msra.mxu0 0.0
    %6375 = vmatprep.subr.mxu0 0.0
    %6376 = vmatpush1.msra.mxu0 0.0
    %6377 = vmatprep.subr.mxu0 0.0
    %6378 = vmatpush1.msra.mxu0 0.0
    %6379 = vmatprep.subr.mxu0 0.0
    %6380 = vmatpush1.msra.mxu0 0.0
    %6381 = vmatprep.subr.mxu0 0.0
    %6382 = vmatpush1.msra.mxu0 0.0
    %6383 = vmatprep.subr.mxu0 0.0
    %6384 = vmatpush1.msra.mxu0 0.0
    %6385 = vmatprep.subr.mxu0 0.0
    %6386 = vmatpush1.msra.mxu0 0.0
    %6387 = vmatprep.subr.mxu0 0.0
    %6388 = vmatpush1.msra.mxu0 %v6276
    %6389 = vmatprep.subr.mxu0 0.0
    %6390 = vmatpush1.msra.mxu0 %v6274
    %6391 = vmatprep.subr.mxu0 0.0
    %6392 = vmatpush2.msra.mxu0 0.0
    %6393 = vmatprep.subr.mxu0 0.0
    %6394 = vmatpush2.msra.mxu0 0.0
    %6395 = vmatprep.subr.mxu0 0.0
    %6396 = vmatpush2.msra.mxu0 0.0
    %6397 = vmatprep.subr.mxu0 0.0
    %6398 = vmatpush2.msra.mxu0 0.0
    %6399 = vmatprep.subr.mxu0 0.0
    %6400 = vmatpush2.msra.mxu0 0.0
    %6401 = vmatprep.subr.mxu0 0.0
    %6402 = vmatpush2.msra.mxu0 0.0
    %6403 = vmatprep.subr.mxu0 0.0
    %6404 = vmatpush2.msra.mxu0 0.0
    %6405 = vmatprep.subr.mxu0 0.0
    %6406 = vmatpush2.msra.mxu0 0.0
    %6407 = vmatprep.subr.mxu0 0.0
    %6408 = vmatpush2.msra.mxu0 0.0
    %6409 = vmatprep.subr.mxu0 0.0
    %6410 = vmatpush2.msra.mxu0 0.0
    %6411 = vmatprep.subr.mxu0 0.0
    %6412 = vmatpush2.msra.mxu0 0.0
    %6413 = vmatprep.subr.mxu0 0.0
    %6414 = vmatpush2.msra.mxu0 0.0
    %6415 = vmatprep.subr.mxu0 0.0
    %6416 = vmatpush2.msra.mxu0 0.0
    %6417 = vmatprep.subr.mxu0 0.0
    %6418 = vmatpush2.msra.mxu0 0.0
    %6419 = vmatprep.subr.mxu0 0.0
    %6420 = vmatpush2.msra.mxu0 0.0
    %6421 = vmatprep.subr.mxu0 0.0
    %6422 = vmatpush2.msra.mxu0 0.0
    %6423 = vmatprep.mubr.f32.mxu0 0.0
    %6424 = vmatmul.mubr.f32.gmra.mxu0 %v404
    %v6425 = vpop.f32.mrf.mxu0
    %v6426 = vadd.f32 0.0, %v6425
    %v6427 = vpop.f32.mrf.mxu0
    %6428 = vdwg.mxu0
    %v6430 = vsel %vm96, %v6356, 0
    %6432 = vmatprep.subr.mxu0 0.0
    %6433 = vmatpush1.msra.mxu0 0.0
    %6434 = vmatprep.subr.mxu0 0.0
    %6435 = vmatpush1.msra.mxu0 0.0
    %6436 = vmatprep.subr.mxu0 0.0
    %6437 = vmatpush1.msra.mxu0 0.0
    %6438 = vmatprep.subr.mxu0 0.0
    %6439 = vmatpush1.msra.mxu0 0.0
    %6440 = vmatprep.subr.mxu0 0.0
    %6441 = vmatpush1.msra.mxu0 0.0
    %6442 = vmatprep.subr.mxu0 0.0
    %6443 = vmatpush1.msra.mxu0 0.0
    %6444 = vmatprep.subr.mxu0 0.0
    %6445 = vmatpush1.msra.mxu0 0.0
    %6446 = vmatprep.subr.mxu0 0.0
    %6447 = vmatpush1.msra.mxu0 0.0
    %6448 = vmatprep.subr.mxu0 0.0
    %6449 = vmatpush1.msra.mxu0 0.0
    %6450 = vmatprep.subr.mxu0 0.0
    %6451 = vmatpush1.msra.mxu0 0.0
    %6452 = vmatprep.subr.mxu0 0.0
    %6453 = vmatpush1.msra.mxu0 0.0
    %6454 = vmatprep.subr.mxu0 0.0
    %6455 = vmatpush1.msra.mxu0 0.0
    %6456 = vmatprep.subr.mxu0 0.0
    %6457 = vmatpush1.msra.mxu0 %v190
    %6458 = vmatprep.subr.mxu0 0.0
    %6459 = vmatpush1.msra.mxu0 %v189
    %6460 = vmatprep.subr.mxu0 0.0
    %6461 = vmatpush1.msra.mxu0 %v188
    %6462 = vmatprep.subr.mxu0 0.0
    %6463 = vmatpush1.msra.mxu0 %v187
    %6464 = vmatprep.subr.mxu0 0.0
    %6465 = vmatpush2.msra.mxu0 0.0
    %6466 = vmatprep.subr.mxu0 0.0
    %6467 = vmatpush2.msra.mxu0 0.0
    %6468 = vmatprep.subr.mxu0 0.0
    %6469 = vmatpush2.msra.mxu0 0.0
    %6470 = vmatprep.subr.mxu0 0.0
    %6471 = vmatpush2.msra.mxu0 0.0
    %6472 = vmatprep.subr.mxu0 0.0
    %6473 = vmatpush2.msra.mxu0 0.0
    %6474 = vmatprep.subr.mxu0 0.0
    %6475 = vmatpush2.msra.mxu0 0.0
    %6476 = vmatprep.subr.mxu0 0.0
    %6477 = vmatpush2.msra.mxu0 0.0
    %6478 = vmatprep.subr.mxu0 0.0
    %6479 = vmatpush2.msra.mxu0 0.0
    %6480 = vmatprep.subr.mxu0 0.0
    %6481 = vmatpush2.msra.mxu0 0.0
    %6482 = vmatprep.subr.mxu0 0.0
    %6483 = vmatpush2.msra.mxu0 0.0
    %6484 = vmatprep.subr.mxu0 0.0
    %6485 = vmatpush2.msra.mxu0 0.0
    %6486 = vmatprep.subr.mxu0 0.0
    %6487 = vmatpush2.msra.mxu0 0.0
    %6488 = vmatprep.subr.mxu0 0.0
    %6489 = vmatpush2.msra.mxu0 0.0
    %6490 = vmatprep.subr.mxu0 0.0
    %6491 = vmatpush2.msra.mxu0 0.0
    %6492 = vmatprep.subr.mxu0 0.0
    %6493 = vmatpush2.msra.mxu0 0.0
    %6494 = vmatprep.subr.mxu0 0.0
    %6495 = vmatpush2.msra.mxu0 0.0
    %6496 = vmatprep.mubr.f32.mxu0 0.0
    %6497 = vmatmul.mubr.f32.gmra.mxu0 %v6430
    %v6498 = vpop.f32.mrf.mxu0
    %v6499 = vadd.f32 0.0, %v6498
    %v6500 = vpop.f32.mrf.mxu0
    %6501 = vdwg.mxu0
    %v6502 = vrcp.pop %v6426
    %6504 = vset.pattern.permute.xlu0 0
    %6505 = vperm.xlu0 %6504, %v6502
    %v6506 = vpop.permute.xlu0 %6505
    %v6508 = vmul.f32 %v6499, %v6506
    %v6509 = vadd.f32 %v6508, %v630
    %6510 = vrot.lane.b32.xlu0 %v6160, 96
    %v6511 = vpop.permute.xlu0 %6510
    %v6513 = vadd.f32 %v6509, %v6511
    %v6514 = vxor.u32 %v6513, 2147483648
    %v6515 = vmul.f32 %v6514, 1.442695
    %v6516 = vpow.pop %v6515
    %v6517 = vadd.f32 %v6516, 1.0
    %v6518 = vrcp.pop %v6517
    %v6519 = vmul.f32 1.0, %v6518
    %6520 = vrot.lane.b32.xlu0 %v6160, 32
    %v6521 = vpop.permute.xlu0 %6520
    %v6523 = vmul.f32 %v6519, %v6521
    %6525 = vrot.lane.b32.xlu0 %v6523, 64
    %v6526 = vpop.permute.xlu0 %6525
    %v6528 = vadd.f32 %v6509, %v6526
    %v6529 = vtanh.pop %v6528
    %v6530 = vsub.f32 1.0, %v6519
    %6532 = vrot.lane.b32.xlu0 %v6529, 96
    %v6533 = vpop.permute.xlu0 %6532
    %v6535 = vmul.f32 %v6530, %v6533
    %v6536 = vmul.f32 %v6519, %v6085
    %v6537 = vadd.f32 %v6535, %v6536
    %6539 = vrot.lane.b32.xlu0 %v6537, 96
    %v6540 = vpop.permute.xlu0 %6539
    %6542 = vst.msk [vmem:[#allocation2 + $0x1a] sm:$0x3] %vm665, %v6540
    %v6543 = vsel %vm96, %v6540, 0
    %6545 = vmatprep.subr.mxu0 0.0
    %6546 = vmatpush1.msra.mxu0 0.0
    %6547 = vmatprep.subr.mxu0 0.0
    %6548 = vmatpush1.msra.mxu0 0.0
    %6549 = vmatprep.subr.mxu0 0.0
    %6550 = vmatpush1.msra.mxu0 0.0
    %6551 = vmatprep.subr.mxu0 0.0
    %6552 = vmatpush1.msra.mxu0 0.0
    %6553 = vmatprep.subr.mxu0 0.0
    %6554 = vmatpush1.msra.mxu0 0.0
    %6555 = vmatprep.subr.mxu0 0.0
    %6556 = vmatpush1.msra.mxu0 0.0
    %6557 = vmatprep.subr.mxu0 0.0
    %6558 = vmatpush1.msra.mxu0 0.0
    %6559 = vmatprep.subr.mxu0 0.0
    %6560 = vmatpush1.msra.mxu0 0.0
    %6561 = vmatprep.subr.mxu0 0.0
    %6562 = vmatpush1.msra.mxu0 0.0
    %6563 = vmatprep.subr.mxu0 0.0
    %6564 = vmatpush1.msra.mxu0 0.0
    %6565 = vmatprep.subr.mxu0 0.0
    %6566 = vmatpush1.msra.mxu0 0.0
    %6567 = vmatprep.subr.mxu0 0.0
    %6568 = vmatpush1.msra.mxu0 0.0
    %6569 = vmatprep.subr.mxu0 0.0
    %6570 = vmatpush1.msra.mxu0 %v181
    %6571 = vmatprep.subr.mxu0 0.0
    %6572 = vmatpush1.msra.mxu0 %v180
    %6573 = vmatprep.subr.mxu0 0.0
    %6574 = vmatpush1.msra.mxu0 %v179
    %6575 = vmatprep.subr.mxu0 0.0
    %6576 = vmatpush1.msra.mxu0 %v178
    %6577 = vmatprep.subr.mxu0 0.0
    %6578 = vmatpush2.msra.mxu0 0.0
    %6579 = vmatprep.subr.mxu0 0.0
    %6580 = vmatpush2.msra.mxu0 0.0
    %6581 = vmatprep.subr.mxu0 0.0
    %6582 = vmatpush2.msra.mxu0 0.0
    %6583 = vmatprep.subr.mxu0 0.0
    %6584 = vmatpush2.msra.mxu0 0.0
    %6585 = vmatprep.subr.mxu0 0.0
    %6586 = vmatpush2.msra.mxu0 0.0
    %6587 = vmatprep.subr.mxu0 0.0
    %6588 = vmatpush2.msra.mxu0 0.0
    %6589 = vmatprep.subr.mxu0 0.0
    %6590 = vmatpush2.msra.mxu0 0.0
    %6591 = vmatprep.subr.mxu0 0.0
    %6592 = vmatpush2.msra.mxu0 0.0
    %6593 = vmatprep.subr.mxu0 0.0
    %6594 = vmatpush2.msra.mxu0 0.0
    %6595 = vmatprep.subr.mxu0 0.0
    %6596 = vmatpush2.msra.mxu0 0.0
    %6597 = vmatprep.subr.mxu0 0.0
    %6598 = vmatpush2.msra.mxu0 0.0
    %6599 = vmatprep.subr.mxu0 0.0
    %6600 = vmatpush2.msra.mxu0 0.0
    %6601 = vmatprep.subr.mxu0 0.0
    %6602 = vmatpush2.msra.mxu0 0.0
    %6603 = vmatprep.subr.mxu0 0.0
    %6604 = vmatpush2.msra.mxu0 0.0
    %6605 = vmatprep.subr.mxu0 0.0
    %6606 = vmatpush2.msra.mxu0 0.0
    %6607 = vmatprep.subr.mxu0 0.0
    %6608 = vmatpush2.msra.mxu0 0.0
    %6609 = vmatprep.mubr.f32.mxu0 0.0
    %6610 = vmatmul.mubr.f32.gmra.mxu0 %v6543
    %v6611 = vpop.f32.mrf.mxu0
    %v6612 = vadd.f32 %v197, %v6611
    %v6613 = vpop.f32.mrf.mxu0
    %6614 = vdwg.mxu0
    %v6616 = vrot.slane %v6612, 6
    %v6618 = vrot.slane %v6612, 4
    %v6620 = vrot.slane %v6612, 2
    %v6622 = vsel %vm279, %v6612, %v6616
    %v6623 = vsel %vm281, %v6622, %v6618
    %v6624 = vsel %vm283, %v6623, %v6620
    %v6625 = vadd.f32 %v170, %v6624
    %v6626 = vadd.f32 %v175, %v6624
    %v6627 = vtanh.pop %v6625
    %v6628 = vtanh.pop %v6626
    %v6630 = vsel %vm96, %v6627, 0
    %v6633 = vsel %vm96, %v6628, 0
    %6635 = vmatprep.subr.mxu0 0.0
    %6636 = vmatpush1.msra.mxu0 0.0
    %6637 = vmatprep.subr.mxu0 0.0
    %6638 = vmatpush1.msra.mxu0 0.0
    %6639 = vmatprep.subr.mxu0 0.0
    %6640 = vmatpush1.msra.mxu0 0.0
    %6641 = vmatprep.subr.mxu0 0.0
    %6642 = vmatpush1.msra.mxu0 0.0
    %6643 = vmatprep.subr.mxu0 0.0
    %6644 = vmatpush1.msra.mxu0 0.0
    %6645 = vmatprep.subr.mxu0 0.0
    %6646 = vmatpush1.msra.mxu0 0.0
    %6647 = vmatprep.subr.mxu0 0.0
    %6648 = vmatpush1.msra.mxu0 0.0
    %6649 = vmatprep.subr.mxu0 0.0
    %6650 = vmatpush1.msra.mxu0 0.0
    %6651 = vmatprep.subr.mxu0 0.0
    %6652 = vmatpush1.msra.mxu0 0.0
    %6653 = vmatprep.subr.mxu0 0.0
    %6654 = vmatpush1.msra.mxu0 0.0
    %6655 = vmatprep.subr.mxu0 0.0
    %6656 = vmatpush1.msra.mxu0 0.0
    %6657 = vmatprep.subr.mxu0 0.0
    %6658 = vmatpush1.msra.mxu0 0.0
    %6659 = vmatprep.subr.mxu0 0.0
    %6660 = vmatpush1.msra.mxu0 %v186
    %6661 = vmatprep.subr.mxu0 0.0
    %6662 = vmatpush1.msra.mxu0 %v185
    %6663 = vmatprep.subr.mxu0 0.0
    %6664 = vmatpush1.msra.mxu0 %v184
    %6665 = vmatprep.subr.mxu0 0.0
    %6666 = vmatpush1.msra.mxu0 %v183
    %6667 = vmatprep.subr.mxu0 0.0
    %6668 = vmatpush2.msra.mxu0 0.0
    %6669 = vmatprep.subr.mxu0 0.0
    %6670 = vmatpush2.msra.mxu0 0.0
    %6671 = vmatprep.subr.mxu0 0.0
    %6672 = vmatpush2.msra.mxu0 0.0
    %6673 = vmatprep.subr.mxu0 0.0
    %6674 = vmatpush2.msra.mxu0 0.0
    %6675 = vmatprep.subr.mxu0 0.0
    %6676 = vmatpush2.msra.mxu0 0.0
    %6677 = vmatprep.subr.mxu0 0.0
    %6678 = vmatpush2.msra.mxu0 0.0
    %6679 = vmatprep.subr.mxu0 0.0
    %6680 = vmatpush2.msra.mxu0 0.0
    %6681 = vmatprep.subr.mxu0 0.0
    %6682 = vmatpush2.msra.mxu0 0.0
    %6683 = vmatprep.subr.mxu0 0.0
    %6684 = vmatpush2.msra.mxu0 0.0
    %6685 = vmatprep.subr.mxu0 0.0
    %6686 = vmatpush2.msra.mxu0 0.0
    %6687 = vmatprep.subr.mxu0 0.0
    %6688 = vmatpush2.msra.mxu0 0.0
    %6689 = vmatprep.subr.mxu0 0.0
    %6690 = vmatpush2.msra.mxu0 0.0
    %6691 = vmatprep.subr.mxu0 0.0
    %6692 = vmatpush2.msra.mxu0 0.0
    %6693 = vmatprep.subr.mxu0 0.0
    %6694 = vmatpush2.msra.mxu0 0.0
    %6695 = vmatprep.subr.mxu0 0.0
    %6696 = vmatpush2.msra.mxu0 0.0
    %6697 = vmatprep.subr.mxu0 0.0
    %6698 = vmatpush2.msra.mxu0 0.0
    %6699 = vmatprep.mubr.f32.mxu0 0.0
    %6700 = vmatmul.mubr.f32.gmra.mxu0 %v6630
    %v6701 = vpop.f32.mrf.mxu0
    %v6702 = vadd.f32 0.0, %v6701
    %v6703 = vpop.f32.mrf.mxu0
    %6704 = vmatprep.mubr.f32.mxu0 0.0
    %6705 = vmatmul.mubr.f32.gmra.mxu0 %v6633
    %v6706 = vpop.f32.mrf.mxu0
    %v6707 = vadd.f32 0.0, %v6706
    %v6708 = vpop.f32.mrf.mxu0
    %6709 = vdwg.mxu0
    %v6710 = vsel %vm370, %v6702, -inf
    %v6711 = vsel %vm370, %v6707, -inf
    %v6712 = vmax.f32 %v6710, %v6711
    %6713 = vmax.xlane.f32.xlu0 %v6712
    %v6714 = vpop.xlane.xlu0 %6713
    %v6715 = vrot.slane %v6714, 4
    %v6716 = vmax.f32 %v6714, %v6715
    %v6717 = vrot.slane %v6716, 2
    %v6718 = vmax.f32 %v6716, %v6717
    %v6719 = vrot.slane %v6718, 1
    %v6720 = vmax.f32 %v6718, %v6719
    %s6721 = vtos %v6720
    %v6722 = vstv %s6721
    %v6723 = vsub.f32 %v6702, %v6722
    %v6724 = vsub.f32 %v6707, %v6722
    %v6725 = vmul.f32 %v6723, 1.442695
    %v6726 = vpow.pop %v6725
    %v6727 = vmul.f32 %v6724, 1.442695
    %v6728 = vpow.pop %v6727
    %6730 = vset.pattern.permute.xlu0 0
    %6731 = vperm.xlu0 %6730, %v6726
    %v6732 = vpop.permute.xlu0 %6731
    %6735 = vset.pattern.permute.xlu0 0
    %6736 = vperm.xlu0 %6735, %v6728
    %v6737 = vpop.permute.xlu0 %6736
    %v6739 = vmul.f32 %v90, %v6732
    %v6740 = vmul.f32 %v91, %v6737
    %6741 = vmatprep.subr.mxu0 0.0
    %6742 = vmatpush1.msra.mxu0 0.0
    %6743 = vmatprep.subr.mxu0 0.0
    %6744 = vmatpush1.msra.mxu0 0.0
    %6745 = vmatprep.subr.mxu0 0.0
    %6746 = vmatpush1.msra.mxu0 0.0
    %6747 = vmatprep.subr.mxu0 0.0
    %6748 = vmatpush1.msra.mxu0 0.0
    %6749 = vmatprep.subr.mxu0 0.0
    %6750 = vmatpush1.msra.mxu0 0.0
    %6751 = vmatprep.subr.mxu0 0.0
    %6752 = vmatpush1.msra.mxu0 0.0
    %6753 = vmatprep.subr.mxu0 0.0
    %6754 = vmatpush1.msra.mxu0 0.0
    %6755 = vmatprep.subr.mxu0 0.0
    %6756 = vmatpush1.msra.mxu0 0.0
    %6757 = vmatprep.subr.mxu0 0.0
    %6758 = vmatpush1.msra.mxu0 0.0
    %6759 = vmatprep.subr.mxu0 0.0
    %6760 = vmatpush1.msra.mxu0 0.0
    %6761 = vmatprep.subr.mxu0 0.0
    %6762 = vmatpush1.msra.mxu0 0.0
    %6763 = vmatprep.subr.mxu0 0.0
    %6764 = vmatpush1.msra.mxu0 0.0
    %6765 = vmatprep.subr.mxu0 0.0
    %6766 = vmatpush1.msra.mxu0 0.0
    %6767 = vmatprep.subr.mxu0 0.0
    %6768 = vmatpush1.msra.mxu0 0.0
    %6769 = vmatprep.subr.mxu0 0.0
    %6770 = vmatpush1.msra.mxu0 %v6740
    %6771 = vmatprep.subr.mxu0 0.0
    %6772 = vmatpush1.msra.mxu0 %v6739
    %6773 = vmatprep.subr.mxu0 0.0
    %6774 = vmatpush2.msra.mxu0 0.0
    %6775 = vmatprep.subr.mxu0 0.0
    %6776 = vmatpush2.msra.mxu0 0.0
    %6777 = vmatprep.subr.mxu0 0.0
    %6778 = vmatpush2.msra.mxu0 0.0
    %6779 = vmatprep.subr.mxu0 0.0
    %6780 = vmatpush2.msra.mxu0 0.0
    %6781 = vmatprep.subr.mxu0 0.0
    %6782 = vmatpush2.msra.mxu0 0.0
    %6783 = vmatprep.subr.mxu0 0.0
    %6784 = vmatpush2.msra.mxu0 0.0
    %6785 = vmatprep.subr.mxu0 0.0
    %6786 = vmatpush2.msra.mxu0 0.0
    %6787 = vmatprep.subr.mxu0 0.0
    %6788 = vmatpush2.msra.mxu0 0.0
    %6789 = vmatprep.subr.mxu0 0.0
    %6790 = vmatpush2.msra.mxu0 0.0
    %6791 = vmatprep.subr.mxu0 0.0
    %6792 = vmatpush2.msra.mxu0 0.0
    %6793 = vmatprep.subr.mxu0 0.0
    %6794 = vmatpush2.msra.mxu0 0.0
    %6795 = vmatprep.subr.mxu0 0.0
    %6796 = vmatpush2.msra.mxu0 0.0
    %6797 = vmatprep.subr.mxu0 0.0
    %6798 = vmatpush2.msra.mxu0 0.0
    %6799 = vmatprep.subr.mxu0 0.0
    %6800 = vmatpush2.msra.mxu0 0.0
    %6801 = vmatprep.subr.mxu0 0.0
    %6802 = vmatpush2.msra.mxu0 0.0
    %6803 = vmatprep.subr.mxu0 0.0
    %6804 = vmatpush2.msra.mxu0 0.0
    %6805 = vmatprep.mubr.f32.mxu0 0.0
    %6806 = vmatmul.mubr.f32.gmra.mxu0 %v404
    %v6807 = vpop.f32.mrf.mxu0
    %v6808 = vadd.f32 0.0, %v6807
    %v6809 = vpop.f32.mrf.mxu0
    %6810 = vdwg.mxu0
    %6811 = vmatprep.subr.mxu0 0.0
    %6812 = vmatpush1.msra.mxu0 0.0
    %6813 = vmatprep.subr.mxu0 0.0
    %6814 = vmatpush1.msra.mxu0 0.0
    %6815 = vmatprep.subr.mxu0 0.0
    %6816 = vmatpush1.msra.mxu0 0.0
    %6817 = vmatprep.subr.mxu0 0.0
    %6818 = vmatpush1.msra.mxu0 0.0
    %6819 = vmatprep.subr.mxu0 0.0
    %6820 = vmatpush1.msra.mxu0 0.0
    %6821 = vmatprep.subr.mxu0 0.0
    %6822 = vmatpush1.msra.mxu0 0.0
    %6823 = vmatprep.subr.mxu0 0.0
    %6824 = vmatpush1.msra.mxu0 0.0
    %6825 = vmatprep.subr.mxu0 0.0
    %6826 = vmatpush1.msra.mxu0 0.0
    %6827 = vmatprep.subr.mxu0 0.0
    %6828 = vmatpush1.msra.mxu0 0.0
    %6829 = vmatprep.subr.mxu0 0.0
    %6830 = vmatpush1.msra.mxu0 0.0
    %6831 = vmatprep.subr.mxu0 0.0
    %6832 = vmatpush1.msra.mxu0 0.0
    %6833 = vmatprep.subr.mxu0 0.0
    %6834 = vmatpush1.msra.mxu0 0.0
    %6835 = vmatprep.subr.mxu0 0.0
    %6836 = vmatpush1.msra.mxu0 0.0
    %6837 = vmatprep.subr.mxu0 0.0
    %6838 = vmatpush1.msra.mxu0 0.0
    %6839 = vmatprep.subr.mxu0 0.0
    %6840 = vmatpush1.msra.mxu0 %v6728
    %6841 = vmatprep.subr.mxu0 0.0
    %6842 = vmatpush1.msra.mxu0 %v6726
    %6843 = vmatprep.subr.mxu0 0.0
    %6844 = vmatpush2.msra.mxu0 0.0
    %6845 = vmatprep.subr.mxu0 0.0
    %6846 = vmatpush2.msra.mxu0 0.0
    %6847 = vmatprep.subr.mxu0 0.0
    %6848 = vmatpush2.msra.mxu0 0.0
    %6849 = vmatprep.subr.mxu0 0.0
    %6850 = vmatpush2.msra.mxu0 0.0
    %6851 = vmatprep.subr.mxu0 0.0
    %6852 = vmatpush2.msra.mxu0 0.0
    %6853 = vmatprep.subr.mxu0 0.0
    %6854 = vmatpush2.msra.mxu0 0.0
    %6855 = vmatprep.subr.mxu0 0.0
    %6856 = vmatpush2.msra.mxu0 0.0
    %6857 = vmatprep.subr.mxu0 0.0
    %6858 = vmatpush2.msra.mxu0 0.0
    %6859 = vmatprep.subr.mxu0 0.0
    %6860 = vmatpush2.msra.mxu0 0.0
    %6861 = vmatprep.subr.mxu0 0.0
    %6862 = vmatpush2.msra.mxu0 0.0
    %6863 = vmatprep.subr.mxu0 0.0
    %6864 = vmatpush2.msra.mxu0 0.0
    %6865 = vmatprep.subr.mxu0 0.0
    %6866 = vmatpush2.msra.mxu0 0.0
    %6867 = vmatprep.subr.mxu0 0.0
    %6868 = vmatpush2.msra.mxu0 0.0
    %6869 = vmatprep.subr.mxu0 0.0
    %6870 = vmatpush2.msra.mxu0 0.0
    %6871 = vmatprep.subr.mxu0 0.0
    %6872 = vmatpush2.msra.mxu0 0.0
    %6873 = vmatprep.subr.mxu0 0.0
    %6874 = vmatpush2.msra.mxu0 0.0
    %6875 = vmatprep.mubr.f32.mxu0 0.0
    %6876 = vmatmul.mubr.f32.gmra.mxu0 %v404
    %v6877 = vpop.f32.mrf.mxu0
    %v6878 = vadd.f32 0.0, %v6877
    %v6879 = vpop.f32.mrf.mxu0
    %6880 = vdwg.mxu0
    %v6882 = vsel %vm96, %v6808, 0
    %6884 = vmatprep.subr.mxu0 0.0
    %6885 = vmatpush1.msra.mxu0 0.0
    %6886 = vmatprep.subr.mxu0 0.0
    %6887 = vmatpush1.msra.mxu0 0.0
    %6888 = vmatprep.subr.mxu0 0.0
    %6889 = vmatpush1.msra.mxu0 0.0
    %6890 = vmatprep.subr.mxu0 0.0
    %6891 = vmatpush1.msra.mxu0 0.0
    %6892 = vmatprep.subr.mxu0 0.0
    %6893 = vmatpush1.msra.mxu0 0.0
    %6894 = vmatprep.subr.mxu0 0.0
    %6895 = vmatpush1.msra.mxu0 0.0
    %6896 = vmatprep.subr.mxu0 0.0
    %6897 = vmatpush1.msra.mxu0 0.0
    %6898 = vmatprep.subr.mxu0 0.0
    %6899 = vmatpush1.msra.mxu0 0.0
    %6900 = vmatprep.subr.mxu0 0.0
    %6901 = vmatpush1.msra.mxu0 0.0
    %6902 = vmatprep.subr.mxu0 0.0
    %6903 = vmatpush1.msra.mxu0 0.0
    %6904 = vmatprep.subr.mxu0 0.0
    %6905 = vmatpush1.msra.mxu0 0.0
    %6906 = vmatprep.subr.mxu0 0.0
    %6907 = vmatpush1.msra.mxu0 0.0
    %6908 = vmatprep.subr.mxu0 0.0
    %6909 = vmatpush1.msra.mxu0 %v190
    %6910 = vmatprep.subr.mxu0 0.0
    %6911 = vmatpush1.msra.mxu0 %v189
    %6912 = vmatprep.subr.mxu0 0.0
    %6913 = vmatpush1.msra.mxu0 %v188
    %6914 = vmatprep.subr.mxu0 0.0
    %6915 = vmatpush1.msra.mxu0 %v187
    %6916 = vmatprep.subr.mxu0 0.0
    %6917 = vmatpush2.msra.mxu0 0.0
    %6918 = vmatprep.subr.mxu0 0.0
    %6919 = vmatpush2.msra.mxu0 0.0
    %6920 = vmatprep.subr.mxu0 0.0
    %6921 = vmatpush2.msra.mxu0 0.0
    %6922 = vmatprep.subr.mxu0 0.0
    %6923 = vmatpush2.msra.mxu0 0.0
    %6924 = vmatprep.subr.mxu0 0.0
    %6925 = vmatpush2.msra.mxu0 0.0
    %6926 = vmatprep.subr.mxu0 0.0
    %6927 = vmatpush2.msra.mxu0 0.0
    %6928 = vmatprep.subr.mxu0 0.0
    %6929 = vmatpush2.msra.mxu0 0.0
    %6930 = vmatprep.subr.mxu0 0.0
    %6931 = vmatpush2.msra.mxu0 0.0
    %6932 = vmatprep.subr.mxu0 0.0
    %6933 = vmatpush2.msra.mxu0 0.0
    %6934 = vmatprep.subr.mxu0 0.0
    %6935 = vmatpush2.msra.mxu0 0.0
    %6936 = vmatprep.subr.mxu0 0.0
    %6937 = vmatpush2.msra.mxu0 0.0
    %6938 = vmatprep.subr.mxu0 0.0
    %6939 = vmatpush2.msra.mxu0 0.0
    %6940 = vmatprep.subr.mxu0 0.0
    %6941 = vmatpush2.msra.mxu0 0.0
    %6942 = vmatprep.subr.mxu0 0.0
    %6943 = vmatpush2.msra.mxu0 0.0
    %6944 = vmatprep.subr.mxu0 0.0
    %6945 = vmatpush2.msra.mxu0 0.0
    %6946 = vmatprep.subr.mxu0 0.0
    %6947 = vmatpush2.msra.mxu0 0.0
    %6948 = vmatprep.mubr.f32.mxu0 0.0
    %6949 = vmatmul.mubr.f32.gmra.mxu0 %v6882
    %v6950 = vpop.f32.mrf.mxu0
    %v6951 = vadd.f32 0.0, %v6950
    %v6952 = vpop.f32.mrf.mxu0
    %6953 = vdwg.mxu0
    %v6954 = vrcp.pop %v6878
    %6956 = vset.pattern.permute.xlu0 0
    %6957 = vperm.xlu0 %6956, %v6954
    %v6958 = vpop.permute.xlu0 %6957
    %v6960 = vmul.f32 %v6951, %v6958
    %v6961 = vadd.f32 %v6960, %v630
    %6962 = vrot.lane.b32.xlu0 %v6612, 96
    %v6963 = vpop.permute.xlu0 %6962
    %v6965 = vadd.f32 %v6961, %v6963
    %v6966 = vxor.u32 %v6965, 2147483648
    %v6967 = vmul.f32 %v6966, 1.442695
    %v6968 = vpow.pop %v6967
    %v6969 = vadd.f32 %v6968, 1.0
    %v6970 = vrcp.pop %v6969
    %v6971 = vmul.f32 1.0, %v6970
    %6972 = vrot.lane.b32.xlu0 %v6612, 32
    %v6973 = vpop.permute.xlu0 %6972
    %v6975 = vmul.f32 %v6971, %v6973
    %6977 = vrot.lane.b32.xlu0 %v6975, 64
    %v6978 = vpop.permute.xlu0 %6977
    %v6980 = vadd.f32 %v6961, %v6978
    %v6981 = vtanh.pop %v6980
    %v6982 = vsub.f32 1.0, %v6971
    %6984 = vrot.lane.b32.xlu0 %v6981, 96
    %v6985 = vpop.permute.xlu0 %6984
    %v6987 = vmul.f32 %v6982, %v6985
    %v6988 = vmul.f32 %v6971, %v6537
    %v6989 = vadd.f32 %v6987, %v6988
    %6991 = vrot.lane.b32.xlu0 %v6989, 96
    %v6992 = vpop.permute.xlu0 %6991
    %6994 = vst.msk [vmem:[#allocation2 + $0x1c] sm:$0x3] %vm665, %v6992
    %v6995 = vsel %vm96, %v6992, 0
    %6997 = vmatprep.subr.mxu0 0.0
    %6998 = vmatpush1.msra.mxu0 0.0
    %6999 = vmatprep.subr.mxu0 0.0
    %7000 = vmatpush1.msra.mxu0 0.0
    %7001 = vmatprep.subr.mxu0 0.0
    %7002 = vmatpush1.msra.mxu0 0.0
    %7003 = vmatprep.subr.mxu0 0.0
    %7004 = vmatpush1.msra.mxu0 0.0
    %7005 = vmatprep.subr.mxu0 0.0
    %7006 = vmatpush1.msra.mxu0 0.0
    %7007 = vmatprep.subr.mxu0 0.0
    %7008 = vmatpush1.msra.mxu0 0.0
    %7009 = vmatprep.subr.mxu0 0.0
    %7010 = vmatpush1.msra.mxu0 0.0
    %7011 = vmatprep.subr.mxu0 0.0
    %7012 = vmatpush1.msra.mxu0 0.0
    %7013 = vmatprep.subr.mxu0 0.0
    %7014 = vmatpush1.msra.mxu0 0.0
    %7015 = vmatprep.subr.mxu0 0.0
    %7016 = vmatpush1.msra.mxu0 0.0
    %7017 = vmatprep.subr.mxu0 0.0
    %7018 = vmatpush1.msra.mxu0 0.0
    %7019 = vmatprep.subr.mxu0 0.0
    %7020 = vmatpush1.msra.mxu0 0.0
    %7021 = vmatprep.subr.mxu0 0.0
    %7022 = vmatpush1.msra.mxu0 %v181
    %7023 = vmatprep.subr.mxu0 0.0
    %7024 = vmatpush1.msra.mxu0 %v180
    %7025 = vmatprep.subr.mxu0 0.0
    %7026 = vmatpush1.msra.mxu0 %v179
    %7027 = vmatprep.subr.mxu0 0.0
    %7028 = vmatpush1.msra.mxu0 %v178
    %7029 = vmatprep.subr.mxu0 0.0
    %7030 = vmatpush2.msra.mxu0 0.0
    %7031 = vmatprep.subr.mxu0 0.0
    %7032 = vmatpush2.msra.mxu0 0.0
    %7033 = vmatprep.subr.mxu0 0.0
    %7034 = vmatpush2.msra.mxu0 0.0
    %7035 = vmatprep.subr.mxu0 0.0
    %7036 = vmatpush2.msra.mxu0 0.0
    %7037 = vmatprep.subr.mxu0 0.0
    %7038 = vmatpush2.msra.mxu0 0.0
    %7039 = vmatprep.subr.mxu0 0.0
    %7040 = vmatpush2.msra.mxu0 0.0
    %7041 = vmatprep.subr.mxu0 0.0
    %7042 = vmatpush2.msra.mxu0 0.0
    %7043 = vmatprep.subr.mxu0 0.0
    %7044 = vmatpush2.msra.mxu0 0.0
    %7045 = vmatprep.subr.mxu0 0.0
    %7046 = vmatpush2.msra.mxu0 0.0
    %7047 = vmatprep.subr.mxu0 0.0
    %7048 = vmatpush2.msra.mxu0 0.0
    %7049 = vmatprep.subr.mxu0 0.0
    %7050 = vmatpush2.msra.mxu0 0.0
    %7051 = vmatprep.subr.mxu0 0.0
    %7052 = vmatpush2.msra.mxu0 0.0
    %7053 = vmatprep.subr.mxu0 0.0
    %7054 = vmatpush2.msra.mxu0 0.0
    %7055 = vmatprep.subr.mxu0 0.0
    %7056 = vmatpush2.msra.mxu0 0.0
    %7057 = vmatprep.subr.mxu0 0.0
    %7058 = vmatpush2.msra.mxu0 0.0
    %7059 = vmatprep.subr.mxu0 0.0
    %7060 = vmatpush2.msra.mxu0 0.0
    %7061 = vmatprep.mubr.f32.mxu0 0.0
    %7062 = vmatmul.mubr.f32.gmra.mxu0 %v6995
    %v7063 = vpop.f32.mrf.mxu0
    %v7064 = vadd.f32 %v197, %v7063
    %v7065 = vpop.f32.mrf.mxu0
    %7066 = vdwg.mxu0
    %v7068 = vrot.slane %v7064, 6
    %v7070 = vrot.slane %v7064, 4
    %v7072 = vrot.slane %v7064, 2
    %v7074 = vsel %vm279, %v7064, %v7068
    %v7075 = vsel %vm281, %v7074, %v7070
    %v7076 = vsel %vm283, %v7075, %v7072
    %v7077 = vadd.f32 %v170, %v7076
    %v7078 = vadd.f32 %v175, %v7076
    %v7079 = vtanh.pop %v7077
    %v7080 = vtanh.pop %v7078
    %v7082 = vsel %vm96, %v7079, 0
    %v7085 = vsel %vm96, %v7080, 0
    %7087 = vmatprep.subr.mxu0 0.0
    %7088 = vmatpush1.msra.mxu0 0.0
    %7089 = vmatprep.subr.mxu0 0.0
    %7090 = vmatpush1.msra.mxu0 0.0
    %7091 = vmatprep.subr.mxu0 0.0
    %7092 = vmatpush1.msra.mxu0 0.0
    %7093 = vmatprep.subr.mxu0 0.0
    %7094 = vmatpush1.msra.mxu0 0.0
    %7095 = vmatprep.subr.mxu0 0.0
    %7096 = vmatpush1.msra.mxu0 0.0
    %7097 = vmatprep.subr.mxu0 0.0
    %7098 = vmatpush1.msra.mxu0 0.0
    %7099 = vmatprep.subr.mxu0 0.0
    %7100 = vmatpush1.msra.mxu0 0.0
    %7101 = vmatprep.subr.mxu0 0.0
    %7102 = vmatpush1.msra.mxu0 0.0
    %7103 = vmatprep.subr.mxu0 0.0
    %7104 = vmatpush1.msra.mxu0 0.0
    %7105 = vmatprep.subr.mxu0 0.0
    %7106 = vmatpush1.msra.mxu0 0.0
    %7107 = vmatprep.subr.mxu0 0.0
    %7108 = vmatpush1.msra.mxu0 0.0
    %7109 = vmatprep.subr.mxu0 0.0
    %7110 = vmatpush1.msra.mxu0 0.0
    %7111 = vmatprep.subr.mxu0 0.0
    %7112 = vmatpush1.msra.mxu0 %v186
    %7113 = vmatprep.subr.mxu0 0.0
    %7114 = vmatpush1.msra.mxu0 %v185
    %7115 = vmatprep.subr.mxu0 0.0
    %7116 = vmatpush1.msra.mxu0 %v184
    %7117 = vmatprep.subr.mxu0 0.0
    %7118 = vmatpush1.msra.mxu0 %v183
    %7119 = vmatprep.subr.mxu0 0.0
    %7120 = vmatpush2.msra.mxu0 0.0
    %7121 = vmatprep.subr.mxu0 0.0
    %7122 = vmatpush2.msra.mxu0 0.0
    %7123 = vmatprep.subr.mxu0 0.0
    %7124 = vmatpush2.msra.mxu0 0.0
    %7125 = vmatprep.subr.mxu0 0.0
    %7126 = vmatpush2.msra.mxu0 0.0
    %7127 = vmatprep.subr.mxu0 0.0
    %7128 = vmatpush2.msra.mxu0 0.0
    %7129 = vmatprep.subr.mxu0 0.0
    %7130 = vmatpush2.msra.mxu0 0.0
    %7131 = vmatprep.subr.mxu0 0.0
    %7132 = vmatpush2.msra.mxu0 0.0
    %7133 = vmatprep.subr.mxu0 0.0
    %7134 = vmatpush2.msra.mxu0 0.0
    %7135 = vmatprep.subr.mxu0 0.0
    %7136 = vmatpush2.msra.mxu0 0.0
    %7137 = vmatprep.subr.mxu0 0.0
    %7138 = vmatpush2.msra.mxu0 0.0
    %7139 = vmatprep.subr.mxu0 0.0
    %7140 = vmatpush2.msra.mxu0 0.0
    %7141 = vmatprep.subr.mxu0 0.0
    %7142 = vmatpush2.msra.mxu0 0.0
    %7143 = vmatprep.subr.mxu0 0.0
    %7144 = vmatpush2.msra.mxu0 0.0
    %7145 = vmatprep.subr.mxu0 0.0
    %7146 = vmatpush2.msra.mxu0 0.0
    %7147 = vmatprep.subr.mxu0 0.0
    %7148 = vmatpush2.msra.mxu0 0.0
    %7149 = vmatprep.subr.mxu0 0.0
    %7150 = vmatpush2.msra.mxu0 0.0
    %7151 = vmatprep.mubr.f32.mxu0 0.0
    %7152 = vmatmul.mubr.f32.gmra.mxu0 %v7082
    %v7153 = vpop.f32.mrf.mxu0
    %v7154 = vadd.f32 0.0, %v7153
    %v7155 = vpop.f32.mrf.mxu0
    %7156 = vmatprep.mubr.f32.mxu0 0.0
    %7157 = vmatmul.mubr.f32.gmra.mxu0 %v7085
    %v7158 = vpop.f32.mrf.mxu0
    %v7159 = vadd.f32 0.0, %v7158
    %v7160 = vpop.f32.mrf.mxu0
    %7161 = vdwg.mxu0
    %v7162 = vsel %vm370, %v7154, -inf
    %v7163 = vsel %vm370, %v7159, -inf
    %v7164 = vmax.f32 %v7162, %v7163
    %7165 = vmax.xlane.f32.xlu0 %v7164
    %v7166 = vpop.xlane.xlu0 %7165
    %v7167 = vrot.slane %v7166, 4
    %v7168 = vmax.f32 %v7166, %v7167
    %v7169 = vrot.slane %v7168, 2
    %v7170 = vmax.f32 %v7168, %v7169
    %v7171 = vrot.slane %v7170, 1
    %v7172 = vmax.f32 %v7170, %v7171
    %s7173 = vtos %v7172
    %v7174 = vstv %s7173
    %v7175 = vsub.f32 %v7154, %v7174
    %v7176 = vsub.f32 %v7159, %v7174
    %v7177 = vmul.f32 %v7175, 1.442695
    %v7178 = vpow.pop %v7177
    %v7179 = vmul.f32 %v7176, 1.442695
    %v7180 = vpow.pop %v7179
    %7182 = vset.pattern.permute.xlu0 0
    %7183 = vperm.xlu0 %7182, %v7178
    %v7184 = vpop.permute.xlu0 %7183
    %7187 = vset.pattern.permute.xlu0 0
    %7188 = vperm.xlu0 %7187, %v7180
    %v7189 = vpop.permute.xlu0 %7188
    %v7191 = vmul.f32 %v90, %v7184
    %v7192 = vmul.f32 %v91, %v7189
    %7193 = vmatprep.subr.mxu0 0.0
    %7194 = vmatpush1.msra.mxu0 0.0
    %7195 = vmatprep.subr.mxu0 0.0
    %7196 = vmatpush1.msra.mxu0 0.0
    %7197 = vmatprep.subr.mxu0 0.0
    %7198 = vmatpush1.msra.mxu0 0.0
    %7199 = vmatprep.subr.mxu0 0.0
    %7200 = vmatpush1.msra.mxu0 0.0
    %7201 = vmatprep.subr.mxu0 0.0
    %7202 = vmatpush1.msra.mxu0 0.0
    %7203 = vmatprep.subr.mxu0 0.0
    %7204 = vmatpush1.msra.mxu0 0.0
    %7205 = vmatprep.subr.mxu0 0.0
    %7206 = vmatpush1.msra.mxu0 0.0
    %7207 = vmatprep.subr.mxu0 0.0
    %7208 = vmatpush1.msra.mxu0 0.0
    %7209 = vmatprep.subr.mxu0 0.0
    %7210 = vmatpush1.msra.mxu0 0.0
    %7211 = vmatprep.subr.mxu0 0.0
    %7212 = vmatpush1.msra.mxu0 0.0
    %7213 = vmatprep.subr.mxu0 0.0
    %7214 = vmatpush1.msra.mxu0 0.0
    %7215 = vmatprep.subr.mxu0 0.0
    %7216 = vmatpush1.msra.mxu0 0.0
    %7217 = vmatprep.subr.mxu0 0.0
    %7218 = vmatpush1.msra.mxu0 0.0
    %7219 = vmatprep.subr.mxu0 0.0
    %7220 = vmatpush1.msra.mxu0 0.0
    %7221 = vmatprep.subr.mxu0 0.0
    %7222 = vmatpush1.msra.mxu0 %v7192
    %7223 = vmatprep.subr.mxu0 0.0
    %7224 = vmatpush1.msra.mxu0 %v7191
    %7225 = vmatprep.subr.mxu0 0.0
    %7226 = vmatpush2.msra.mxu0 0.0
    %7227 = vmatprep.subr.mxu0 0.0
    %7228 = vmatpush2.msra.mxu0 0.0
    %7229 = vmatprep.subr.mxu0 0.0
    %7230 = vmatpush2.msra.mxu0 0.0
    %7231 = vmatprep.subr.mxu0 0.0
    %7232 = vmatpush2.msra.mxu0 0.0
    %7233 = vmatprep.subr.mxu0 0.0
    %7234 = vmatpush2.msra.mxu0 0.0
    %7235 = vmatprep.subr.mxu0 0.0
    %7236 = vmatpush2.msra.mxu0 0.0
    %7237 = vmatprep.subr.mxu0 0.0
    %7238 = vmatpush2.msra.mxu0 0.0
    %7239 = vmatprep.subr.mxu0 0.0
    %7240 = vmatpush2.msra.mxu0 0.0
    %7241 = vmatprep.subr.mxu0 0.0
    %7242 = vmatpush2.msra.mxu0 0.0
    %7243 = vmatprep.subr.mxu0 0.0
    %7244 = vmatpush2.msra.mxu0 0.0
    %7245 = vmatprep.subr.mxu0 0.0
    %7246 = vmatpush2.msra.mxu0 0.0
    %7247 = vmatprep.subr.mxu0 0.0
    %7248 = vmatpush2.msra.mxu0 0.0
    %7249 = vmatprep.subr.mxu0 0.0
    %7250 = vmatpush2.msra.mxu0 0.0
    %7251 = vmatprep.subr.mxu0 0.0
    %7252 = vmatpush2.msra.mxu0 0.0
    %7253 = vmatprep.subr.mxu0 0.0
    %7254 = vmatpush2.msra.mxu0 0.0
    %7255 = vmatprep.subr.mxu0 0.0
    %7256 = vmatpush2.msra.mxu0 0.0
    %7257 = vmatprep.mubr.f32.mxu0 0.0
    %7258 = vmatmul.mubr.f32.gmra.mxu0 %v404
    %v7259 = vpop.f32.mrf.mxu0
    %v7260 = vadd.f32 0.0, %v7259
    %v7261 = vpop.f32.mrf.mxu0
    %7262 = vdwg.mxu0
    %7263 = vmatprep.subr.mxu0 0.0
    %7264 = vmatpush1.msra.mxu0 0.0
    %7265 = vmatprep.subr.mxu0 0.0
    %7266 = vmatpush1.msra.mxu0 0.0
    %7267 = vmatprep.subr.mxu0 0.0
    %7268 = vmatpush1.msra.mxu0 0.0
    %7269 = vmatprep.subr.mxu0 0.0
    %7270 = vmatpush1.msra.mxu0 0.0
    %7271 = vmatprep.subr.mxu0 0.0
    %7272 = vmatpush1.msra.mxu0 0.0
    %7273 = vmatprep.subr.mxu0 0.0
    %7274 = vmatpush1.msra.mxu0 0.0
    %7275 = vmatprep.subr.mxu0 0.0
    %7276 = vmatpush1.msra.mxu0 0.0
    %7277 = vmatprep.subr.mxu0 0.0
    %7278 = vmatpush1.msra.mxu0 0.0
    %7279 = vmatprep.subr.mxu0 0.0
    %7280 = vmatpush1.msra.mxu0 0.0
    %7281 = vmatprep.subr.mxu0 0.0
    %7282 = vmatpush1.msra.mxu0 0.0
    %7283 = vmatprep.subr.mxu0 0.0
    %7284 = vmatpush1.msra.mxu0 0.0
    %7285 = vmatprep.subr.mxu0 0.0
    %7286 = vmatpush1.msra.mxu0 0.0
    %7287 = vmatprep.subr.mxu0 0.0
    %7288 = vmatpush1.msra.mxu0 0.0
    %7289 = vmatprep.subr.mxu0 0.0
    %7290 = vmatpush1.msra.mxu0 0.0
    %7291 = vmatprep.subr.mxu0 0.0
    %7292 = vmatpush1.msra.mxu0 %v7180
    %7293 = vmatprep.subr.mxu0 0.0
    %7294 = vmatpush1.msra.mxu0 %v7178
    %7295 = vmatprep.subr.mxu0 0.0
    %7296 = vmatpush2.msra.mxu0 0.0
    %7297 = vmatprep.subr.mxu0 0.0
    %7298 = vmatpush2.msra.mxu0 0.0
    %7299 = vmatprep.subr.mxu0 0.0
    %7300 = vmatpush2.msra.mxu0 0.0
    %7301 = vmatprep.subr.mxu0 0.0
    %7302 = vmatpush2.msra.mxu0 0.0
    %7303 = vmatprep.subr.mxu0 0.0
    %7304 = vmatpush2.msra.mxu0 0.0
    %7305 = vmatprep.subr.mxu0 0.0
    %7306 = vmatpush2.msra.mxu0 0.0
    %7307 = vmatprep.subr.mxu0 0.0
    %7308 = vmatpush2.msra.mxu0 0.0
    %7309 = vmatprep.subr.mxu0 0.0
    %7310 = vmatpush2.msra.mxu0 0.0
    %7311 = vmatprep.subr.mxu0 0.0
    %7312 = vmatpush2.msra.mxu0 0.0
    %7313 = vmatprep.subr.mxu0 0.0
    %7314 = vmatpush2.msra.mxu0 0.0
    %7315 = vmatprep.subr.mxu0 0.0
    %7316 = vmatpush2.msra.mxu0 0.0
    %7317 = vmatprep.subr.mxu0 0.0
    %7318 = vmatpush2.msra.mxu0 0.0
    %7319 = vmatprep.subr.mxu0 0.0
    %7320 = vmatpush2.msra.mxu0 0.0
    %7321 = vmatprep.subr.mxu0 0.0
    %7322 = vmatpush2.msra.mxu0 0.0
    %7323 = vmatprep.subr.mxu0 0.0
    %7324 = vmatpush2.msra.mxu0 0.0
    %7325 = vmatprep.subr.mxu0 0.0
    %7326 = vmatpush2.msra.mxu0 0.0
    %7327 = vmatprep.mubr.f32.mxu0 0.0
    %7328 = vmatmul.mubr.f32.gmra.mxu0 %v404
    %v7329 = vpop.f32.mrf.mxu0
    %v7330 = vadd.f32 0.0, %v7329
    %v7331 = vpop.f32.mrf.mxu0
    %7332 = vdwg.mxu0
    %v7334 = vsel %vm96, %v7260, 0
    %7336 = vmatprep.subr.mxu0 0.0
    %7337 = vmatpush1.msra.mxu0 0.0
    %7338 = vmatprep.subr.mxu0 0.0
    %7339 = vmatpush1.msra.mxu0 0.0
    %7340 = vmatprep.subr.mxu0 0.0
    %7341 = vmatpush1.msra.mxu0 0.0
    %7342 = vmatprep.subr.mxu0 0.0
    %7343 = vmatpush1.msra.mxu0 0.0
    %7344 = vmatprep.subr.mxu0 0.0
    %7345 = vmatpush1.msra.mxu0 0.0
    %7346 = vmatprep.subr.mxu0 0.0
    %7347 = vmatpush1.msra.mxu0 0.0
    %7348 = vmatprep.subr.mxu0 0.0
    %7349 = vmatpush1.msra.mxu0 0.0
    %7350 = vmatprep.subr.mxu0 0.0
    %7351 = vmatpush1.msra.mxu0 0.0
    %7352 = vmatprep.subr.mxu0 0.0
    %7353 = vmatpush1.msra.mxu0 0.0
    %7354 = vmatprep.subr.mxu0 0.0
    %7355 = vmatpush1.msra.mxu0 0.0
    %7356 = vmatprep.subr.mxu0 0.0
    %7357 = vmatpush1.msra.mxu0 0.0
    %7358 = vmatprep.subr.mxu0 0.0
    %7359 = vmatpush1.msra.mxu0 0.0
    %7360 = vmatprep.subr.mxu0 0.0
    %7361 = vmatpush1.msra.mxu0 %v190
    %7362 = vmatprep.subr.mxu0 0.0
    %7363 = vmatpush1.msra.mxu0 %v189
    %7364 = vmatprep.subr.mxu0 0.0
    %7365 = vmatpush1.msra.mxu0 %v188
    %7366 = vmatprep.subr.mxu0 0.0
    %7367 = vmatpush1.msra.mxu0 %v187
    %7368 = vmatprep.subr.mxu0 0.0
    %7369 = vmatpush2.msra.mxu0 0.0
    %7370 = vmatprep.subr.mxu0 0.0
    %7371 = vmatpush2.msra.mxu0 0.0
    %7372 = vmatprep.subr.mxu0 0.0
    %7373 = vmatpush2.msra.mxu0 0.0
    %7374 = vmatprep.subr.mxu0 0.0
    %7375 = vmatpush2.msra.mxu0 0.0
    %7376 = vmatprep.subr.mxu0 0.0
    %7377 = vmatpush2.msra.mxu0 0.0
    %7378 = vmatprep.subr.mxu0 0.0
    %7379 = vmatpush2.msra.mxu0 0.0
    %7380 = vmatprep.subr.mxu0 0.0
    %7381 = vmatpush2.msra.mxu0 0.0
    %7382 = vmatprep.subr.mxu0 0.0
    %7383 = vmatpush2.msra.mxu0 0.0
    %7384 = vmatprep.subr.mxu0 0.0
    %7385 = vmatpush2.msra.mxu0 0.0
    %7386 = vmatprep.subr.mxu0 0.0
    %7387 = vmatpush2.msra.mxu0 0.0
    %7388 = vmatprep.subr.mxu0 0.0
    %7389 = vmatpush2.msra.mxu0 0.0
    %7390 = vmatprep.subr.mxu0 0.0
    %7391 = vmatpush2.msra.mxu0 0.0
    %7392 = vmatprep.subr.mxu0 0.0
    %7393 = vmatpush2.msra.mxu0 0.0
    %7394 = vmatprep.subr.mxu0 0.0
    %7395 = vmatpush2.msra.mxu0 0.0
    %7396 = vmatprep.subr.mxu0 0.0
    %7397 = vmatpush2.msra.mxu0 0.0
    %7398 = vmatprep.subr.mxu0 0.0
    %7399 = vmatpush2.msra.mxu0 0.0
    %7400 = vmatprep.mubr.f32.mxu0 0.0
    %7401 = vmatmul.mubr.f32.gmra.mxu0 %v7334
    %v7402 = vpop.f32.mrf.mxu0
    %v7403 = vadd.f32 0.0, %v7402
    %v7404 = vpop.f32.mrf.mxu0
    %7405 = vdwg.mxu0
    %v7406 = vrcp.pop %v7330
    %7408 = vset.pattern.permute.xlu0 0
    %7409 = vperm.xlu0 %7408, %v7406
    %v7410 = vpop.permute.xlu0 %7409
    %v7412 = vmul.f32 %v7403, %v7410
    %v7413 = vadd.f32 %v7412, %v630
    %7414 = vrot.lane.b32.xlu0 %v7064, 96
    %v7415 = vpop.permute.xlu0 %7414
    %v7417 = vadd.f32 %v7413, %v7415
    %v7418 = vxor.u32 %v7417, 2147483648
    %v7419 = vmul.f32 %v7418, 1.442695
    %v7420 = vpow.pop %v7419
    %v7421 = vadd.f32 %v7420, 1.0
    %v7422 = vrcp.pop %v7421
    %v7423 = vmul.f32 1.0, %v7422
    %7424 = vrot.lane.b32.xlu0 %v7064, 32
    %v7425 = vpop.permute.xlu0 %7424
    %v7427 = vmul.f32 %v7423, %v7425
    %7429 = vrot.lane.b32.xlu0 %v7427, 64
    %v7430 = vpop.permute.xlu0 %7429
    %v7432 = vadd.f32 %v7413, %v7430
    %v7433 = vtanh.pop %v7432
    %v7434 = vsub.f32 1.0, %v7423
    %7436 = vrot.lane.b32.xlu0 %v7433, 96
    %v7437 = vpop.permute.xlu0 %7436
    %v7439 = vmul.f32 %v7434, %v7437
    %v7440 = vmul.f32 %v7423, %v6989
    %v7441 = vadd.f32 %v7439, %v7440
    %7443 = vrot.lane.b32.xlu0 %v7441, 96
    %v7444 = vpop.permute.xlu0 %7443
    %7446 = vst.msk [vmem:[#allocation2 + $0x1e] sm:$0x3] %vm665, %v7444
    %v7447 = vsel %vm96, %v7444, 0
    %7449 = vmatprep.subr.mxu0 0.0
    %7450 = vmatpush1.msra.mxu0 0.0
    %7451 = vmatprep.subr.mxu0 0.0
    %7452 = vmatpush1.msra.mxu0 0.0
    %7453 = vmatprep.subr.mxu0 0.0
    %7454 = vmatpush1.msra.mxu0 0.0
    %7455 = vmatprep.subr.mxu0 0.0
    %7456 = vmatpush1.msra.mxu0 0.0
    %7457 = vmatprep.subr.mxu0 0.0
    %7458 = vmatpush1.msra.mxu0 0.0
    %7459 = vmatprep.subr.mxu0 0.0
    %7460 = vmatpush1.msra.mxu0 0.0
    %7461 = vmatprep.subr.mxu0 0.0
    %7462 = vmatpush1.msra.mxu0 0.0
    %7463 = vmatprep.subr.mxu0 0.0
    %7464 = vmatpush1.msra.mxu0 0.0
    %7465 = vmatprep.subr.mxu0 0.0
    %7466 = vmatpush1.msra.mxu0 0.0
    %7467 = vmatprep.subr.mxu0 0.0
    %7468 = vmatpush1.msra.mxu0 0.0
    %7469 = vmatprep.subr.mxu0 0.0
    %7470 = vmatpush1.msra.mxu0 0.0
    %7471 = vmatprep.subr.mxu0 0.0
    %7472 = vmatpush1.msra.mxu0 0.0
    %7473 = vmatprep.subr.mxu0 0.0
    %7474 = vmatpush1.msra.mxu0 %v181
    %7475 = vmatprep.subr.mxu0 0.0
    %7476 = vmatpush1.msra.mxu0 %v180
    %7477 = vmatprep.subr.mxu0 0.0
    %7478 = vmatpush1.msra.mxu0 %v179
    %7479 = vmatprep.subr.mxu0 0.0
    %7480 = vmatpush1.msra.mxu0 %v178
    %7481 = vmatprep.subr.mxu0 0.0
    %7482 = vmatpush2.msra.mxu0 0.0
    %7483 = vmatprep.subr.mxu0 0.0
    %7484 = vmatpush2.msra.mxu0 0.0
    %7485 = vmatprep.subr.mxu0 0.0
    %7486 = vmatpush2.msra.mxu0 0.0
    %7487 = vmatprep.subr.mxu0 0.0
    %7488 = vmatpush2.msra.mxu0 0.0
    %7489 = vmatprep.subr.mxu0 0.0
    %7490 = vmatpush2.msra.mxu0 0.0
    %7491 = vmatprep.subr.mxu0 0.0
    %7492 = vmatpush2.msra.mxu0 0.0
    %7493 = vmatprep.subr.mxu0 0.0
    %7494 = vmatpush2.msra.mxu0 0.0
    %7495 = vmatprep.subr.mxu0 0.0
    %7496 = vmatpush2.msra.mxu0 0.0
    %7497 = vmatprep.subr.mxu0 0.0
    %7498 = vmatpush2.msra.mxu0 0.0
    %7499 = vmatprep.subr.mxu0 0.0
    %7500 = vmatpush2.msra.mxu0 0.0
    %7501 = vmatprep.subr.mxu0 0.0
    %7502 = vmatpush2.msra.mxu0 0.0
    %7503 = vmatprep.subr.mxu0 0.0
    %7504 = vmatpush2.msra.mxu0 0.0
    %7505 = vmatprep.subr.mxu0 0.0
    %7506 = vmatpush2.msra.mxu0 0.0
    %7507 = vmatprep.subr.mxu0 0.0
    %7508 = vmatpush2.msra.mxu0 0.0
    %7509 = vmatprep.subr.mxu0 0.0
    %7510 = vmatpush2.msra.mxu0 0.0
    %7511 = vmatprep.subr.mxu0 0.0
    %7512 = vmatpush2.msra.mxu0 0.0
    %7513 = vmatprep.mubr.f32.mxu0 0.0
    %7514 = vmatmul.mubr.f32.gmra.mxu0 %v7447
    %v7515 = vpop.f32.mrf.mxu0
    %v7516 = vadd.f32 %v197, %v7515
    %v7517 = vpop.f32.mrf.mxu0
    %7518 = vdwg.mxu0
    %v7520 = vrot.slane %v7516, 6
    %v7522 = vrot.slane %v7516, 4
    %v7524 = vrot.slane %v7516, 2
    %v7526 = vsel %vm279, %v7516, %v7520
    %v7527 = vsel %vm281, %v7526, %v7522
    %v7528 = vsel %vm283, %v7527, %v7524
    %v7529 = vadd.f32 %v170, %v7528
    %v7530 = vadd.f32 %v175, %v7528
    %v7531 = vtanh.pop %v7529
    %v7532 = vtanh.pop %v7530
    %v7534 = vsel %vm96, %v7531, 0
    %v7537 = vsel %vm96, %v7532, 0
    %7539 = vmatprep.subr.mxu0 0.0
    %7540 = vmatpush1.msra.mxu0 0.0
    %7541 = vmatprep.subr.mxu0 0.0
    %7542 = vmatpush1.msra.mxu0 0.0
    %7543 = vmatprep.subr.mxu0 0.0
    %7544 = vmatpush1.msra.mxu0 0.0
    %7545 = vmatprep.subr.mxu0 0.0
    %7546 = vmatpush1.msra.mxu0 0.0
    %7547 = vmatprep.subr.mxu0 0.0
    %7548 = vmatpush1.msra.mxu0 0.0
    %7549 = vmatprep.subr.mxu0 0.0
    %7550 = vmatpush1.msra.mxu0 0.0
    %7551 = vmatprep.subr.mxu0 0.0
    %7552 = vmatpush1.msra.mxu0 0.0
    %7553 = vmatprep.subr.mxu0 0.0
    %7554 = vmatpush1.msra.mxu0 0.0
    %7555 = vmatprep.subr.mxu0 0.0
    %7556 = vmatpush1.msra.mxu0 0.0
    %7557 = vmatprep.subr.mxu0 0.0
    %7558 = vmatpush1.msra.mxu0 0.0
    %7559 = vmatprep.subr.mxu0 0.0
    %7560 = vmatpush1.msra.mxu0 0.0
    %7561 = vmatprep.subr.mxu0 0.0
    %7562 = vmatpush1.msra.mxu0 0.0
    %7563 = vmatprep.subr.mxu0 0.0
    %7564 = vmatpush1.msra.mxu0 %v186
    %7565 = vmatprep.subr.mxu0 0.0
    %7566 = vmatpush1.msra.mxu0 %v185
    %7567 = vmatprep.subr.mxu0 0.0
    %7568 = vmatpush1.msra.mxu0 %v184
    %7569 = vmatprep.subr.mxu0 0.0
    %7570 = vmatpush1.msra.mxu0 %v183
    %7571 = vmatprep.subr.mxu0 0.0
    %7572 = vmatpush2.msra.mxu0 0.0
    %7573 = vmatprep.subr.mxu0 0.0
    %7574 = vmatpush2.msra.mxu0 0.0
    %7575 = vmatprep.subr.mxu0 0.0
    %7576 = vmatpush2.msra.mxu0 0.0
    %7577 = vmatprep.subr.mxu0 0.0
    %7578 = vmatpush2.msra.mxu0 0.0
    %7579 = vmatprep.subr.mxu0 0.0
    %7580 = vmatpush2.msra.mxu0 0.0
    %7581 = vmatprep.subr.mxu0 0.0
    %7582 = vmatpush2.msra.mxu0 0.0
    %7583 = vmatprep.subr.mxu0 0.0
    %7584 = vmatpush2.msra.mxu0 0.0
    %7585 = vmatprep.subr.mxu0 0.0
    %7586 = vmatpush2.msra.mxu0 0.0
    %7587 = vmatprep.subr.mxu0 0.0
    %7588 = vmatpush2.msra.mxu0 0.0
    %7589 = vmatprep.subr.mxu0 0.0
    %7590 = vmatpush2.msra.mxu0 0.0
    %7591 = vmatprep.subr.mxu0 0.0
    %7592 = vmatpush2.msra.mxu0 0.0
    %7593 = vmatprep.subr.mxu0 0.0
    %7594 = vmatpush2.msra.mxu0 0.0
    %7595 = vmatprep.subr.mxu0 0.0
    %7596 = vmatpush2.msra.mxu0 0.0
    %7597 = vmatprep.subr.mxu0 0.0
    %7598 = vmatpush2.msra.mxu0 0.0
    %7599 = vmatprep.subr.mxu0 0.0
    %7600 = vmatpush2.msra.mxu0 0.0
    %7601 = vmatprep.subr.mxu0 0.0
    %7602 = vmatpush2.msra.mxu0 0.0
    %7603 = vmatprep.mubr.f32.mxu0 0.0
    %7604 = vmatmul.mubr.f32.gmra.mxu0 %v7534
    %v7605 = vpop.f32.mrf.mxu0
    %v7606 = vadd.f32 0.0, %v7605
    %v7607 = vpop.f32.mrf.mxu0
    %7608 = vmatprep.mubr.f32.mxu0 0.0
    %7609 = vmatmul.mubr.f32.gmra.mxu0 %v7537
    %v7610 = vpop.f32.mrf.mxu0
    %v7611 = vadd.f32 0.0, %v7610
    %v7612 = vpop.f32.mrf.mxu0
    %7613 = vdwg.mxu0
    %v7614 = vsel %vm370, %v7606, -inf
    %v7615 = vsel %vm370, %v7611, -inf
    %v7616 = vmax.f32 %v7614, %v7615
    %7617 = vmax.xlane.f32.xlu0 %v7616
    %v7618 = vpop.xlane.xlu0 %7617
    %v7619 = vrot.slane %v7618, 4
    %v7620 = vmax.f32 %v7618, %v7619
    %v7621 = vrot.slane %v7620, 2
    %v7622 = vmax.f32 %v7620, %v7621
    %v7623 = vrot.slane %v7622, 1
    %v7624 = vmax.f32 %v7622, %v7623
    %s7625 = vtos %v7624
    %v7626 = vstv %s7625
    %v7627 = vsub.f32 %v7606, %v7626
    %v7628 = vsub.f32 %v7611, %v7626
    %v7629 = vmul.f32 %v7627, 1.442695
    %v7630 = vpow.pop %v7629
    %v7631 = vmul.f32 %v7628, 1.442695
    %v7632 = vpow.pop %v7631
    %7634 = vset.pattern.permute.xlu0 0
    %7635 = vperm.xlu0 %7634, %v7630
    %v7636 = vpop.permute.xlu0 %7635
    %7639 = vset.pattern.permute.xlu0 0
    %7640 = vperm.xlu0 %7639, %v7632
    %v7641 = vpop.permute.xlu0 %7640
    %v7643 = vmul.f32 %v90, %v7636
    %v7644 = vmul.f32 %v91, %v7641
    %7645 = vmatprep.subr.mxu0 0.0
    %7646 = vmatpush1.msra.mxu0 0.0
    %7647 = vmatprep.subr.mxu0 0.0
    %7648 = vmatpush1.msra.mxu0 0.0
    %7649 = vmatprep.subr.mxu0 0.0
    %7650 = vmatpush1.msra.mxu0 0.0
    %7651 = vmatprep.subr.mxu0 0.0
    %7652 = vmatpush1.msra.mxu0 0.0
    %7653 = vmatprep.subr.mxu0 0.0
    %7654 = vmatpush1.msra.mxu0 0.0
    %7655 = vmatprep.subr.mxu0 0.0
    %7656 = vmatpush1.msra.mxu0 0.0
    %7657 = vmatprep.subr.mxu0 0.0
    %7658 = vmatpush1.msra.mxu0 0.0
    %7659 = vmatprep.subr.mxu0 0.0
    %7660 = vmatpush1.msra.mxu0 0.0
    %7661 = vmatprep.subr.mxu0 0.0
    %7662 = vmatpush1.msra.mxu0 0.0
    %7663 = vmatprep.subr.mxu0 0.0
    %7664 = vmatpush1.msra.mxu0 0.0
    %7665 = vmatprep.subr.mxu0 0.0
    %7666 = vmatpush1.msra.mxu0 0.0
    %7667 = vmatprep.subr.mxu0 0.0
    %7668 = vmatpush1.msra.mxu0 0.0
    %7669 = vmatprep.subr.mxu0 0.0
    %7670 = vmatpush1.msra.mxu0 0.0
    %7671 = vmatprep.subr.mxu0 0.0
    %7672 = vmatpush1.msra.mxu0 0.0
    %7673 = vmatprep.subr.mxu0 0.0
    %7674 = vmatpush1.msra.mxu0 %v7644
    %7675 = vmatprep.subr.mxu0 0.0
    %7676 = vmatpush1.msra.mxu0 %v7643
    %7677 = vmatprep.subr.mxu0 0.0
    %7678 = vmatpush2.msra.mxu0 0.0
    %7679 = vmatprep.subr.mxu0 0.0
    %7680 = vmatpush2.msra.mxu0 0.0
    %7681 = vmatprep.subr.mxu0 0.0
    %7682 = vmatpush2.msra.mxu0 0.0
    %7683 = vmatprep.subr.mxu0 0.0
    %7684 = vmatpush2.msra.mxu0 0.0
    %7685 = vmatprep.subr.mxu0 0.0
    %7686 = vmatpush2.msra.mxu0 0.0
    %7687 = vmatprep.subr.mxu0 0.0
    %7688 = vmatpush2.msra.mxu0 0.0
    %7689 = vmatprep.subr.mxu0 0.0
    %7690 = vmatpush2.msra.mxu0 0.0
    %7691 = vmatprep.subr.mxu0 0.0
    %7692 = vmatpush2.msra.mxu0 0.0
    %7693 = vmatprep.subr.mxu0 0.0
    %7694 = vmatpush2.msra.mxu0 0.0
    %7695 = vmatprep.subr.mxu0 0.0
    %7696 = vmatpush2.msra.mxu0 0.0
    %7697 = vmatprep.subr.mxu0 0.0
    %7698 = vmatpush2.msra.mxu0 0.0
    %7699 = vmatprep.subr.mxu0 0.0
    %7700 = vmatpush2.msra.mxu0 0.0
    %7701 = vmatprep.subr.mxu0 0.0
    %7702 = vmatpush2.msra.mxu0 0.0
    %7703 = vmatprep.subr.mxu0 0.0
    %7704 = vmatpush2.msra.mxu0 0.0
    %7705 = vmatprep.subr.mxu0 0.0
    %7706 = vmatpush2.msra.mxu0 0.0
    %7707 = vmatprep.subr.mxu0 0.0
    %7708 = vmatpush2.msra.mxu0 0.0
    %7709 = vmatprep.mubr.f32.mxu0 0.0
    %7710 = vmatmul.mubr.f32.gmra.mxu0 %v404
    %v7711 = vpop.f32.mrf.mxu0
    %v7712 = vadd.f32 0.0, %v7711
    %v7713 = vpop.f32.mrf.mxu0
    %7714 = vdwg.mxu0
    %7715 = vmatprep.subr.mxu0 0.0
    %7716 = vmatpush1.msra.mxu0 0.0
    %7717 = vmatprep.subr.mxu0 0.0
    %7718 = vmatpush1.msra.mxu0 0.0
    %7719 = vmatprep.subr.mxu0 0.0
    %7720 = vmatpush1.msra.mxu0 0.0
    %7721 = vmatprep.subr.mxu0 0.0
    %7722 = vmatpush1.msra.mxu0 0.0
    %7723 = vmatprep.subr.mxu0 0.0
    %7724 = vmatpush1.msra.mxu0 0.0
    %7725 = vmatprep.subr.mxu0 0.0
    %7726 = vmatpush1.msra.mxu0 0.0
    %7727 = vmatprep.subr.mxu0 0.0
    %7728 = vmatpush1.msra.mxu0 0.0
    %7729 = vmatprep.subr.mxu0 0.0
    %7730 = vmatpush1.msra.mxu0 0.0
    %7731 = vmatprep.subr.mxu0 0.0
    %7732 = vmatpush1.msra.mxu0 0.0
    %7733 = vmatprep.subr.mxu0 0.0
    %7734 = vmatpush1.msra.mxu0 0.0
    %7735 = vmatprep.subr.mxu0 0.0
    %7736 = vmatpush1.msra.mxu0 0.0
    %7737 = vmatprep.subr.mxu0 0.0
    %7738 = vmatpush1.msra.mxu0 0.0
    %7739 = vmatprep.subr.mxu0 0.0
    %7740 = vmatpush1.msra.mxu0 0.0
    %7741 = vmatprep.subr.mxu0 0.0
    %7742 = vmatpush1.msra.mxu0 0.0
    %7743 = vmatprep.subr.mxu0 0.0
    %7744 = vmatpush1.msra.mxu0 %v7632
    %7745 = vmatprep.subr.mxu0 0.0
    %7746 = vmatpush1.msra.mxu0 %v7630
    %7747 = vmatprep.subr.mxu0 0.0
    %7748 = vmatpush2.msra.mxu0 0.0
    %7749 = vmatprep.subr.mxu0 0.0
    %7750 = vmatpush2.msra.mxu0 0.0
    %7751 = vmatprep.subr.mxu0 0.0
    %7752 = vmatpush2.msra.mxu0 0.0
    %7753 = vmatprep.subr.mxu0 0.0
    %7754 = vmatpush2.msra.mxu0 0.0
    %7755 = vmatprep.subr.mxu0 0.0
    %7756 = vmatpush2.msra.mxu0 0.0
    %7757 = vmatprep.subr.mxu0 0.0
    %7758 = vmatpush2.msra.mxu0 0.0
    %7759 = vmatprep.subr.mxu0 0.0
    %7760 = vmatpush2.msra.mxu0 0.0
    %7761 = vmatprep.subr.mxu0 0.0
    %7762 = vmatpush2.msra.mxu0 0.0
    %7763 = vmatprep.subr.mxu0 0.0
    %7764 = vmatpush2.msra.mxu0 0.0
    %7765 = vmatprep.subr.mxu0 0.0
    %7766 = vmatpush2.msra.mxu0 0.0
    %7767 = vmatprep.subr.mxu0 0.0
    %7768 = vmatpush2.msra.mxu0 0.0
    %7769 = vmatprep.subr.mxu0 0.0
    %7770 = vmatpush2.msra.mxu0 0.0
    %7771 = vmatprep.subr.mxu0 0.0
    %7772 = vmatpush2.msra.mxu0 0.0
    %7773 = vmatprep.subr.mxu0 0.0
    %7774 = vmatpush2.msra.mxu0 0.0
    %7775 = vmatprep.subr.mxu0 0.0
    %7776 = vmatpush2.msra.mxu0 0.0
    %7777 = vmatprep.subr.mxu0 0.0
    %7778 = vmatpush2.msra.mxu0 0.0
    %7779 = vmatprep.mubr.f32.mxu0 0.0
    %7780 = vmatmul.mubr.f32.gmra.mxu0 %v404
    %v7781 = vpop.f32.mrf.mxu0
    %v7782 = vadd.f32 0.0, %v7781
    %v7783 = vpop.f32.mrf.mxu0
    %7784 = vdwg.mxu0
    %v7786 = vsel %vm96, %v7712, 0
    %7788 = vmatprep.subr.mxu0 0.0
    %7789 = vmatpush1.msra.mxu0 0.0
    %7790 = vmatprep.subr.mxu0 0.0
    %7791 = vmatpush1.msra.mxu0 0.0
    %7792 = vmatprep.subr.mxu0 0.0
    %7793 = vmatpush1.msra.mxu0 0.0
    %7794 = vmatprep.subr.mxu0 0.0
    %7795 = vmatpush1.msra.mxu0 0.0
    %7796 = vmatprep.subr.mxu0 0.0
    %7797 = vmatpush1.msra.mxu0 0.0
    %7798 = vmatprep.subr.mxu0 0.0
    %7799 = vmatpush1.msra.mxu0 0.0
    %7800 = vmatprep.subr.mxu0 0.0
    %7801 = vmatpush1.msra.mxu0 0.0
    %7802 = vmatprep.subr.mxu0 0.0
    %7803 = vmatpush1.msra.mxu0 0.0
    %7804 = vmatprep.subr.mxu0 0.0
    %7805 = vmatpush1.msra.mxu0 0.0
    %7806 = vmatprep.subr.mxu0 0.0
    %7807 = vmatpush1.msra.mxu0 0.0
    %7808 = vmatprep.subr.mxu0 0.0
    %7809 = vmatpush1.msra.mxu0 0.0
    %7810 = vmatprep.subr.mxu0 0.0
    %7811 = vmatpush1.msra.mxu0 0.0
    %7812 = vmatprep.subr.mxu0 0.0
    %7813 = vmatpush1.msra.mxu0 %v190
    %7814 = vmatprep.subr.mxu0 0.0
    %7815 = vmatpush1.msra.mxu0 %v189
    %7816 = vmatprep.subr.mxu0 0.0
    %7817 = vmatpush1.msra.mxu0 %v188
    %7818 = vmatprep.subr.mxu0 0.0
    %7819 = vmatpush1.msra.mxu0 %v187
    %7820 = vmatprep.subr.mxu0 0.0
    %7821 = vmatpush2.msra.mxu0 0.0
    %7822 = vmatprep.subr.mxu0 0.0
    %7823 = vmatpush2.msra.mxu0 0.0
    %7824 = vmatprep.subr.mxu0 0.0
    %7825 = vmatpush2.msra.mxu0 0.0
    %7826 = vmatprep.subr.mxu0 0.0
    %7827 = vmatpush2.msra.mxu0 0.0
    %7828 = vmatprep.subr.mxu0 0.0
    %7829 = vmatpush2.msra.mxu0 0.0
    %7830 = vmatprep.subr.mxu0 0.0
    %7831 = vmatpush2.msra.mxu0 0.0
    %7832 = vmatprep.subr.mxu0 0.0
    %7833 = vmatpush2.msra.mxu0 0.0
    %7834 = vmatprep.subr.mxu0 0.0
    %7835 = vmatpush2.msra.mxu0 0.0
    %7836 = vmatprep.subr.mxu0 0.0
    %7837 = vmatpush2.msra.mxu0 0.0
    %7838 = vmatprep.subr.mxu0 0.0
    %7839 = vmatpush2.msra.mxu0 0.0
    %7840 = vmatprep.subr.mxu0 0.0
    %7841 = vmatpush2.msra.mxu0 0.0
    %7842 = vmatprep.subr.mxu0 0.0
    %7843 = vmatpush2.msra.mxu0 0.0
    %7844 = vmatprep.subr.mxu0 0.0
    %7845 = vmatpush2.msra.mxu0 0.0
    %7846 = vmatprep.subr.mxu0 0.0
    %7847 = vmatpush2.msra.mxu0 0.0
    %7848 = vmatprep.subr.mxu0 0.0
    %7849 = vmatpush2.msra.mxu0 0.0
    %7850 = vmatprep.subr.mxu0 0.0
    %7851 = vmatpush2.msra.mxu0 0.0
    %7852 = vmatprep.mubr.f32.mxu0 0.0
    %7853 = vmatmul.mubr.f32.gmra.mxu0 %v7786
    %v7854 = vpop.f32.mrf.mxu0
    %v7855 = vadd.f32 0.0, %v7854
    %v7856 = vpop.f32.mrf.mxu0
    %7857 = vdwg.mxu0
    %v7858 = vrcp.pop %v7782
    %7860 = vset.pattern.permute.xlu0 0
    %7861 = vperm.xlu0 %7860, %v7858
    %v7862 = vpop.permute.xlu0 %7861
    %v7864 = vmul.f32 %v7855, %v7862
    %v7865 = vadd.f32 %v7864, %v630
    %7866 = vrot.lane.b32.xlu0 %v7516, 96
    %v7867 = vpop.permute.xlu0 %7866
    %v7869 = vadd.f32 %v7865, %v7867
    %v7870 = vxor.u32 %v7869, 2147483648
    %v7871 = vmul.f32 %v7870, 1.442695
    %v7872 = vpow.pop %v7871
    %v7873 = vadd.f32 %v7872, 1.0
    %v7874 = vrcp.pop %v7873
    %v7875 = vmul.f32 1.0, %v7874
    %7876 = vrot.lane.b32.xlu0 %v7516, 32
    %v7877 = vpop.permute.xlu0 %7876
    %v7879 = vmul.f32 %v7875, %v7877
    %7881 = vrot.lane.b32.xlu0 %v7879, 64
    %v7882 = vpop.permute.xlu0 %7881
    %v7884 = vadd.f32 %v7865, %v7882
    %v7885 = vtanh.pop %v7884
    %v7886 = vsub.f32 1.0, %v7875
    %7888 = vrot.lane.b32.xlu0 %v7885, 96
    %v7889 = vpop.permute.xlu0 %7888
    %v7891 = vmul.f32 %v7886, %v7889
    %v7892 = vmul.f32 %v7875, %v7441
    %v7893 = vadd.f32 %v7891, %v7892
    %7895 = vrot.lane.b32.xlu0 %v7893, 96
    %v7896 = vpop.permute.xlu0 %7895
    %7898 = vst.msk [vmem:[#allocation2 + $0x20] sm:$0x3] %vm665, %v7896
    %v7899 = vsel %vm96, %v7896, 0
    %7901 = vmatprep.subr.mxu0 0.0
    %7902 = vmatpush1.msra.mxu0 0.0
    %7903 = vmatprep.subr.mxu0 0.0
    %7904 = vmatpush1.msra.mxu0 0.0
    %7905 = vmatprep.subr.mxu0 0.0
    %7906 = vmatpush1.msra.mxu0 0.0
    %7907 = vmatprep.subr.mxu0 0.0
    %7908 = vmatpush1.msra.mxu0 0.0
    %7909 = vmatprep.subr.mxu0 0.0
    %7910 = vmatpush1.msra.mxu0 0.0
    %7911 = vmatprep.subr.mxu0 0.0
    %7912 = vmatpush1.msra.mxu0 0.0
    %7913 = vmatprep.subr.mxu0 0.0
    %7914 = vmatpush1.msra.mxu0 0.0
    %7915 = vmatprep.subr.mxu0 0.0
    %7916 = vmatpush1.msra.mxu0 0.0
    %7917 = vmatprep.subr.mxu0 0.0
    %7918 = vmatpush1.msra.mxu0 0.0
    %7919 = vmatprep.subr.mxu0 0.0
    %7920 = vmatpush1.msra.mxu0 0.0
    %7921 = vmatprep.subr.mxu0 0.0
    %7922 = vmatpush1.msra.mxu0 0.0
    %7923 = vmatprep.subr.mxu0 0.0
    %7924 = vmatpush1.msra.mxu0 0.0
    %7925 = vmatprep.subr.mxu0 0.0
    %7926 = vmatpush1.msra.mxu0 %v181
    %7927 = vmatprep.subr.mxu0 0.0
    %7928 = vmatpush1.msra.mxu0 %v180
    %7929 = vmatprep.subr.mxu0 0.0
    %7930 = vmatpush1.msra.mxu0 %v179
    %7931 = vmatprep.subr.mxu0 0.0
    %7932 = vmatpush1.msra.mxu0 %v178
    %7933 = vmatprep.subr.mxu0 0.0
    %7934 = vmatpush2.msra.mxu0 0.0
    %7935 = vmatprep.subr.mxu0 0.0
    %7936 = vmatpush2.msra.mxu0 0.0
    %7937 = vmatprep.subr.mxu0 0.0
    %7938 = vmatpush2.msra.mxu0 0.0
    %7939 = vmatprep.subr.mxu0 0.0
    %7940 = vmatpush2.msra.mxu0 0.0
    %7941 = vmatprep.subr.mxu0 0.0
    %7942 = vmatpush2.msra.mxu0 0.0
    %7943 = vmatprep.subr.mxu0 0.0
    %7944 = vmatpush2.msra.mxu0 0.0
    %7945 = vmatprep.subr.mxu0 0.0
    %7946 = vmatpush2.msra.mxu0 0.0
    %7947 = vmatprep.subr.mxu0 0.0
    %7948 = vmatpush2.msra.mxu0 0.0
    %7949 = vmatprep.subr.mxu0 0.0
    %7950 = vmatpush2.msra.mxu0 0.0
    %7951 = vmatprep.subr.mxu0 0.0
    %7952 = vmatpush2.msra.mxu0 0.0
    %7953 = vmatprep.subr.mxu0 0.0
    %7954 = vmatpush2.msra.mxu0 0.0
    %7955 = vmatprep.subr.mxu0 0.0
    %7956 = vmatpush2.msra.mxu0 0.0
    %7957 = vmatprep.subr.mxu0 0.0
    %7958 = vmatpush2.msra.mxu0 0.0
    %7959 = vmatprep.subr.mxu0 0.0
    %7960 = vmatpush2.msra.mxu0 0.0
    %7961 = vmatprep.subr.mxu0 0.0
    %7962 = vmatpush2.msra.mxu0 0.0
    %7963 = vmatprep.subr.mxu0 0.0
    %7964 = vmatpush2.msra.mxu0 0.0
    %7965 = vmatprep.mubr.f32.mxu0 0.0
    %7966 = vmatmul.mubr.f32.gmra.mxu0 %v7899
    %v7967 = vpop.f32.mrf.mxu0
    %v7968 = vadd.f32 %v197, %v7967
    %v7969 = vpop.f32.mrf.mxu0
    %7970 = vdwg.mxu0
    %v7972 = vrot.slane %v7968, 6
    %v7974 = vrot.slane %v7968, 4
    %v7976 = vrot.slane %v7968, 2
    %v7978 = vsel %vm279, %v7968, %v7972
    %v7979 = vsel %vm281, %v7978, %v7974
    %v7980 = vsel %vm283, %v7979, %v7976
    %v7981 = vadd.f32 %v170, %v7980
    %v7982 = vadd.f32 %v175, %v7980
    %v7983 = vtanh.pop %v7981
    %v7984 = vtanh.pop %v7982
    %v7986 = vsel %vm96, %v7983, 0
    %v7989 = vsel %vm96, %v7984, 0
    %7991 = vmatprep.subr.mxu0 0.0
    %7992 = vmatpush1.msra.mxu0 0.0
    %7993 = vmatprep.subr.mxu0 0.0
    %7994 = vmatpush1.msra.mxu0 0.0
    %7995 = vmatprep.subr.mxu0 0.0
    %7996 = vmatpush1.msra.mxu0 0.0
    %7997 = vmatprep.subr.mxu0 0.0
    %7998 = vmatpush1.msra.mxu0 0.0
    %7999 = vmatprep.subr.mxu0 0.0
    %8000 = vmatpush1.msra.mxu0 0.0
    %8001 = vmatprep.subr.mxu0 0.0
    %8002 = vmatpush1.msra.mxu0 0.0
    %8003 = vmatprep.subr.mxu0 0.0
    %8004 = vmatpush1.msra.mxu0 0.0
    %8005 = vmatprep.subr.mxu0 0.0
    %8006 = vmatpush1.msra.mxu0 0.0
    %8007 = vmatprep.subr.mxu0 0.0
    %8008 = vmatpush1.msra.mxu0 0.0
    %8009 = vmatprep.subr.mxu0 0.0
    %8010 = vmatpush1.msra.mxu0 0.0
    %8011 = vmatprep.subr.mxu0 0.0
    %8012 = vmatpush1.msra.mxu0 0.0
    %8013 = vmatprep.subr.mxu0 0.0
    %8014 = vmatpush1.msra.mxu0 0.0
    %8015 = vmatprep.subr.mxu0 0.0
    %8016 = vmatpush1.msra.mxu0 %v186
    %8017 = vmatprep.subr.mxu0 0.0
    %8018 = vmatpush1.msra.mxu0 %v185
    %8019 = vmatprep.subr.mxu0 0.0
    %8020 = vmatpush1.msra.mxu0 %v184
    %8021 = vmatprep.subr.mxu0 0.0
    %8022 = vmatpush1.msra.mxu0 %v183
    %8023 = vmatprep.subr.mxu0 0.0
    %8024 = vmatpush2.msra.mxu0 0.0
    %8025 = vmatprep.subr.mxu0 0.0
    %8026 = vmatpush2.msra.mxu0 0.0
    %8027 = vmatprep.subr.mxu0 0.0
    %8028 = vmatpush2.msra.mxu0 0.0
    %8029 = vmatprep.subr.mxu0 0.0
    %8030 = vmatpush2.msra.mxu0 0.0
    %8031 = vmatprep.subr.mxu0 0.0
    %8032 = vmatpush2.msra.mxu0 0.0
    %8033 = vmatprep.subr.mxu0 0.0
    %8034 = vmatpush2.msra.mxu0 0.0
    %8035 = vmatprep.subr.mxu0 0.0
    %8036 = vmatpush2.msra.mxu0 0.0
    %8037 = vmatprep.subr.mxu0 0.0
    %8038 = vmatpush2.msra.mxu0 0.0
    %8039 = vmatprep.subr.mxu0 0.0
    %8040 = vmatpush2.msra.mxu0 0.0
    %8041 = vmatprep.subr.mxu0 0.0
    %8042 = vmatpush2.msra.mxu0 0.0
    %8043 = vmatprep.subr.mxu0 0.0
    %8044 = vmatpush2.msra.mxu0 0.0
    %8045 = vmatprep.subr.mxu0 0.0
    %8046 = vmatpush2.msra.mxu0 0.0
    %8047 = vmatprep.subr.mxu0 0.0
    %8048 = vmatpush2.msra.mxu0 0.0
    %8049 = vmatprep.subr.mxu0 0.0
    %8050 = vmatpush2.msra.mxu0 0.0
    %8051 = vmatprep.subr.mxu0 0.0
    %8052 = vmatpush2.msra.mxu0 0.0
    %8053 = vmatprep.subr.mxu0 0.0
    %8054 = vmatpush2.msra.mxu0 0.0
    %8055 = vmatprep.mubr.f32.mxu0 0.0
    %8056 = vmatmul.mubr.f32.gmra.mxu0 %v7986
    %v8057 = vpop.f32.mrf.mxu0
    %v8058 = vadd.f32 0.0, %v8057
    %v8059 = vpop.f32.mrf.mxu0
    %8060 = vmatprep.mubr.f32.mxu0 0.0
    %8061 = vmatmul.mubr.f32.gmra.mxu0 %v7989
    %v8062 = vpop.f32.mrf.mxu0
    %v8063 = vadd.f32 0.0, %v8062
    %v8064 = vpop.f32.mrf.mxu0
    %8065 = vdwg.mxu0
    %v8066 = vsel %vm370, %v8058, -inf
    %v8067 = vsel %vm370, %v8063, -inf
    %v8068 = vmax.f32 %v8066, %v8067
    %8069 = vmax.xlane.f32.xlu0 %v8068
    %v8070 = vpop.xlane.xlu0 %8069
    %v8071 = vrot.slane %v8070, 4
    %v8072 = vmax.f32 %v8070, %v8071
    %v8073 = vrot.slane %v8072, 2
    %v8074 = vmax.f32 %v8072, %v8073
    %v8075 = vrot.slane %v8074, 1
    %v8076 = vmax.f32 %v8074, %v8075
    %s8077 = vtos %v8076
    %v8078 = vstv %s8077
    %v8079 = vsub.f32 %v8058, %v8078
    %v8080 = vsub.f32 %v8063, %v8078
    %v8081 = vmul.f32 %v8079, 1.442695
    %v8082 = vpow.pop %v8081
    %v8083 = vmul.f32 %v8080, 1.442695
    %v8084 = vpow.pop %v8083
    %8086 = vset.pattern.permute.xlu0 0
    %8087 = vperm.xlu0 %8086, %v8082
    %v8088 = vpop.permute.xlu0 %8087
    %8091 = vset.pattern.permute.xlu0 0
    %8092 = vperm.xlu0 %8091, %v8084
    %v8093 = vpop.permute.xlu0 %8092
    %v8095 = vmul.f32 %v90, %v8088
    %v8096 = vmul.f32 %v91, %v8093
    %8097 = vmatprep.subr.mxu0 0.0
    %8098 = vmatpush1.msra.mxu0 0.0
    %8099 = vmatprep.subr.mxu0 0.0
    %8100 = vmatpush1.msra.mxu0 0.0
    %8101 = vmatprep.subr.mxu0 0.0
    %8102 = vmatpush1.msra.mxu0 0.0
    %8103 = vmatprep.subr.mxu0 0.0
    %8104 = vmatpush1.msra.mxu0 0.0
    %8105 = vmatprep.subr.mxu0 0.0
    %8106 = vmatpush1.msra.mxu0 0.0
    %8107 = vmatprep.subr.mxu0 0.0
    %8108 = vmatpush1.msra.mxu0 0.0
    %8109 = vmatprep.subr.mxu0 0.0
    %8110 = vmatpush1.msra.mxu0 0.0
    %8111 = vmatprep.subr.mxu0 0.0
    %8112 = vmatpush1.msra.mxu0 0.0
    %8113 = vmatprep.subr.mxu0 0.0
    %8114 = vmatpush1.msra.mxu0 0.0
    %8115 = vmatprep.subr.mxu0 0.0
    %8116 = vmatpush1.msra.mxu0 0.0
    %8117 = vmatprep.subr.mxu0 0.0
    %8118 = vmatpush1.msra.mxu0 0.0
    %8119 = vmatprep.subr.mxu0 0.0
    %8120 = vmatpush1.msra.mxu0 0.0
    %8121 = vmatprep.subr.mxu0 0.0
    %8122 = vmatpush1.msra.mxu0 0.0
    %8123 = vmatprep.subr.mxu0 0.0
    %8124 = vmatpush1.msra.mxu0 0.0
    %8125 = vmatprep.subr.mxu0 0.0
    %8126 = vmatpush1.msra.mxu0 %v8096
    %8127 = vmatprep.subr.mxu0 0.0
    %8128 = vmatpush1.msra.mxu0 %v8095
    %8129 = vmatprep.subr.mxu0 0.0
    %8130 = vmatpush2.msra.mxu0 0.0
    %8131 = vmatprep.subr.mxu0 0.0
    %8132 = vmatpush2.msra.mxu0 0.0
    %8133 = vmatprep.subr.mxu0 0.0
    %8134 = vmatpush2.msra.mxu0 0.0
    %8135 = vmatprep.subr.mxu0 0.0
    %8136 = vmatpush2.msra.mxu0 0.0
    %8137 = vmatprep.subr.mxu0 0.0
    %8138 = vmatpush2.msra.mxu0 0.0
    %8139 = vmatprep.subr.mxu0 0.0
    %8140 = vmatpush2.msra.mxu0 0.0
    %8141 = vmatprep.subr.mxu0 0.0
    %8142 = vmatpush2.msra.mxu0 0.0
    %8143 = vmatprep.subr.mxu0 0.0
    %8144 = vmatpush2.msra.mxu0 0.0
    %8145 = vmatprep.subr.mxu0 0.0
    %8146 = vmatpush2.msra.mxu0 0.0
    %8147 = vmatprep.subr.mxu0 0.0
    %8148 = vmatpush2.msra.mxu0 0.0
    %8149 = vmatprep.subr.mxu0 0.0
    %8150 = vmatpush2.msra.mxu0 0.0
    %8151 = vmatprep.subr.mxu0 0.0
    %8152 = vmatpush2.msra.mxu0 0.0
    %8153 = vmatprep.subr.mxu0 0.0
    %8154 = vmatpush2.msra.mxu0 0.0
    %8155 = vmatprep.subr.mxu0 0.0
    %8156 = vmatpush2.msra.mxu0 0.0
    %8157 = vmatprep.subr.mxu0 0.0
    %8158 = vmatpush2.msra.mxu0 0.0
    %8159 = vmatprep.subr.mxu0 0.0
    %8160 = vmatpush2.msra.mxu0 0.0
    %8161 = vmatprep.mubr.f32.mxu0 0.0
    %8162 = vmatmul.mubr.f32.gmra.mxu0 %v404
    %v8163 = vpop.f32.mrf.mxu0
    %v8164 = vadd.f32 0.0, %v8163
    %v8165 = vpop.f32.mrf.mxu0
    %8166 = vdwg.mxu0
    %8167 = vmatprep.subr.mxu0 0.0
    %8168 = vmatpush1.msra.mxu0 0.0
    %8169 = vmatprep.subr.mxu0 0.0
    %8170 = vmatpush1.msra.mxu0 0.0
    %8171 = vmatprep.subr.mxu0 0.0
    %8172 = vmatpush1.msra.mxu0 0.0
    %8173 = vmatprep.subr.mxu0 0.0
    %8174 = vmatpush1.msra.mxu0 0.0
    %8175 = vmatprep.subr.mxu0 0.0
    %8176 = vmatpush1.msra.mxu0 0.0
    %8177 = vmatprep.subr.mxu0 0.0
    %8178 = vmatpush1.msra.mxu0 0.0
    %8179 = vmatprep.subr.mxu0 0.0
    %8180 = vmatpush1.msra.mxu0 0.0
    %8181 = vmatprep.subr.mxu0 0.0
    %8182 = vmatpush1.msra.mxu0 0.0
    %8183 = vmatprep.subr.mxu0 0.0
    %8184 = vmatpush1.msra.mxu0 0.0
    %8185 = vmatprep.subr.mxu0 0.0
    %8186 = vmatpush1.msra.mxu0 0.0
    %8187 = vmatprep.subr.mxu0 0.0
    %8188 = vmatpush1.msra.mxu0 0.0
    %8189 = vmatprep.subr.mxu0 0.0
    %8190 = vmatpush1.msra.mxu0 0.0
    %8191 = vmatprep.subr.mxu0 0.0
    %8192 = vmatpush1.msra.mxu0 0.0
    %8193 = vmatprep.subr.mxu0 0.0
    %8194 = vmatpush1.msra.mxu0 0.0
    %8195 = vmatprep.subr.mxu0 0.0
    %8196 = vmatpush1.msra.mxu0 %v8084
    %8197 = vmatprep.subr.mxu0 0.0
    %8198 = vmatpush1.msra.mxu0 %v8082
    %8199 = vmatprep.subr.mxu0 0.0
    %8200 = vmatpush2.msra.mxu0 0.0
    %8201 = vmatprep.subr.mxu0 0.0
    %8202 = vmatpush2.msra.mxu0 0.0
    %8203 = vmatprep.subr.mxu0 0.0
    %8204 = vmatpush2.msra.mxu0 0.0
    %8205 = vmatprep.subr.mxu0 0.0
    %8206 = vmatpush2.msra.mxu0 0.0
    %8207 = vmatprep.subr.mxu0 0.0
    %8208 = vmatpush2.msra.mxu0 0.0
    %8209 = vmatprep.subr.mxu0 0.0
    %8210 = vmatpush2.msra.mxu0 0.0
    %8211 = vmatprep.subr.mxu0 0.0
    %8212 = vmatpush2.msra.mxu0 0.0
    %8213 = vmatprep.subr.mxu0 0.0
    %8214 = vmatpush2.msra.mxu0 0.0
    %8215 = vmatprep.subr.mxu0 0.0
    %8216 = vmatpush2.msra.mxu0 0.0
    %8217 = vmatprep.subr.mxu0 0.0
    %8218 = vmatpush2.msra.mxu0 0.0
    %8219 = vmatprep.subr.mxu0 0.0
    %8220 = vmatpush2.msra.mxu0 0.0
    %8221 = vmatprep.subr.mxu0 0.0
    %8222 = vmatpush2.msra.mxu0 0.0
    %8223 = vmatprep.subr.mxu0 0.0
    %8224 = vmatpush2.msra.mxu0 0.0
    %8225 = vmatprep.subr.mxu0 0.0
    %8226 = vmatpush2.msra.mxu0 0.0
    %8227 = vmatprep.subr.mxu0 0.0
    %8228 = vmatpush2.msra.mxu0 0.0
    %8229 = vmatprep.subr.mxu0 0.0
    %8230 = vmatpush2.msra.mxu0 0.0
    %8231 = vmatprep.mubr.f32.mxu0 0.0
    %8232 = vmatmul.mubr.f32.gmra.mxu0 %v404
    %v8233 = vpop.f32.mrf.mxu0
    %v8234 = vadd.f32 0.0, %v8233
    %v8235 = vpop.f32.mrf.mxu0
    %8236 = vdwg.mxu0
    %v8238 = vsel %vm96, %v8164, 0
    %8240 = vmatprep.subr.mxu0 0.0
    %8241 = vmatpush1.msra.mxu0 0.0
    %8242 = vmatprep.subr.mxu0 0.0
    %8243 = vmatpush1.msra.mxu0 0.0
    %8244 = vmatprep.subr.mxu0 0.0
    %8245 = vmatpush1.msra.mxu0 0.0
    %8246 = vmatprep.subr.mxu0 0.0
    %8247 = vmatpush1.msra.mxu0 0.0
    %8248 = vmatprep.subr.mxu0 0.0
    %8249 = vmatpush1.msra.mxu0 0.0
    %8250 = vmatprep.subr.mxu0 0.0
    %8251 = vmatpush1.msra.mxu0 0.0
    %8252 = vmatprep.subr.mxu0 0.0
    %8253 = vmatpush1.msra.mxu0 0.0
    %8254 = vmatprep.subr.mxu0 0.0
    %8255 = vmatpush1.msra.mxu0 0.0
    %8256 = vmatprep.subr.mxu0 0.0
    %8257 = vmatpush1.msra.mxu0 0.0
    %8258 = vmatprep.subr.mxu0 0.0
    %8259 = vmatpush1.msra.mxu0 0.0
    %8260 = vmatprep.subr.mxu0 0.0
    %8261 = vmatpush1.msra.mxu0 0.0
    %8262 = vmatprep.subr.mxu0 0.0
    %8263 = vmatpush1.msra.mxu0 0.0
    %8264 = vmatprep.subr.mxu0 0.0
    %8265 = vmatpush1.msra.mxu0 %v190
    %8266 = vmatprep.subr.mxu0 0.0
    %8267 = vmatpush1.msra.mxu0 %v189
    %8268 = vmatprep.subr.mxu0 0.0
    %8269 = vmatpush1.msra.mxu0 %v188
    %8270 = vmatprep.subr.mxu0 0.0
    %8271 = vmatpush1.msra.mxu0 %v187
    %8272 = vmatprep.subr.mxu0 0.0
    %8273 = vmatpush2.msra.mxu0 0.0
    %8274 = vmatprep.subr.mxu0 0.0
    %8275 = vmatpush2.msra.mxu0 0.0
    %8276 = vmatprep.subr.mxu0 0.0
    %8277 = vmatpush2.msra.mxu0 0.0
    %8278 = vmatprep.subr.mxu0 0.0
    %8279 = vmatpush2.msra.mxu0 0.0
    %8280 = vmatprep.subr.mxu0 0.0
    %8281 = vmatpush2.msra.mxu0 0.0
    %8282 = vmatprep.subr.mxu0 0.0
    %8283 = vmatpush2.msra.mxu0 0.0
    %8284 = vmatprep.subr.mxu0 0.0
    %8285 = vmatpush2.msra.mxu0 0.0
    %8286 = vmatprep.subr.mxu0 0.0
    %8287 = vmatpush2.msra.mxu0 0.0
    %8288 = vmatprep.subr.mxu0 0.0
    %8289 = vmatpush2.msra.mxu0 0.0
    %8290 = vmatprep.subr.mxu0 0.0
    %8291 = vmatpush2.msra.mxu0 0.0
    %8292 = vmatprep.subr.mxu0 0.0
    %8293 = vmatpush2.msra.mxu0 0.0
    %8294 = vmatprep.subr.mxu0 0.0
    %8295 = vmatpush2.msra.mxu0 0.0
    %8296 = vmatprep.subr.mxu0 0.0
    %8297 = vmatpush2.msra.mxu0 0.0
    %8298 = vmatprep.subr.mxu0 0.0
    %8299 = vmatpush2.msra.mxu0 0.0
    %8300 = vmatprep.subr.mxu0 0.0
    %8301 = vmatpush2.msra.mxu0 0.0
    %8302 = vmatprep.subr.mxu0 0.0
    %8303 = vmatpush2.msra.mxu0 0.0
    %8304 = vmatprep.mubr.f32.mxu0 0.0
    %8305 = vmatmul.mubr.f32.gmra.mxu0 %v8238
    %v8306 = vpop.f32.mrf.mxu0
    %v8307 = vadd.f32 0.0, %v8306
    %v8308 = vpop.f32.mrf.mxu0
    %8309 = vdwg.mxu0
    %v8310 = vrcp.pop %v8234
    %8312 = vset.pattern.permute.xlu0 0
    %8313 = vperm.xlu0 %8312, %v8310
    %v8314 = vpop.permute.xlu0 %8313
    %v8316 = vmul.f32 %v8307, %v8314
    %v8317 = vadd.f32 %v8316, %v630
    %8318 = vrot.lane.b32.xlu0 %v7968, 96
    %v8319 = vpop.permute.xlu0 %8318
    %v8321 = vadd.f32 %v8317, %v8319
    %v8322 = vxor.u32 %v8321, 2147483648
    %v8323 = vmul.f32 %v8322, 1.442695
    %v8324 = vpow.pop %v8323
    %v8325 = vadd.f32 %v8324, 1.0
    %v8326 = vrcp.pop %v8325
    %v8327 = vmul.f32 1.0, %v8326
    %8328 = vrot.lane.b32.xlu0 %v7968, 32
    %v8329 = vpop.permute.xlu0 %8328
    %v8331 = vmul.f32 %v8327, %v8329
    %8333 = vrot.lane.b32.xlu0 %v8331, 64
    %v8334 = vpop.permute.xlu0 %8333
    %v8336 = vadd.f32 %v8317, %v8334
    %v8337 = vtanh.pop %v8336
    %v8338 = vsub.f32 1.0, %v8327
    %8340 = vrot.lane.b32.xlu0 %v8337, 96
    %v8341 = vpop.permute.xlu0 %8340
    %v8343 = vmul.f32 %v8338, %v8341
    %v8344 = vmul.f32 %v8327, %v7893
    %v8345 = vadd.f32 %v8343, %v8344
    %8347 = vrot.lane.b32.xlu0 %v8345, 96
    %v8348 = vpop.permute.xlu0 %8347
    %8350 = vst.msk [vmem:[#allocation2 + $0x22] sm:$0x3] %vm665, %v8348
    %v8351 = vsel %vm96, %v8348, 0
    %8353 = vmatprep.subr.mxu0 0.0
    %8354 = vmatpush1.msra.mxu0 0.0
    %8355 = vmatprep.subr.mxu0 0.0
    %8356 = vmatpush1.msra.mxu0 0.0
    %8357 = vmatprep.subr.mxu0 0.0
    %8358 = vmatpush1.msra.mxu0 0.0
    %8359 = vmatprep.subr.mxu0 0.0
    %8360 = vmatpush1.msra.mxu0 0.0
    %8361 = vmatprep.subr.mxu0 0.0
    %8362 = vmatpush1.msra.mxu0 0.0
    %8363 = vmatprep.subr.mxu0 0.0
    %8364 = vmatpush1.msra.mxu0 0.0
    %8365 = vmatprep.subr.mxu0 0.0
    %8366 = vmatpush1.msra.mxu0 0.0
    %8367 = vmatprep.subr.mxu0 0.0
    %8368 = vmatpush1.msra.mxu0 0.0
    %8369 = vmatprep.subr.mxu0 0.0
    %8370 = vmatpush1.msra.mxu0 0.0
    %8371 = vmatprep.subr.mxu0 0.0
    %8372 = vmatpush1.msra.mxu0 0.0
    %8373 = vmatprep.subr.mxu0 0.0
    %8374 = vmatpush1.msra.mxu0 0.0
    %8375 = vmatprep.subr.mxu0 0.0
    %8376 = vmatpush1.msra.mxu0 0.0
    %8377 = vmatprep.subr.mxu0 0.0
    %8378 = vmatpush1.msra.mxu0 %v181
    %8379 = vmatprep.subr.mxu0 0.0
    %8380 = vmatpush1.msra.mxu0 %v180
    %8381 = vmatprep.subr.mxu0 0.0
    %8382 = vmatpush1.msra.mxu0 %v179
    %8383 = vmatprep.subr.mxu0 0.0
    %8384 = vmatpush1.msra.mxu0 %v178
    %8385 = vmatprep.subr.mxu0 0.0
    %8386 = vmatpush2.msra.mxu0 0.0
    %8387 = vmatprep.subr.mxu0 0.0
    %8388 = vmatpush2.msra.mxu0 0.0
    %8389 = vmatprep.subr.mxu0 0.0
    %8390 = vmatpush2.msra.mxu0 0.0
    %8391 = vmatprep.subr.mxu0 0.0
    %8392 = vmatpush2.msra.mxu0 0.0
    %8393 = vmatprep.subr.mxu0 0.0
    %8394 = vmatpush2.msra.mxu0 0.0
    %8395 = vmatprep.subr.mxu0 0.0
    %8396 = vmatpush2.msra.mxu0 0.0
    %8397 = vmatprep.subr.mxu0 0.0
    %8398 = vmatpush2.msra.mxu0 0.0
    %8399 = vmatprep.subr.mxu0 0.0
    %8400 = vmatpush2.msra.mxu0 0.0
    %8401 = vmatprep.subr.mxu0 0.0
    %8402 = vmatpush2.msra.mxu0 0.0
    %8403 = vmatprep.subr.mxu0 0.0
    %8404 = vmatpush2.msra.mxu0 0.0
    %8405 = vmatprep.subr.mxu0 0.0
    %8406 = vmatpush2.msra.mxu0 0.0
    %8407 = vmatprep.subr.mxu0 0.0
    %8408 = vmatpush2.msra.mxu0 0.0
    %8409 = vmatprep.subr.mxu0 0.0
    %8410 = vmatpush2.msra.mxu0 0.0
    %8411 = vmatprep.subr.mxu0 0.0
    %8412 = vmatpush2.msra.mxu0 0.0
    %8413 = vmatprep.subr.mxu0 0.0
    %8414 = vmatpush2.msra.mxu0 0.0
    %8415 = vmatprep.subr.mxu0 0.0
    %8416 = vmatpush2.msra.mxu0 0.0
    %8417 = vmatprep.mubr.f32.mxu0 0.0
    %8418 = vmatmul.mubr.f32.gmra.mxu0 %v8351
    %v8419 = vpop.f32.mrf.mxu0
    %v8420 = vadd.f32 %v197, %v8419
    %v8421 = vpop.f32.mrf.mxu0
    %8422 = vdwg.mxu0
    %v8424 = vrot.slane %v8420, 6
    %v8426 = vrot.slane %v8420, 4
    %v8428 = vrot.slane %v8420, 2
    %v8430 = vsel %vm279, %v8420, %v8424
    %v8431 = vsel %vm281, %v8430, %v8426
    %v8432 = vsel %vm283, %v8431, %v8428
    %v8433 = vadd.f32 %v170, %v8432
    %v8434 = vadd.f32 %v175, %v8432
    %v8435 = vtanh.pop %v8433
    %v8436 = vtanh.pop %v8434
    %v8438 = vsel %vm96, %v8435, 0
    %v8441 = vsel %vm96, %v8436, 0
    %8443 = vmatprep.subr.mxu0 0.0
    %8444 = vmatpush1.msra.mxu0 0.0
    %8445 = vmatprep.subr.mxu0 0.0
    %8446 = vmatpush1.msra.mxu0 0.0
    %8447 = vmatprep.subr.mxu0 0.0
    %8448 = vmatpush1.msra.mxu0 0.0
    %8449 = vmatprep.subr.mxu0 0.0
    %8450 = vmatpush1.msra.mxu0 0.0
    %8451 = vmatprep.subr.mxu0 0.0
    %8452 = vmatpush1.msra.mxu0 0.0
    %8453 = vmatprep.subr.mxu0 0.0
    %8454 = vmatpush1.msra.mxu0 0.0
    %8455 = vmatprep.subr.mxu0 0.0
    %8456 = vmatpush1.msra.mxu0 0.0
    %8457 = vmatprep.subr.mxu0 0.0
    %8458 = vmatpush1.msra.mxu0 0.0
    %8459 = vmatprep.subr.mxu0 0.0
    %8460 = vmatpush1.msra.mxu0 0.0
    %8461 = vmatprep.subr.mxu0 0.0
    %8462 = vmatpush1.msra.mxu0 0.0
    %8463 = vmatprep.subr.mxu0 0.0
    %8464 = vmatpush1.msra.mxu0 0.0
    %8465 = vmatprep.subr.mxu0 0.0
    %8466 = vmatpush1.msra.mxu0 0.0
    %8467 = vmatprep.subr.mxu0 0.0
    %8468 = vmatpush1.msra.mxu0 %v186
    %8469 = vmatprep.subr.mxu0 0.0
    %8470 = vmatpush1.msra.mxu0 %v185
    %8471 = vmatprep.subr.mxu0 0.0
    %8472 = vmatpush1.msra.mxu0 %v184
    %8473 = vmatprep.subr.mxu0 0.0
    %8474 = vmatpush1.msra.mxu0 %v183
    %8475 = vmatprep.subr.mxu0 0.0
    %8476 = vmatpush2.msra.mxu0 0.0
    %8477 = vmatprep.subr.mxu0 0.0
    %8478 = vmatpush2.msra.mxu0 0.0
    %8479 = vmatprep.subr.mxu0 0.0
    %8480 = vmatpush2.msra.mxu0 0.0
    %8481 = vmatprep.subr.mxu0 0.0
    %8482 = vmatpush2.msra.mxu0 0.0
    %8483 = vmatprep.subr.mxu0 0.0
    %8484 = vmatpush2.msra.mxu0 0.0
    %8485 = vmatprep.subr.mxu0 0.0
    %8486 = vmatpush2.msra.mxu0 0.0
    %8487 = vmatprep.subr.mxu0 0.0
    %8488 = vmatpush2.msra.mxu0 0.0
    %8489 = vmatprep.subr.mxu0 0.0
    %8490 = vmatpush2.msra.mxu0 0.0
    %8491 = vmatprep.subr.mxu0 0.0
    %8492 = vmatpush2.msra.mxu0 0.0
    %8493 = vmatprep.subr.mxu0 0.0
    %8494 = vmatpush2.msra.mxu0 0.0
    %8495 = vmatprep.subr.mxu0 0.0
    %8496 = vmatpush2.msra.mxu0 0.0
    %8497 = vmatprep.subr.mxu0 0.0
    %8498 = vmatpush2.msra.mxu0 0.0
    %8499 = vmatprep.subr.mxu0 0.0
    %8500 = vmatpush2.msra.mxu0 0.0
    %8501 = vmatprep.subr.mxu0 0.0
    %8502 = vmatpush2.msra.mxu0 0.0
    %8503 = vmatprep.subr.mxu0 0.0
    %8504 = vmatpush2.msra.mxu0 0.0
    %8505 = vmatprep.subr.mxu0 0.0
    %8506 = vmatpush2.msra.mxu0 0.0
    %8507 = vmatprep.mubr.f32.mxu0 0.0
    %8508 = vmatmul.mubr.f32.gmra.mxu0 %v8438
    %v8509 = vpop.f32.mrf.mxu0
    %v8510 = vadd.f32 0.0, %v8509
    %v8511 = vpop.f32.mrf.mxu0
    %8512 = vmatprep.mubr.f32.mxu0 0.0
    %8513 = vmatmul.mubr.f32.gmra.mxu0 %v8441
    %v8514 = vpop.f32.mrf.mxu0
    %v8515 = vadd.f32 0.0, %v8514
    %v8516 = vpop.f32.mrf.mxu0
    %8517 = vdwg.mxu0
    %v8518 = vsel %vm370, %v8510, -inf
    %v8519 = vsel %vm370, %v8515, -inf
    %v8520 = vmax.f32 %v8518, %v8519
    %8521 = vmax.xlane.f32.xlu0 %v8520
    %v8522 = vpop.xlane.xlu0 %8521
    %v8523 = vrot.slane %v8522, 4
    %v8524 = vmax.f32 %v8522, %v8523
    %v8525 = vrot.slane %v8524, 2
    %v8526 = vmax.f32 %v8524, %v8525
    %v8527 = vrot.slane %v8526, 1
    %v8528 = vmax.f32 %v8526, %v8527
    %s8529 = vtos %v8528
    %v8530 = vstv %s8529
    %v8531 = vsub.f32 %v8510, %v8530
    %v8532 = vsub.f32 %v8515, %v8530
    %v8533 = vmul.f32 %v8531, 1.442695
    %v8534 = vpow.pop %v8533
    %v8535 = vmul.f32 %v8532, 1.442695
    %v8536 = vpow.pop %v8535
    %8538 = vset.pattern.permute.xlu0 0
    %8539 = vperm.xlu0 %8538, %v8534
    %v8540 = vpop.permute.xlu0 %8539
    %8543 = vset.pattern.permute.xlu0 0
    %8544 = vperm.xlu0 %8543, %v8536
    %v8545 = vpop.permute.xlu0 %8544
    %v8547 = vmul.f32 %v90, %v8540
    %v8548 = vmul.f32 %v91, %v8545
    %8549 = vmatprep.subr.mxu0 0.0
    %8550 = vmatpush1.msra.mxu0 0.0
    %8551 = vmatprep.subr.mxu0 0.0
    %8552 = vmatpush1.msra.mxu0 0.0
    %8553 = vmatprep.subr.mxu0 0.0
    %8554 = vmatpush1.msra.mxu0 0.0
    %8555 = vmatprep.subr.mxu0 0.0
    %8556 = vmatpush1.msra.mxu0 0.0
    %8557 = vmatprep.subr.mxu0 0.0
    %8558 = vmatpush1.msra.mxu0 0.0
    %8559 = vmatprep.subr.mxu0 0.0
    %8560 = vmatpush1.msra.mxu0 0.0
    %8561 = vmatprep.subr.mxu0 0.0
    %8562 = vmatpush1.msra.mxu0 0.0
    %8563 = vmatprep.subr.mxu0 0.0
    %8564 = vmatpush1.msra.mxu0 0.0
    %8565 = vmatprep.subr.mxu0 0.0
    %8566 = vmatpush1.msra.mxu0 0.0
    %8567 = vmatprep.subr.mxu0 0.0
    %8568 = vmatpush1.msra.mxu0 0.0
    %8569 = vmatprep.subr.mxu0 0.0
    %8570 = vmatpush1.msra.mxu0 0.0
    %8571 = vmatprep.subr.mxu0 0.0
    %8572 = vmatpush1.msra.mxu0 0.0
    %8573 = vmatprep.subr.mxu0 0.0
    %8574 = vmatpush1.msra.mxu0 0.0
    %8575 = vmatprep.subr.mxu0 0.0
    %8576 = vmatpush1.msra.mxu0 0.0
    %8577 = vmatprep.subr.mxu0 0.0
    %8578 = vmatpush1.msra.mxu0 %v8548
    %8579 = vmatprep.subr.mxu0 0.0
    %8580 = vmatpush1.msra.mxu0 %v8547
    %8581 = vmatprep.subr.mxu0 0.0
    %8582 = vmatpush2.msra.mxu0 0.0
    %8583 = vmatprep.subr.mxu0 0.0
    %8584 = vmatpush2.msra.mxu0 0.0
    %8585 = vmatprep.subr.mxu0 0.0
    %8586 = vmatpush2.msra.mxu0 0.0
    %8587 = vmatprep.subr.mxu0 0.0
    %8588 = vmatpush2.msra.mxu0 0.0
    %8589 = vmatprep.subr.mxu0 0.0
    %8590 = vmatpush2.msra.mxu0 0.0
    %8591 = vmatprep.subr.mxu0 0.0
    %8592 = vmatpush2.msra.mxu0 0.0
    %8593 = vmatprep.subr.mxu0 0.0
    %8594 = vmatpush2.msra.mxu0 0.0
    %8595 = vmatprep.subr.mxu0 0.0
    %8596 = vmatpush2.msra.mxu0 0.0
    %8597 = vmatprep.subr.mxu0 0.0
    %8598 = vmatpush2.msra.mxu0 0.0
    %8599 = vmatprep.subr.mxu0 0.0
    %8600 = vmatpush2.msra.mxu0 0.0
    %8601 = vmatprep.subr.mxu0 0.0
    %8602 = vmatpush2.msra.mxu0 0.0
    %8603 = vmatprep.subr.mxu0 0.0
    %8604 = vmatpush2.msra.mxu0 0.0
    %8605 = vmatprep.subr.mxu0 0.0
    %8606 = vmatpush2.msra.mxu0 0.0
    %8607 = vmatprep.subr.mxu0 0.0
    %8608 = vmatpush2.msra.mxu0 0.0
    %8609 = vmatprep.subr.mxu0 0.0
    %8610 = vmatpush2.msra.mxu0 0.0
    %8611 = vmatprep.subr.mxu0 0.0
    %8612 = vmatpush2.msra.mxu0 0.0
    %8613 = vmatprep.mubr.f32.mxu0 0.0
    %8614 = vmatmul.mubr.f32.gmra.mxu0 %v404
    %v8615 = vpop.f32.mrf.mxu0
    %v8616 = vadd.f32 0.0, %v8615
    %v8617 = vpop.f32.mrf.mxu0
    %8618 = vdwg.mxu0
    %8619 = vmatprep.subr.mxu0 0.0
    %8620 = vmatpush1.msra.mxu0 0.0
    %8621 = vmatprep.subr.mxu0 0.0
    %8622 = vmatpush1.msra.mxu0 0.0
    %8623 = vmatprep.subr.mxu0 0.0
    %8624 = vmatpush1.msra.mxu0 0.0
    %8625 = vmatprep.subr.mxu0 0.0
    %8626 = vmatpush1.msra.mxu0 0.0
    %8627 = vmatprep.subr.mxu0 0.0
    %8628 = vmatpush1.msra.mxu0 0.0
    %8629 = vmatprep.subr.mxu0 0.0
    %8630 = vmatpush1.msra.mxu0 0.0
    %8631 = vmatprep.subr.mxu0 0.0
    %8632 = vmatpush1.msra.mxu0 0.0
    %8633 = vmatprep.subr.mxu0 0.0
    %8634 = vmatpush1.msra.mxu0 0.0
    %8635 = vmatprep.subr.mxu0 0.0
    %8636 = vmatpush1.msra.mxu0 0.0
    %8637 = vmatprep.subr.mxu0 0.0
    %8638 = vmatpush1.msra.mxu0 0.0
    %8639 = vmatprep.subr.mxu0 0.0
    %8640 = vmatpush1.msra.mxu0 0.0
    %8641 = vmatprep.subr.mxu0 0.0
    %8642 = vmatpush1.msra.mxu0 0.0
    %8643 = vmatprep.subr.mxu0 0.0
    %8644 = vmatpush1.msra.mxu0 0.0
    %8645 = vmatprep.subr.mxu0 0.0
    %8646 = vmatpush1.msra.mxu0 0.0
    %8647 = vmatprep.subr.mxu0 0.0
    %8648 = vmatpush1.msra.mxu0 %v8536
    %8649 = vmatprep.subr.mxu0 0.0
    %8650 = vmatpush1.msra.mxu0 %v8534
    %8651 = vmatprep.subr.mxu0 0.0
    %8652 = vmatpush2.msra.mxu0 0.0
    %8653 = vmatprep.subr.mxu0 0.0
    %8654 = vmatpush2.msra.mxu0 0.0
    %8655 = vmatprep.subr.mxu0 0.0
    %8656 = vmatpush2.msra.mxu0 0.0
    %8657 = vmatprep.subr.mxu0 0.0
    %8658 = vmatpush2.msra.mxu0 0.0
    %8659 = vmatprep.subr.mxu0 0.0
    %8660 = vmatpush2.msra.mxu0 0.0
    %8661 = vmatprep.subr.mxu0 0.0
    %8662 = vmatpush2.msra.mxu0 0.0
    %8663 = vmatprep.subr.mxu0 0.0
    %8664 = vmatpush2.msra.mxu0 0.0
    %8665 = vmatprep.subr.mxu0 0.0
    %8666 = vmatpush2.msra.mxu0 0.0
    %8667 = vmatprep.subr.mxu0 0.0
    %8668 = vmatpush2.msra.mxu0 0.0
    %8669 = vmatprep.subr.mxu0 0.0
    %8670 = vmatpush2.msra.mxu0 0.0
    %8671 = vmatprep.subr.mxu0 0.0
    %8672 = vmatpush2.msra.mxu0 0.0
    %8673 = vmatprep.subr.mxu0 0.0
    %8674 = vmatpush2.msra.mxu0 0.0
    %8675 = vmatprep.subr.mxu0 0.0
    %8676 = vmatpush2.msra.mxu0 0.0
    %8677 = vmatprep.subr.mxu0 0.0
    %8678 = vmatpush2.msra.mxu0 0.0
    %8679 = vmatprep.subr.mxu0 0.0
    %8680 = vmatpush2.msra.mxu0 0.0
    %8681 = vmatprep.subr.mxu0 0.0
    %8682 = vmatpush2.msra.mxu0 0.0
    %8683 = vmatprep.mubr.f32.mxu0 0.0
    %8684 = vmatmul.mubr.f32.gmra.mxu0 %v404
    %v8685 = vpop.f32.mrf.mxu0
    %v8686 = vadd.f32 0.0, %v8685
    %v8687 = vpop.f32.mrf.mxu0
    %8688 = vdwg.mxu0
    %v8690 = vsel %vm96, %v8616, 0
    %8692 = vmatprep.subr.mxu0 0.0
    %8693 = vmatpush1.msra.mxu0 0.0
    %8694 = vmatprep.subr.mxu0 0.0
    %8695 = vmatpush1.msra.mxu0 0.0
    %8696 = vmatprep.subr.mxu0 0.0
    %8697 = vmatpush1.msra.mxu0 0.0
    %8698 = vmatprep.subr.mxu0 0.0
    %8699 = vmatpush1.msra.mxu0 0.0
    %8700 = vmatprep.subr.mxu0 0.0
    %8701 = vmatpush1.msra.mxu0 0.0
    %8702 = vmatprep.subr.mxu0 0.0
    %8703 = vmatpush1.msra.mxu0 0.0
    %8704 = vmatprep.subr.mxu0 0.0
    %8705 = vmatpush1.msra.mxu0 0.0
    %8706 = vmatprep.subr.mxu0 0.0
    %8707 = vmatpush1.msra.mxu0 0.0
    %8708 = vmatprep.subr.mxu0 0.0
    %8709 = vmatpush1.msra.mxu0 0.0
    %8710 = vmatprep.subr.mxu0 0.0
    %8711 = vmatpush1.msra.mxu0 0.0
    %8712 = vmatprep.subr.mxu0 0.0
    %8713 = vmatpush1.msra.mxu0 0.0
    %8714 = vmatprep.subr.mxu0 0.0
    %8715 = vmatpush1.msra.mxu0 0.0
    %8716 = vmatprep.subr.mxu0 0.0
    %8717 = vmatpush1.msra.mxu0 %v190
    %8718 = vmatprep.subr.mxu0 0.0
    %8719 = vmatpush1.msra.mxu0 %v189
    %8720 = vmatprep.subr.mxu0 0.0
    %8721 = vmatpush1.msra.mxu0 %v188
    %8722 = vmatprep.subr.mxu0 0.0
    %8723 = vmatpush1.msra.mxu0 %v187
    %8724 = vmatprep.subr.mxu0 0.0
    %8725 = vmatpush2.msra.mxu0 0.0
    %8726 = vmatprep.subr.mxu0 0.0
    %8727 = vmatpush2.msra.mxu0 0.0
    %8728 = vmatprep.subr.mxu0 0.0
    %8729 = vmatpush2.msra.mxu0 0.0
    %8730 = vmatprep.subr.mxu0 0.0
    %8731 = vmatpush2.msra.mxu0 0.0
    %8732 = vmatprep.subr.mxu0 0.0
    %8733 = vmatpush2.msra.mxu0 0.0
    %8734 = vmatprep.subr.mxu0 0.0
    %8735 = vmatpush2.msra.mxu0 0.0
    %8736 = vmatprep.subr.mxu0 0.0
    %8737 = vmatpush2.msra.mxu0 0.0
    %8738 = vmatprep.subr.mxu0 0.0
    %8739 = vmatpush2.msra.mxu0 0.0
    %8740 = vmatprep.subr.mxu0 0.0
    %8741 = vmatpush2.msra.mxu0 0.0
    %8742 = vmatprep.subr.mxu0 0.0
    %8743 = vmatpush2.msra.mxu0 0.0
    %8744 = vmatprep.subr.mxu0 0.0
    %8745 = vmatpush2.msra.mxu0 0.0
    %8746 = vmatprep.subr.mxu0 0.0
    %8747 = vmatpush2.msra.mxu0 0.0
    %8748 = vmatprep.subr.mxu0 0.0
    %8749 = vmatpush2.msra.mxu0 0.0
    %8750 = vmatprep.subr.mxu0 0.0
    %8751 = vmatpush2.msra.mxu0 0.0
    %8752 = vmatprep.subr.mxu0 0.0
    %8753 = vmatpush2.msra.mxu0 0.0
    %8754 = vmatprep.subr.mxu0 0.0
    %8755 = vmatpush2.msra.mxu0 0.0
    %8756 = vmatprep.mubr.f32.mxu0 0.0
    %8757 = vmatmul.mubr.f32.gmra.mxu0 %v8690
    %v8758 = vpop.f32.mrf.mxu0
    %v8759 = vadd.f32 0.0, %v8758
    %v8760 = vpop.f32.mrf.mxu0
    %8761 = vdwg.mxu0
    %v8762 = vrcp.pop %v8686
    %8764 = vset.pattern.permute.xlu0 0
    %8765 = vperm.xlu0 %8764, %v8762
    %v8766 = vpop.permute.xlu0 %8765
    %v8768 = vmul.f32 %v8759, %v8766
    %v8769 = vadd.f32 %v8768, %v630
    %8770 = vrot.lane.b32.xlu0 %v8420, 96
    %v8771 = vpop.permute.xlu0 %8770
    %v8773 = vadd.f32 %v8769, %v8771
    %v8774 = vxor.u32 %v8773, 2147483648
    %v8775 = vmul.f32 %v8774, 1.442695
    %v8776 = vpow.pop %v8775
    %v8777 = vadd.f32 %v8776, 1.0
    %v8778 = vrcp.pop %v8777
    %v8779 = vmul.f32 1.0, %v8778
    %8780 = vrot.lane.b32.xlu0 %v8420, 32
    %v8781 = vpop.permute.xlu0 %8780
    %v8783 = vmul.f32 %v8779, %v8781
    %8785 = vrot.lane.b32.xlu0 %v8783, 64
    %v8786 = vpop.permute.xlu0 %8785
    %v8788 = vadd.f32 %v8769, %v8786
    %v8789 = vtanh.pop %v8788
    %v8790 = vsub.f32 1.0, %v8779
    %8792 = vrot.lane.b32.xlu0 %v8789, 96
    %v8793 = vpop.permute.xlu0 %8792
    %v8795 = vmul.f32 %v8790, %v8793
    %v8796 = vmul.f32 %v8779, %v8345
    %v8797 = vadd.f32 %v8795, %v8796
    %8799 = vrot.lane.b32.xlu0 %v8797, 96
    %v8800 = vpop.permute.xlu0 %8799
    %8802 = vst.msk [vmem:[#allocation2 + $0x24] sm:$0x3] %vm665, %v8800
    %v8803 = vsel %vm96, %v8800, 0
    %8805 = vmatprep.subr.mxu0 0.0
    %8806 = vmatpush1.msra.mxu0 0.0
    %8807 = vmatprep.subr.mxu0 0.0
    %8808 = vmatpush1.msra.mxu0 0.0
    %8809 = vmatprep.subr.mxu0 0.0
    %8810 = vmatpush1.msra.mxu0 0.0
    %8811 = vmatprep.subr.mxu0 0.0
    %8812 = vmatpush1.msra.mxu0 0.0
    %8813 = vmatprep.subr.mxu0 0.0
    %8814 = vmatpush1.msra.mxu0 0.0
    %8815 = vmatprep.subr.mxu0 0.0
    %8816 = vmatpush1.msra.mxu0 0.0
    %8817 = vmatprep.subr.mxu0 0.0
    %8818 = vmatpush1.msra.mxu0 0.0
    %8819 = vmatprep.subr.mxu0 0.0
    %8820 = vmatpush1.msra.mxu0 0.0
    %8821 = vmatprep.subr.mxu0 0.0
    %8822 = vmatpush1.msra.mxu0 0.0
    %8823 = vmatprep.subr.mxu0 0.0
    %8824 = vmatpush1.msra.mxu0 0.0
    %8825 = vmatprep.subr.mxu0 0.0
    %8826 = vmatpush1.msra.mxu0 0.0
    %8827 = vmatprep.subr.mxu0 0.0
    %8828 = vmatpush1.msra.mxu0 0.0
    %8829 = vmatprep.subr.mxu0 0.0
    %8830 = vmatpush1.msra.mxu0 %v181
    %8831 = vmatprep.subr.mxu0 0.0
    %8832 = vmatpush1.msra.mxu0 %v180
    %8833 = vmatprep.subr.mxu0 0.0
    %8834 = vmatpush1.msra.mxu0 %v179
    %8835 = vmatprep.subr.mxu0 0.0
    %8836 = vmatpush1.msra.mxu0 %v178
    %8837 = vmatprep.subr.mxu0 0.0
    %8838 = vmatpush2.msra.mxu0 0.0
    %8839 = vmatprep.subr.mxu0 0.0
    %8840 = vmatpush2.msra.mxu0 0.0
    %8841 = vmatprep.subr.mxu0 0.0
    %8842 = vmatpush2.msra.mxu0 0.0
    %8843 = vmatprep.subr.mxu0 0.0
    %8844 = vmatpush2.msra.mxu0 0.0
    %8845 = vmatprep.subr.mxu0 0.0
    %8846 = vmatpush2.msra.mxu0 0.0
    %8847 = vmatprep.subr.mxu0 0.0
    %8848 = vmatpush2.msra.mxu0 0.0
    %8849 = vmatprep.subr.mxu0 0.0
    %8850 = vmatpush2.msra.mxu0 0.0
    %8851 = vmatprep.subr.mxu0 0.0
    %8852 = vmatpush2.msra.mxu0 0.0
    %8853 = vmatprep.subr.mxu0 0.0
    %8854 = vmatpush2.msra.mxu0 0.0
    %8855 = vmatprep.subr.mxu0 0.0
    %8856 = vmatpush2.msra.mxu0 0.0
    %8857 = vmatprep.subr.mxu0 0.0
    %8858 = vmatpush2.msra.mxu0 0.0
    %8859 = vmatprep.subr.mxu0 0.0
    %8860 = vmatpush2.msra.mxu0 0.0
    %8861 = vmatprep.subr.mxu0 0.0
    %8862 = vmatpush2.msra.mxu0 0.0
    %8863 = vmatprep.subr.mxu0 0.0
    %8864 = vmatpush2.msra.mxu0 0.0
    %8865 = vmatprep.subr.mxu0 0.0
    %8866 = vmatpush2.msra.mxu0 0.0
    %8867 = vmatprep.subr.mxu0 0.0
    %8868 = vmatpush2.msra.mxu0 0.0
    %8869 = vmatprep.mubr.f32.mxu0 0.0
    %8870 = vmatmul.mubr.f32.gmra.mxu0 %v8803
    %v8871 = vpop.f32.mrf.mxu0
    %v8872 = vadd.f32 %v197, %v8871
    %v8873 = vpop.f32.mrf.mxu0
    %8874 = vdwg.mxu0
    %v8876 = vrot.slane %v8872, 6
    %v8878 = vrot.slane %v8872, 4
    %v8880 = vrot.slane %v8872, 2
    %v8882 = vsel %vm279, %v8872, %v8876
    %v8883 = vsel %vm281, %v8882, %v8878
    %v8884 = vsel %vm283, %v8883, %v8880
    %v8885 = vadd.f32 %v170, %v8884
    %v8886 = vadd.f32 %v175, %v8884
    %v8887 = vtanh.pop %v8885
    %v8888 = vtanh.pop %v8886
    %v8890 = vsel %vm96, %v8887, 0
    %v8893 = vsel %vm96, %v8888, 0
    %8895 = vmatprep.subr.mxu0 0.0
    %8896 = vmatpush1.msra.mxu0 0.0
    %8897 = vmatprep.subr.mxu0 0.0
    %8898 = vmatpush1.msra.mxu0 0.0
    %8899 = vmatprep.subr.mxu0 0.0
    %8900 = vmatpush1.msra.mxu0 0.0
    %8901 = vmatprep.subr.mxu0 0.0
    %8902 = vmatpush1.msra.mxu0 0.0
    %8903 = vmatprep.subr.mxu0 0.0
    %8904 = vmatpush1.msra.mxu0 0.0
    %8905 = vmatprep.subr.mxu0 0.0
    %8906 = vmatpush1.msra.mxu0 0.0
    %8907 = vmatprep.subr.mxu0 0.0
    %8908 = vmatpush1.msra.mxu0 0.0
    %8909 = vmatprep.subr.mxu0 0.0
    %8910 = vmatpush1.msra.mxu0 0.0
    %8911 = vmatprep.subr.mxu0 0.0
    %8912 = vmatpush1.msra.mxu0 0.0
    %8913 = vmatprep.subr.mxu0 0.0
    %8914 = vmatpush1.msra.mxu0 0.0
    %8915 = vmatprep.subr.mxu0 0.0
    %8916 = vmatpush1.msra.mxu0 0.0
    %8917 = vmatprep.subr.mxu0 0.0
    %8918 = vmatpush1.msra.mxu0 0.0
    %8919 = vmatprep.subr.mxu0 0.0
    %8920 = vmatpush1.msra.mxu0 %v186
    %8921 = vmatprep.subr.mxu0 0.0
    %8922 = vmatpush1.msra.mxu0 %v185
    %8923 = vmatprep.subr.mxu0 0.0
    %8924 = vmatpush1.msra.mxu0 %v184
    %8925 = vmatprep.subr.mxu0 0.0
    %8926 = vmatpush1.msra.mxu0 %v183
    %8927 = vmatprep.subr.mxu0 0.0
    %8928 = vmatpush2.msra.mxu0 0.0
    %8929 = vmatprep.subr.mxu0 0.0
    %8930 = vmatpush2.msra.mxu0 0.0
    %8931 = vmatprep.subr.mxu0 0.0
    %8932 = vmatpush2.msra.mxu0 0.0
    %8933 = vmatprep.subr.mxu0 0.0
    %8934 = vmatpush2.msra.mxu0 0.0
    %8935 = vmatprep.subr.mxu0 0.0
    %8936 = vmatpush2.msra.mxu0 0.0
    %8937 = vmatprep.subr.mxu0 0.0
    %8938 = vmatpush2.msra.mxu0 0.0
    %8939 = vmatprep.subr.mxu0 0.0
    %8940 = vmatpush2.msra.mxu0 0.0
    %8941 = vmatprep.subr.mxu0 0.0
    %8942 = vmatpush2.msra.mxu0 0.0
    %8943 = vmatprep.subr.mxu0 0.0
    %8944 = vmatpush2.msra.mxu0 0.0
    %8945 = vmatprep.subr.mxu0 0.0
    %8946 = vmatpush2.msra.mxu0 0.0
    %8947 = vmatprep.subr.mxu0 0.0
    %8948 = vmatpush2.msra.mxu0 0.0
    %8949 = vmatprep.subr.mxu0 0.0
    %8950 = vmatpush2.msra.mxu0 0.0
    %8951 = vmatprep.subr.mxu0 0.0
    %8952 = vmatpush2.msra.mxu0 0.0
    %8953 = vmatprep.subr.mxu0 0.0
    %8954 = vmatpush2.msra.mxu0 0.0
    %8955 = vmatprep.subr.mxu0 0.0
    %8956 = vmatpush2.msra.mxu0 0.0
    %8957 = vmatprep.subr.mxu0 0.0
    %8958 = vmatpush2.msra.mxu0 0.0
    %8959 = vmatprep.mubr.f32.mxu0 0.0
    %8960 = vmatmul.mubr.f32.gmra.mxu0 %v8890
    %v8961 = vpop.f32.mrf.mxu0
    %v8962 = vadd.f32 0.0, %v8961
    %v8963 = vpop.f32.mrf.mxu0
    %8964 = vmatprep.mubr.f32.mxu0 0.0
    %8965 = vmatmul.mubr.f32.gmra.mxu0 %v8893
    %v8966 = vpop.f32.mrf.mxu0
    %v8967 = vadd.f32 0.0, %v8966
    %v8968 = vpop.f32.mrf.mxu0
    %8969 = vdwg.mxu0
    %v8970 = vsel %vm370, %v8962, -inf
    %v8971 = vsel %vm370, %v8967, -inf
    %v8972 = vmax.f32 %v8970, %v8971
    %8973 = vmax.xlane.f32.xlu0 %v8972
    %v8974 = vpop.xlane.xlu0 %8973
    %v8975 = vrot.slane %v8974, 4
    %v8976 = vmax.f32 %v8974, %v8975
    %v8977 = vrot.slane %v8976, 2
    %v8978 = vmax.f32 %v8976, %v8977
    %v8979 = vrot.slane %v8978, 1
    %v8980 = vmax.f32 %v8978, %v8979
    %s8981 = vtos %v8980
    %v8982 = vstv %s8981
    %v8983 = vsub.f32 %v8962, %v8982
    %v8984 = vsub.f32 %v8967, %v8982
    %v8985 = vmul.f32 %v8983, 1.442695
    %v8986 = vpow.pop %v8985
    %v8987 = vmul.f32 %v8984, 1.442695
    %v8988 = vpow.pop %v8987
    %8990 = vset.pattern.permute.xlu0 0
    %8991 = vperm.xlu0 %8990, %v8986
    %v8992 = vpop.permute.xlu0 %8991
    %8995 = vset.pattern.permute.xlu0 0
    %8996 = vperm.xlu0 %8995, %v8988
    %v8997 = vpop.permute.xlu0 %8996
    %v8999 = vmul.f32 %v90, %v8992
    %v9000 = vmul.f32 %v91, %v8997
    %9001 = vmatprep.subr.mxu0 0.0
    %9002 = vmatpush1.msra.mxu0 0.0
    %9003 = vmatprep.subr.mxu0 0.0
    %9004 = vmatpush1.msra.mxu0 0.0
    %9005 = vmatprep.subr.mxu0 0.0
    %9006 = vmatpush1.msra.mxu0 0.0
    %9007 = vmatprep.subr.mxu0 0.0
    %9008 = vmatpush1.msra.mxu0 0.0
    %9009 = vmatprep.subr.mxu0 0.0
    %9010 = vmatpush1.msra.mxu0 0.0
    %9011 = vmatprep.subr.mxu0 0.0
    %9012 = vmatpush1.msra.mxu0 0.0
    %9013 = vmatprep.subr.mxu0 0.0
    %9014 = vmatpush1.msra.mxu0 0.0
    %9015 = vmatprep.subr.mxu0 0.0
    %9016 = vmatpush1.msra.mxu0 0.0
    %9017 = vmatprep.subr.mxu0 0.0
    %9018 = vmatpush1.msra.mxu0 0.0
    %9019 = vmatprep.subr.mxu0 0.0
    %9020 = vmatpush1.msra.mxu0 0.0
    %9021 = vmatprep.subr.mxu0 0.0
    %9022 = vmatpush1.msra.mxu0 0.0
    %9023 = vmatprep.subr.mxu0 0.0
    %9024 = vmatpush1.msra.mxu0 0.0
    %9025 = vmatprep.subr.mxu0 0.0
    %9026 = vmatpush1.msra.mxu0 0.0
    %9027 = vmatprep.subr.mxu0 0.0
    %9028 = vmatpush1.msra.mxu0 0.0
    %9029 = vmatprep.subr.mxu0 0.0
    %9030 = vmatpush1.msra.mxu0 %v9000
    %9031 = vmatprep.subr.mxu0 0.0
    %9032 = vmatpush1.msra.mxu0 %v8999
    %9033 = vmatprep.subr.mxu0 0.0
    %9034 = vmatpush2.msra.mxu0 0.0
    %9035 = vmatprep.subr.mxu0 0.0
    %9036 = vmatpush2.msra.mxu0 0.0
    %9037 = vmatprep.subr.mxu0 0.0
    %9038 = vmatpush2.msra.mxu0 0.0
    %9039 = vmatprep.subr.mxu0 0.0
    %9040 = vmatpush2.msra.mxu0 0.0
    %9041 = vmatprep.subr.mxu0 0.0
    %9042 = vmatpush2.msra.mxu0 0.0
    %9043 = vmatprep.subr.mxu0 0.0
    %9044 = vmatpush2.msra.mxu0 0.0
    %9045 = vmatprep.subr.mxu0 0.0
    %9046 = vmatpush2.msra.mxu0 0.0
    %9047 = vmatprep.subr.mxu0 0.0
    %9048 = vmatpush2.msra.mxu0 0.0
    %9049 = vmatprep.subr.mxu0 0.0
    %9050 = vmatpush2.msra.mxu0 0.0
    %9051 = vmatprep.subr.mxu0 0.0
    %9052 = vmatpush2.msra.mxu0 0.0
    %9053 = vmatprep.subr.mxu0 0.0
    %9054 = vmatpush2.msra.mxu0 0.0
    %9055 = vmatprep.subr.mxu0 0.0
    %9056 = vmatpush2.msra.mxu0 0.0
    %9057 = vmatprep.subr.mxu0 0.0
    %9058 = vmatpush2.msra.mxu0 0.0
    %9059 = vmatprep.subr.mxu0 0.0
    %9060 = vmatpush2.msra.mxu0 0.0
    %9061 = vmatprep.subr.mxu0 0.0
    %9062 = vmatpush2.msra.mxu0 0.0
    %9063 = vmatprep.subr.mxu0 0.0
    %9064 = vmatpush2.msra.mxu0 0.0
    %9065 = vmatprep.mubr.f32.mxu0 0.0
    %9066 = vmatmul.mubr.f32.gmra.mxu0 %v404
    %v9067 = vpop.f32.mrf.mxu0
    %v9068 = vadd.f32 0.0, %v9067
    %v9069 = vpop.f32.mrf.mxu0
    %9070 = vdwg.mxu0
    %9071 = vmatprep.subr.mxu0 0.0
    %9072 = vmatpush1.msra.mxu0 0.0
    %9073 = vmatprep.subr.mxu0 0.0
    %9074 = vmatpush1.msra.mxu0 0.0
    %9075 = vmatprep.subr.mxu0 0.0
    %9076 = vmatpush1.msra.mxu0 0.0
    %9077 = vmatprep.subr.mxu0 0.0
    %9078 = vmatpush1.msra.mxu0 0.0
    %9079 = vmatprep.subr.mxu0 0.0
    %9080 = vmatpush1.msra.mxu0 0.0
    %9081 = vmatprep.subr.mxu0 0.0
    %9082 = vmatpush1.msra.mxu0 0.0
    %9083 = vmatprep.subr.mxu0 0.0
    %9084 = vmatpush1.msra.mxu0 0.0
    %9085 = vmatprep.subr.mxu0 0.0
    %9086 = vmatpush1.msra.mxu0 0.0
    %9087 = vmatprep.subr.mxu0 0.0
    %9088 = vmatpush1.msra.mxu0 0.0
    %9089 = vmatprep.subr.mxu0 0.0
    %9090 = vmatpush1.msra.mxu0 0.0
    %9091 = vmatprep.subr.mxu0 0.0
    %9092 = vmatpush1.msra.mxu0 0.0
    %9093 = vmatprep.subr.mxu0 0.0
    %9094 = vmatpush1.msra.mxu0 0.0
    %9095 = vmatprep.subr.mxu0 0.0
    %9096 = vmatpush1.msra.mxu0 0.0
    %9097 = vmatprep.subr.mxu0 0.0
    %9098 = vmatpush1.msra.mxu0 0.0
    %9099 = vmatprep.subr.mxu0 0.0
    %9100 = vmatpush1.msra.mxu0 %v8988
    %9101 = vmatprep.subr.mxu0 0.0
    %9102 = vmatpush1.msra.mxu0 %v8986
    %9103 = vmatprep.subr.mxu0 0.0
    %9104 = vmatpush2.msra.mxu0 0.0
    %9105 = vmatprep.subr.mxu0 0.0
    %9106 = vmatpush2.msra.mxu0 0.0
    %9107 = vmatprep.subr.mxu0 0.0
    %9108 = vmatpush2.msra.mxu0 0.0
    %9109 = vmatprep.subr.mxu0 0.0
    %9110 = vmatpush2.msra.mxu0 0.0
    %9111 = vmatprep.subr.mxu0 0.0
    %9112 = vmatpush2.msra.mxu0 0.0
    %9113 = vmatprep.subr.mxu0 0.0
    %9114 = vmatpush2.msra.mxu0 0.0
    %9115 = vmatprep.subr.mxu0 0.0
    %9116 = vmatpush2.msra.mxu0 0.0
    %9117 = vmatprep.subr.mxu0 0.0
    %9118 = vmatpush2.msra.mxu0 0.0
    %9119 = vmatprep.subr.mxu0 0.0
    %9120 = vmatpush2.msra.mxu0 0.0
    %9121 = vmatprep.subr.mxu0 0.0
    %9122 = vmatpush2.msra.mxu0 0.0
    %9123 = vmatprep.subr.mxu0 0.0
    %9124 = vmatpush2.msra.mxu0 0.0
    %9125 = vmatprep.subr.mxu0 0.0
    %9126 = vmatpush2.msra.mxu0 0.0
    %9127 = vmatprep.subr.mxu0 0.0
    %9128 = vmatpush2.msra.mxu0 0.0
    %9129 = vmatprep.subr.mxu0 0.0
    %9130 = vmatpush2.msra.mxu0 0.0
    %9131 = vmatprep.subr.mxu0 0.0
    %9132 = vmatpush2.msra.mxu0 0.0
    %9133 = vmatprep.subr.mxu0 0.0
    %9134 = vmatpush2.msra.mxu0 0.0
    %9135 = vmatprep.mubr.f32.mxu0 0.0
    %9136 = vmatmul.mubr.f32.gmra.mxu0 %v404
    %v9137 = vpop.f32.mrf.mxu0
    %v9138 = vadd.f32 0.0, %v9137
    %v9139 = vpop.f32.mrf.mxu0
    %9140 = vdwg.mxu0
    %v9142 = vsel %vm96, %v9068, 0
    %9144 = vmatprep.subr.mxu0 0.0
    %9145 = vmatpush1.msra.mxu0 0.0
    %9146 = vmatprep.subr.mxu0 0.0
    %9147 = vmatpush1.msra.mxu0 0.0
    %9148 = vmatprep.subr.mxu0 0.0
    %9149 = vmatpush1.msra.mxu0 0.0
    %9150 = vmatprep.subr.mxu0 0.0
    %9151 = vmatpush1.msra.mxu0 0.0
    %9152 = vmatprep.subr.mxu0 0.0
    %9153 = vmatpush1.msra.mxu0 0.0
    %9154 = vmatprep.subr.mxu0 0.0
    %9155 = vmatpush1.msra.mxu0 0.0
    %9156 = vmatprep.subr.mxu0 0.0
    %9157 = vmatpush1.msra.mxu0 0.0
    %9158 = vmatprep.subr.mxu0 0.0
    %9159 = vmatpush1.msra.mxu0 0.0
    %9160 = vmatprep.subr.mxu0 0.0
    %9161 = vmatpush1.msra.mxu0 0.0
    %9162 = vmatprep.subr.mxu0 0.0
    %9163 = vmatpush1.msra.mxu0 0.0
    %9164 = vmatprep.subr.mxu0 0.0
    %9165 = vmatpush1.msra.mxu0 0.0
    %9166 = vmatprep.subr.mxu0 0.0
    %9167 = vmatpush1.msra.mxu0 0.0
    %9168 = vmatprep.subr.mxu0 0.0
    %9169 = vmatpush1.msra.mxu0 %v190
    %9170 = vmatprep.subr.mxu0 0.0
    %9171 = vmatpush1.msra.mxu0 %v189
    %9172 = vmatprep.subr.mxu0 0.0
    %9173 = vmatpush1.msra.mxu0 %v188
    %9174 = vmatprep.subr.mxu0 0.0
    %9175 = vmatpush1.msra.mxu0 %v187
    %9176 = vmatprep.subr.mxu0 0.0
    %9177 = vmatpush2.msra.mxu0 0.0
    %9178 = vmatprep.subr.mxu0 0.0
    %9179 = vmatpush2.msra.mxu0 0.0
    %9180 = vmatprep.subr.mxu0 0.0
    %9181 = vmatpush2.msra.mxu0 0.0
    %9182 = vmatprep.subr.mxu0 0.0
    %9183 = vmatpush2.msra.mxu0 0.0
    %9184 = vmatprep.subr.mxu0 0.0
    %9185 = vmatpush2.msra.mxu0 0.0
    %9186 = vmatprep.subr.mxu0 0.0
    %9187 = vmatpush2.msra.mxu0 0.0
    %9188 = vmatprep.subr.mxu0 0.0
    %9189 = vmatpush2.msra.mxu0 0.0
    %9190 = vmatprep.subr.mxu0 0.0
    %9191 = vmatpush2.msra.mxu0 0.0
    %9192 = vmatprep.subr.mxu0 0.0
    %9193 = vmatpush2.msra.mxu0 0.0
    %9194 = vmatprep.subr.mxu0 0.0
    %9195 = vmatpush2.msra.mxu0 0.0
    %9196 = vmatprep.subr.mxu0 0.0
    %9197 = vmatpush2.msra.mxu0 0.0
    %9198 = vmatprep.subr.mxu0 0.0
    %9199 = vmatpush2.msra.mxu0 0.0
    %9200 = vmatprep.subr.mxu0 0.0
    %9201 = vmatpush2.msra.mxu0 0.0
    %9202 = vmatprep.subr.mxu0 0.0
    %9203 = vmatpush2.msra.mxu0 0.0
    %9204 = vmatprep.subr.mxu0 0.0
    %9205 = vmatpush2.msra.mxu0 0.0
    %9206 = vmatprep.subr.mxu0 0.0
    %9207 = vmatpush2.msra.mxu0 0.0
    %9208 = vmatprep.mubr.f32.mxu0 0.0
    %9209 = vmatmul.mubr.f32.gmra.mxu0 %v9142
    %v9210 = vpop.f32.mrf.mxu0
    %v9211 = vadd.f32 0.0, %v9210
    %v9212 = vpop.f32.mrf.mxu0
    %9213 = vdwg.mxu0
    %v9214 = vrcp.pop %v9138
    %9216 = vset.pattern.permute.xlu0 0
    %9217 = vperm.xlu0 %9216, %v9214
    %v9218 = vpop.permute.xlu0 %9217
    %v9220 = vmul.f32 %v9211, %v9218
    %v9221 = vadd.f32 %v9220, %v630
    %9222 = vrot.lane.b32.xlu0 %v8872, 96
    %v9223 = vpop.permute.xlu0 %9222
    %v9225 = vadd.f32 %v9221, %v9223
    %v9226 = vxor.u32 %v9225, 2147483648
    %v9227 = vmul.f32 %v9226, 1.442695
    %v9228 = vpow.pop %v9227
    %v9229 = vadd.f32 %v9228, 1.0
    %v9230 = vrcp.pop %v9229
    %v9231 = vmul.f32 1.0, %v9230
    %9232 = vrot.lane.b32.xlu0 %v8872, 32
    %v9233 = vpop.permute.xlu0 %9232
    %v9235 = vmul.f32 %v9231, %v9233
    %9237 = vrot.lane.b32.xlu0 %v9235, 64
    %v9238 = vpop.permute.xlu0 %9237
    %v9240 = vadd.f32 %v9221, %v9238
    %v9241 = vtanh.pop %v9240
    %v9242 = vsub.f32 1.0, %v9231
    %9244 = vrot.lane.b32.xlu0 %v9241, 96
    %v9245 = vpop.permute.xlu0 %9244
    %v9247 = vmul.f32 %v9242, %v9245
    %v9248 = vmul.f32 %v9231, %v8797
    %v9249 = vadd.f32 %v9247, %v9248
    %9251 = vrot.lane.b32.xlu0 %v9249, 96
    %v9252 = vpop.permute.xlu0 %9251
    %9254 = vst.msk [vmem:[#allocation2 + $0x26] sm:$0x3] %vm665, %v9252
    %v9255 = vld [vmem:[#allocation2] sm:$0xff]
    %v9256 = vld [vmem:[#allocation2 + $0x8] sm:$0xff]
    %v9257 = vld [vmem:[#allocation2 + $0x10] sm:$0xff]
    %v9258 = vld [vmem:[#allocation2 + $0x18] sm:$0xff]
    %v9259 = vld [vmem:[#allocation2 + $0x20] sm:$0xff]
    %v9260 = vld [vmem:[#allocation8] sm:$0xff]
    %v9261 = vld [vmem:[#allocation8 + $0x8] sm:$0xff]
    %v9262 = vld [vmem:[#allocation8 + $0x10] sm:$0xff]
    %v9263 = vld [vmem:[#allocation8 + $0x18] sm:$0xff]
    %v9264 = vld [vmem:[%s8] sm:$0x1]
    %v9266 = vlaneseq
    %v9267 = vshrl.u32 %v9266, 7
    %v9268 = vsub.s32 0, %v9267
    %v9269 = vrot.slane %v9264, %v9268
    %v9272 = vsel %vm96, %v9255, 0
    %v9275 = vsel %vm96, %v9256, 0
    %v9278 = vsel %vm96, %v9257, 0
    %v9281 = vsel %vm96, %v9258, 0
    %v9284 = vsel %vm96, %v9259, 0
    %9286 = vmatprep.subr.mxu0 0.0
    %9287 = vmatpush1.msra.mxu0 0.0
    %9288 = vmatprep.subr.mxu0 0.0
    %9289 = vmatpush1.msra.mxu0 0.0
    %9290 = vmatprep.subr.mxu0 0.0
    %9291 = vmatpush1.msra.mxu0 0.0
    %9292 = vmatprep.subr.mxu0 0.0
    %9293 = vmatpush1.msra.mxu0 0.0
    %9294 = vmatprep.subr.mxu0 0.0
    %9295 = vmatpush1.msra.mxu0 0.0
    %9296 = vmatprep.subr.mxu0 0.0
    %9297 = vmatpush1.msra.mxu0 0.0
    %9298 = vmatprep.subr.mxu0 0.0
    %9299 = vmatpush1.msra.mxu0 0.0
    %9300 = vmatprep.subr.mxu0 0.0
    %9301 = vmatpush1.msra.mxu0 0.0
    %9302 = vmatprep.subr.mxu0 0.0
    %9303 = vmatpush1.msra.mxu0 0.0
    %9304 = vmatprep.subr.mxu0 0.0
    %9305 = vmatpush1.msra.mxu0 0.0
    %9306 = vmatprep.subr.mxu0 0.0
    %9307 = vmatpush1.msra.mxu0 0.0
    %9308 = vmatprep.subr.mxu0 0.0
    %9309 = vmatpush1.msra.mxu0 0.0
    %9310 = vmatprep.subr.mxu0 0.0
    %9311 = vmatpush1.msra.mxu0 %v9263
    %9312 = vmatprep.subr.mxu0 0.0
    %9313 = vmatpush1.msra.mxu0 %v9262
    %9314 = vmatprep.subr.mxu0 0.0
    %9315 = vmatpush1.msra.mxu0 %v9261
    %9316 = vmatprep.subr.mxu0 0.0
    %9317 = vmatpush1.msra.mxu0 %v9260
    %9318 = vmatprep.subr.mxu0 0.0
    %9319 = vmatpush2.msra.mxu0 0.0
    %9320 = vmatprep.subr.mxu0 0.0
    %9321 = vmatpush2.msra.mxu0 0.0
    %9322 = vmatprep.subr.mxu0 0.0
    %9323 = vmatpush2.msra.mxu0 0.0
    %9324 = vmatprep.subr.mxu0 0.0
    %9325 = vmatpush2.msra.mxu0 0.0
    %9326 = vmatprep.subr.mxu0 0.0
    %9327 = vmatpush2.msra.mxu0 0.0
    %9328 = vmatprep.subr.mxu0 0.0
    %9329 = vmatpush2.msra.mxu0 0.0
    %9330 = vmatprep.subr.mxu0 0.0
    %9331 = vmatpush2.msra.mxu0 0.0
    %9332 = vmatprep.subr.mxu0 0.0
    %9333 = vmatpush2.msra.mxu0 0.0
    %9334 = vmatprep.subr.mxu0 0.0
    %9335 = vmatpush2.msra.mxu0 0.0
    %9336 = vmatprep.subr.mxu0 0.0
    %9337 = vmatpush2.msra.mxu0 0.0
    %9338 = vmatprep.subr.mxu0 0.0
    %9339 = vmatpush2.msra.mxu0 0.0
    %9340 = vmatprep.subr.mxu0 0.0
    %9341 = vmatpush2.msra.mxu0 0.0
    %9342 = vmatprep.subr.mxu0 0.0
    %9343 = vmatpush2.msra.mxu0 0.0
    %9344 = vmatprep.subr.mxu0 0.0
    %9345 = vmatpush2.msra.mxu0 0.0
    %9346 = vmatprep.subr.mxu0 0.0
    %9347 = vmatpush2.msra.mxu0 0.0
    %9348 = vmatprep.subr.mxu0 0.0
    %9349 = vmatpush2.msra.mxu0 0.0
    %9350 = vmatprep.mubr.f32.mxu0 0.0
    %9351 = vmatmul.mubr.f32.gmra.mxu0 %v9272
    %v9352 = vpop.f32.mrf.mxu0
    %v9353 = vadd.f32 %v9269, %v9352
    %v9354 = vpop.f32.mrf.mxu0
    %9355 = vmatprep.mubr.f32.mxu0 0.0
    %9356 = vmatmul.mubr.f32.gmra.mxu0 %v9275
    %v9357 = vpop.f32.mrf.mxu0
    %v9358 = vadd.f32 %v9269, %v9357
    %v9359 = vpop.f32.mrf.mxu0
    %9360 = vmatprep.mubr.f32.mxu0 0.0
    %9361 = vmatmul.mubr.f32.gmra.mxu0 %v9278
    %v9362 = vpop.f32.mrf.mxu0
    %v9363 = vadd.f32 %v9269, %v9362
    %v9364 = vpop.f32.mrf.mxu0
    %9365 = vmatprep.mubr.f32.mxu0 0.0
    %9366 = vmatmul.mubr.f32.gmra.mxu0 %v9281
    %v9367 = vpop.f32.mrf.mxu0
    %v9368 = vadd.f32 %v9269, %v9367
    %v9369 = vpop.f32.mrf.mxu0
    %9370 = vmatprep.mubr.f32.mxu0 0.0
    %9371 = vmatmul.mubr.f32.gmra.mxu0 %v9284
    %v9372 = vpop.f32.mrf.mxu0
    %v9373 = vadd.f32 %v9269, %v9372
    %v9374 = vpop.f32.mrf.mxu0
    %9375 = vdwg.mxu0
    %9376 = vst.msk [vmem:[%s10] sm:$0xff] %vm96, %v9353
    %9377 = vst.msk [vmem:[%s10 + $0x8] sm:$0xff] %vm96, %v9358
    %9378 = vst.msk [vmem:[%s10 + $0x10] sm:$0xff] %vm96, %v9363
    %9379 = vst.msk [vmem:[%s10 + $0x18] sm:$0xff] %vm96, %v9368
    %9380 = vst.msk [vmem:[%s10 + $0x20] sm:$0xff] %vm96, %v9373
    // Predicated region
    $region58: #{tpu_custom_call.1} parent=1 // pred_check
      _
    $region59: #{tpu_custom_call.1} parent=1 // pred_check_branch
      %9382 = sbr.rel (0) target = $region61
    $region60: #{tpu_custom_call.1} parent=1 // pred_region
      _
    $region61: #{tpu_custom_call.1} parent=1 // pred_fallthru
      _
    // Predicated region
    $region62: #{tpu_custom_call.1} parent=1 // pred_check
      _
    $region63: #{tpu_custom_call.1} parent=1 // pred_check_branch
      %9384 = sbr.rel (0) target = $region65
    $region64: #{tpu_custom_call.1} parent=1 // pred_region
      _
    $region65: #{tpu_custom_call.1} parent=1 // pred_fallthru
      _
    %9385 = vsyncpa [#allocation4], 1
    %9386 = vsyncpa [#allocation6], 1
    %9387 = vsyncpa [#allocation9], 1

</llo_original>
